<compile_context>
chip_gen: v5e
topology: v5e:2x2
jax: 0.10.0
libtpu: 0.0.40
codegen_flags: <defaults>
</compile_context>

<pallas_src>
import functools

import jax
import jax.numpy as jnp
from jax.experimental import pallas as pl
from jax.experimental.pallas import tpu as pltpu


# ---------------------------------------------------------------------------
# Pallas kernels
# ---------------------------------------------------------------------------
def _conv_taps_kernel(x_ref, w_ref, b_ref, o_ref, xcat_ref, *,
                      taps, tm, cin, m_tiled):
    """One (tm, Cout) output tile of a conv as a single stacked-K MXU matmul.

    x_ref   : (1, P, L, Cin)  resident tap slab (or flat x for 1x1) for image n
    w_ref   : (T*Cin, Cout)   stacked weights (tap-major, Cin-minor), bf16
    b_ref   : (1, Cout)       f32 bias
    o_ref   : (1, tm, Cout)   output tile (rows [mi*tm, mi*tm + tm))
    xcat_ref: (tm, T*Cin)     bf16 scratch used to pack the tap windows
    """
    if len(taps) == 1:
        # 1x1 / single-tap path; supports M tiling (grid axis 1) with
        # tile-aligned dynamic starts.
        p, off = taps[0]
        start = off
        if m_tiled:
            start = pl.multiple_of(pl.program_id(1) * tm, tm) + off
        xt = x_ref[0, p, pl.ds(start, tm), :].astype(jnp.bfloat16)
    else:
        # Pack the T contiguous tap windows side-by-side -> one dot with
        # contraction depth T*Cin (no per-tap f32 accumulator RMW traffic).
        for t, (p, off) in enumerate(taps):
            xcat_ref[:, t * cin:(t + 1) * cin] = (
                x_ref[0, p, off:off + tm, :].astype(jnp.bfloat16))
        xt = xcat_ref[...]
    acc = jnp.dot(xt, w_ref[...], preferred_element_type=jnp.float32)
    o_ref[0] = (acc + b_ref[...]).astype(o_ref.dtype)


def _pool_taps_kernel(x_ref, o_ref, *, taps, m):
    """Running max over taps for one image (exact, f32)."""
    p0, off0 = taps[0]
    acc = x_ref[0, p0, off0:off0 + m, :]
    for p, off in taps[1:]:
        acc = jnp.maximum(acc, x_ref[0, p, off:off + m, :])
    o_ref[0] = acc


def _sep7_chain_kernel(x_ref, w2_ref, b2_ref, w3_ref, b3_ref, o_ref,
                       xcat_ref, midp_ref, ycat_ref, *, H, W, K, C1, C2):
    """Fused (1,K) conv (pad along W) -> (K,1) conv (pad along H), stride 1.

    x_ref : (1, H, W + K - 1, C1) bf16, W pre-padded by K//2 on each side
    o_ref : (1, H*W, C3)
    The intermediate activation never leaves VMEM (midp_ref scratch).
    """
    hw = K // 2

    # ---- (1,K) conv along W: junk-free tap windows via 3-D static slices ----
    for kw in range(K):
        xcat_ref[:, :, kw * C1:(kw + 1) * C1] = x_ref[0, :, kw:kw + W, :]
    xt = xcat_ref[...].reshape(H * W, K * C1)
    mid = jnp.dot(xt, w2_ref[...], preferred_element_type=jnp.float32)
    mid = (mid + b2_ref[...]).astype(jnp.bfloat16)               # (H*W, C2)

    # ---- (K,1) conv along H, on an H-padded flat row-major copy in VMEM ----
    zpad = jnp.zeros((hw * W, mid.shape[-1]), jnp.bfloat16)
    midp_ref[0:hw * W, :] = zpad
    midp_ref[(hw + H) * W:(2 * hw + H) * W, :] = zpad
    midp_ref[hw * W:(hw + H) * W, :] = mid
    for kh in range(K):
        ycat_ref[:, kh * C2:(kh + 1) * C2] = midp_ref[kh * W:kh * W + H * W, :]
    out = jnp.dot(ycat_ref[...], w3_ref[...], preferred_element_type=jnp.float32)
    o_ref[0] = (out + b3_ref[...]).astype(o_ref.dtype)


# ---------------------------------------------------------------------------
# Glue: per-image tap slab (pad + space-to-depth + flatten).  After this,
# conv/pool tap (kh, kw) is the contiguous slice
#   slab[n, (kh%sh)*sw + kw%sw, off : off + Ho*Ws, :],  off = (kh//sh)*Ws + kw//sw
# ---------------------------------------------------------------------------
def _build_tap_slab(x, KH, KW, sh, sw, ph, pw):
    N, H, W, C = x.shape
    Hp, Wp = H + 2 * ph, W + 2 * pw
    Ho = (Hp - KH) // sh + 1
    Wo = (Wp - KW) // sw + 1
    He = -(-Hp // sh) * sh                      # round spatial dims up to stride
    We = -(-Wp // sw) * sw
    Hs, Ws = He // sh, We // sw
    P = sh * sw
    M = Ho * Ws                                 # matmul rows (incl. junk cols)
    max_off = ((KH - 1) // sh) * Ws + ((KW - 1) // sw)
    L = max(Hs * Ws, max_off + M)               # flat length: all slices in-range

    xp = jnp.pad(x, ((0, 0), (ph, He - Hp + ph), (pw, We - Wp + pw), (0, 0)))
    xs = xp.reshape(N, Hs, sh, Ws, sw, C)
    xs = xs.transpose(0, 2, 4, 1, 3, 5).reshape(N, P, Hs * Ws, C)
    xs = jnp.pad(xs, ((0, 0), (0, 0), (0, L - Hs * Ws), (0, 0)))

    taps = [((kh % sh) * sw + (kw % sw), (kh // sh) * Ws + (kw // sw))
            for kh in range(KH) for kw in range(KW)]
    return xs, taps, Ho, Wo, Ws, M


# ---------------------------------------------------------------------------
# Conv / pool / separable-chain wrappers
# ---------------------------------------------------------------------------
def conv2d_nhwc(x, w, b, *, stride=(1, 1), padding=(0, 0),
                out_dtype=jnp.float32, block_m=128):
    """Conv2d + bias.  x: (N,H,W,Cin) NHWC; w: (KH,KW,Cin,Cout) HWIO; b: (Cout,).

    block_m: M-tile for the 1x1 fast path (128 is v5e-friendly; bump to 256 on
    v6e/v7x for large images)."""
    N, H, W, Cin = x.shape
    KH, KW, _, Cout = w.shape
    sh, sw = stride
    T = KH * KW

    if (KH, KW) == (1, 1) and stride == (1, 1) and padding == (0, 0):
        # 1x1 fast path: no slab build -- x itself (flattened) is the matmul LHS.
        slab = x.reshape(N, 1, H * W, Cin)
        taps = [(0, 0)]
        Ho, Wo, Ws, M = H, W, W, H * W
    else:
        slab, taps, Ho, Wo, Ws, M = _build_tap_slab(x, KH, KW, sh, sw, *padding)

    # M-tiling (second grid axis) only on the single-tap path: tile starts stay
    # multiples of tm so dynamic sublane offsets are aligned; multi-tap slab
    # convs here have tiny M and keep static (v2-proven) offsets.
    tm = min(block_m, M) if len(taps) == 1 else M
    gm = pl.cdiv(M, tm)
    m_pad = gm * tm

    P, L0 = slab.shape[1], slab.shape[2]
    max_off = max(off for _, off in taps)
    L = max(L0, max_off + m_pad)
    if L > L0:
        slab = jnp.pad(slab, ((0, 0), (0, 0), (0, L - L0), (0, 0)))

    wt = w.reshape(T * Cin, Cout).astype(jnp.bfloat16)
    bt = b.reshape(1, Cout).astype(jnp.float32)

    cost = pl.CostEstimate(
        flops=2 * N * m_pad * T * Cin * Cout,
        transcendentals=0,
        bytes_accessed=int(slab.size * slab.dtype.itemsize + wt.size * 2
                           + N * m_pad * Cout * jnp.dtype(out_dtype).itemsize))

    kernel = functools.partial(_conv_taps_kernel, taps=taps, tm=tm, cin=Cin,
                               m_tiled=gm > 1)
    out = pl.pallas_call(
        kernel,
        out_shape=jax.ShapeDtypeStruct((N, m_pad, Cout), out_dtype),
        grid=(N, gm),
        in_specs=[
            # Same block across m-tiles -> slab stays resident in VMEM.
            pl.BlockSpec((1, P, L, Cin), lambda n, mi: (n, 0, 0, 0)),
            pl.BlockSpec((T * Cin, Cout), lambda n, mi: (0, 0)),
            pl.BlockSpec((1, Cout), lambda n, mi: (0, 0)),
        ],
        out_specs=pl.BlockSpec((1, tm, Cout), lambda n, mi: (n, mi, 0)),
        scratch_shapes=[pltpu.VMEM((tm, T * Cin), jnp.bfloat16)],
        compiler_params=pltpu.CompilerParams(
            dimension_semantics=("parallel", "parallel")),
        cost_estimate=cost,
    )(slab, wt, bt)
    # drop padded rows and wrap-around junk columns, restore NHWC
    return out[:, :M, :].reshape(N, Ho, Ws, Cout)[:, :, :Wo, :]


def maxpool2d_nhwc(x, *, k=3, s=2):
    """MaxPool2d(kernel=k, stride=s, padding=0); exact (f32)."""
    N, H, W, C = x.shape
    slab, taps, Ho, Wo, Ws, M = _build_tap_slab(x, k, k, s, s, 0, 0)
    P, L = slab.shape[1], slab.shape[2]

    cost = pl.CostEstimate(
        flops=N * M * C * (len(taps) - 1), transcendentals=0,
        bytes_accessed=int(slab.size * slab.dtype.itemsize
                           + N * M * C * x.dtype.itemsize))

    kernel = functools.partial(_pool_taps_kernel, taps=taps, m=M)
    out = pl.pallas_call(
        kernel,
        out_shape=jax.ShapeDtypeStruct((N, M, C), x.dtype),
        grid=(N,),
        in_specs=[pl.BlockSpec((1, P, L, C), lambda n: (n, 0, 0, 0))],
        out_specs=pl.BlockSpec((1, M, C), lambda n: (n, 0, 0)),
        compiler_params=pltpu.CompilerParams(dimension_semantics=("parallel",)),
        cost_estimate=cost,
    )(slab)
    return out.reshape(N, Ho, Ws, C)[:, :, :Wo, :]


def sep7_chain_nhwc(x, w2, b2, w3, b3):
    """Fused (1,K) conv pad (0,K//2) -> (K,1) conv pad (K//2,0), stride 1.

    x: (N,H,W,C1) bf16; w2: (1,K,C1,C2); w3: (K,1,C2,C3).  The intermediate
    activation stays in VMEM (one pallas_call, no HBM round trip)."""
    N, H, W, C1 = x.shape
    K = w2.shape[1]
    C2, C3 = w2.shape[-1], w3.shape[-1]
    hw = K // 2
    Wp = W + 2 * hw
    xp = jnp.pad(x, ((0, 0), (0, 0), (hw, hw), (0, 0)))        # pad W only

    w2t = w2.reshape(K * C1, C2).astype(jnp.bfloat16)
    b2t = b2.reshape(1, C2).astype(jnp.float32)
    w3t = w3.reshape(K * C2, C3).astype(jnp.bfloat16)
    b3t = b3.reshape(1, C3).astype(jnp.float32)

    cost = pl.CostEstimate(
        flops=2 * N * H * W * K * (C1 * C2 + C2 * C3), transcendentals=0,
        bytes_accessed=int(xp.size * xp.dtype.itemsize
                           + (w2t.size + w3t.size) * 2 + N * H * W * C3 * 2))

    kernel = functools.partial(_sep7_chain_kernel, H=H, W=W, K=K, C1=C1, C2=C2)
    out = pl.pallas_call(
        kernel,
        out_shape=jax.ShapeDtypeStruct((N, H * W, C3), jnp.bfloat16),
        grid=(N,),
        in_specs=[
            pl.BlockSpec((1, H, Wp, C1), lambda n: (n, 0, 0, 0)),
            pl.BlockSpec((K * C1, C2), lambda n: (0, 0)),
            pl.BlockSpec((1, C2), lambda n: (0, 0)),
            pl.BlockSpec((K * C2, C3), lambda n: (0, 0)),
            pl.BlockSpec((1, C3), lambda n: (0, 0)),
        ],
        out_specs=pl.BlockSpec((1, H * W, C3), lambda n: (n, 0, 0)),
        scratch_shapes=[
            pltpu.VMEM((H, W, K * C1), jnp.bfloat16),          # packed taps #1
            pltpu.VMEM(((H + 2 * hw) * W, C2), jnp.bfloat16),  # H-padded mid
            pltpu.VMEM((H * W, K * C2), jnp.bfloat16),         # packed taps #2
        ],
        compiler_params=pltpu.CompilerParams(dimension_semantics=("parallel",)),
        cost_estimate=cost,
    )(xp, w2t, b2t, w3t, b3t)
    return out.reshape(N, H, W, C3)


# ---------------------------------------------------------------------------
# Reduction_B_v4 forward
# ---------------------------------------------------------------------------
def init_params(key, in_channels, b2_n1, b2_n3, b3_n1, b3_n1x7, b3_n7x1, b3_n3):
    ks = jax.random.split(key, 12)
    scale = 0.05

    def w(k, shape):
        return jax.random.normal(k, shape, jnp.float32) * scale

    def bias(k, n):
        return jax.random.normal(k, (n,), jnp.float32) * scale

    return dict(
        b2_w1=w(ks[0], (1, 1, in_channels, b2_n1)), b2_b1=bias(ks[1], b2_n1),
        b2_w2=w(ks[2], (3, 3, b2_n1, b2_n3)),       b2_b2=bias(ks[3], b2_n3),
        b3_w1=w(ks[4], (1, 1, in_channels, b3_n1)), b3_b1=bias(ks[5], b3_n1),
        b3_w2=w(ks[6], (1, 7, b3_n1, b3_n1x7)),     b3_b2=bias(ks[7], b3_n1x7),
        b3_w3=w(ks[8], (7, 1, b3_n1x7, b3_n7x1)),   b3_b3=bias(ks[9], b3_n7x1),
        b3_w4=w(ks[10], (3, 3, b3_n7x1, b3_n3)),    b3_b4=bias(ks[11], b3_n3),
    )


@jax.jit
def reduction_b_v4(x_nchw, params):
    # QConv2d treated as a plain Conv2d + bias (its forward is an ordinary conv).
    x = jnp.transpose(x_nchw, (0, 2, 3, 1))               # NCHW -> NHWC (f32)

    # branch1: MaxPool2d(3, 2, 0) -- exact f32
    # TODO(synk): fusing the pool into the head kernel (one read of x) needs a
    # strided in-kernel gather; kept as its own (exact) kernel for robustness.
    o1 = maxpool2d_nhwc(x, k=3, s=2)

    # Fused branch heads: both 1x1 convs share one matmul; x read once, no slab.
    w_head = jnp.concatenate([params["b2_w1"], params["b3_w1"]], axis=-1)
    b_head = jnp.concatenate([params["b2_b1"], params["b3_b1"]], axis=-1)
    head = conv2d_nhwc(x, w_head, b_head, out_dtype=jnp.bfloat16, block_m=128)
    n2 = params["b2_w1"].shape[-1]
    t2, t3 = head[..., :n2], head[..., n2:]

    # branch2: 3x3 stride-2 conv
    o2 = conv2d_nhwc(t2, params["b2_w2"], params["b2_b2"], stride=(2, 2),
                     out_dtype=jnp.float32)

    # branch3: fused 1x7 (pad 0,3) -> 7x1 (pad 3,0), then 3x3 stride-2
    t3 = sep7_chain_nhwc(t3, params["b3_w2"], params["b3_b2"],
                         params["b3_w3"], params["b3_b3"])
    o3 = conv2d_nhwc(t3, params["b3_w4"], params["b3_b4"], stride=(2, 2),
                     out_dtype=jnp.float32)

    out = jnp.concatenate([o1, o2, o3], axis=-1)           # channel concat
    return jnp.transpose(out, (0, 3, 1, 2))                # back to NCHW


# ---------------------------------------------------------------------------
# Pure-JAX f32 reference (correctness sanity check)
# ---------------------------------------------------------------------------
def _ref_conv(x, w, b, stride=(1, 1), padding=(0, 0)):
    out = jax.lax.conv_general_dilated(
        x, w, window_strides=stride,
        padding=[(padding[0], padding[0]), (padding[1], padding[1])],
        dimension_numbers=("NHWC", "HWIO", "NHWC"))
    return out + b


def reduction_b_v4_ref(x_nchw, params):
    x = jnp.transpose(x_nchw, (0, 2, 3, 1))
    o1 = jax.lax.reduce_window(x, -jnp.inf, jax.lax.max,
                               (1, 3, 3, 1), (1, 2, 2, 1), "VALID")
    t = _ref_conv(x, params["b2_w1"], params["b2_b1"])
    o2 = _ref_conv(t, params["b2_w2"], params["b2_b2"], stride=(2, 2))
    t = _ref_conv(x, params["b3_w1"], params["b3_b1"])
    t = _ref_conv(t, params["b3_w2"], params["b3_b2"], padding=(0, 3))
    t = _ref_conv(t, params["b3_w3"], params["b3_b3"], padding=(3, 0))
    o3 = _ref_conv(t, params["b3_w4"], params["b3_b4"], stride=(2, 2))
    out = jnp.concatenate([o1, o2, o3], axis=-1)
    return jnp.transpose(out, (0, 3, 1, 2))


# ---------------------------------------------------------------------------
if __name__ == "__main__":
    # Small deterministic config: in=8, b2_n1=8, b2_n3=16, b3_n1=8,
    # b3_n1x7=8, b3_n7x1=8, b3_n3=16; input x: (2, 8, 16, 16) NCHW.
    key = jax.random.PRNGKey(0)
    k_x, k_p = jax.random.split(key)
    x = jax.random.normal(k_x, (2, 8, 16, 16), jnp.float32)
    params = init_params(k_p, 8, 8, 16, 8, 8, 8, 16)

    out = jax.block_until_ready(reduction_b_v4(x, params))
    expected_c = 8 + 16 + 16
    assert out.shape == (2, expected_c, 7, 7), out.shape

    ref = jax.block_until_ready(reduction_b_v4_ref(x, params))
    max_err = float(jnp.max(jnp.abs(out - ref)))
    # bf16 MXU inputs with f32 accumulation -> loosened tolerance vs f32 ref.
    assert max_err < 2e-2, f"max abs err {max_err}"

    print("KERNEL_OK")
</pallas_src>

<mosaic_0001>
module attributes {stable_mosaic.version = 11 : i64} {
  func.func @_conv_taps_kernel(%arg0: i32, %arg1: i32, %arg2: memref<1x1x256x8xf32, #tpu.memory_space<vmem>>, %arg3: memref<8x16xbf16, #tpu.memory_space<vmem>>, %arg4: memref<1x16xf32, #tpu.memory_space<vmem>>, %arg5: memref<1x128x16xbf16, #tpu.memory_space<vmem>>, %arg6: memref<128x8xbf16, #tpu.memory_space<vmem>>) attributes {dimension_semantics = [#tpu.dimension_semantics<parallel>, #tpu.dimension_semantics<parallel>], iteration_bounds = array<i64: 2, 2>, scalar_prefetch = 0 : i64, scratch_operands = 1 : i64, tpu.core_type = #tpu.core_type<tc>, window_params = [{transform_indices = @transform_0, window_bounds = array<i64: 1, 1, 256, 8>}, {pipeline_mode = #tpu.pipeline_mode<synchronous>, transform_indices = @transform_1, window_bounds = array<i64: 8, 16>}, {pipeline_mode = #tpu.pipeline_mode<synchronous>, transform_indices = @transform_2, window_bounds = array<i64: 1, 16>}, {transform_indices = @transform_3, window_bounds = array<i64: 1, 128, 16>}]} {
    %c128_i32 = arith.constant 128 : i32
    %0 = arith.muli %arg1, %c128_i32 : i32
    %1 = tpu.assume_multiple %0, 128 : i32
    %c0_i32 = arith.constant 0 : i32
    %2 = arith.addi %1, %c0_i32 : i32
    %c0 = arith.constant 0 : index
    %c0_0 = arith.constant 0 : index
    %3 = arith.index_cast %2 : i32 to index
    %c0_1 = arith.constant 0 : index
    %4 = vector.load %arg2[%c0, %c0_0, %3, %c0_1] : memref<1x1x256x8xf32, #tpu.memory_space<vmem>>, vector<1x1x128x8xf32>
    %5 = vector.shape_cast %4 : vector<1x1x128x8xf32> to vector<128x8xf32>
    %6 = arith.truncf %5 : vector<128x8xf32> to vector<128x8xbf16>
    %c0_2 = arith.constant 0 : index
    %c0_3 = arith.constant 0 : index
    %7 = vector.load %arg3[%c0_2, %c0_3] : memref<8x16xbf16, #tpu.memory_space<vmem>>, vector<8x16xbf16>
    %cst = arith.constant dense<0.000000e+00> : vector<128x16xf32>
    %8 = tpu.matmul %6, %7, %cst {dimension_numbers = #tpu.dot_dimension_numbers<[1], [0], [0], [1], [0, 0, 1, 1], [], []>} : vector<128x8xbf16>, vector<8x16xbf16>, vector<128x16xf32> -> vector<128x16xf32>
    %c0_4 = arith.constant 0 : index
    %c0_5 = arith.constant 0 : index
    %9 = vector.load %arg4[%c0_4, %c0_5] : memref<1x16xf32, #tpu.memory_space<vmem>>, vector<1x16xf32>
    %10 = vector.broadcast %9 : vector<1x16xf32> to vector<128x16xf32>
    %11 = arith.addf %8, %10 : vector<128x16xf32>
    %12 = arith.truncf %11 : vector<128x16xf32> to vector<128x16xbf16>
    %c0_6 = arith.constant 0 : index
    %c0_7 = arith.constant 0 : index
    %c0_8 = arith.constant 0 : index
    %13 = vector.load %arg5[%c0_6, %c0_7, %c0_8] : memref<1x128x16xbf16, #tpu.memory_space<vmem>>, vector<1x128x16xbf16>
    %14 = vector.shape_cast %13 : vector<1x128x16xbf16> to vector<128x16xbf16>
    %15 = vector.shape_cast %12 : vector<128x16xbf16> to vector<1x128x16xbf16>
    tpu.vector_store %arg5[%c0_6, %c0_7, %c0_8], %15 {strides = array<i32>} : memref<1x128x16xbf16, #tpu.memory_space<vmem>>, vector<1x128x16xbf16>,
    return
  }
  func.func @transform_0(%arg0: i32, %arg1: i32) -> (i32, i32, i32, i32) {
    %c0_i32 = arith.constant 0 : i32
    %c0_i32_0 = arith.constant 0 : i32
    %c0_i32_1 = arith.constant 0 : i32
    %c0_i32_2 = arith.constant 0 : i32
    return %arg0, %c0_i32, %c0_i32_0, %c0_i32_1 : i32, i32, i32, i32
  }
  func.func @transform_1(%arg0: i32, %arg1: i32) -> (i32, i32) {
    %c0_i32 = arith.constant 0 : i32
    %c0_i32_0 = arith.constant 0 : i32
    %c0_i32_1 = arith.constant 0 : i32
    return %c0_i32, %c0_i32_0 : i32, i32
  }
  func.func @transform_2(%arg0: i32, %arg1: i32) -> (i32, i32) {
    %c0_i32 = arith.constant 0 : i32
    %c0_i32_0 = arith.constant 0 : i32
    %c0_i32_1 = arith.constant 0 : i32
    return %c0_i32, %c0_i32_0 : i32, i32
  }
  func.func @transform_3(%arg0: i32, %arg1: i32) -> (i32, i32, i32) {
    %c0_i32 = arith.constant 0 : i32
    %c0_i32_0 = arith.constant 0 : i32
    return %arg0, %arg1, %c0_i32 : i32, i32, i32
  }
}

module attributes {stable_mosaic.version = 11 : i64} {
  func.func @_conv_taps_kernel(%arg0: i32, %arg1: i32, %arg2: memref<1x4x65x8xbf16, #tpu.memory_space<vmem>>, %arg3: memref<72x16xbf16, #tpu.memory_space<vmem>>, %arg4: memref<1x16xf32, #tpu.memory_space<vmem>>, %arg5: memref<1x56x16xf32, #tpu.memory_space<vmem>>, %arg6: memref<56x72xbf16, #tpu.memory_space<vmem>>) attributes {dimension_semantics = [#tpu.dimension_semantics<parallel>, #tpu.dimension_semantics<parallel>], iteration_bounds = array<i64: 2, 1>, scalar_prefetch = 0 : i64, scratch_operands = 1 : i64, tpu.core_type = #tpu.core_type<tc>, window_params = [{transform_indices = @transform_0, window_bounds = array<i64: 1, 4, 65, 8>}, {pipeline_mode = #tpu.pipeline_mode<synchronous>, transform_indices = @transform_1, window_bounds = array<i64: 72, 16>}, {pipeline_mode = #tpu.pipeline_mode<synchronous>, transform_indices = @transform_2, window_bounds = array<i64: 1, 16>}, {transform_indices = @transform_3, window_bounds = array<i64: 1, 56, 16>}]} {
    %c0 = arith.constant 0 : index
    %c0_0 = arith.constant 0 : index
    %c0_1 = arith.constant 0 : index
    %c0_2 = arith.constant 0 : index
    %0 = vector.load %arg2[%c0, %c0_0, %c0_1, %c0_2] : memref<1x4x65x8xbf16, #tpu.memory_space<vmem>>, vector<1x1x56x8xbf16>
    %1 = vector.shape_cast %0 : vector<1x1x56x8xbf16> to vector<56x8xbf16>
    %c0_3 = arith.constant 0 : index
    %c0_4 = arith.constant 0 : index
    %2 = vector.load %arg6[%c0_3, %c0_4] : memref<56x72xbf16, #tpu.memory_space<vmem>>, vector<56x8xbf16>
    tpu.vector_store %arg6[%c0_3, %c0_4], %1 {strides = array<i32>} : memref<56x72xbf16, #tpu.memory_space<vmem>>, vector<56x8xbf16>,
    %c0_5 = arith.constant 0 : index
    %c1 = arith.constant 1 : index
    %c0_6 = arith.constant 0 : index
    %c0_7 = arith.constant 0 : index
    %3 = vector.load %arg2[%c0_5, %c1, %c0_6, %c0_7] : memref<1x4x65x8xbf16, #tpu.memory_space<vmem>>, vector<1x1x56x8xbf16>
    %4 = vector.shape_cast %3 : vector<1x1x56x8xbf16> to vector<56x8xbf16>
    %c0_8 = arith.constant 0 : index
    %c8 = arith.constant 8 : index
    %5 = vector.load %arg6[%c0_8, %c8] : memref<56x72xbf16, #tpu.memory_space<vmem>>, vector<56x8xbf16>
    tpu.vector_store %arg6[%c0_8, %c8], %4 {strides = array<i32>} : memref<56x72xbf16, #tpu.memory_space<vmem>>, vector<56x8xbf16>,
    %c0_9 = arith.constant 0 : index
    %c0_10 = arith.constant 0 : index
    %c1_11 = arith.constant 1 : index
    %c0_12 = arith.constant 0 : index
    %6 = vector.load %arg2[%c0_9, %c0_10, %c1_11, %c0_12] : memref<1x4x65x8xbf16, #tpu.memory_space<vmem>>, vector<1x1x56x8xbf16>
    %7 = vector.shape_cast %6 : vector<1x1x56x8xbf16> to vector<56x8xbf16>
    %c0_13 = arith.constant 0 : index
    %c16 = arith.constant 16 : index
    %8 = vector.load %arg6[%c0_13, %c16] : memref<56x72xbf16, #tpu.memory_space<vmem>>, vector<56x8xbf16>
    tpu.vector_store %arg6[%c0_13, %c16], %7 {strides = array<i32>} : memref<56x72xbf16, #tpu.memory_space<vmem>>, vector<56x8xbf16>,
    %c0_14 = arith.constant 0 : index
    %c2 = arith.constant 2 : index
    %c0_15 = arith.constant 0 : index
    %c0_16 = arith.constant 0 : index
    %9 = vector.load %arg2[%c0_14, %c2, %c0_15, %c0_16] : memref<1x4x65x8xbf16, #tpu.memory_space<vmem>>, vector<1x1x56x8xbf16>
    %10 = vector.shape_cast %9 : vector<1x1x56x8xbf16> to vector<56x8xbf16>
    %c0_17 = arith.constant 0 : index
    %c24 = arith.constant 24 : index
    %11 = vector.load %arg6[%c0_17, %c24] : memref<56x72xbf16, #tpu.memory_space<vmem>>, vector<56x8xbf16>
    tpu.vector_store %arg6[%c0_17, %c24], %10 {strides = array<i32>} : memref<56x72xbf16, #tpu.memory_space<vmem>>, vector<56x8xbf16>,
    %c0_18 = arith.constant 0 : index
    %c3 = arith.constant 3 : index
    %c0_19 = arith.constant 0 : index
    %c0_20 = arith.constant 0 : index
    %12 = vector.load %arg2[%c0_18, %c3, %c0_19, %c0_20] : memref<1x4x65x8xbf16, #tpu.memory_space<vmem>>, vector<1x1x56x8xbf16>
    %13 = vector.shape_cast %12 : vector<1x1x56x8xbf16> to vector<56x8xbf16>
    %c0_21 = arith.constant 0 : index
    %c32 = arith.constant 32 : index
    %14 = vector.load %arg6[%c0_21, %c32] : memref<56x72xbf16, #tpu.memory_space<vmem>>, vector<56x8xbf16>
    tpu.vector_store %arg6[%c0_21, %c32], %13 {strides = array<i32>} : memref<56x72xbf16, #tpu.memory_space<vmem>>, vector<56x8xbf16>,
    %c0_22 = arith.constant 0 : index
    %c2_23 = arith.constant 2 : index
    %c1_24 = arith.constant 1 : index
    %c0_25 = arith.constant 0 : index
    %15 = vector.load %arg2[%c0_22, %c2_23, %c1_24, %c0_25] : memref<1x4x65x8xbf16, #tpu.memory_space<vmem>>, vector<1x1x56x8xbf16>
    %16 = vector.shape_cast %15 : vector<1x1x56x8xbf16> to vector<56x8xbf16>
    %c0_26 = arith.constant 0 : index
    %c40 = arith.constant 40 : index
    %17 = vector.load %arg6[%c0_26, %c40] : memref<56x72xbf16, #tpu.memory_space<vmem>>, vector<56x8xbf16>
    tpu.vector_store %arg6[%c0_26, %c40], %16 {strides = array<i32>} : memref<56x72xbf16, #tpu.memory_space<vmem>>, vector<56x8xbf16>,
    %c0_27 = arith.constant 0 : index
    %c0_28 = arith.constant 0 : index
    %c8_29 = arith.constant 8 : index
    %c0_30 = arith.constant 0 : index
    %18 = vector.load %arg2[%c0_27, %c0_28, %c8_29, %c0_30] : memref<1x4x65x8xbf16, #tpu.memory_space<vmem>>, vector<1x1x56x8xbf16>
    %19 = vector.shape_cast %18 : vector<1x1x56x8xbf16> to vector<56x8xbf16>
    %c0_31 = arith.constant 0 : index
    %c48 = arith.constant 48 : index
    %20 = vector.load %arg6[%c0_31, %c48] : memref<56x72xbf16, #tpu.memory_space<vmem>>, vector<56x8xbf16>
    tpu.vector_store %arg6[%c0_31, %c48], %19 {strides = array<i32>} : memref<56x72xbf16, #tpu.memory_space<vmem>>, vector<56x8xbf16>,
    %c0_32 = arith.constant 0 : index
    %c1_33 = arith.constant 1 : index
    %c8_34 = arith.constant 8 : index
    %c0_35 = arith.constant 0 : index
    %21 = vector.load %arg2[%c0_32, %c1_33, %c8_34, %c0_35] : memref<1x4x65x8xbf16, #tpu.memory_space<vmem>>, vector<1x1x56x8xbf16>
    %22 = vector.shape_cast %21 : vector<1x1x56x8xbf16> to vector<56x8xbf16>
    %c0_36 = arith.constant 0 : index
    %c56 = arith.constant 56 : index
    %23 = vector.load %arg6[%c0_36, %c56] : memref<56x72xbf16, #tpu.memory_space<vmem>>, vector<56x8xbf16>
    tpu.vector_store %arg6[%c0_36, %c56], %22 {strides = array<i32>} : memref<56x72xbf16, #tpu.memory_space<vmem>>, vector<56x8xbf16>,
    %c0_37 = arith.constant 0 : index
    %c0_38 = arith.constant 0 : index
    %c9 = arith.constant 9 : index
    %c0_39 = arith.constant 0 : index
    %24 = vector.load %arg2[%c0_37, %c0_38, %c9, %c0_39] : memref<1x4x65x8xbf16, #tpu.memory_space<vmem>>, vector<1x1x56x8xbf16>
    %25 = vector.shape_cast %24 : vector<1x1x56x8xbf16> to vector<56x8xbf16>
    %c0_40 = arith.constant 0 : index
    %c64 = arith.constant 64 : index
    %26 = vector.load %arg6[%c0_40, %c64] : memref<56x72xbf16, #tpu.memory_space<vmem>>, vector<56x8xbf16>
    tpu.vector_store %arg6[%c0_40, %c64], %25 {strides = array<i32>} : memref<56x72xbf16, #tpu.memory_space<vmem>>, vector<56x8xbf16>,
    %c0_41 = arith.constant 0 : index
    %c0_42 = arith.constant 0 : index
    %27 = vector.load %arg6[%c0_41, %c0_42] : memref<56x72xbf16, #tpu.memory_space<vmem>>, vector<56x72xbf16>
    %c0_43 = arith.constant 0 : index
    %c0_44 = arith.constant 0 : index
    %28 = vector.load %arg3[%c0_43, %c0_44] : memref<72x16xbf16, #tpu.memory_space<vmem>>, vector<72x16xbf16>
    %cst = arith.constant dense<0.000000e+00> : vector<56x16xf32>
    %29 = tpu.matmul %27, %28, %cst {dimension_numbers = #tpu.dot_dimension_numbers<[1], [0], [0], [1], [0, 0, 1, 1], [], []>} : vector<56x72xbf16>, vector<72x16xbf16>, vector<56x16xf32> -> vector<56x16xf32>
    %c0_45 = arith.constant 0 : index
    %c0_46 = arith.constant 0 : index
    %30 = vector.load %arg4[%c0_45, %c0_46] : memref<1x16xf32, #tpu.memory_space<vmem>>, vector<1x16xf32>
    %31 = vector.broadcast %30 : vector<1x16xf32> to vector<56x16xf32>
    %32 = arith.addf %29, %31 : vector<56x16xf32>
    %c0_47 = arith.constant 0 : index
    %c0_48 = arith.constant 0 : index
    %c0_49 = arith.constant 0 : index
    %33 = vector.load %arg5[%c0_47, %c0_48, %c0_49] : memref<1x56x16xf32, #tpu.memory_space<vmem>>, vector<1x56x16xf32>
    %34 = vector.shape_cast %33 : vector<1x56x16xf32> to vector<56x16xf32>
    %35 = vector.shape_cast %32 : vector<56x16xf32> to vector<1x56x16xf32>
    tpu.vector_store %arg5[%c0_47, %c0_48, %c0_49], %35 {strides = array<i32>} : memref<1x56x16xf32, #tpu.memory_space<vmem>>, vector<1x56x16xf32>,
    return
  }
  func.func @transform_0(%arg0: i32, %arg1: i32) -> (i32, i32, i32, i32) {
    %c0_i32 = arith.constant 0 : i32
    %c0_i32_0 = arith.constant 0 : i32
    %c0_i32_1 = arith.constant 0 : i32
    %c0_i32_2 = arith.constant 0 : i32
    return %arg0, %c0_i32, %c0_i32_0, %c0_i32_1 : i32, i32, i32, i32
  }
  func.func @transform_1(%arg0: i32, %arg1: i32) -> (i32, i32) {
    %c0_i32 = arith.constant 0 : i32
    %c0_i32_0 = arith.constant 0 : i32
    %c0_i32_1 = arith.constant 0 : i32
    return %c0_i32, %c0_i32_0 : i32, i32
  }
  func.func @transform_2(%arg0: i32, %arg1: i32) -> (i32, i32) {
    %c0_i32 = arith.constant 0 : i32
    %c0_i32_0 = arith.constant 0 : i32
    %c0_i32_1 = arith.constant 0 : i32
    return %c0_i32, %c0_i32_0 : i32, i32
  }
  func.func @transform_3(%arg0: i32, %arg1: i32) -> (i32, i32, i32) {
    %c0_i32 = arith.constant 0 : i32
    %c0_i32_0 = arith.constant 0 : i32
    return %arg0, %arg1, %c0_i32 : i32, i32, i32
  }
}

module attributes {stable_mosaic.version = 11 : i64} {
  func.func @_sep7_chain_kernel(%arg0: i32, %arg1: memref<1x16x22x8xbf16, #tpu.memory_space<vmem>>, %arg2: memref<56x8xbf16, #tpu.memory_space<vmem>>, %arg3: memref<1x8xf32, #tpu.memory_space<vmem>>, %arg4: memref<56x8xbf16, #tpu.memory_space<vmem>>, %arg5: memref<1x8xf32, #tpu.memory_space<vmem>>, %arg6: memref<1x256x8xbf16, #tpu.memory_space<vmem>>, %arg7: memref<16x16x56xbf16, #tpu.memory_space<vmem>>, %arg8: memref<352x8xbf16, #tpu.memory_space<vmem>>, %arg9: memref<256x56xbf16, #tpu.memory_space<vmem>>) attributes {dimension_semantics = [#tpu.dimension_semantics<parallel>], iteration_bounds = array<i64: 2>, scalar_prefetch = 0 : i64, scratch_operands = 3 : i64, tpu.core_type = #tpu.core_type<tc>, window_params = [{transform_indices = @transform_0, window_bounds = array<i64: 1, 16, 22, 8>}, {pipeline_mode = #tpu.pipeline_mode<synchronous>, transform_indices = @transform_1, window_bounds = array<i64: 56, 8>}, {pipeline_mode = #tpu.pipeline_mode<synchronous>, transform_indices = @transform_2, window_bounds = array<i64: 1, 8>}, {pipeline_mode = #tpu.pipeline_mode<synchronous>, transform_indices = @transform_3, window_bounds = array<i64: 56, 8>}, {pipeline_mode = #tpu.pipeline_mode<synchronous>, transform_indices = @transform_4, window_bounds = array<i64: 1, 8>}, {transform_indices = @transform_5, window_bounds = array<i64: 1, 256, 8>}]} {
    %c0 = arith.constant 0 : index
    %c0_0 = arith.constant 0 : index
    %c0_1 = arith.constant 0 : index
    %c0_2 = arith.constant 0 : index
    %0 = vector.load %arg1[%c0, %c0_0, %c0_1, %c0_2] : memref<1x16x22x8xbf16, #tpu.memory_space<vmem>>, vector<1x16x16x8xbf16>
    %1 = vector.shape_cast %0 : vector<1x16x16x8xbf16> to vector<16x16x8xbf16>
    %c0_3 = arith.constant 0 : index
    %c0_4 = arith.constant 0 : index
    %c0_5 = arith.constant 0 : index
    %2 = vector.load %arg7[%c0_3, %c0_4, %c0_5] : memref<16x16x56xbf16, #tpu.memory_space<vmem>>, vector<16x16x8xbf16>
    tpu.vector_store %arg7[%c0_3, %c0_4, %c0_5], %1 {strides = array<i32>} : memref<16x16x56xbf16, #tpu.memory_space<vmem>>, vector<16x16x8xbf16>,
    %c0_6 = arith.constant 0 : index
    %c0_7 = arith.constant 0 : index
    %c1 = arith.constant 1 : index
    %c0_8 = arith.constant 0 : index
    %3 = vector.load %arg1[%c0_6, %c0_7, %c1, %c0_8] : memref<1x16x22x8xbf16, #tpu.memory_space<vmem>>, vector<1x16x16x8xbf16>
    %4 = vector.shape_cast %3 : vector<1x16x16x8xbf16> to vector<16x16x8xbf16>
    %c0_9 = arith.constant 0 : index
    %c0_10 = arith.constant 0 : index
    %c8 = arith.constant 8 : index
    %5 = vector.load %arg7[%c0_9, %c0_10, %c8] : memref<16x16x56xbf16, #tpu.memory_space<vmem>>, vector<16x16x8xbf16>
    tpu.vector_store %arg7[%c0_9, %c0_10, %c8], %4 {strides = array<i32>} : memref<16x16x56xbf16, #tpu.memory_space<vmem>>, vector<16x16x8xbf16>,
    %c0_11 = arith.constant 0 : index
    %c0_12 = arith.constant 0 : index
    %c2 = arith.constant 2 : index
    %c0_13 = arith.constant 0 : index
    %6 = vector.load %arg1[%c0_11, %c0_12, %c2, %c0_13] : memref<1x16x22x8xbf16, #tpu.memory_space<vmem>>, vector<1x16x16x8xbf16>
    %7 = vector.shape_cast %6 : vector<1x16x16x8xbf16> to vector<16x16x8xbf16>
    %c0_14 = arith.constant 0 : index
    %c0_15 = arith.constant 0 : index
    %c16 = arith.constant 16 : index
    %8 = vector.load %arg7[%c0_14, %c0_15, %c16] : memref<16x16x56xbf16, #tpu.memory_space<vmem>>, vector<16x16x8xbf16>
    tpu.vector_store %arg7[%c0_14, %c0_15, %c16], %7 {strides = array<i32>} : memref<16x16x56xbf16, #tpu.memory_space<vmem>>, vector<16x16x8xbf16>,
    %c0_16 = arith.constant 0 : index
    %c0_17 = arith.constant 0 : index
    %c3 = arith.constant 3 : index
    %c0_18 = arith.constant 0 : index
    %9 = vector.load %arg1[%c0_16, %c0_17, %c3, %c0_18] : memref<1x16x22x8xbf16, #tpu.memory_space<vmem>>, vector<1x16x16x8xbf16>
    %10 = vector.shape_cast %9 : vector<1x16x16x8xbf16> to vector<16x16x8xbf16>
    %c0_19 = arith.constant 0 : index
    %c0_20 = arith.constant 0 : index
    %c24 = arith.constant 24 : index
    %11 = vector.load %arg7[%c0_19, %c0_20, %c24] : memref<16x16x56xbf16, #tpu.memory_space<vmem>>, vector<16x16x8xbf16>
    tpu.vector_store %arg7[%c0_19, %c0_20, %c24], %10 {strides = array<i32>} : memref<16x16x56xbf16, #tpu.memory_space<vmem>>, vector<16x16x8xbf16>,
    %c0_21 = arith.constant 0 : index
    %c0_22 = arith.constant 0 : index
    %c4 = arith.constant 4 : index
    %c0_23 = arith.constant 0 : index
    %12 = vector.load %arg1[%c0_21, %c0_22, %c4, %c0_23] : memref<1x16x22x8xbf16, #tpu.memory_space<vmem>>, vector<1x16x16x8xbf16>
    %13 = vector.shape_cast %12 : vector<1x16x16x8xbf16> to vector<16x16x8xbf16>
    %c0_24 = arith.constant 0 : index
    %c0_25 = arith.constant 0 : index
    %c32 = arith.constant 32 : index
    %14 = vector.load %arg7[%c0_24, %c0_25, %c32] : memref<16x16x56xbf16, #tpu.memory_space<vmem>>, vector<16x16x8xbf16>
    tpu.vector_store %arg7[%c0_24, %c0_25, %c32], %13 {strides = array<i32>} : memref<16x16x56xbf16, #tpu.memory_space<vmem>>, vector<16x16x8xbf16>,
    %c0_26 = arith.constant 0 : index
    %c0_27 = arith.constant 0 : index
    %c5 = arith.constant 5 : index
    %c0_28 = arith.constant 0 : index
    %15 = vector.load %arg1[%c0_26, %c0_27, %c5, %c0_28] : memref<1x16x22x8xbf16, #tpu.memory_space<vmem>>, vector<1x16x16x8xbf16>
    %16 = vector.shape_cast %15 : vector<1x16x16x8xbf16> to vector<16x16x8xbf16>
    %c0_29 = arith.constant 0 : index
    %c0_30 = arith.constant 0 : index
    %c40 = arith.constant 40 : index
    %17 = vector.load %arg7[%c0_29, %c0_30, %c40] : memref<16x16x56xbf16, #tpu.memory_space<vmem>>, vector<16x16x8xbf16>
    tpu.vector_store %arg7[%c0_29, %c0_30, %c40], %16 {strides = array<i32>} : memref<16x16x56xbf16, #tpu.memory_space<vmem>>, vector<16x16x8xbf16>,
    %c0_31 = arith.constant 0 : index
    %c0_32 = arith.constant 0 : index
    %c6 = arith.constant 6 : index
    %c0_33 = arith.constant 0 : index
    %18 = vector.load %arg1[%c0_31, %c0_32, %c6, %c0_33] : memref<1x16x22x8xbf16, #tpu.memory_space<vmem>>, vector<1x16x16x8xbf16>
    %19 = vector.shape_cast %18 : vector<1x16x16x8xbf16> to vector<16x16x8xbf16>
    %c0_34 = arith.constant 0 : index
    %c0_35 = arith.constant 0 : index
    %c48 = arith.constant 48 : index
    %20 = vector.load %arg7[%c0_34, %c0_35, %c48] : memref<16x16x56xbf16, #tpu.memory_space<vmem>>, vector<16x16x8xbf16>
    tpu.vector_store %arg7[%c0_34, %c0_35, %c48], %19 {strides = array<i32>} : memref<16x16x56xbf16, #tpu.memory_space<vmem>>, vector<16x16x8xbf16>,
    %c0_36 = arith.constant 0 : index
    %c0_37 = arith.constant 0 : index
    %c0_38 = arith.constant 0 : index
    %21 = vector.load %arg7[%c0_36, %c0_37, %c0_38] : memref<16x16x56xbf16, #tpu.memory_space<vmem>>, vector<16x16x56xbf16>
    %22 = vector.shape_cast %21 : vector<16x16x56xbf16> to vector<256x56xbf16>
    %c0_39 = arith.constant 0 : index
    %c0_40 = arith.constant 0 : index
    %23 = vector.load %arg2[%c0_39, %c0_40] : memref<56x8xbf16, #tpu.memory_space<vmem>>, vector<56x8xbf16>
    %cst = arith.constant dense<0.000000e+00> : vector<256x8xf32>
    %24 = tpu.matmul %22, %23, %cst {dimension_numbers = #tpu.dot_dimension_numbers<[1], [0], [0], [1], [0, 0, 1, 1], [], []>} : vector<256x56xbf16>, vector<56x8xbf16>, vector<256x8xf32> -> vector<256x8xf32>
    %c0_41 = arith.constant 0 : index
    %c0_42 = arith.constant 0 : index
    %25 = vector.load %arg3[%c0_41, %c0_42] : memref<1x8xf32, #tpu.memory_space<vmem>>, vector<1x8xf32>
    %26 = vector.broadcast %25 : vector<1x8xf32> to vector<256x8xf32>
    %27 = arith.addf %24, %26 : vector<256x8xf32>
    %28 = arith.truncf %27 : vector<256x8xf32> to vector<256x8xbf16>
    %cst_43 = arith.constant 0.000000e+00 : bf16
    %29 = vector.broadcast %cst_43 : bf16 to vector<48x8xbf16>
    %c0_44 = arith.constant 0 : index
    %c0_45 = arith.constant 0 : index
    %30 = vector.load %arg8[%c0_44, %c0_45] : memref<352x8xbf16, #tpu.memory_space<vmem>>, vector<48x8xbf16>
    tpu.vector_store %arg8[%c0_44, %c0_45], %29 {strides = array<i32>} : memref<352x8xbf16, #tpu.memory_space<vmem>>, vector<48x8xbf16>,
    %c304 = arith.constant 304 : index
    %c0_46 = arith.constant 0 : index
    %31 = vector.load %arg8[%c304, %c0_46] : memref<352x8xbf16, #tpu.memory_space<vmem>>, vector<48x8xbf16>
    tpu.vector_store %arg8[%c304, %c0_46], %29 {strides = array<i32>} : memref<352x8xbf16, #tpu.memory_space<vmem>>, vector<48x8xbf16>,
    %c48_47 = arith.constant 48 : index
    %c0_48 = arith.constant 0 : index
    %32 = vector.load %arg8[%c48_47, %c0_48] : memref<352x8xbf16, #tpu.memory_space<vmem>>, vector<256x8xbf16>
    tpu.vector_store %arg8[%c48_47, %c0_48], %28 {strides = array<i32>} : memref<352x8xbf16, #tpu.memory_space<vmem>>, vector<256x8xbf16>,
    %c0_49 = arith.constant 0 : index
    %c0_50 = arith.constant 0 : index
    %33 = vector.load %arg8[%c0_49, %c0_50] : memref<352x8xbf16, #tpu.memory_space<vmem>>, vector<256x8xbf16>
    %c0_51 = arith.constant 0 : index
    %c0_52 = arith.constant 0 : index
    %34 = vector.load %arg9[%c0_51, %c0_52] : memref<256x56xbf16, #tpu.memory_space<vmem>>, vector<256x8xbf16>
    tpu.vector_store %arg9[%c0_51, %c0_52], %33 {strides = array<i32>} : memref<256x56xbf16, #tpu.memory_space<vmem>>, vector<256x8xbf16>,
    %c16_53 = arith.constant 16 : index
    %c0_54 = arith.constant 0 : index
    %35 = vector.load %arg8[%c16_53, %c0_54] : memref<352x8xbf16, #tpu.memory_space<vmem>>, vector<256x8xbf16>
    %c0_55 = arith.constant 0 : index
    %c8_56 = arith.constant 8 : index
    %36 = vector.load %arg9[%c0_55, %c8_56] : memref<256x56xbf16, #tpu.memory_space<vmem>>, vector<256x8xbf16>
    tpu.vector_store %arg9[%c0_55, %c8_56], %35 {strides = array<i32>} : memref<256x56xbf16, #tpu.memory_space<vmem>>, vector<256x8xbf16>,
    %c32_57 = arith.constant 32 : index
    %c0_58 = arith.constant 0 : index
    %37 = vector.load %arg8[%c32_57, %c0_58] : memref<352x8xbf16, #tpu.memory_space<vmem>>, vector<256x8xbf16>
    %c0_59 = arith.constant 0 : index
    %c16_60 = arith.constant 16 : index
    %38 = vector.load %arg9[%c0_59, %c16_60] : memref<256x56xbf16, #tpu.memory_space<vmem>>, vector<256x8xbf16>
    tpu.vector_store %arg9[%c0_59, %c16_60], %37 {strides = array<i32>} : memref<256x56xbf16, #tpu.memory_space<vmem>>, vector<256x8xbf16>,
    %c48_61 = arith.constant 48 : index
    %c0_62 = arith.constant 0 : index
    %39 = vector.load %arg8[%c48_61, %c0_62] : memref<352x8xbf16, #tpu.memory_space<vmem>>, vector<256x8xbf16>
    %c0_63 = arith.constant 0 : index
    %c24_64 = arith.constant 24 : index
    %40 = vector.load %arg9[%c0_63, %c24_64] : memref<256x56xbf16, #tpu.memory_space<vmem>>, vector<256x8xbf16>
    tpu.vector_store %arg9[%c0_63, %c24_64], %39 {strides = array<i32>} : memref<256x56xbf16, #tpu.memory_space<vmem>>, vector<256x8xbf16>,
    %c64 = arith.constant 64 : index
    %c0_65 = arith.constant 0 : index
    %41 = vector.load %arg8[%c64, %c0_65] : memref<352x8xbf16, #tpu.memory_space<vmem>>, vector<256x8xbf16>
    %c0_66 = arith.constant 0 : index
    %c32_67 = arith.constant 32 : index
    %42 = vector.load %arg9[%c0_66, %c32_67] : memref<256x56xbf16, #tpu.memory_space<vmem>>, vector<256x8xbf16>
    tpu.vector_store %arg9[%c0_66, %c32_67], %41 {strides = array<i32>} : memref<256x56xbf16, #tpu.memory_space<vmem>>, vector<256x8xbf16>,
    %c80 = arith.constant 80 : index
    %c0_68 = arith.constant 0 : index
    %43 = vector.load %arg8[%c80, %c0_68] : memref<352x8xbf16, #tpu.memory_space<vmem>>, vector<256x8xbf16>
    %c0_69 = arith.constant 0 : index
    %c40_70 = arith.constant 40 : index
    %44 = vector.load %arg9[%c0_69, %c40_70] : memref<256x56xbf16, #tpu.memory_space<vmem>>, vector<256x8xbf16>
    tpu.vector_store %arg9[%c0_69, %c40_70], %43 {strides = array<i32>} : memref<256x56xbf16, #tpu.memory_space<vmem>>, vector<256x8xbf16>,
    %c96 = arith.constant 96 : index
    %c0_71 = arith.constant 0 : index
    %45 = vector.load %arg8[%c96, %c0_71] : memref<352x8xbf16, #tpu.memory_space<vmem>>, vector<256x8xbf16>
    %c0_72 = arith.constant 0 : index
    %c48_73 = arith.constant 48 : index
    %46 = vector.load %arg9[%c0_72, %c48_73] : memref<256x56xbf16, #tpu.memory_space<vmem>>, vector<256x8xbf16>
    tpu.vector_store %arg9[%c0_72, %c48_73], %45 {strides = array<i32>} : memref<256x56xbf16, #tpu.memory_space<vmem>>, vector<256x8xbf16>,
    %c0_74 = arith.constant 0 : index
    %c0_75 = arith.constant 0 : index
    %47 = vector.load %arg9[%c0_74, %c0_75] : memref<256x56xbf16, #tpu.memory_space<vmem>>, vector<256x56xbf16>
    %c0_76 = arith.constant 0 : index
    %c0_77 = arith.constant 0 : index
    %48 = vector.load %arg4[%c0_76, %c0_77] : memref<56x8xbf16, #tpu.memory_space<vmem>>, vector<56x8xbf16>
    %cst_78 = arith.constant dense<0.000000e+00> : vector<256x8xf32>
    %49 = tpu.matmul %47, %48, %cst_78 {dimension_numbers = #tpu.dot_dimension_numbers<[1], [0], [0], [1], [0, 0, 1, 1], [], []>} : vector<256x56xbf16>, vector<56x8xbf16>, vector<256x8xf32> -> vector<256x8xf32>
    %c0_79 = arith.constant 0 : index
    %c0_80 = arith.constant 0 : index
    %50 = vector.load %arg5[%c0_79, %c0_80] : memref<1x8xf32, #tpu.memory_space<vmem>>, vector<1x8xf32>
    %51 = vector.broadcast %50 : vector<1x8xf32> to vector<256x8xf32>
    %52 = arith.addf %49, %51 : vector<256x8xf32>
    %53 = arith.truncf %52 : vector<256x8xf32> to vector<256x8xbf16>
    %c0_81 = arith.constant 0 : index
    %c0_82 = arith.constant 0 : index
    %c0_83 = arith.constant 0 : index
    %54 = vector.load %arg6[%c0_81, %c0_82, %c0_83] : memref<1x256x8xbf16, #tpu.memory_space<vmem>>, vector<1x256x8xbf16>
    %55 = vector.shape_cast %54 : vector<1x256x8xbf16> to vector<256x8xbf16>
    %56 = vector.shape_cast %53 : vector<256x8xbf16> to vector<1x256x8xbf16>
    tpu.vector_store %arg6[%c0_81, %c0_82, %c0_83], %56 {strides = array<i32>} : memref<1x256x8xbf16, #tpu.memory_space<vmem>>, vector<1x256x8xbf16>,
    return
  }
  func.func @transform_0(%arg0: i32) -> (i32, i32, i32, i32) {
    %c0_i32 = arith.constant 0 : i32
    %c0_i32_0 = arith.constant 0 : i32
    %c0_i32_1 = arith.constant 0 : i32
    %c0_i32_2 = arith.constant 0 : i32
    return %arg0, %c0_i32, %c0_i32_0, %c0_i32_1 : i32, i32, i32, i32
  }
  func.func @transform_1(%arg0: i32) -> (i32, i32) {
    %c0_i32 = arith.constant 0 : i32
    %c0_i32_0 = arith.constant 0 : i32
    %c0_i32_1 = arith.constant 0 : i32
    return %c0_i32, %c0_i32_0 : i32, i32
  }
  func.func @transform_2(%arg0: i32) -> (i32, i32) {
    %c0_i32 = arith.constant 0 : i32
    %c0_i32_0 = arith.constant 0 : i32
    %c0_i32_1 = arith.constant 0 : i32
    return %c0_i32, %c0_i32_0 : i32, i32
  }
  func.func @transform_3(%arg0: i32) -> (i32, i32) {
    %c0_i32 = arith.constant 0 : i32
    %c0_i32_0 = arith.constant 0 : i32
    %c0_i32_1 = arith.constant 0 : i32
    return %c0_i32, %c0_i32_0 : i32, i32
  }
  func.func @transform_4(%arg0: i32) -> (i32, i32) {
    %c0_i32 = arith.constant 0 : i32
    %c0_i32_0 = arith.constant 0 : i32
    %c0_i32_1 = arith.constant 0 : i32
    return %c0_i32, %c0_i32_0 : i32, i32
  }
  func.func @transform_5(%arg0: i32) -> (i32, i32, i32) {
    %c0_i32 = arith.constant 0 : i32
    %c0_i32_0 = arith.constant 0 : i32
    %c0_i32_1 = arith.constant 0 : i32
    return %arg0, %c0_i32, %c0_i32_0 : i32, i32, i32
  }
}

module attributes {stable_mosaic.version = 11 : i64} {
  func.func @_pool_taps_kernel(%arg0: i32, %arg1: memref<1x4x65x8xf32, #tpu.memory_space<vmem>>, %arg2: memref<1x56x8xf32, #tpu.memory_space<vmem>>) attributes {dimension_semantics = [#tpu.dimension_semantics<parallel>], iteration_bounds = array<i64: 2>, scalar_prefetch = 0 : i64, scratch_operands = 0 : i64, tpu.core_type = #tpu.core_type<tc>, window_params = [{transform_indices = @transform_0, window_bounds = array<i64: 1, 4, 65, 8>}, {transform_indices = @transform_1, window_bounds = array<i64: 1, 56, 8>}]} {
    %c0 = arith.constant 0 : index
    %c0_0 = arith.constant 0 : index
    %c0_1 = arith.constant 0 : index
    %c0_2 = arith.constant 0 : index
    %0 = vector.load %arg1[%c0, %c0_0, %c0_1, %c0_2] : memref<1x4x65x8xf32, #tpu.memory_space<vmem>>, vector<1x1x56x8xf32>
    %1 = vector.shape_cast %0 : vector<1x1x56x8xf32> to vector<56x8xf32>
    %c0_3 = arith.constant 0 : index
    %c1 = arith.constant 1 : index
    %c0_4 = arith.constant 0 : index
    %c0_5 = arith.constant 0 : index
    %2 = vector.load %arg1[%c0_3, %c1, %c0_4, %c0_5] : memref<1x4x65x8xf32, #tpu.memory_space<vmem>>, vector<1x1x56x8xf32>
    %3 = vector.shape_cast %2 : vector<1x1x56x8xf32> to vector<56x8xf32>
    %4 = arith.maximumf %1, %3 : vector<56x8xf32>
    %c0_6 = arith.constant 0 : index
    %c0_7 = arith.constant 0 : index
    %c1_8 = arith.constant 1 : index
    %c0_9 = arith.constant 0 : index
    %5 = vector.load %arg1[%c0_6, %c0_7, %c1_8, %c0_9] : memref<1x4x65x8xf32, #tpu.memory_space<vmem>>, vector<1x1x56x8xf32>
    %6 = vector.shape_cast %5 : vector<1x1x56x8xf32> to vector<56x8xf32>
    %7 = arith.maximumf %4, %6 : vector<56x8xf32>
    %c0_10 = arith.constant 0 : index
    %c2 = arith.constant 2 : index
    %c0_11 = arith.constant 0 : index
    %c0_12 = arith.constant 0 : index
    %8 = vector.load %arg1[%c0_10, %c2, %c0_11, %c0_12] : memref<1x4x65x8xf32, #tpu.memory_space<vmem>>, vector<1x1x56x8xf32>
    %9 = vector.shape_cast %8 : vector<1x1x56x8xf32> to vector<56x8xf32>
    %10 = arith.maximumf %7, %9 : vector<56x8xf32>
    %c0_13 = arith.constant 0 : index
    %c3 = arith.constant 3 : index
    %c0_14 = arith.constant 0 : index
    %c0_15 = arith.constant 0 : index
    %11 = vector.load %arg1[%c0_13, %c3, %c0_14, %c0_15] : memref<1x4x65x8xf32, #tpu.memory_space<vmem>>, vector<1x1x56x8xf32>
    %12 = vector.shape_cast %11 : vector<1x1x56x8xf32> to vector<56x8xf32>
    %13 = arith.maximumf %10, %12 : vector<56x8xf32>
    %c0_16 = arith.constant 0 : index
    %c2_17 = arith.constant 2 : index
    %c1_18 = arith.constant 1 : index
    %c0_19 = arith.constant 0 : index
    %14 = vector.load %arg1[%c0_16, %c2_17, %c1_18, %c0_19] : memref<1x4x65x8xf32, #tpu.memory_space<vmem>>, vector<1x1x56x8xf32>
    %15 = vector.shape_cast %14 : vector<1x1x56x8xf32> to vector<56x8xf32>
    %16 = arith.maximumf %13, %15 : vector<56x8xf32>
    %c0_20 = arith.constant 0 : index
    %c0_21 = arith.constant 0 : index
    %c8 = arith.constant 8 : index
    %c0_22 = arith.constant 0 : index
    %17 = vector.load %arg1[%c0_20, %c0_21, %c8, %c0_22] : memref<1x4x65x8xf32, #tpu.memory_space<vmem>>, vector<1x1x56x8xf32>
    %18 = vector.shape_cast %17 : vector<1x1x56x8xf32> to vector<56x8xf32>
    %19 = arith.maximumf %16, %18 : vector<56x8xf32>
    %c0_23 = arith.constant 0 : index
    %c1_24 = arith.constant 1 : index
    %c8_25 = arith.constant 8 : index
    %c0_26 = arith.constant 0 : index
    %20 = vector.load %arg1[%c0_23, %c1_24, %c8_25, %c0_26] : memref<1x4x65x8xf32, #tpu.memory_space<vmem>>, vector<1x1x56x8xf32>
    %21 = vector.shape_cast %20 : vector<1x1x56x8xf32> to vector<56x8xf32>
    %22 = arith.maximumf %19, %21 : vector<56x8xf32>
    %c0_27 = arith.constant 0 : index
    %c0_28 = arith.constant 0 : index
    %c9 = arith.constant 9 : index
    %c0_29 = arith.constant 0 : index
    %23 = vector.load %arg1[%c0_27, %c0_28, %c9, %c0_29] : memref<1x4x65x8xf32, #tpu.memory_space<vmem>>, vector<1x1x56x8xf32>
    %24 = vector.shape_cast %23 : vector<1x1x56x8xf32> to vector<56x8xf32>
    %25 = arith.maximumf %22, %24 : vector<56x8xf32>
    %c0_30 = arith.constant 0 : index
    %c0_31 = arith.constant 0 : index
    %c0_32 = arith.constant 0 : index
    %26 = vector.load %arg2[%c0_30, %c0_31, %c0_32] : memref<1x56x8xf32, #tpu.memory_space<vmem>>, vector<1x56x8xf32>
    %27 = vector.shape_cast %26 : vector<1x56x8xf32> to vector<56x8xf32>
    %28 = vector.shape_cast %25 : vector<56x8xf32> to vector<1x56x8xf32>
    tpu.vector_store %arg2[%c0_30, %c0_31, %c0_32], %28 {strides = array<i32>} : memref<1x56x8xf32, #tpu.memory_space<vmem>>, vector<1x56x8xf32>,
    return
  }
  func.func @transform_0(%arg0: i32) -> (i32, i32, i32, i32) {
    %c0_i32 = arith.constant 0 : i32
    %c0_i32_0 = arith.constant 0 : i32
    %c0_i32_1 = arith.constant 0 : i32
    %c0_i32_2 = arith.constant 0 : i32
    return %arg0, %c0_i32, %c0_i32_0, %c0_i32_1 : i32, i32, i32, i32
  }
  func.func @transform_1(%arg0: i32) -> (i32, i32, i32) {
    %c0_i32 = arith.constant 0 : i32
    %c0_i32_0 = arith.constant 0 : i32
    %c0_i32_1 = arith.constant 0 : i32
    return %arg0, %c0_i32, %c0_i32_0 : i32, i32, i32
  }
}

</mosaic_0001>

<llo_original>
// kernel: reduction_b_v4.6
$region0: #{reduction_b_v4.6}
  #allocation0 [shape = 'u32[]', space=smem, size = 0x4, offset = 0x4, fixed_abs, tag = 'smem constant byte address 0x4 - core index']
  #allocation1 [shape = 'u32[72,128]{1,0:T(1,128)}', space=vmem, size = 0x9000, scoped, tag = 'internal scratch']
  #allocation2 [shape = 'bf16[128,8]{1,0:T(8,128)(2,1)}', space=vmem, size = 0x8000, scoped, tag = 'scratch operand']
  %s0 = inlined_call_operand.vmem [shape: f32[2,1,256,8], index: 0, kind: input, shape index: {}]
  %s1 = inlined_call_operand.vmem [shape: bf16[8,16], index: 1, kind: input, shape index: {}]
  %s2 = inlined_call_operand.vmem [shape: f32[1,16], index: 2, kind: input, shape index: {}]
  %s3 = inlined_call_operand.vmem [shape: bf16[2,256,16], index: 3, kind: output, shape index: {}]
  %s4 = sld [smem:[#allocation0]]
  $region45: #{reduction_b_v4.6} parent=0
    _
  %s6 = ssub.s32 1, %s4
  %s7 = scalar_select 0, %s6, %s4
  loop: start=0, step=1, limit=6
  $region2: #{reduction_b_v4.6} parent=0 // loop_pre_header
    _
  $region3: #{reduction_b_v4.6} parent=0 // loop_header
    %s9 = sphi 0, %s13
    %p10 = scmp.ge.s32.totalorder %s9, 6
    %s16 = sphi 0, %s28
    %s17 = sphi 0, %s24
    %s18 = sphi 0, %s16
    %s19 = sphi 0, %s17
    %s20 = sphi 0, %s18
    %s21 = sphi 0, %s19
    %s31 = sphi 0, %s33
    %s34 = sphi 0, %s31
    %s35 = sphi 0, %s34
    %s51 = sphi 0, %s35
    %s55 = sphi 0, %s55
    %s57 = sphi 0, %s55
    %s58 = sphi 0, %s57
    %s72 = sphi 0, %s58
    %s76 = sphi 0, %s76
    %s78 = sphi 0, %s76
    %s79 = sphi 0, %s78
    %s93 = sphi 0, %s79
    %s101 = sphi 0, %s103
    %s104 = sphi 0, %s101
    %s105 = sphi 0, %s104
    %s121 = sphi 0, %s105
  $region4: #{reduction_b_v4.6} parent=0 // loop_header_branch
    %12 = sbr.rel (%p10) target = $region8
  $region5: #{reduction_b_v4.6} parent=0 // loop_body
    %s14 = ssub.s32 %s9, 1
    %s15 = ssub.s32 %s9, 2
    %s22 = sadd.s32 1, %s17
    %p23 = scmp.ge.s32.totalorder %s22, 2
    %s24 = scalar_select %p23, 0, %s22
    %s25 = sadd.s32 1, %s16
    %s26 = scalar_select %p23, %s25, %s16
    %p27 = scmp.ge.s32.totalorder %s26, 2
    %s28 = scalar_select %p27, 0, %s26
    %s29 = ssub.s32 %s16, %s28
    %p30 = scmp.eq.s32.totalorder %s29, 0
    %s32 = sadd.s32 %s31, 1
    %s33 = scalar_select %p30, %s31, %s32
    %p36 = pneg %p30
    %p37 = scmp.eq.s32.totalorder %s9, 3
    %p38 = por %p36, %p37
    %p39 = scmp.ne.s32.totalorder %s31, %s34
    %p40 = scmp.eq.s32.totalorder %s9, 0
    %p41 = por %p39, %p40
    %p42 = scmp.ne.s32.totalorder %s31, %s34
    %p43 = scmp.eq.s32.totalorder %s14, 3
    %p44 = por %p42, %p43
    %p45 = scmp.ne.s32.totalorder %s34, %s35
    %p46 = scmp.eq.s32.totalorder %s14, 0
    %p47 = por %p45, %p46
    %p48 = scmp.ne.s32.totalorder %s34, %s35
    %p49 = scmp.eq.s32.totalorder %s15, 3
    %p50 = por %p48, %p49
    %p52 = scmp.ne.s32.totalorder %s35, %s51
    %p53 = scmp.eq.s32.totalorder %s15, 0
    %p54 = por %p52, %p53
    %s56 = sadd.s32 %s55, 1
    %p59 = scmp.eq.s32.totalorder %s9, 3
    %p60 = scmp.ne.s32.totalorder %s55, %s57
    %p61 = scmp.eq.s32.totalorder %s9, 0
    %p62 = por %p60, %p61
    %p63 = scmp.ne.s32.totalorder %s55, %s57
    %p64 = scmp.eq.s32.totalorder %s14, 3
    %p65 = por %p63, %p64
    %p66 = scmp.ne.s32.totalorder %s57, %s58
    %p67 = scmp.eq.s32.totalorder %s14, 0
    %p68 = por %p66, %p67
    %p69 = scmp.ne.s32.totalorder %s57, %s58
    %p70 = scmp.eq.s32.totalorder %s15, 3
    %p71 = por %p69, %p70
    %p73 = scmp.ne.s32.totalorder %s58, %s72
    %p74 = scmp.eq.s32.totalorder %s15, 0
    %p75 = por %p73, %p74
    %s77 = sadd.s32 %s76, 1
    %p80 = scmp.eq.s32.totalorder %s9, 3
    %p81 = scmp.ne.s32.totalorder %s76, %s78
    %p82 = scmp.eq.s32.totalorder %s9, 0
    %p83 = por %p81, %p82
    %p84 = scmp.ne.s32.totalorder %s76, %s78
    %p85 = scmp.eq.s32.totalorder %s14, 3
    %p86 = por %p84, %p85
    %p87 = scmp.ne.s32.totalorder %s78, %s79
    %p88 = scmp.eq.s32.totalorder %s14, 0
    %p89 = por %p87, %p88
    %p90 = scmp.ne.s32.totalorder %s78, %s79
    %p91 = scmp.eq.s32.totalorder %s15, 3
    %p92 = por %p90, %p91
    %p94 = scmp.ne.s32.totalorder %s79, %s93
    %p95 = scmp.eq.s32.totalorder %s15, 0
    %p96 = por %p94, %p95
    %s97 = ssub.s32 %s16, %s28
    %s98 = ssub.s32 %s17, %s24
    %s99 = sor.u32 %s97, %s98
    %p100 = scmp.eq.s32.totalorder %s99, 0
    %s102 = sadd.s32 %s101, 1
    %s103 = scalar_select %p100, %s101, %s102
    %p106 = pneg %p100
    %p107 = scmp.eq.s32.totalorder %s9, 3
    %p108 = por %p106, %p107
    %p109 = scmp.ne.s32.totalorder %s101, %s104
    %p110 = scmp.eq.s32.totalorder %s9, 0
    %p111 = por %p109, %p110
    %p112 = scmp.ne.s32.totalorder %s101, %s104
    %p113 = scmp.eq.s32.totalorder %s14, 3
    %p114 = por %p112, %p113
    %p115 = scmp.ne.s32.totalorder %s104, %s105
    %p116 = scmp.eq.s32.totalorder %s14, 0
    %p117 = por %p115, %p116
    %p118 = scmp.ne.s32.totalorder %s104, %s105
    %p119 = scmp.eq.s32.totalorder %s15, 3
    %p120 = por %p118, %p119
    %p122 = scmp.ne.s32.totalorder %s105, %s121
    %p123 = scmp.eq.s32.totalorder %s15, 0
    %p124 = por %p122, %p123
    %p125 = scmp.le.s32.totalorder 1, %s9
    %p126 = scmp.lt.s32.totalorder %s9, 5
    %p127 = pnand %p125, %p126
    %p128 = pneg %p127
    // Predicated region
    $region9: #{reduction_b_v4.6} parent=5 // pred_check
      _
    $region10: #{reduction_b_v4.6} parent=5 // pred_check_branch
      %130 = sbr.rel (%p127) target = $region12
    $region11: #{reduction_b_v4.6} parent=5 // pred_region
      %s131 = ssub.s32 %s9, 1
      // Predicated region
      $region13: #{reduction_b_v4.6} parent=11 // pred_check
        %p132 = pneg %p68
      $region14: #{reduction_b_v4.6} parent=11 // pred_check_branch
        %134 = sbr.rel (%p132) target = $region16
      $region15: #{reduction_b_v4.6} parent=11 // pred_region
        _
      $region16: #{reduction_b_v4.6} parent=11 // pred_fallthru
        _
      // Predicated region
      $region17: #{reduction_b_v4.6} parent=11 // pred_check
        %p135 = pneg %p89
      $region18: #{reduction_b_v4.6} parent=11 // pred_check_branch
        %137 = sbr.rel (%p135) target = $region20
      $region19: #{reduction_b_v4.6} parent=11 // pred_region
        _
      $region20: #{reduction_b_v4.6} parent=11 // pred_fallthru
        _
    $region12: #{reduction_b_v4.6} parent=5 // pred_fallthru
      _
    %p138 = scmp.lt.s32.totalorder %s9, 4
    // Predicated region
    $region21: #{reduction_b_v4.6} parent=5 // pred_check
      %p139 = pneg %p138
    $region22: #{reduction_b_v4.6} parent=5 // pred_check_branch
      %141 = sbr.rel (%p139) target = $region24
    $region23: #{reduction_b_v4.6} parent=5 // pred_region
      // Predicated region
      $region25: #{reduction_b_v4.6} parent=23 // pred_check
        %p142 = pneg %p41
      $region26: #{reduction_b_v4.6} parent=23 // pred_check_branch
        %144 = sbr.rel (%p142) target = $region28
      $region27: #{reduction_b_v4.6} parent=23 // pred_region
        %p145 = scmp.lt.s32.totalorder %s16, 1
        %s146 = scalar_select %p145, %s16, 1
        %s147 = smul.addr %s146, 32
        %s148 = smul.addr %s147, 8
        %s149 = scalar_lea.vmem %s0, %s148
      $region28: #{reduction_b_v4.6} parent=23 // pred_fallthru
        _
    $region24: #{reduction_b_v4.6} parent=5 // pred_fallthru
      _
    %p150 = scmp.le.s32.totalorder 1, %s9
    %p151 = scmp.lt.s32.totalorder %s9, 5
    %p152 = pnand %p150, %p151
    %p153 = pneg %p152
    // Predicated region
    $region29: #{reduction_b_v4.6} parent=5 // pred_check
      _
    $region30: #{reduction_b_v4.6} parent=5 // pred_check_branch
      %155 = sbr.rel (%p152) target = $region32
    $region31: #{reduction_b_v4.6} parent=5 // pred_region
      %s156 = ssub.s32 %s9, 1
      %p157 = scmp.lt.s32.totalorder %s18, 1
      %s158 = scalar_select %p157, %s18, 1
      %s159 = smul.addr %s158, 32
      %s160 = smul.addr %s159, 8
      %s161 = scalar_lea.vmem %s0, %s160
      %p162 = pneg %p47
      %p163 = pneg %p44
      %p164 = pneg %p68
      %p165 = pneg %p65
      %p166 = pneg %p89
      %p167 = pneg %p86
      %p168 = pneg %p117
      %p169 = pneg %p114
      %s170 = smul.u32 16, %s19
      %p171 = scmp.lt.s32.totalorder %s18, 1
      %s172 = scalar_select %p171, %s18, 1
      %p173 = scmp.lt.s32.totalorder %s170, 31
      %s174 = scalar_select %p173, %s170, 31
      %s175 = smul.addr %s172, 32
      %s176 = sadd.s32 %s174, %s175
      %s177 = smul.addr %s176, 4
      %s178 = scalar_lea.vmem %s3, %s177
      %p179 = scmp.lt.s32.totalorder %s18, 1
      %s180 = scalar_select %p179, %s18, 1
      %s181 = smul.addr %s180, 32
      %s182 = smul.addr %s181, 8
      %s183 = scalar_lea.vmem %s0, %s182
      %s184 = smul.u32 16, %s19
      %p185 = scmp.lt.s32.totalorder %s18, 1
      %s186 = scalar_select %p185, %s18, 1
      %p187 = scmp.lt.s32.totalorder %s184, 31
      %s188 = scalar_select %p187, %s184, 31
      %s189 = smul.addr %s186, 32
      %s190 = sadd.s32 %s188, %s189
      %s191 = smul.addr %s190, 4
      %s192 = scalar_lea.vmem %s3, %s191
      %s193 = smul.u32 16, %s19
      %s195 = smul.u32 %s19, 128
      %s196 = scalar_lea.vmem %s183, %s195
      %v197 = vld [vmem:[%s196] sm:$0xff]
      %v198 = vld [vmem:[%s196 + $0x8] sm:$0xff]
      %v199 = vld [vmem:[%s196 + $0x10] sm:$0xff]
      %v200 = vld [vmem:[%s196 + $0x18] sm:$0xff]
      %v201 = vld [vmem:[%s196 + $0x20] sm:$0xff]
      %v202 = vld [vmem:[%s196 + $0x28] sm:$0xff]
      %v203 = vld [vmem:[%s196 + $0x30] sm:$0xff]
      %v204 = vld [vmem:[%s196 + $0x38] sm:$0xff]
      %v205 = vld [vmem:[%s196 + $0x40] sm:$0xff]
      %v206 = vld [vmem:[%s196 + $0x48] sm:$0xff]
      %v207 = vld [vmem:[%s196 + $0x50] sm:$0xff]
      %v208 = vld [vmem:[%s196 + $0x58] sm:$0xff]
      %v209 = vld [vmem:[%s196 + $0x60] sm:$0xff]
      %v210 = vld [vmem:[%s196 + $0x68] sm:$0xff]
      %v211 = vld [vmem:[%s196 + $0x70] sm:$0xff]
      %v212 = vld [vmem:[%s196 + $0x78] sm:$0xff]
      %v213 = vpack.c.bf16 %v198, %v197
      %v214 = vpack.c.bf16 %v200, %v199
      %v215 = vpack.c.bf16 %v202, %v201
      %v216 = vpack.c.bf16 %v204, %v203
      %v217 = vpack.c.bf16 %v206, %v205
      %v218 = vpack.c.bf16 %v208, %v207
      %v219 = vpack.c.bf16 %v210, %v209
      %v220 = vpack.c.bf16 %v212, %v211
      %v221 = vld [vmem:[%s1] sm:$0xf]
      %v222 = vld [vmem:[%s2] sm:$0x1]
      %v224 = vperm.slane %v222, 0
      %vm226 = vcmask 64512
      %v228 = vsel %vm226, %v213, 0
      %v231 = vsel %vm226, %v214, 0
      %v234 = vsel %vm226, %v215, 0
      %v237 = vsel %vm226, %v216, 0
      %v240 = vsel %vm226, %v217, 0
      %v243 = vsel %vm226, %v218, 0
      %v246 = vsel %vm226, %v219, 0
      %v249 = vsel %vm226, %v220, 0
      %vm251 = vcmask 1043456
      %v253 = vsel %vm251, %v221, 0
      %255 = vmatpush.bf16.msra.mxu0 0
      %256 = vmatpush.bf16.msra.mxu0 0
      %257 = vmatpush.bf16.msra.mxu0 0
      %258 = vmatpush.bf16.msra.mxu0 0
      %259 = vmatpush.bf16.msra.mxu0 0
      %260 = vmatpush.bf16.msra.mxu0 0
      %261 = vmatpush.bf16.msra.mxu0 0
      %262 = vmatpush.bf16.msra.mxu0 %v253
      %263 = vmatmul.bf16.gmra.mxu0 %v228
      %v264 = vpop.f32.mrf.mxu0
      %v265 = vadd.f32 %v224, %v264
      %v266 = vpop.f32.mrf.mxu0
      %v267 = vadd.f32 %v224, %v266
      %268 = vmatmul.bf16.gmra.mxu0 %v231
      %v269 = vpop.f32.mrf.mxu0
      %v270 = vadd.f32 %v224, %v269
      %v271 = vpop.f32.mrf.mxu0
      %v272 = vadd.f32 %v224, %v271
      %273 = vmatmul.bf16.gmra.mxu0 %v234
      %v274 = vpop.f32.mrf.mxu0
      %v275 = vadd.f32 %v224, %v274
      %v276 = vpop.f32.mrf.mxu0
      %v277 = vadd.f32 %v224, %v276
      %278 = vmatmul.bf16.gmra.mxu0 %v237
      %v279 = vpop.f32.mrf.mxu0
      %v280 = vadd.f32 %v224, %v279
      %v281 = vpop.f32.mrf.mxu0
      %v282 = vadd.f32 %v224, %v281
      %283 = vmatmul.bf16.gmra.mxu0 %v240
      %v284 = vpop.f32.mrf.mxu0
      %v285 = vadd.f32 %v224, %v284
      %v286 = vpop.f32.mrf.mxu0
      %v287 = vadd.f32 %v224, %v286
      %288 = vmatmul.bf16.gmra.mxu0 %v243
      %v289 = vpop.f32.mrf.mxu0
      %v290 = vadd.f32 %v224, %v289
      %v291 = vpop.f32.mrf.mxu0
      %v292 = vadd.f32 %v224, %v291
      %293 = vmatmul.bf16.gmra.mxu0 %v246
      %v294 = vpop.f32.mrf.mxu0
      %v295 = vadd.f32 %v224, %v294
      %v296 = vpop.f32.mrf.mxu0
      %v297 = vadd.f32 %v224, %v296
      %298 = vmatmul.bf16.gmra.mxu0 %v249
      %v299 = vpop.f32.mrf.mxu0
      %v300 = vadd.f32 %v224, %v299
      %v301 = vpop.f32.mrf.mxu0
      %v302 = vadd.f32 %v224, %v301
      %303 = vdwg.mxu0
      %v304 = vpack.c.bf16 %v265, %v265
      %v305 = vpack.c.bf16 %v267, %v267
      %v306 = vpack.c.bf16 %v270, %v270
      %v307 = vpack.c.bf16 %v272, %v272
      %v308 = vpack.c.bf16 %v275, %v275
      %v309 = vpack.c.bf16 %v277, %v277
      %v310 = vpack.c.bf16 %v280, %v280
      %v311 = vpack.c.bf16 %v282, %v282
      %v312 = vpack.c.bf16 %v285, %v285
      %v313 = vpack.c.bf16 %v287, %v287
      %v314 = vpack.c.bf16 %v290, %v290
      %v315 = vpack.c.bf16 %v292, %v292
      %v316 = vpack.c.bf16 %v295, %v295
      %v317 = vpack.c.bf16 %v297, %v297
      %v318 = vpack.c.bf16 %v300, %v300
      %v319 = vpack.c.bf16 %v302, %v302
      %vm320 = vcmask 125952
      %321 = vst.msk [vmem:[%s192] sm:$0xf] %vm320, %v304
      %322 = vst.msk [vmem:[%s192 + $0x4] sm:$0xf] %vm320, %v305
      %323 = vst.msk [vmem:[%s192 + $0x8] sm:$0xf] %vm320, %v306
      %324 = vst.msk [vmem:[%s192 + $0xc] sm:$0xf] %vm320, %v307
      %325 = vst.msk [vmem:[%s192 + $0x10] sm:$0xf] %vm320, %v308
      %326 = vst.msk [vmem:[%s192 + $0x14] sm:$0xf] %vm320, %v309
      %327 = vst.msk [vmem:[%s192 + $0x18] sm:$0xf] %vm320, %v310
      %328 = vst.msk [vmem:[%s192 + $0x1c] sm:$0xf] %vm320, %v311
      %329 = vst.msk [vmem:[%s192 + $0x20] sm:$0xf] %vm320, %v312
      %330 = vst.msk [vmem:[%s192 + $0x24] sm:$0xf] %vm320, %v313
      %331 = vst.msk [vmem:[%s192 + $0x28] sm:$0xf] %vm320, %v314
      %332 = vst.msk [vmem:[%s192 + $0x2c] sm:$0xf] %vm320, %v315
      %333 = vst.msk [vmem:[%s192 + $0x30] sm:$0xf] %vm320, %v316
      %334 = vst.msk [vmem:[%s192 + $0x34] sm:$0xf] %vm320, %v317
      %335 = vst.msk [vmem:[%s192 + $0x38] sm:$0xf] %vm320, %v318
      %336 = vst.msk [vmem:[%s192 + $0x3c] sm:$0xf] %vm320, %v319
      %s337 = smul.u32 16, %s19
      %p338 = scmp.lt.s32.totalorder %s18, 1
      %s339 = scalar_select %p338, %s18, 1
      %p340 = scmp.lt.s32.totalorder %s337, 31
      %s341 = scalar_select %p340, %s337, 31
      %s342 = smul.addr %s339, 32
      %s343 = sadd.s32 %s341, %s342
      %s344 = smul.addr %s343, 4
      %s345 = scalar_lea.vmem %s3, %s344
      // Predicated region
      $region33: #{reduction_b_v4.6} parent=31 // pred_check
        %p346 = pneg %p114
      $region34: #{reduction_b_v4.6} parent=31 // pred_check_branch
        %348 = sbr.rel (%p346) target = $region36
      $region35: #{reduction_b_v4.6} parent=31 // pred_region
        %s349 = smul.u32 16, %s19
      $region36: #{reduction_b_v4.6} parent=31 // pred_fallthru
        _
    $region32: #{reduction_b_v4.6} parent=5 // pred_fallthru
      _
    %p350 = scmp.le.s32.totalorder 2, %s9
    // Predicated region
    $region37: #{reduction_b_v4.6} parent=5 // pred_check
      %p351 = pneg %p350
    $region38: #{reduction_b_v4.6} parent=5 // pred_check_branch
      %353 = sbr.rel (%p351) target = $region40
    $region39: #{reduction_b_v4.6} parent=5 // pred_region
      %s354 = ssub.s32 %s9, 2
      // Predicated region
      $region41: #{reduction_b_v4.6} parent=39 // pred_check
        %p355 = pneg %p120
      $region42: #{reduction_b_v4.6} parent=39 // pred_check_branch
        %357 = sbr.rel (%p355) target = $region44
      $region43: #{reduction_b_v4.6} parent=39 // pred_region
        %s358 = smul.u32 16, %s21
        %p359 = scmp.lt.s32.totalorder %s20, 1
        %s360 = scalar_select %p359, %s20, 1
        %p361 = scmp.lt.s32.totalorder %s358, 31
        %s362 = scalar_select %p361, %s358, 31
        %s363 = smul.addr %s360, 32
        %s364 = sadd.s32 %s362, %s363
        %s365 = smul.addr %s364, 4
        %s366 = scalar_lea.vmem %s3, %s365
      $region44: #{reduction_b_v4.6} parent=39 // pred_fallthru
        _
    $region40: #{reduction_b_v4.6} parent=5 // pred_fallthru
      _
  $region6: #{reduction_b_v4.6} parent=0 // loop_footer
    %s13 = sadd.s32 1, %s9
  $region7: #{reduction_b_v4.6} parent=0 // loop_footer_branch
    %8 = sbr.rel target = $region3
  $region8: #{reduction_b_v4.6} parent=0 // loop_exit
    _

// kernel: reduction_b_v4.7
$region0: #{reduction_b_v4.7}
  #allocation0 [shape = 'u32[]', space=smem, size = 0x4, offset = 0x4, fixed_abs, tag = 'smem constant byte address 0x4 - core index']
  #allocation1 [shape = 'u32[72,128]{1,0:T(1,128)}', space=vmem, size = 0x9000, scoped, tag = 'internal scratch']
  #allocation2 [shape = 'bf16[56,72]{1,0:T(8,128)(2,1)}', space=vmem, size = 0x3800, scoped, tag = 'scratch operand']
  %s0 = inlined_call_operand.vmem [shape: bf16[2,4,65,8], index: 0, kind: input, shape index: {}]
  %s1 = inlined_call_operand.vmem [shape: bf16[72,16], index: 1, kind: input, shape index: {}]
  %s2 = inlined_call_operand.vmem [shape: f32[1,16], index: 2, kind: input, shape index: {}]
  %s3 = inlined_call_operand.vmem [shape: f32[2,56,16], index: 3, kind: output, shape index: {}]
  %s4 = sld [smem:[#allocation0]]
  $region45: #{reduction_b_v4.7} parent=0
    _
  %s6 = ssub.s32 1, %s4
  %s7 = scalar_select 0, %s6, %s4
  loop: start=0, step=1, limit=4
  $region2: #{reduction_b_v4.7} parent=0 // loop_pre_header
    _
  $region3: #{reduction_b_v4.7} parent=0 // loop_header
    %s9 = sphi 0, %s13
    %p10 = scmp.ge.s32.totalorder %s9, 4
    %s16 = sphi 0, %s28
    %s17 = sphi 0, %s24
    %s18 = sphi 0, %s16
    %s19 = sphi 0, %s17
    %s20 = sphi 0, %s18
    %s21 = sphi 0, %s19
    %s31 = sphi 0, %s33
    %s34 = sphi 0, %s31
    %s35 = sphi 0, %s34
    %s51 = sphi 0, %s35
    %s55 = sphi 0, %s55
    %s57 = sphi 0, %s55
    %s58 = sphi 0, %s57
    %s72 = sphi 0, %s58
    %s76 = sphi 0, %s76
    %s78 = sphi 0, %s76
    %s79 = sphi 0, %s78
    %s93 = sphi 0, %s79
    %s101 = sphi 0, %s103
    %s104 = sphi 0, %s101
    %s105 = sphi 0, %s104
    %s121 = sphi 0, %s105
  $region4: #{reduction_b_v4.7} parent=0 // loop_header_branch
    %12 = sbr.rel (%p10) target = $region8
  $region5: #{reduction_b_v4.7} parent=0 // loop_body
    %s14 = ssub.s32 %s9, 1
    %s15 = ssub.s32 %s9, 2
    %s22 = sadd.s32 1, %s17
    %p23 = scmp.ge.s32.totalorder %s22, 1
    %s24 = scalar_select %p23, 0, %s22
    %s25 = sadd.s32 1, %s16
    %s26 = scalar_select %p23, %s25, %s16
    %p27 = scmp.ge.s32.totalorder %s26, 2
    %s28 = scalar_select %p27, 0, %s26
    %s29 = ssub.s32 %s16, %s28
    %p30 = scmp.eq.s32.totalorder %s29, 0
    %s32 = sadd.s32 %s31, 1
    %s33 = scalar_select %p30, %s31, %s32
    %p36 = pneg %p30
    %p37 = scmp.eq.s32.totalorder %s9, 1
    %p38 = por %p36, %p37
    %p39 = scmp.ne.s32.totalorder %s31, %s34
    %p40 = scmp.eq.s32.totalorder %s9, 0
    %p41 = por %p39, %p40
    %p42 = scmp.ne.s32.totalorder %s31, %s34
    %p43 = scmp.eq.s32.totalorder %s14, 1
    %p44 = por %p42, %p43
    %p45 = scmp.ne.s32.totalorder %s34, %s35
    %p46 = scmp.eq.s32.totalorder %s14, 0
    %p47 = por %p45, %p46
    %p48 = scmp.ne.s32.totalorder %s34, %s35
    %p49 = scmp.eq.s32.totalorder %s15, 1
    %p50 = por %p48, %p49
    %p52 = scmp.ne.s32.totalorder %s35, %s51
    %p53 = scmp.eq.s32.totalorder %s15, 0
    %p54 = por %p52, %p53
    %s56 = sadd.s32 %s55, 1
    %p59 = scmp.eq.s32.totalorder %s9, 1
    %p60 = scmp.ne.s32.totalorder %s55, %s57
    %p61 = scmp.eq.s32.totalorder %s9, 0
    %p62 = por %p60, %p61
    %p63 = scmp.ne.s32.totalorder %s55, %s57
    %p64 = scmp.eq.s32.totalorder %s14, 1
    %p65 = por %p63, %p64
    %p66 = scmp.ne.s32.totalorder %s57, %s58
    %p67 = scmp.eq.s32.totalorder %s14, 0
    %p68 = por %p66, %p67
    %p69 = scmp.ne.s32.totalorder %s57, %s58
    %p70 = scmp.eq.s32.totalorder %s15, 1
    %p71 = por %p69, %p70
    %p73 = scmp.ne.s32.totalorder %s58, %s72
    %p74 = scmp.eq.s32.totalorder %s15, 0
    %p75 = por %p73, %p74
    %s77 = sadd.s32 %s76, 1
    %p80 = scmp.eq.s32.totalorder %s9, 1
    %p81 = scmp.ne.s32.totalorder %s76, %s78
    %p82 = scmp.eq.s32.totalorder %s9, 0
    %p83 = por %p81, %p82
    %p84 = scmp.ne.s32.totalorder %s76, %s78
    %p85 = scmp.eq.s32.totalorder %s14, 1
    %p86 = por %p84, %p85
    %p87 = scmp.ne.s32.totalorder %s78, %s79
    %p88 = scmp.eq.s32.totalorder %s14, 0
    %p89 = por %p87, %p88
    %p90 = scmp.ne.s32.totalorder %s78, %s79
    %p91 = scmp.eq.s32.totalorder %s15, 1
    %p92 = por %p90, %p91
    %p94 = scmp.ne.s32.totalorder %s79, %s93
    %p95 = scmp.eq.s32.totalorder %s15, 0
    %p96 = por %p94, %p95
    %s97 = ssub.s32 %s16, %s28
    %s98 = ssub.s32 %s17, %s24
    %s99 = sor.u32 %s97, %s98
    %p100 = scmp.eq.s32.totalorder %s99, 0
    %s102 = sadd.s32 %s101, 1
    %s103 = scalar_select %p100, %s101, %s102
    %p106 = pneg %p100
    %p107 = scmp.eq.s32.totalorder %s9, 1
    %p108 = por %p106, %p107
    %p109 = scmp.ne.s32.totalorder %s101, %s104
    %p110 = scmp.eq.s32.totalorder %s9, 0
    %p111 = por %p109, %p110
    %p112 = scmp.ne.s32.totalorder %s101, %s104
    %p113 = scmp.eq.s32.totalorder %s14, 1
    %p114 = por %p112, %p113
    %p115 = scmp.ne.s32.totalorder %s104, %s105
    %p116 = scmp.eq.s32.totalorder %s14, 0
    %p117 = por %p115, %p116
    %p118 = scmp.ne.s32.totalorder %s104, %s105
    %p119 = scmp.eq.s32.totalorder %s15, 1
    %p120 = por %p118, %p119
    %p122 = scmp.ne.s32.totalorder %s105, %s121
    %p123 = scmp.eq.s32.totalorder %s15, 0
    %p124 = por %p122, %p123
    %p125 = scmp.le.s32.totalorder 1, %s9
    %p126 = scmp.lt.s32.totalorder %s9, 3
    %p127 = pnand %p125, %p126
    %p128 = pneg %p127
    // Predicated region
    $region9: #{reduction_b_v4.7} parent=5 // pred_check
      _
    $region10: #{reduction_b_v4.7} parent=5 // pred_check_branch
      %130 = sbr.rel (%p127) target = $region12
    $region11: #{reduction_b_v4.7} parent=5 // pred_region
      %s131 = ssub.s32 %s9, 1
      // Predicated region
      $region13: #{reduction_b_v4.7} parent=11 // pred_check
        %p132 = pneg %p68
      $region14: #{reduction_b_v4.7} parent=11 // pred_check_branch
        %134 = sbr.rel (%p132) target = $region16
      $region15: #{reduction_b_v4.7} parent=11 // pred_region
        _
      $region16: #{reduction_b_v4.7} parent=11 // pred_fallthru
        _
      // Predicated region
      $region17: #{reduction_b_v4.7} parent=11 // pred_check
        %p135 = pneg %p89
      $region18: #{reduction_b_v4.7} parent=11 // pred_check_branch
        %137 = sbr.rel (%p135) target = $region20
      $region19: #{reduction_b_v4.7} parent=11 // pred_region
        _
      $region20: #{reduction_b_v4.7} parent=11 // pred_fallthru
        _
    $region12: #{reduction_b_v4.7} parent=5 // pred_fallthru
      _
    %p138 = scmp.lt.s32.totalorder %s9, 2
    // Predicated region
    $region21: #{reduction_b_v4.7} parent=5 // pred_check
      %p139 = pneg %p138
    $region22: #{reduction_b_v4.7} parent=5 // pred_check_branch
      %141 = sbr.rel (%p139) target = $region24
    $region23: #{reduction_b_v4.7} parent=5 // pred_region
      // Predicated region
      $region25: #{reduction_b_v4.7} parent=23 // pred_check
        %p142 = pneg %p41
      $region26: #{reduction_b_v4.7} parent=23 // pred_check_branch
        %144 = sbr.rel (%p142) target = $region28
      $region27: #{reduction_b_v4.7} parent=23 // pred_region
        %p145 = scmp.lt.s32.totalorder %s16, 1
        %s146 = scalar_select %p145, %s16, 1
        %s147 = smul.addr %s146, 36
        %s148 = smul.addr %s147, 4
        %s149 = scalar_lea.vmem %s0, %s148
      $region28: #{reduction_b_v4.7} parent=23 // pred_fallthru
        _
    $region24: #{reduction_b_v4.7} parent=5 // pred_fallthru
      _
    %p150 = scmp.le.s32.totalorder 1, %s9
    %p151 = scmp.lt.s32.totalorder %s9, 3
    %p152 = pnand %p150, %p151
    %p153 = pneg %p152
    // Predicated region
    $region29: #{reduction_b_v4.7} parent=5 // pred_check
      _
    $region30: #{reduction_b_v4.7} parent=5 // pred_check_branch
      %155 = sbr.rel (%p152) target = $region32
    $region31: #{reduction_b_v4.7} parent=5 // pred_region
      %s156 = ssub.s32 %s9, 1
      %p157 = scmp.lt.s32.totalorder %s18, 1
      %s158 = scalar_select %p157, %s18, 1
      %s159 = smul.addr %s158, 36
      %s160 = smul.addr %s159, 4
      %s161 = scalar_lea.vmem %s0, %s160
      %p162 = pneg %p47
      %p163 = pneg %p44
      %p164 = pneg %p68
      %p165 = pneg %p65
      %p166 = pneg %p89
      %p167 = pneg %p86
      %p168 = pneg %p117
      %p169 = pneg %p114
      %s170 = smul.u32 7, %s19
      %p171 = scmp.lt.s32.totalorder %s18, 1
      %s172 = scalar_select %p171, %s18, 1
      %p173 = scmp.lt.s32.totalorder %s170, 6
      %s174 = scalar_select %p173, %s170, 6
      %s175 = smul.addr %s172, 7
      %s176 = sadd.s32 %s174, %s175
      %s177 = smul.addr %s176, 8
      %s178 = scalar_lea.vmem %s3, %s177
      %p179 = scmp.lt.s32.totalorder %s18, 1
      %s180 = scalar_select %p179, %s18, 1
      %s181 = smul.addr %s180, 36
      %s182 = smul.addr %s181, 4
      %s183 = scalar_lea.vmem %s0, %s182
      %s184 = smul.u32 7, %s19
      %p185 = scmp.lt.s32.totalorder %s18, 1
      %s186 = scalar_select %p185, %s18, 1
      %p187 = scmp.lt.s32.totalorder %s184, 6
      %s188 = scalar_select %p187, %s184, 6
      %s189 = smul.addr %s186, 7
      %s190 = sadd.s32 %s188, %s189
      %s191 = smul.addr %s190, 8
      %s192 = scalar_lea.vmem %s3, %s191
      %s193 = smul.u32 7, %s19
      %v195 = vld [vmem:[%s183] sm:$0xf]
      %v196 = vld [vmem:[%s183 + $0x4] sm:$0xf]
      %v197 = vld [vmem:[%s183 + $0x8] sm:$0xf]
      %v198 = vld [vmem:[%s183 + $0xc] sm:$0xf]
      %v199 = vld [vmem:[%s183 + $0x10] sm:$0xf]
      %v200 = vld [vmem:[%s183 + $0x14] sm:$0xf]
      %v201 = vld [vmem:[%s183 + $0x18] sm:$0xf]
      %vm202 = vcmask 60416
      %203 = vst.msk [vmem:[#allocation2] sm:$0xf] %vm202, %v195
      %204 = vst.msk [vmem:[#allocation2 + $0x4] sm:$0xf] %vm202, %v196
      %205 = vst.msk [vmem:[#allocation2 + $0x8] sm:$0xf] %vm202, %v197
      %206 = vst.msk [vmem:[#allocation2 + $0xc] sm:$0xf] %vm202, %v198
      %207 = vst.msk [vmem:[#allocation2 + $0x10] sm:$0xf] %vm202, %v199
      %208 = vst.msk [vmem:[#allocation2 + $0x14] sm:$0xf] %vm202, %v200
      %209 = vst.msk [vmem:[#allocation2 + $0x18] sm:$0xf] %vm202, %v201
      %s210 = scalar_lea.vmem %s183, 36
      %v211 = vld [vmem:[%s210] sm:$0xf]
      %v212 = vld [vmem:[%s210 + $0x4] sm:$0xf]
      %v213 = vld [vmem:[%s210 + $0x8] sm:$0xf]
      %v214 = vld [vmem:[%s210 + $0xc] sm:$0xf]
      %v215 = vld [vmem:[%s210 + $0x10] sm:$0xf]
      %v216 = vld [vmem:[%s210 + $0x14] sm:$0xf]
      %v217 = vld [vmem:[%s210 + $0x18] sm:$0xf]
      %225 = vrot.lane.b32.xlu0 %v211, 8
      %v226 = vpop.permute.xlu0 %225
      %227 = vrot.lane.b32.xlu0 %v212, 8
      %v228 = vpop.permute.xlu0 %227
      %229 = vrot.lane.b32.xlu0 %v213, 8
      %v230 = vpop.permute.xlu0 %229
      %231 = vrot.lane.b32.xlu0 %v214, 8
      %v232 = vpop.permute.xlu0 %231
      %233 = vrot.lane.b32.xlu0 %v215, 8
      %v234 = vpop.permute.xlu0 %233
      %235 = vrot.lane.b32.xlu0 %v216, 8
      %v236 = vpop.permute.xlu0 %235
      %237 = vrot.lane.b32.xlu0 %v217, 8
      %v238 = vpop.permute.xlu0 %237
      %vm246 = vcmask 126016
      %247 = vst.msk [vmem:[#allocation2] sm:$0xf] %vm246, %v226
      %248 = vst.msk [vmem:[#allocation2 + $0x4] sm:$0xf] %vm246, %v228
      %249 = vst.msk [vmem:[#allocation2 + $0x8] sm:$0xf] %vm246, %v230
      %250 = vst.msk [vmem:[#allocation2 + $0xc] sm:$0xf] %vm246, %v232
      %251 = vst.msk [vmem:[#allocation2 + $0x10] sm:$0xf] %vm246, %v234
      %252 = vst.msk [vmem:[#allocation2 + $0x14] sm:$0xf] %vm246, %v236
      %253 = vst.msk [vmem:[#allocation2 + $0x18] sm:$0xf] %vm246, %v238
      %v254 = vld [vmem:[%s183] sm:$0xf]
      %v255 = vld [vmem:[%s183 + $0x4] sm:$0xf]
      %v256 = vld [vmem:[%s183 + $0x8] sm:$0xf]
      %v257 = vld [vmem:[%s183 + $0xc] sm:$0xf]
      %v258 = vld [vmem:[%s183 + $0x10] sm:$0xf]
      %v259 = vld [vmem:[%s183 + $0x14] sm:$0xf]
      %v260 = vld [vmem:[%s183 + $0x18] sm:$0xf]
      %v261 = vld [vmem:[%s183 + $0x1c] sm:$0x1]
      %vm262 = vsmask.f32 3328
      %vm263 = vsmask.f32 7440
      %vm264 = vmor %vm262, %vm263
      %v266 = vshrl.u32 %v254, 16
      %v268 = vrot.slane %v266, 4
      %v269 = vshll.u32 %v254, 16
      %v271 = vrot.slane %v269, 5
      %v272 = vor.u32 %v268, %v271
      %v273 = vrot.slane %v272, 4
      %v275 = vshll.u32 %v255, 16
      %v277 = vrot.slane %v275, 5
      %v278 = vsel %vm264, %v273, %v277
      %v279 = vshrl.u32 %v255, 16
      %v281 = vrot.slane %v279, 4
      %v282 = vor.u32 %v281, %v277
      %v283 = vrot.slane %v282, 4
      %v285 = vshll.u32 %v256, 16
      %v287 = vrot.slane %v285, 5
      %v288 = vsel %vm264, %v283, %v287
      %v289 = vshrl.u32 %v256, 16
      %v291 = vrot.slane %v289, 4
      %v292 = vor.u32 %v291, %v287
      %v293 = vrot.slane %v292, 4
      %v295 = vshll.u32 %v257, 16
      %v297 = vrot.slane %v295, 5
      %v298 = vsel %vm264, %v293, %v297
      %v299 = vshrl.u32 %v257, 16
      %v301 = vrot.slane %v299, 4
      %v302 = vor.u32 %v301, %v297
      %v303 = vrot.slane %v302, 4
      %v305 = vshll.u32 %v258, 16
      %v307 = vrot.slane %v305, 5
      %v308 = vsel %vm264, %v303, %v307
      %v309 = vshrl.u32 %v258, 16
      %v311 = vrot.slane %v309, 4
      %v312 = vor.u32 %v311, %v307
      %v313 = vrot.slane %v312, 4
      %v315 = vshll.u32 %v259, 16
      %v317 = vrot.slane %v315, 5
      %v318 = vsel %vm264, %v313, %v317
      %v319 = vshrl.u32 %v259, 16
      %v321 = vrot.slane %v319, 4
      %v322 = vor.u32 %v321, %v317
      %v323 = vrot.slane %v322, 4
      %v325 = vshll.u32 %v260, 16
      %v327 = vrot.slane %v325, 5
      %v328 = vsel %vm264, %v323, %v327
      %v329 = vshrl.u32 %v260, 16
      %v331 = vrot.slane %v329, 4
      %v332 = vor.u32 %v331, %v327
      %v333 = vrot.slane %v332, 4
      %v335 = vshll.u32 %v261, 16
      %v337 = vrot.slane %v335, 5
      %v338 = vsel %vm264, %v333, %v337
      %339 = vrot.lane.b32.xlu0 %v278, 16
      %v340 = vpop.permute.xlu0 %339
      %341 = vrot.lane.b32.xlu0 %v288, 16
      %v342 = vpop.permute.xlu0 %341
      %343 = vrot.lane.b32.xlu0 %v298, 16
      %v344 = vpop.permute.xlu0 %343
      %345 = vrot.lane.b32.xlu0 %v308, 16
      %v346 = vpop.permute.xlu0 %345
      %347 = vrot.lane.b32.xlu0 %v318, 16
      %v348 = vpop.permute.xlu0 %347
      %349 = vrot.lane.b32.xlu0 %v328, 16
      %v350 = vpop.permute.xlu0 %349
      %351 = vrot.lane.b32.xlu0 %v338, 16
      %v352 = vpop.permute.xlu0 %351
      %vm360 = vcmask 191616
      %361 = vst.msk [vmem:[#allocation2] sm:$0xf] %vm360, %v340
      %362 = vst.msk [vmem:[#allocation2 + $0x4] sm:$0xf] %vm360, %v342
      %363 = vst.msk [vmem:[#allocation2 + $0x8] sm:$0xf] %vm360, %v344
      %364 = vst.msk [vmem:[#allocation2 + $0xc] sm:$0xf] %vm360, %v346
      %365 = vst.msk [vmem:[#allocation2 + $0x10] sm:$0xf] %vm360, %v348
      %366 = vst.msk [vmem:[#allocation2 + $0x14] sm:$0xf] %vm360, %v350
      %367 = vst.msk [vmem:[#allocation2 + $0x18] sm:$0xf] %vm360, %v352
      %s368 = scalar_lea.vmem %s183, 72
      %v369 = vld [vmem:[%s368] sm:$0xf]
      %v370 = vld [vmem:[%s368 + $0x4] sm:$0xf]
      %v371 = vld [vmem:[%s368 + $0x8] sm:$0xf]
      %v372 = vld [vmem:[%s368 + $0xc] sm:$0xf]
      %v373 = vld [vmem:[%s368 + $0x10] sm:$0xf]
      %v374 = vld [vmem:[%s368 + $0x14] sm:$0xf]
      %v375 = vld [vmem:[%s368 + $0x18] sm:$0xf]
      %383 = vrot.lane.b32.xlu0 %v369, 24
      %v384 = vpop.permute.xlu0 %383
      %385 = vrot.lane.b32.xlu0 %v370, 24
      %v386 = vpop.permute.xlu0 %385
      %387 = vrot.lane.b32.xlu0 %v371, 24
      %v388 = vpop.permute.xlu0 %387
      %389 = vrot.lane.b32.xlu0 %v372, 24
      %v390 = vpop.permute.xlu0 %389
      %391 = vrot.lane.b32.xlu0 %v373, 24
      %v392 = vpop.permute.xlu0 %391
      %393 = vrot.lane.b32.xlu0 %v374, 24
      %v394 = vpop.permute.xlu0 %393
      %395 = vrot.lane.b32.xlu0 %v375, 24
      %v396 = vpop.permute.xlu0 %395
      %vm404 = vcmask 257216
      %405 = vst.msk [vmem:[#allocation2] sm:$0xf] %vm404, %v384
      %406 = vst.msk [vmem:[#allocation2 + $0x4] sm:$0xf] %vm404, %v386
      %407 = vst.msk [vmem:[#allocation2 + $0x8] sm:$0xf] %vm404, %v388
      %408 = vst.msk [vmem:[#allocation2 + $0xc] sm:$0xf] %vm404, %v390
      %409 = vst.msk [vmem:[#allocation2 + $0x10] sm:$0xf] %vm404, %v392
      %410 = vst.msk [vmem:[#allocation2 + $0x14] sm:$0xf] %vm404, %v394
      %411 = vst.msk [vmem:[#allocation2 + $0x18] sm:$0xf] %vm404, %v396
      %s412 = scalar_lea.vmem %s183, 108
      %v413 = vld [vmem:[%s412] sm:$0xf]
      %v414 = vld [vmem:[%s412 + $0x4] sm:$0xf]
      %v415 = vld [vmem:[%s412 + $0x8] sm:$0xf]
      %v416 = vld [vmem:[%s412 + $0xc] sm:$0xf]
      %v417 = vld [vmem:[%s412 + $0x10] sm:$0xf]
      %v418 = vld [vmem:[%s412 + $0x14] sm:$0xf]
      %v419 = vld [vmem:[%s412 + $0x18] sm:$0xf]
      %427 = vrot.lane.b32.xlu0 %v413, 32
      %v428 = vpop.permute.xlu0 %427
      %429 = vrot.lane.b32.xlu0 %v414, 32
      %v430 = vpop.permute.xlu0 %429
      %431 = vrot.lane.b32.xlu0 %v415, 32
      %v432 = vpop.permute.xlu0 %431
      %433 = vrot.lane.b32.xlu0 %v416, 32
      %v434 = vpop.permute.xlu0 %433
      %435 = vrot.lane.b32.xlu0 %v417, 32
      %v436 = vpop.permute.xlu0 %435
      %437 = vrot.lane.b32.xlu0 %v418, 32
      %v438 = vpop.permute.xlu0 %437
      %439 = vrot.lane.b32.xlu0 %v419, 32
      %v440 = vpop.permute.xlu0 %439
      %vm448 = vcmask 322816
      %449 = vst.msk [vmem:[#allocation2] sm:$0xf] %vm448, %v428
      %450 = vst.msk [vmem:[#allocation2 + $0x4] sm:$0xf] %vm448, %v430
      %451 = vst.msk [vmem:[#allocation2 + $0x8] sm:$0xf] %vm448, %v432
      %452 = vst.msk [vmem:[#allocation2 + $0xc] sm:$0xf] %vm448, %v434
      %453 = vst.msk [vmem:[#allocation2 + $0x10] sm:$0xf] %vm448, %v436
      %454 = vst.msk [vmem:[#allocation2 + $0x14] sm:$0xf] %vm448, %v438
      %455 = vst.msk [vmem:[#allocation2 + $0x18] sm:$0xf] %vm448, %v440
      %v456 = vld [vmem:[%s368] sm:$0xf]
      %v457 = vld [vmem:[%s368 + $0x4] sm:$0xf]
      %v458 = vld [vmem:[%s368 + $0x8] sm:$0xf]
      %v459 = vld [vmem:[%s368 + $0xc] sm:$0xf]
      %v460 = vld [vmem:[%s368 + $0x10] sm:$0xf]
      %v461 = vld [vmem:[%s368 + $0x14] sm:$0xf]
      %v462 = vld [vmem:[%s368 + $0x18] sm:$0xf]
      %v463 = vld [vmem:[%s368 + $0x1c] sm:$0x1]
      %v465 = vshrl.u32 %v456, 16
      %v467 = vrot.slane %v465, 4
      %v468 = vshll.u32 %v456, 16
      %v470 = vrot.slane %v468, 5
      %v471 = vor.u32 %v467, %v470
      %v472 = vrot.slane %v471, 4
      %v474 = vshll.u32 %v457, 16
      %v476 = vrot.slane %v474, 5
      %v477 = vsel %vm264, %v472, %v476
      %v478 = vshrl.u32 %v457, 16
      %v480 = vrot.slane %v478, 4
      %v481 = vor.u32 %v480, %v476
      %v482 = vrot.slane %v481, 4
      %v484 = vshll.u32 %v458, 16
      %v486 = vrot.slane %v484, 5
      %v487 = vsel %vm264, %v482, %v486
      %v488 = vshrl.u32 %v458, 16
      %v490 = vrot.slane %v488, 4
      %v491 = vor.u32 %v490, %v486
      %v492 = vrot.slane %v491, 4
      %v494 = vshll.u32 %v459, 16
      %v496 = vrot.slane %v494, 5
      %v497 = vsel %vm264, %v492, %v496
      %v498 = vshrl.u32 %v459, 16
      %v500 = vrot.slane %v498, 4
      %v501 = vor.u32 %v500, %v496
      %v502 = vrot.slane %v501, 4
      %v504 = vshll.u32 %v460, 16
      %v506 = vrot.slane %v504, 5
      %v507 = vsel %vm264, %v502, %v506
      %v508 = vshrl.u32 %v460, 16
      %v510 = vrot.slane %v508, 4
      %v511 = vor.u32 %v510, %v506
      %v512 = vrot.slane %v511, 4
      %v514 = vshll.u32 %v461, 16
      %v516 = vrot.slane %v514, 5
      %v517 = vsel %vm264, %v512, %v516
      %v518 = vshrl.u32 %v461, 16
      %v520 = vrot.slane %v518, 4
      %v521 = vor.u32 %v520, %v516
      %v522 = vrot.slane %v521, 4
      %v524 = vshll.u32 %v462, 16
      %v526 = vrot.slane %v524, 5
      %v527 = vsel %vm264, %v522, %v526
      %v528 = vshrl.u32 %v462, 16
      %v530 = vrot.slane %v528, 4
      %v531 = vor.u32 %v530, %v526
      %v532 = vrot.slane %v531, 4
      %v534 = vshll.u32 %v463, 16
      %v536 = vrot.slane %v534, 5
      %v537 = vsel %vm264, %v532, %v536
      %538 = vrot.lane.b32.xlu0 %v477, 40
      %v539 = vpop.permute.xlu0 %538
      %540 = vrot.lane.b32.xlu0 %v487, 40
      %v541 = vpop.permute.xlu0 %540
      %542 = vrot.lane.b32.xlu0 %v497, 40
      %v543 = vpop.permute.xlu0 %542
      %544 = vrot.lane.b32.xlu0 %v507, 40
      %v545 = vpop.permute.xlu0 %544
      %546 = vrot.lane.b32.xlu0 %v517, 40
      %v547 = vpop.permute.xlu0 %546
      %548 = vrot.lane.b32.xlu0 %v527, 40
      %v549 = vpop.permute.xlu0 %548
      %550 = vrot.lane.b32.xlu0 %v537, 40
      %v551 = vpop.permute.xlu0 %550
      %vm559 = vcmask 388416
      %560 = vst.msk [vmem:[#allocation2] sm:$0xf] %vm559, %v539
      %561 = vst.msk [vmem:[#allocation2 + $0x4] sm:$0xf] %vm559, %v541
      %562 = vst.msk [vmem:[#allocation2 + $0x8] sm:$0xf] %vm559, %v543
      %563 = vst.msk [vmem:[#allocation2 + $0xc] sm:$0xf] %vm559, %v545
      %564 = vst.msk [vmem:[#allocation2 + $0x10] sm:$0xf] %vm559, %v547
      %565 = vst.msk [vmem:[#allocation2 + $0x14] sm:$0xf] %vm559, %v549
      %566 = vst.msk [vmem:[#allocation2 + $0x18] sm:$0xf] %vm559, %v551
      %v567 = vld [vmem:[%s183 + $0x4] sm:$0xf]
      %v568 = vld [vmem:[%s183 + $0x8] sm:$0xf]
      %v569 = vld [vmem:[%s183 + $0xc] sm:$0xf]
      %v570 = vld [vmem:[%s183 + $0x10] sm:$0xf]
      %v571 = vld [vmem:[%s183 + $0x14] sm:$0xf]
      %v572 = vld [vmem:[%s183 + $0x18] sm:$0xf]
      %v573 = vld [vmem:[%s183 + $0x1c] sm:$0xf]
      %581 = vrot.lane.b32.xlu0 %v567, 48
      %v582 = vpop.permute.xlu0 %581
      %583 = vrot.lane.b32.xlu0 %v568, 48
      %v584 = vpop.permute.xlu0 %583
      %585 = vrot.lane.b32.xlu0 %v569, 48
      %v586 = vpop.permute.xlu0 %585
      %587 = vrot.lane.b32.xlu0 %v570, 48
      %v588 = vpop.permute.xlu0 %587
      %589 = vrot.lane.b32.xlu0 %v571, 48
      %v590 = vpop.permute.xlu0 %589
      %591 = vrot.lane.b32.xlu0 %v572, 48
      %v592 = vpop.permute.xlu0 %591
      %593 = vrot.lane.b32.xlu0 %v573, 48
      %v594 = vpop.permute.xlu0 %593
      %vm602 = vcmask 454016
      %603 = vst.msk [vmem:[#allocation2] sm:$0xf] %vm602, %v582
      %604 = vst.msk [vmem:[#allocation2 + $0x4] sm:$0xf] %vm602, %v584
      %605 = vst.msk [vmem:[#allocation2 + $0x8] sm:$0xf] %vm602, %v586
      %606 = vst.msk [vmem:[#allocation2 + $0xc] sm:$0xf] %vm602, %v588
      %607 = vst.msk [vmem:[#allocation2 + $0x10] sm:$0xf] %vm602, %v590
      %608 = vst.msk [vmem:[#allocation2 + $0x14] sm:$0xf] %vm602, %v592
      %609 = vst.msk [vmem:[#allocation2 + $0x18] sm:$0xf] %vm602, %v594
      %v610 = vld [vmem:[%s210 + $0x4] sm:$0xf]
      %v611 = vld [vmem:[%s210 + $0x8] sm:$0xf]
      %v612 = vld [vmem:[%s210 + $0xc] sm:$0xf]
      %v613 = vld [vmem:[%s210 + $0x10] sm:$0xf]
      %v614 = vld [vmem:[%s210 + $0x14] sm:$0xf]
      %v615 = vld [vmem:[%s210 + $0x18] sm:$0xf]
      %v616 = vld [vmem:[%s210 + $0x1c] sm:$0xf]
      %624 = vrot.lane.b32.xlu0 %v610, 56
      %v625 = vpop.permute.xlu0 %624
      %626 = vrot.lane.b32.xlu0 %v611, 56
      %v627 = vpop.permute.xlu0 %626
      %628 = vrot.lane.b32.xlu0 %v612, 56
      %v629 = vpop.permute.xlu0 %628
      %630 = vrot.lane.b32.xlu0 %v613, 56
      %v631 = vpop.permute.xlu0 %630
      %632 = vrot.lane.b32.xlu0 %v614, 56
      %v633 = vpop.permute.xlu0 %632
      %634 = vrot.lane.b32.xlu0 %v615, 56
      %v635 = vpop.permute.xlu0 %634
      %636 = vrot.lane.b32.xlu0 %v616, 56
      %v637 = vpop.permute.xlu0 %636
      %vm645 = vcmask 519616
      %646 = vst.msk [vmem:[#allocation2] sm:$0xf] %vm645, %v625
      %647 = vst.msk [vmem:[#allocation2 + $0x4] sm:$0xf] %vm645, %v627
      %648 = vst.msk [vmem:[#allocation2 + $0x8] sm:$0xf] %vm645, %v629
      %649 = vst.msk [vmem:[#allocation2 + $0xc] sm:$0xf] %vm645, %v631
      %650 = vst.msk [vmem:[#allocation2 + $0x10] sm:$0xf] %vm645, %v633
      %651 = vst.msk [vmem:[#allocation2 + $0x14] sm:$0xf] %vm645, %v635
      %652 = vst.msk [vmem:[#allocation2 + $0x18] sm:$0xf] %vm645, %v637
      %v653 = vld [vmem:[%s183 + $0x4] sm:$0xf]
      %v654 = vld [vmem:[%s183 + $0x8] sm:$0xf]
      %v655 = vld [vmem:[%s183 + $0xc] sm:$0xf]
      %v656 = vld [vmem:[%s183 + $0x10] sm:$0xf]
      %v657 = vld [vmem:[%s183 + $0x14] sm:$0xf]
      %v658 = vld [vmem:[%s183 + $0x18] sm:$0xf]
      %v659 = vld [vmem:[%s183 + $0x1c] sm:$0xf]
      %v660 = vld [vmem:[%s183 + $0x20] sm:$0x1]
      %v662 = vshrl.u32 %v653, 16
      %v664 = vrot.slane %v662, 4
      %v665 = vshll.u32 %v653, 16
      %v667 = vrot.slane %v665, 5
      %v668 = vor.u32 %v664, %v667
      %v669 = vrot.slane %v668, 4
      %v671 = vshll.u32 %v654, 16
      %v673 = vrot.slane %v671, 5
      %v674 = vsel %vm264, %v669, %v673
      %v675 = vshrl.u32 %v654, 16
      %v677 = vrot.slane %v675, 4
      %v678 = vor.u32 %v677, %v673
      %v679 = vrot.slane %v678, 4
      %v681 = vshll.u32 %v655, 16
      %v683 = vrot.slane %v681, 5
      %v684 = vsel %vm264, %v679, %v683
      %v685 = vshrl.u32 %v655, 16
      %v687 = vrot.slane %v685, 4
      %v688 = vor.u32 %v687, %v683
      %v689 = vrot.slane %v688, 4
      %v691 = vshll.u32 %v656, 16
      %v693 = vrot.slane %v691, 5
      %v694 = vsel %vm264, %v689, %v693
      %v695 = vshrl.u32 %v656, 16
      %v697 = vrot.slane %v695, 4
      %v698 = vor.u32 %v697, %v693
      %v699 = vrot.slane %v698, 4
      %v701 = vshll.u32 %v657, 16
      %v703 = vrot.slane %v701, 5
      %v704 = vsel %vm264, %v699, %v703
      %v705 = vshrl.u32 %v657, 16
      %v707 = vrot.slane %v705, 4
      %v708 = vor.u32 %v707, %v703
      %v709 = vrot.slane %v708, 4
      %v711 = vshll.u32 %v658, 16
      %v713 = vrot.slane %v711, 5
      %v714 = vsel %vm264, %v709, %v713
      %v715 = vshrl.u32 %v658, 16
      %v717 = vrot.slane %v715, 4
      %v718 = vor.u32 %v717, %v713
      %v719 = vrot.slane %v718, 4
      %v721 = vshll.u32 %v659, 16
      %v723 = vrot.slane %v721, 5
      %v724 = vsel %vm264, %v719, %v723
      %v725 = vshrl.u32 %v659, 16
      %v727 = vrot.slane %v725, 4
      %v728 = vor.u32 %v727, %v723
      %v729 = vrot.slane %v728, 4
      %v731 = vshll.u32 %v660, 16
      %v733 = vrot.slane %v731, 5
      %v734 = vsel %vm264, %v729, %v733
      %735 = vrot.lane.b32.xlu0 %v674, 64
      %v736 = vpop.permute.xlu0 %735
      %737 = vrot.lane.b32.xlu0 %v684, 64
      %v738 = vpop.permute.xlu0 %737
      %739 = vrot.lane.b32.xlu0 %v694, 64
      %v740 = vpop.permute.xlu0 %739
      %741 = vrot.lane.b32.xlu0 %v704, 64
      %v742 = vpop.permute.xlu0 %741
      %743 = vrot.lane.b32.xlu0 %v714, 64
      %v744 = vpop.permute.xlu0 %743
      %745 = vrot.lane.b32.xlu0 %v724, 64
      %v746 = vpop.permute.xlu0 %745
      %747 = vrot.lane.b32.xlu0 %v734, 64
      %v748 = vpop.permute.xlu0 %747
      %vm756 = vcmask 585216
      %757 = vst.msk [vmem:[#allocation2] sm:$0xf] %vm756, %v736
      %758 = vst.msk [vmem:[#allocation2 + $0x4] sm:$0xf] %vm756, %v738
      %759 = vst.msk [vmem:[#allocation2 + $0x8] sm:$0xf] %vm756, %v740
      %760 = vst.msk [vmem:[#allocation2 + $0xc] sm:$0xf] %vm756, %v742
      %761 = vst.msk [vmem:[#allocation2 + $0x10] sm:$0xf] %vm756, %v744
      %762 = vst.msk [vmem:[#allocation2 + $0x14] sm:$0xf] %vm756, %v746
      %763 = vst.msk [vmem:[#allocation2 + $0x18] sm:$0xf] %vm756, %v748
      %v764 = vld [vmem:[#allocation2] sm:$0xf]
      %v765 = vld [vmem:[#allocation2 + $0x4] sm:$0xf]
      %v766 = vld [vmem:[#allocation2 + $0x8] sm:$0xf]
      %v767 = vld [vmem:[#allocation2 + $0xc] sm:$0xf]
      %v768 = vld [vmem:[#allocation2 + $0x10] sm:$0xf]
      %v769 = vld [vmem:[#allocation2 + $0x14] sm:$0xf]
      %v770 = vld [vmem:[#allocation2 + $0x18] sm:$0xf]
      %v771 = vld [vmem:[%s1] sm:$0xf]
      %v772 = vld [vmem:[%s1 + $0x4] sm:$0xf]
      %v773 = vld [vmem:[%s1 + $0x8] sm:$0xf]
      %v774 = vld [vmem:[%s1 + $0xc] sm:$0xf]
      %v775 = vld [vmem:[%s1 + $0x10] sm:$0xf]
      %v776 = vld [vmem:[%s1 + $0x14] sm:$0xf]
      %v777 = vld [vmem:[%s1 + $0x18] sm:$0xf]
      %v778 = vld [vmem:[%s1 + $0x1c] sm:$0xf]
      %v779 = vld [vmem:[%s1 + $0x20] sm:$0xf]
      %v780 = vld [vmem:[%s2] sm:$0x1]
      %v782 = vperm.slane %v780, 0
      %v791 = vunpack.c.l.b16 %v764
      %v792 = vunpack.c.l.b16 %v765
      %v793 = vunpack.c.l.b16 %v766
      %v794 = vunpack.c.l.b16 %v767
      %v795 = vunpack.c.l.b16 %v768
      %v796 = vunpack.c.l.b16 %v769
      %v797 = vunpack.c.l.b16 %v770
      %v798 = vpack.c.b16 %v792, %v791
      %v799 = vpack.c.b16 %v794, %v793
      %v800 = vpack.c.b16 %v796, %v795
      %v801 = vpack.c.b16 %v797, %v797
      %v811 = vunpack.c.l.b16 %v771
      %v812 = vunpack.c.l.b16 %v772
      %v813 = vunpack.c.l.b16 %v773
      %v814 = vunpack.c.l.b16 %v774
      %v815 = vunpack.c.l.b16 %v775
      %v816 = vunpack.c.l.b16 %v776
      %v817 = vunpack.c.l.b16 %v777
      %v818 = vunpack.c.l.b16 %v778
      %v819 = vunpack.c.l.b16 %v779
      %v820 = vpack.c.b16 %v812, %v811
      %v821 = vpack.c.b16 %v814, %v813
      %v822 = vpack.c.b16 %v816, %v815
      %v823 = vpack.c.b16 %v818, %v817
      %v824 = vpack.c.b16 %v819, %v819
      %vm829 = vcmask 588800
      %v831 = vsel %vm829, %v798, 0
      %v834 = vsel %vm829, %v799, 0
      %v837 = vsel %vm829, %v800, 0
      %v840 = vsel %vm829, %v801, 0
      %vm842 = vcmask 1043456
      %v844 = vsel %vm842, %v824, 0
      %846 = vmatpush.bf16.msra.mxu0 0
      %847 = vmatpush.bf16.msra.mxu0 0
      %848 = vmatpush.bf16.msra.mxu0 0
      %849 = vmatpush.bf16.msra.mxu0 %v844
      %850 = vmatpush.bf16.msra.mxu0 %v823
      %851 = vmatpush.bf16.msra.mxu0 %v822
      %852 = vmatpush.bf16.msra.mxu0 %v821
      %853 = vmatpush.bf16.msra.mxu0 %v820
      %854 = vmatmul.bf16.gmra.mxu0 %v831
      %v855 = vpop.f32.mrf.mxu0
      %v856 = vadd.f32 %v782, %v855
      %v857 = vpop.f32.mrf.mxu0
      %v858 = vadd.f32 %v782, %v857
      %859 = vmatmul.bf16.gmra.mxu0 %v834
      %v860 = vpop.f32.mrf.mxu0
      %v861 = vadd.f32 %v782, %v860
      %v862 = vpop.f32.mrf.mxu0
      %v863 = vadd.f32 %v782, %v862
      %864 = vmatmul.bf16.gmra.mxu0 %v837
      %v865 = vpop.f32.mrf.mxu0
      %v866 = vadd.f32 %v782, %v865
      %v867 = vpop.f32.mrf.mxu0
      %v868 = vadd.f32 %v782, %v867
      %869 = vmatmul.bf16.gmra.mxu0 %v840
      %v870 = vpop.f32.mrf.mxu0
      %v871 = vadd.f32 %v782, %v870
      %v872 = vpop.f32.mrf.mxu0
      %873 = vdwg.mxu0
      %vm874 = vcmask 130048
      %875 = vst.msk [vmem:[%s192] sm:$0xff] %vm874, %v856
      %876 = vst.msk [vmem:[%s192 + $0x8] sm:$0xff] %vm874, %v858
      %877 = vst.msk [vmem:[%s192 + $0x10] sm:$0xff] %vm874, %v861
      %878 = vst.msk [vmem:[%s192 + $0x18] sm:$0xff] %vm874, %v863
      %879 = vst.msk [vmem:[%s192 + $0x20] sm:$0xff] %vm874, %v866
      %880 = vst.msk [vmem:[%s192 + $0x28] sm:$0xff] %vm874, %v868
      %881 = vst.msk [vmem:[%s192 + $0x30] sm:$0xff] %vm874, %v871
      %s882 = smul.u32 7, %s19
      %p883 = scmp.lt.s32.totalorder %s18, 1
      %s884 = scalar_select %p883, %s18, 1
      %p885 = scmp.lt.s32.totalorder %s882, 6
      %s886 = scalar_select %p885, %s882, 6
      %s887 = smul.addr %s884, 7
      %s888 = sadd.s32 %s886, %s887
      %s889 = smul.addr %s888, 8
      %s890 = scalar_lea.vmem %s3, %s889
      // Predicated region
      $region33: #{reduction_b_v4.7} parent=31 // pred_check
        %p891 = pneg %p114
      $region34: #{reduction_b_v4.7} parent=31 // pred_check_branch
        %893 = sbr.rel (%p891) target = $region36
      $region35: #{reduction_b_v4.7} parent=31 // pred_region
        %s894 = smul.u32 7, %s19
      $region36: #{reduction_b_v4.7} parent=31 // pred_fallthru
        _
    $region32: #{reduction_b_v4.7} parent=5 // pred_fallthru
      _
    %p895 = scmp.le.s32.totalorder 2, %s9
    // Predicated region
    $region37: #{reduction_b_v4.7} parent=5 // pred_check
      %p896 = pneg %p895
    $region38: #{reduction_b_v4.7} parent=5 // pred_check_branch
      %898 = sbr.rel (%p896) target = $region40
    $region39: #{reduction_b_v4.7} parent=5 // pred_region
      %s899 = ssub.s32 %s9, 2
      // Predicated region
      $region41: #{reduction_b_v4.7} parent=39 // pred_check
        %p900 = pneg %p120
      $region42: #{reduction_b_v4.7} parent=39 // pred_check_branch
        %902 = sbr.rel (%p900) target = $region44
      $region43: #{reduction_b_v4.7} parent=39 // pred_region
        %s903 = smul.u32 7, %s21
        %p904 = scmp.lt.s32.totalorder %s20, 1
        %s905 = scalar_select %p904, %s20, 1
        %p906 = scmp.lt.s32.totalorder %s903, 6
        %s907 = scalar_select %p906, %s903, 6
        %s908 = smul.addr %s905, 7
        %s909 = sadd.s32 %s907, %s908
        %s910 = smul.addr %s909, 8
        %s911 = scalar_lea.vmem %s3, %s910
      $region44: #{reduction_b_v4.7} parent=39 // pred_fallthru
        _
    $region40: #{reduction_b_v4.7} parent=5 // pred_fallthru
      _
  $region6: #{reduction_b_v4.7} parent=0 // loop_footer
    %s13 = sadd.s32 1, %s9
  $region7: #{reduction_b_v4.7} parent=0 // loop_footer_branch
    %8 = sbr.rel target = $region3
  $region8: #{reduction_b_v4.7} parent=0 // loop_exit
    _

// kernel: reduction_b_v4.5
$region0: #{reduction_b_v4.5}
  #allocation0 [shape = 'u32[]', space=smem, size = 0x4, offset = 0x4, fixed_abs, tag = 'smem constant byte address 0x4 - core index']
  #allocation1 [shape = 'u32[72,128]{1,0:T(1,128)}', space=vmem, size = 0x9000, scoped, tag = 'internal scratch']
  %s0 = inlined_call_operand.vmem [shape: f32[2,4,65,8], index: 0, kind: input, shape index: {}]
  %s1 = inlined_call_operand.vmem [shape: f32[2,56,8], index: 1, kind: output, shape index: {}]
  %s2 = sld [smem:[#allocation0]]
  $region37: #{reduction_b_v4.5} parent=0
    _
  %s4 = ssub.s32 1, %s2
  %s5 = scalar_select 0, %s4, %s2
  loop: start=0, step=1, limit=4
  $region2: #{reduction_b_v4.5} parent=0 // loop_pre_header
    _
  $region3: #{reduction_b_v4.5} parent=0 // loop_header
    %s7 = sphi 0, %s11
    %p8 = scmp.ge.s32.totalorder %s7, 4
    %s17 = sphi 0, %s19
    %s20 = sphi 0, %s17
    %s21 = sphi 0, %s20
    %s37 = sphi 0, %s21
    %s43 = sphi 0, %s45
    %s46 = sphi 0, %s43
    %s47 = sphi 0, %s46
    %s63 = sphi 0, %s47
  $region4: #{reduction_b_v4.5} parent=0 // loop_header_branch
    %10 = sbr.rel (%p8) target = $region8
  $region5: #{reduction_b_v4.5} parent=0 // loop_body
    %s12 = ssub.s32 %s7, 1
    %s13 = ssub.s32 %s7, 2
    %s14 = sadd.s32 %s7, 1
    %s15 = ssub.s32 %s7, %s14
    %p16 = scmp.eq.s32.totalorder %s15, 0
    %s18 = sadd.s32 %s17, 1
    %s19 = scalar_select %p16, %s17, %s18
    %p22 = pneg %p16
    %p23 = scmp.eq.s32.totalorder %s7, 1
    %p24 = por %p22, %p23
    %p25 = scmp.ne.s32.totalorder %s17, %s20
    %p26 = scmp.eq.s32.totalorder %s7, 0
    %p27 = por %p25, %p26
    %p28 = scmp.ne.s32.totalorder %s17, %s20
    %p29 = scmp.eq.s32.totalorder %s12, 1
    %p30 = por %p28, %p29
    %p31 = scmp.ne.s32.totalorder %s20, %s21
    %p32 = scmp.eq.s32.totalorder %s12, 0
    %p33 = por %p31, %p32
    %p34 = scmp.ne.s32.totalorder %s20, %s21
    %p35 = scmp.eq.s32.totalorder %s13, 1
    %p36 = por %p34, %p35
    %p38 = scmp.ne.s32.totalorder %s21, %s37
    %p39 = scmp.eq.s32.totalorder %s13, 0
    %p40 = por %p38, %p39
    %s41 = ssub.s32 %s7, %s14
    %p42 = scmp.eq.s32.totalorder %s41, 0
    %s44 = sadd.s32 %s43, 1
    %s45 = scalar_select %p42, %s43, %s44
    %p48 = pneg %p42
    %p49 = scmp.eq.s32.totalorder %s7, 1
    %p50 = por %p48, %p49
    %p51 = scmp.ne.s32.totalorder %s43, %s46
    %p52 = scmp.eq.s32.totalorder %s7, 0
    %p53 = por %p51, %p52
    %p54 = scmp.ne.s32.totalorder %s43, %s46
    %p55 = scmp.eq.s32.totalorder %s12, 1
    %p56 = por %p54, %p55
    %p57 = scmp.ne.s32.totalorder %s46, %s47
    %p58 = scmp.eq.s32.totalorder %s12, 0
    %p59 = por %p57, %p58
    %p60 = scmp.ne.s32.totalorder %s46, %s47
    %p61 = scmp.eq.s32.totalorder %s13, 1
    %p62 = por %p60, %p61
    %p64 = scmp.ne.s32.totalorder %s47, %s63
    %p65 = scmp.eq.s32.totalorder %s13, 0
    %p66 = por %p64, %p65
    %p67 = scmp.le.s32.totalorder 1, %s7
    %p68 = scmp.lt.s32.totalorder %s7, 3
    %p69 = pnand %p67, %p68
    %p70 = pneg %p69
    // Predicated region
    $region9: #{reduction_b_v4.5} parent=5 // pred_check
      _
    $region10: #{reduction_b_v4.5} parent=5 // pred_check_branch
      %72 = sbr.rel (%p69) target = $region12
    $region11: #{reduction_b_v4.5} parent=5 // pred_region
      %s73 = ssub.s32 %s7, 1
    $region12: #{reduction_b_v4.5} parent=5 // pred_fallthru
      _
    %p74 = scmp.lt.s32.totalorder %s7, 2
    // Predicated region
    $region13: #{reduction_b_v4.5} parent=5 // pred_check
      %p75 = pneg %p74
    $region14: #{reduction_b_v4.5} parent=5 // pred_check_branch
      %77 = sbr.rel (%p75) target = $region16
    $region15: #{reduction_b_v4.5} parent=5 // pred_region
      // Predicated region
      $region17: #{reduction_b_v4.5} parent=15 // pred_check
        %p78 = pneg %p27
      $region18: #{reduction_b_v4.5} parent=15 // pred_check_branch
        %80 = sbr.rel (%p78) target = $region20
      $region19: #{reduction_b_v4.5} parent=15 // pred_region
        %p81 = scmp.lt.s32.totalorder %s7, 1
        %s82 = scalar_select %p81, %s7, 1
        %s83 = smul.addr %s82, 36
        %s84 = smul.addr %s83, 8
        %s85 = scalar_lea.vmem %s0, %s84
      $region20: #{reduction_b_v4.5} parent=15 // pred_fallthru
        _
    $region16: #{reduction_b_v4.5} parent=5 // pred_fallthru
      _
    %p86 = scmp.le.s32.totalorder 1, %s7
    %p87 = scmp.lt.s32.totalorder %s7, 3
    %p88 = pnand %p86, %p87
    %p89 = pneg %p88
    // Predicated region
    $region21: #{reduction_b_v4.5} parent=5 // pred_check
      _
    $region22: #{reduction_b_v4.5} parent=5 // pred_check_branch
      %91 = sbr.rel (%p88) target = $region24
    $region23: #{reduction_b_v4.5} parent=5 // pred_region
      %s92 = ssub.s32 %s7, 1
      %p93 = scmp.lt.s32.totalorder %s12, 1
      %s94 = scalar_select %p93, %s12, 1
      %s95 = smul.addr %s94, 36
      %s96 = smul.addr %s95, 8
      %s97 = scalar_lea.vmem %s0, %s96
      %p98 = pneg %p33
      %p99 = pneg %p30
      %p100 = pneg %p59
      %p101 = pneg %p56
      %p102 = scmp.lt.s32.totalorder %s12, 1
      %s103 = scalar_select %p102, %s12, 1
      %s104 = smul.addr %s103, 7
      %s105 = smul.addr %s104, 8
      %s106 = scalar_lea.vmem %s1, %s105
      %p107 = scmp.lt.s32.totalorder %s12, 1
      %s108 = scalar_select %p107, %s12, 1
      %s109 = smul.addr %s108, 36
      %s110 = smul.addr %s109, 8
      %s111 = scalar_lea.vmem %s0, %s110
      %p112 = scmp.lt.s32.totalorder %s12, 1
      %s113 = scalar_select %p112, %s12, 1
      %s114 = smul.addr %s113, 7
      %s115 = smul.addr %s114, 8
      %s116 = scalar_lea.vmem %s1, %s115
      %v117 = vld [vmem:[%s111] sm:$0xff]
      %v118 = vld [vmem:[%s111 + $0x8] sm:$0xff]
      %v119 = vld [vmem:[%s111 + $0x10] sm:$0xff]
      %v120 = vld [vmem:[%s111 + $0x18] sm:$0xff]
      %v121 = vld [vmem:[%s111 + $0x20] sm:$0xff]
      %v122 = vld [vmem:[%s111 + $0x28] sm:$0xff]
      %v123 = vld [vmem:[%s111 + $0x30] sm:$0xff]
      %s124 = scalar_lea.vmem %s111, 72
      %v125 = vld [vmem:[%s124] sm:$0xff]
      %v126 = vld [vmem:[%s124 + $0x8] sm:$0xff]
      %v127 = vld [vmem:[%s124 + $0x10] sm:$0xff]
      %v128 = vld [vmem:[%s124 + $0x18] sm:$0xff]
      %v129 = vld [vmem:[%s124 + $0x20] sm:$0xff]
      %v130 = vld [vmem:[%s124 + $0x28] sm:$0xff]
      %v131 = vld [vmem:[%s124 + $0x30] sm:$0xff]
      %v132 = vmax.f32 %v117, %v125
      %v133 = vmax.f32 %v118, %v126
      %v134 = vmax.f32 %v119, %v127
      %v135 = vmax.f32 %v120, %v128
      %v136 = vmax.f32 %v121, %v129
      %v137 = vmax.f32 %v122, %v130
      %v138 = vmax.f32 %v123, %v131
      %v139 = vld [vmem:[%s111 + $0x1] sm:$0xff]
      %v140 = vld [vmem:[%s111 + $0x9] sm:$0xff]
      %v141 = vld [vmem:[%s111 + $0x11] sm:$0xff]
      %v142 = vld [vmem:[%s111 + $0x19] sm:$0xff]
      %v143 = vld [vmem:[%s111 + $0x21] sm:$0xff]
      %v144 = vld [vmem:[%s111 + $0x29] sm:$0xff]
      %v145 = vld [vmem:[%s111 + $0x31] sm:$0xff]
      %v146 = vmax.f32 %v132, %v139
      %v147 = vmax.f32 %v133, %v140
      %v148 = vmax.f32 %v134, %v141
      %v149 = vmax.f32 %v135, %v142
      %v150 = vmax.f32 %v136, %v143
      %v151 = vmax.f32 %v137, %v144
      %v152 = vmax.f32 %v138, %v145
      %s153 = scalar_lea.vmem %s111, 144
      %v154 = vld [vmem:[%s153] sm:$0xff]
      %v155 = vld [vmem:[%s153 + $0x8] sm:$0xff]
      %v156 = vld [vmem:[%s153 + $0x10] sm:$0xff]
      %v157 = vld [vmem:[%s153 + $0x18] sm:$0xff]
      %v158 = vld [vmem:[%s153 + $0x20] sm:$0xff]
      %v159 = vld [vmem:[%s153 + $0x28] sm:$0xff]
      %v160 = vld [vmem:[%s153 + $0x30] sm:$0xff]
      %v161 = vmax.f32 %v146, %v154
      %v162 = vmax.f32 %v147, %v155
      %v163 = vmax.f32 %v148, %v156
      %v164 = vmax.f32 %v149, %v157
      %v165 = vmax.f32 %v150, %v158
      %v166 = vmax.f32 %v151, %v159
      %v167 = vmax.f32 %v152, %v160
      %s168 = scalar_lea.vmem %s111, 216
      %v169 = vld [vmem:[%s168] sm:$0xff]
      %v170 = vld [vmem:[%s168 + $0x8] sm:$0xff]
      %v171 = vld [vmem:[%s168 + $0x10] sm:$0xff]
      %v172 = vld [vmem:[%s168 + $0x18] sm:$0xff]
      %v173 = vld [vmem:[%s168 + $0x20] sm:$0xff]
      %v174 = vld [vmem:[%s168 + $0x28] sm:$0xff]
      %v175 = vld [vmem:[%s168 + $0x30] sm:$0xff]
      %v176 = vmax.f32 %v161, %v169
      %v177 = vmax.f32 %v162, %v170
      %v178 = vmax.f32 %v163, %v171
      %v179 = vmax.f32 %v164, %v172
      %v180 = vmax.f32 %v165, %v173
      %v181 = vmax.f32 %v166, %v174
      %v182 = vmax.f32 %v167, %v175
      %v183 = vld [vmem:[%s153 + $0x1] sm:$0xff]
      %v184 = vld [vmem:[%s153 + $0x9] sm:$0xff]
      %v185 = vld [vmem:[%s153 + $0x11] sm:$0xff]
      %v186 = vld [vmem:[%s153 + $0x19] sm:$0xff]
      %v187 = vld [vmem:[%s153 + $0x21] sm:$0xff]
      %v188 = vld [vmem:[%s153 + $0x29] sm:$0xff]
      %v189 = vld [vmem:[%s153 + $0x31] sm:$0xff]
      %v190 = vmax.f32 %v176, %v183
      %v191 = vmax.f32 %v177, %v184
      %v192 = vmax.f32 %v178, %v185
      %v193 = vmax.f32 %v179, %v186
      %v194 = vmax.f32 %v180, %v187
      %v195 = vmax.f32 %v181, %v188
      %v196 = vmax.f32 %v182, %v189
      %v197 = vld [vmem:[%s111 + $0x38] sm:$0xff]
      %v198 = vmax.f32 %v190, %v118
      %v199 = vmax.f32 %v191, %v119
      %v200 = vmax.f32 %v192, %v120
      %v201 = vmax.f32 %v193, %v121
      %v202 = vmax.f32 %v194, %v122
      %v203 = vmax.f32 %v195, %v123
      %v204 = vmax.f32 %v196, %v197
      %v205 = vld [vmem:[%s124 + $0x38] sm:$0xff]
      %v206 = vmax.f32 %v198, %v126
      %v207 = vmax.f32 %v199, %v127
      %v208 = vmax.f32 %v200, %v128
      %v209 = vmax.f32 %v201, %v129
      %v210 = vmax.f32 %v202, %v130
      %v211 = vmax.f32 %v203, %v131
      %v212 = vmax.f32 %v204, %v205
      %v213 = vld [vmem:[%s111 + $0x39] sm:$0xff]
      %v214 = vmax.f32 %v206, %v140
      %v215 = vmax.f32 %v207, %v141
      %v216 = vmax.f32 %v208, %v142
      %v217 = vmax.f32 %v209, %v143
      %v218 = vmax.f32 %v210, %v144
      %v219 = vmax.f32 %v211, %v145
      %v220 = vmax.f32 %v212, %v213
      %vm221 = vcmask 64512
      %222 = vst.msk [vmem:[%s116] sm:$0xff] %vm221, %v214
      %223 = vst.msk [vmem:[%s116 + $0x8] sm:$0xff] %vm221, %v215
      %224 = vst.msk [vmem:[%s116 + $0x10] sm:$0xff] %vm221, %v216
      %225 = vst.msk [vmem:[%s116 + $0x18] sm:$0xff] %vm221, %v217
      %226 = vst.msk [vmem:[%s116 + $0x20] sm:$0xff] %vm221, %v218
      %227 = vst.msk [vmem:[%s116 + $0x28] sm:$0xff] %vm221, %v219
      %228 = vst.msk [vmem:[%s116 + $0x30] sm:$0xff] %vm221, %v220
      %p229 = scmp.lt.s32.totalorder %s12, 1
      %s230 = scalar_select %p229, %s12, 1
      %s231 = smul.addr %s230, 7
      %s232 = smul.addr %s231, 8
      %s233 = scalar_lea.vmem %s1, %s232
      // Predicated region
      $region25: #{reduction_b_v4.5} parent=23 // pred_check
        %p234 = pneg %p56
      $region26: #{reduction_b_v4.5} parent=23 // pred_check_branch
        %236 = sbr.rel (%p234) target = $region28
      $region27: #{reduction_b_v4.5} parent=23 // pred_region
        _
      $region28: #{reduction_b_v4.5} parent=23 // pred_fallthru
        _
    $region24: #{reduction_b_v4.5} parent=5 // pred_fallthru
      _
    %p237 = scmp.le.s32.totalorder 2, %s7
    // Predicated region
    $region29: #{reduction_b_v4.5} parent=5 // pred_check
      %p238 = pneg %p237
    $region30: #{reduction_b_v4.5} parent=5 // pred_check_branch
      %240 = sbr.rel (%p238) target = $region32
    $region31: #{reduction_b_v4.5} parent=5 // pred_region
      %s241 = ssub.s32 %s7, 2
      // Predicated region
      $region33: #{reduction_b_v4.5} parent=31 // pred_check
        %p242 = pneg %p62
      $region34: #{reduction_b_v4.5} parent=31 // pred_check_branch
        %244 = sbr.rel (%p242) target = $region36
      $region35: #{reduction_b_v4.5} parent=31 // pred_region
        %p245 = scmp.lt.s32.totalorder %s13, 1
        %s246 = scalar_select %p245, %s13, 1
        %s247 = smul.addr %s246, 7
        %s248 = smul.addr %s247, 8
        %s249 = scalar_lea.vmem %s1, %s248
      $region36: #{reduction_b_v4.5} parent=31 // pred_fallthru
        _
    $region32: #{reduction_b_v4.5} parent=5 // pred_fallthru
      _
  $region6: #{reduction_b_v4.5} parent=0 // loop_footer
    %s11 = sadd.s32 1, %s7
  $region7: #{reduction_b_v4.5} parent=0 // loop_footer_branch
    %6 = sbr.rel target = $region3
  $region8: #{reduction_b_v4.5} parent=0 // loop_exit
    _

// kernel: reduction_b_v4.8
$region0: #{reduction_b_v4.8}
  #allocation0 [shape = 'u32[]', space=smem, size = 0x4, offset = 0x4, fixed_abs, tag = 'smem constant byte address 0x4 - core index']
  #allocation1 [shape = 'u32[72,128]{1,0:T(1,128)}', space=vmem, size = 0x9000, scoped, tag = 'internal scratch']
  #allocation2 [shape = 'bf16[16,16,56]{2,1,0:T(8,128)(2,1)}', space=vmem, size = 0x10000, scoped, tag = 'scratch operand']
  #allocation3 [shape = 'bf16[352,8]{1,0:T(8,128)(2,1)}', space=vmem, size = 0x16000, scoped, tag = 'scratch operand']
  #allocation4 [shape = 'bf16[256,56]{1,0:T(8,128)(2,1)}', space=vmem, size = 0x10000, scoped, tag = 'scratch operand']
  %s0 = inlined_call_operand.vmem [shape: bf16[2,16,22,8], index: 0, kind: input, shape index: {}]
  %s1 = inlined_call_operand.vmem [shape: bf16[56,8], index: 1, kind: input, shape index: {}]
  %s2 = inlined_call_operand.vmem [shape: f32[1,8], index: 2, kind: input, shape index: {}]
  %s3 = inlined_call_operand.vmem [shape: bf16[56,8], index: 3, kind: input, shape index: {}]
  %s4 = inlined_call_operand.vmem [shape: f32[1,8], index: 4, kind: input, shape index: {}]
  %s5 = inlined_call_operand.vmem [shape: bf16[2,256,8], index: 5, kind: output, shape index: {}]
  %s6 = sld [smem:[#allocation0]]
  $region53: #{reduction_b_v4.8} parent=0
    _
  %s8 = ssub.s32 1, %s6
  %s9 = scalar_select 0, %s8, %s6
  loop: start=0, step=1, limit=4
  $region2: #{reduction_b_v4.8} parent=0 // loop_pre_header
    _
  $region3: #{reduction_b_v4.8} parent=0 // loop_header
    %s11 = sphi 0, %s15
    %p12 = scmp.ge.s32.totalorder %s11, 4
    %s21 = sphi 0, %s23
    %s24 = sphi 0, %s21
    %s25 = sphi 0, %s24
    %s41 = sphi 0, %s25
    %s45 = sphi 0, %s45
    %s47 = sphi 0, %s45
    %s48 = sphi 0, %s47
    %s62 = sphi 0, %s48
    %s66 = sphi 0, %s66
    %s68 = sphi 0, %s66
    %s69 = sphi 0, %s68
    %s83 = sphi 0, %s69
    %s87 = sphi 0, %s87
    %s89 = sphi 0, %s87
    %s90 = sphi 0, %s89
    %s104 = sphi 0, %s90
    %s108 = sphi 0, %s108
    %s110 = sphi 0, %s108
    %s111 = sphi 0, %s110
    %s125 = sphi 0, %s111
    %s131 = sphi 0, %s133
    %s134 = sphi 0, %s131
    %s135 = sphi 0, %s134
    %s151 = sphi 0, %s135
  $region4: #{reduction_b_v4.8} parent=0 // loop_header_branch
    %14 = sbr.rel (%p12) target = $region8
  $region5: #{reduction_b_v4.8} parent=0 // loop_body
    %s16 = ssub.s32 %s11, 1
    %s17 = ssub.s32 %s11, 2
    %s18 = sadd.s32 %s11, 1
    %s19 = ssub.s32 %s11, %s18
    %p20 = scmp.eq.s32.totalorder %s19, 0
    %s22 = sadd.s32 %s21, 1
    %s23 = scalar_select %p20, %s21, %s22
    %p26 = pneg %p20
    %p27 = scmp.eq.s32.totalorder %s11, 1
    %p28 = por %p26, %p27
    %p29 = scmp.ne.s32.totalorder %s21, %s24
    %p30 = scmp.eq.s32.totalorder %s11, 0
    %p31 = por %p29, %p30
    %p32 = scmp.ne.s32.totalorder %s21, %s24
    %p33 = scmp.eq.s32.totalorder %s16, 1
    %p34 = por %p32, %p33
    %p35 = scmp.ne.s32.totalorder %s24, %s25
    %p36 = scmp.eq.s32.totalorder %s16, 0
    %p37 = por %p35, %p36
    %p38 = scmp.ne.s32.totalorder %s24, %s25
    %p39 = scmp.eq.s32.totalorder %s17, 1
    %p40 = por %p38, %p39
    %p42 = scmp.ne.s32.totalorder %s25, %s41
    %p43 = scmp.eq.s32.totalorder %s17, 0
    %p44 = por %p42, %p43
    %s46 = sadd.s32 %s45, 1
    %p49 = scmp.eq.s32.totalorder %s11, 1
    %p50 = scmp.ne.s32.totalorder %s45, %s47
    %p51 = scmp.eq.s32.totalorder %s11, 0
    %p52 = por %p50, %p51
    %p53 = scmp.ne.s32.totalorder %s45, %s47
    %p54 = scmp.eq.s32.totalorder %s16, 1
    %p55 = por %p53, %p54
    %p56 = scmp.ne.s32.totalorder %s47, %s48
    %p57 = scmp.eq.s32.totalorder %s16, 0
    %p58 = por %p56, %p57
    %p59 = scmp.ne.s32.totalorder %s47, %s48
    %p60 = scmp.eq.s32.totalorder %s17, 1
    %p61 = por %p59, %p60
    %p63 = scmp.ne.s32.totalorder %s48, %s62
    %p64 = scmp.eq.s32.totalorder %s17, 0
    %p65 = por %p63, %p64
    %s67 = sadd.s32 %s66, 1
    %p70 = scmp.eq.s32.totalorder %s11, 1
    %p71 = scmp.ne.s32.totalorder %s66, %s68
    %p72 = scmp.eq.s32.totalorder %s11, 0
    %p73 = por %p71, %p72
    %p74 = scmp.ne.s32.totalorder %s66, %s68
    %p75 = scmp.eq.s32.totalorder %s16, 1
    %p76 = por %p74, %p75
    %p77 = scmp.ne.s32.totalorder %s68, %s69
    %p78 = scmp.eq.s32.totalorder %s16, 0
    %p79 = por %p77, %p78
    %p80 = scmp.ne.s32.totalorder %s68, %s69
    %p81 = scmp.eq.s32.totalorder %s17, 1
    %p82 = por %p80, %p81
    %p84 = scmp.ne.s32.totalorder %s69, %s83
    %p85 = scmp.eq.s32.totalorder %s17, 0
    %p86 = por %p84, %p85
    %s88 = sadd.s32 %s87, 1
    %p91 = scmp.eq.s32.totalorder %s11, 1
    %p92 = scmp.ne.s32.totalorder %s87, %s89
    %p93 = scmp.eq.s32.totalorder %s11, 0
    %p94 = por %p92, %p93
    %p95 = scmp.ne.s32.totalorder %s87, %s89
    %p96 = scmp.eq.s32.totalorder %s16, 1
    %p97 = por %p95, %p96
    %p98 = scmp.ne.s32.totalorder %s89, %s90
    %p99 = scmp.eq.s32.totalorder %s16, 0
    %p100 = por %p98, %p99
    %p101 = scmp.ne.s32.totalorder %s89, %s90
    %p102 = scmp.eq.s32.totalorder %s17, 1
    %p103 = por %p101, %p102
    %p105 = scmp.ne.s32.totalorder %s90, %s104
    %p106 = scmp.eq.s32.totalorder %s17, 0
    %p107 = por %p105, %p106
    %s109 = sadd.s32 %s108, 1
    %p112 = scmp.eq.s32.totalorder %s11, 1
    %p113 = scmp.ne.s32.totalorder %s108, %s110
    %p114 = scmp.eq.s32.totalorder %s11, 0
    %p115 = por %p113, %p114
    %p116 = scmp.ne.s32.totalorder %s108, %s110
    %p117 = scmp.eq.s32.totalorder %s16, 1
    %p118 = por %p116, %p117
    %p119 = scmp.ne.s32.totalorder %s110, %s111
    %p120 = scmp.eq.s32.totalorder %s16, 0
    %p121 = por %p119, %p120
    %p122 = scmp.ne.s32.totalorder %s110, %s111
    %p123 = scmp.eq.s32.totalorder %s17, 1
    %p124 = por %p122, %p123
    %p126 = scmp.ne.s32.totalorder %s111, %s125
    %p127 = scmp.eq.s32.totalorder %s17, 0
    %p128 = por %p126, %p127
    %s129 = ssub.s32 %s11, %s18
    %p130 = scmp.eq.s32.totalorder %s129, 0
    %s132 = sadd.s32 %s131, 1
    %s133 = scalar_select %p130, %s131, %s132
    %p136 = pneg %p130
    %p137 = scmp.eq.s32.totalorder %s11, 1
    %p138 = por %p136, %p137
    %p139 = scmp.ne.s32.totalorder %s131, %s134
    %p140 = scmp.eq.s32.totalorder %s11, 0
    %p141 = por %p139, %p140
    %p142 = scmp.ne.s32.totalorder %s131, %s134
    %p143 = scmp.eq.s32.totalorder %s16, 1
    %p144 = por %p142, %p143
    %p145 = scmp.ne.s32.totalorder %s134, %s135
    %p146 = scmp.eq.s32.totalorder %s16, 0
    %p147 = por %p145, %p146
    %p148 = scmp.ne.s32.totalorder %s134, %s135
    %p149 = scmp.eq.s32.totalorder %s17, 1
    %p150 = por %p148, %p149
    %p152 = scmp.ne.s32.totalorder %s135, %s151
    %p153 = scmp.eq.s32.totalorder %s17, 0
    %p154 = por %p152, %p153
    %p155 = scmp.le.s32.totalorder 1, %s11
    %p156 = scmp.lt.s32.totalorder %s11, 3
    %p157 = pnand %p155, %p156
    %p158 = pneg %p157
    // Predicated region
    $region9: #{reduction_b_v4.8} parent=5 // pred_check
      _
    $region10: #{reduction_b_v4.8} parent=5 // pred_check_branch
      %160 = sbr.rel (%p157) target = $region12
    $region11: #{reduction_b_v4.8} parent=5 // pred_region
      %s161 = ssub.s32 %s11, 1
      // Predicated region
      $region13: #{reduction_b_v4.8} parent=11 // pred_check
        %p162 = pneg %p58
      $region14: #{reduction_b_v4.8} parent=11 // pred_check_branch
        %164 = sbr.rel (%p162) target = $region16
      $region15: #{reduction_b_v4.8} parent=11 // pred_region
        _
      $region16: #{reduction_b_v4.8} parent=11 // pred_fallthru
        _
      // Predicated region
      $region17: #{reduction_b_v4.8} parent=11 // pred_check
        %p165 = pneg %p79
      $region18: #{reduction_b_v4.8} parent=11 // pred_check_branch
        %167 = sbr.rel (%p165) target = $region20
      $region19: #{reduction_b_v4.8} parent=11 // pred_region
        _
      $region20: #{reduction_b_v4.8} parent=11 // pred_fallthru
        _
      // Predicated region
      $region21: #{reduction_b_v4.8} parent=11 // pred_check
        %p168 = pneg %p100
      $region22: #{reduction_b_v4.8} parent=11 // pred_check_branch
        %170 = sbr.rel (%p168) target = $region24
      $region23: #{reduction_b_v4.8} parent=11 // pred_region
        _
      $region24: #{reduction_b_v4.8} parent=11 // pred_fallthru
        _
      // Predicated region
      $region25: #{reduction_b_v4.8} parent=11 // pred_check
        %p171 = pneg %p121
      $region26: #{reduction_b_v4.8} parent=11 // pred_check_branch
        %173 = sbr.rel (%p171) target = $region28
      $region27: #{reduction_b_v4.8} parent=11 // pred_region
        _
      $region28: #{reduction_b_v4.8} parent=11 // pred_fallthru
        _
    $region12: #{reduction_b_v4.8} parent=5 // pred_fallthru
      _
    %p174 = scmp.lt.s32.totalorder %s11, 2
    // Predicated region
    $region29: #{reduction_b_v4.8} parent=5 // pred_check
      %p175 = pneg %p174
    $region30: #{reduction_b_v4.8} parent=5 // pred_check_branch
      %177 = sbr.rel (%p175) target = $region32
    $region31: #{reduction_b_v4.8} parent=5 // pred_region
      // Predicated region
      $region33: #{reduction_b_v4.8} parent=31 // pred_check
        %p178 = pneg %p31
      $region34: #{reduction_b_v4.8} parent=31 // pred_check_branch
        %180 = sbr.rel (%p178) target = $region36
      $region35: #{reduction_b_v4.8} parent=31 // pred_region
        %p181 = scmp.lt.s32.totalorder %s11, 1
        %s182 = scalar_select %p181, %s11, 1
        %s183 = smul.addr %s182, 48
        %s184 = smul.addr %s183, 4
        %s185 = scalar_lea.vmem %s0, %s184
      $region36: #{reduction_b_v4.8} parent=31 // pred_fallthru
        _
    $region32: #{reduction_b_v4.8} parent=5 // pred_fallthru
      _
    %p186 = scmp.le.s32.totalorder 1, %s11
    %p187 = scmp.lt.s32.totalorder %s11, 3
    %p188 = pnand %p186, %p187
    %p189 = pneg %p188
    // Predicated region
    $region37: #{reduction_b_v4.8} parent=5 // pred_check
      _
    $region38: #{reduction_b_v4.8} parent=5 // pred_check_branch
      %191 = sbr.rel (%p188) target = $region40
    $region39: #{reduction_b_v4.8} parent=5 // pred_region
      %s192 = ssub.s32 %s11, 1
      %p193 = scmp.lt.s32.totalorder %s16, 1
      %s194 = scalar_select %p193, %s16, 1
      %s195 = smul.addr %s194, 48
      %s196 = smul.addr %s195, 4
      %s197 = scalar_lea.vmem %s0, %s196
      %p198 = pneg %p37
      %p199 = pneg %p34
      %p200 = pneg %p58
      %p201 = pneg %p55
      %p202 = pneg %p79
      %p203 = pneg %p76
      %p204 = pneg %p100
      %p205 = pneg %p97
      %p206 = pneg %p121
      %p207 = pneg %p118
      %p208 = pneg %p147
      %p209 = pneg %p144
      %p210 = scmp.lt.s32.totalorder %s16, 1
      %s211 = scalar_select %p210, %s16, 1
      %s212 = smul.addr %s211, 32
      %s213 = smul.addr %s212, 4
      %s214 = scalar_lea.vmem %s5, %s213
      %p215 = scmp.lt.s32.totalorder %s16, 1
      %s216 = scalar_select %p215, %s16, 1
      %s217 = smul.addr %s216, 48
      %s218 = smul.addr %s217, 4
      %s219 = scalar_lea.vmem %s0, %s218
      %p220 = scmp.lt.s32.totalorder %s16, 1
      %s221 = scalar_select %p220, %s16, 1
      %s222 = smul.addr %s221, 32
      %s223 = smul.addr %s222, 4
      %s224 = scalar_lea.vmem %s5, %s223
      %v226 = vld [vmem:[%s219] sm:$0xf]
      %v227 = vld [vmem:[%s219 + $0x4] sm:$0xf]
      %v228 = vld [vmem:[%s219 + $0xc] sm:$0xf]
      %v229 = vld [vmem:[%s219 + $0x10] sm:$0xf]
      %v230 = vld [vmem:[%s219 + $0x18] sm:$0xf]
      %v231 = vld [vmem:[%s219 + $0x1c] sm:$0xf]
      %v232 = vld [vmem:[%s219 + $0x24] sm:$0xf]
      %v233 = vld [vmem:[%s219 + $0x28] sm:$0xf]
      %v234 = vld [vmem:[%s219 + $0x30] sm:$0xf]
      %v235 = vld [vmem:[%s219 + $0x34] sm:$0xf]
      %v236 = vld [vmem:[%s219 + $0x3c] sm:$0xf]
      %v237 = vld [vmem:[%s219 + $0x40] sm:$0xf]
      %v238 = vld [vmem:[%s219 + $0x48] sm:$0xf]
      %v239 = vld [vmem:[%s219 + $0x4c] sm:$0xf]
      %v240 = vld [vmem:[%s219 + $0x54] sm:$0xf]
      %v241 = vld [vmem:[%s219 + $0x58] sm:$0xf]
      %v242 = vld [vmem:[%s219 + $0x60] sm:$0xf]
      %v243 = vld [vmem:[%s219 + $0x64] sm:$0xf]
      %v244 = vld [vmem:[%s219 + $0x6c] sm:$0xf]
      %v245 = vld [vmem:[%s219 + $0x70] sm:$0xf]
      %v246 = vld [vmem:[%s219 + $0x78] sm:$0xf]
      %v247 = vld [vmem:[%s219 + $0x7c] sm:$0xf]
      %v248 = vld [vmem:[%s219 + $0x84] sm:$0xf]
      %v249 = vld [vmem:[%s219 + $0x88] sm:$0xf]
      %v250 = vld [vmem:[%s219 + $0x90] sm:$0xf]
      %v251 = vld [vmem:[%s219 + $0x94] sm:$0xf]
      %v252 = vld [vmem:[%s219 + $0x9c] sm:$0xf]
      %v253 = vld [vmem:[%s219 + $0xa0] sm:$0xf]
      %v254 = vld [vmem:[%s219 + $0xa8] sm:$0xf]
      %v255 = vld [vmem:[%s219 + $0xac] sm:$0xf]
      %v256 = vld [vmem:[%s219 + $0xb4] sm:$0xf]
      %v257 = vld [vmem:[%s219 + $0xb8] sm:$0xf]
      %vm258 = vcmask 60416
      %259 = vst.msk [vmem:[#allocation2] sm:$0xf] %vm258, %v226
      %260 = vst.msk [vmem:[#allocation2 + $0x4] sm:$0xf] %vm258, %v227
      %261 = vst.msk [vmem:[#allocation2 + $0x8] sm:$0xf] %vm258, %v228
      %262 = vst.msk [vmem:[#allocation2 + $0xc] sm:$0xf] %vm258, %v229
      %263 = vst.msk [vmem:[#allocation2 + $0x10] sm:$0xf] %vm258, %v230
      %264 = vst.msk [vmem:[#allocation2 + $0x14] sm:$0xf] %vm258, %v231
      %265 = vst.msk [vmem:[#allocation2 + $0x18] sm:$0xf] %vm258, %v232
      %266 = vst.msk [vmem:[#allocation2 + $0x1c] sm:$0xf] %vm258, %v233
      %267 = vst.msk [vmem:[#allocation2 + $0x20] sm:$0xf] %vm258, %v234
      %268 = vst.msk [vmem:[#allocation2 + $0x24] sm:$0xf] %vm258, %v235
      %269 = vst.msk [vmem:[#allocation2 + $0x28] sm:$0xf] %vm258, %v236
      %270 = vst.msk [vmem:[#allocation2 + $0x2c] sm:$0xf] %vm258, %v237
      %271 = vst.msk [vmem:[#allocation2 + $0x30] sm:$0xf] %vm258, %v238
      %272 = vst.msk [vmem:[#allocation2 + $0x34] sm:$0xf] %vm258, %v239
      %273 = vst.msk [vmem:[#allocation2 + $0x38] sm:$0xf] %vm258, %v240
      %274 = vst.msk [vmem:[#allocation2 + $0x3c] sm:$0xf] %vm258, %v241
      %275 = vst.msk [vmem:[#allocation2 + $0x40] sm:$0xf] %vm258, %v242
      %276 = vst.msk [vmem:[#allocation2 + $0x44] sm:$0xf] %vm258, %v243
      %277 = vst.msk [vmem:[#allocation2 + $0x48] sm:$0xf] %vm258, %v244
      %278 = vst.msk [vmem:[#allocation2 + $0x4c] sm:$0xf] %vm258, %v245
      %279 = vst.msk [vmem:[#allocation2 + $0x50] sm:$0xf] %vm258, %v246
      %280 = vst.msk [vmem:[#allocation2 + $0x54] sm:$0xf] %vm258, %v247
      %281 = vst.msk [vmem:[#allocation2 + $0x58] sm:$0xf] %vm258, %v248
      %282 = vst.msk [vmem:[#allocation2 + $0x5c] sm:$0xf] %vm258, %v249
      %283 = vst.msk [vmem:[#allocation2 + $0x60] sm:$0xf] %vm258, %v250
      %284 = vst.msk [vmem:[#allocation2 + $0x64] sm:$0xf] %vm258, %v251
      %285 = vst.msk [vmem:[#allocation2 + $0x68] sm:$0xf] %vm258, %v252
      %286 = vst.msk [vmem:[#allocation2 + $0x6c] sm:$0xf] %vm258, %v253
      %287 = vst.msk [vmem:[#allocation2 + $0x70] sm:$0xf] %vm258, %v254
      %288 = vst.msk [vmem:[#allocation2 + $0x74] sm:$0xf] %vm258, %v255
      %289 = vst.msk [vmem:[#allocation2 + $0x78] sm:$0xf] %vm258, %v256
      %290 = vst.msk [vmem:[#allocation2 + $0x7c] sm:$0xf] %vm258, %v257
      %v291 = vld [vmem:[%s219] sm:$0xf]
      %v292 = vld [vmem:[%s219 + $0x4] sm:$0xf]
      %v293 = vld [vmem:[%s219 + $0x8] sm:$0x1]
      %v294 = vld [vmem:[%s219 + $0xc] sm:$0xf]
      %v295 = vld [vmem:[%s219 + $0x10] sm:$0xf]
      %v296 = vld [vmem:[%s219 + $0x14] sm:$0x1]
      %v297 = vld [vmem:[%s219 + $0x18] sm:$0xf]
      %v298 = vld [vmem:[%s219 + $0x1c] sm:$0xf]
      %v299 = vld [vmem:[%s219 + $0x20] sm:$0x1]
      %v300 = vld [vmem:[%s219 + $0x24] sm:$0xf]
      %v301 = vld [vmem:[%s219 + $0x28] sm:$0xf]
      %v302 = vld [vmem:[%s219 + $0x2c] sm:$0x1]
      %v303 = vld [vmem:[%s219 + $0x30] sm:$0xf]
      %v304 = vld [vmem:[%s219 + $0x34] sm:$0xf]
      %v305 = vld [vmem:[%s219 + $0x38] sm:$0x1]
      %v306 = vld [vmem:[%s219 + $0x3c] sm:$0xf]
      %v307 = vld [vmem:[%s219 + $0x40] sm:$0xf]
      %v308 = vld [vmem:[%s219 + $0x44] sm:$0x1]
      %v309 = vld [vmem:[%s219 + $0x48] sm:$0xf]
      %v310 = vld [vmem:[%s219 + $0x4c] sm:$0xf]
      %v311 = vld [vmem:[%s219 + $0x50] sm:$0x1]
      %v312 = vld [vmem:[%s219 + $0x54] sm:$0xf]
      %v313 = vld [vmem:[%s219 + $0x58] sm:$0xf]
      %v314 = vld [vmem:[%s219 + $0x5c] sm:$0x1]
      %v315 = vld [vmem:[%s219 + $0x60] sm:$0xf]
      %v316 = vld [vmem:[%s219 + $0x64] sm:$0xf]
      %v317 = vld [vmem:[%s219 + $0x68] sm:$0x1]
      %v318 = vld [vmem:[%s219 + $0x6c] sm:$0xf]
      %v319 = vld [vmem:[%s219 + $0x70] sm:$0xf]
      %v320 = vld [vmem:[%s219 + $0x74] sm:$0x1]
      %v321 = vld [vmem:[%s219 + $0x78] sm:$0xf]
      %v322 = vld [vmem:[%s219 + $0x7c] sm:$0xf]
      %v323 = vld [vmem:[%s219 + $0x80] sm:$0x1]
      %v324 = vld [vmem:[%s219 + $0x84] sm:$0xf]
      %v325 = vld [vmem:[%s219 + $0x88] sm:$0xf]
      %v326 = vld [vmem:[%s219 + $0x8c] sm:$0x1]
      %v327 = vld [vmem:[%s219 + $0x90] sm:$0xf]
      %v328 = vld [vmem:[%s219 + $0x94] sm:$0xf]
      %v329 = vld [vmem:[%s219 + $0x98] sm:$0x1]
      %v330 = vld [vmem:[%s219 + $0x9c] sm:$0xf]
      %v331 = vld [vmem:[%s219 + $0xa0] sm:$0xf]
      %v332 = vld [vmem:[%s219 + $0xa4] sm:$0x1]
      %v333 = vld [vmem:[%s219 + $0xa8] sm:$0xf]
      %v334 = vld [vmem:[%s219 + $0xac] sm:$0xf]
      %v335 = vld [vmem:[%s219 + $0xb0] sm:$0x1]
      %v336 = vld [vmem:[%s219 + $0xb4] sm:$0xf]
      %v337 = vld [vmem:[%s219 + $0xb8] sm:$0xf]
      %v338 = vld [vmem:[%s219 + $0xbc] sm:$0x1]
      %vm339 = vsmask.f32 3328
      %vm340 = vsmask.f32 7440
      %vm341 = vmor %vm339, %vm340
      %v343 = vshrl.u32 %v291, 16
      %v345 = vrot.slane %v343, 4
      %v346 = vshll.u32 %v291, 16
      %v348 = vrot.slane %v346, 5
      %v349 = vor.u32 %v345, %v348
      %v350 = vrot.slane %v349, 4
      %v352 = vshll.u32 %v292, 16
      %v354 = vrot.slane %v352, 5
      %v355 = vsel %vm341, %v350, %v354
      %v356 = vshrl.u32 %v292, 16
      %v358 = vrot.slane %v356, 4
      %v359 = vor.u32 %v358, %v354
      %v360 = vrot.slane %v359, 4
      %v362 = vshll.u32 %v293, 16
      %v364 = vrot.slane %v362, 5
      %v365 = vsel %vm341, %v360, %v364
      %v367 = vshrl.u32 %v294, 16
      %v369 = vrot.slane %v367, 4
      %v370 = vshll.u32 %v294, 16
      %v372 = vrot.slane %v370, 5
      %v373 = vor.u32 %v369, %v372
      %v374 = vrot.slane %v373, 4
      %v376 = vshll.u32 %v295, 16
      %v378 = vrot.slane %v376, 5
      %v379 = vsel %vm341, %v374, %v378
      %v380 = vshrl.u32 %v295, 16
      %v382 = vrot.slane %v380, 4
      %v383 = vor.u32 %v382, %v378
      %v384 = vrot.slane %v383, 4
      %v386 = vshll.u32 %v296, 16
      %v388 = vrot.slane %v386, 5
      %v389 = vsel %vm341, %v384, %v388
      %v391 = vshrl.u32 %v297, 16
      %v393 = vrot.slane %v391, 4
      %v394 = vshll.u32 %v297, 16
      %v396 = vrot.slane %v394, 5
      %v397 = vor.u32 %v393, %v396
      %v398 = vrot.slane %v397, 4
      %v400 = vshll.u32 %v298, 16
      %v402 = vrot.slane %v400, 5
      %v403 = vsel %vm341, %v398, %v402
      %v404 = vshrl.u32 %v298, 16
      %v406 = vrot.slane %v404, 4
      %v407 = vor.u32 %v406, %v402
      %v408 = vrot.slane %v407, 4
      %v410 = vshll.u32 %v299, 16
      %v412 = vrot.slane %v410, 5
      %v413 = vsel %vm341, %v408, %v412
      %v415 = vshrl.u32 %v300, 16
      %v417 = vrot.slane %v415, 4
      %v418 = vshll.u32 %v300, 16
      %v420 = vrot.slane %v418, 5
      %v421 = vor.u32 %v417, %v420
      %v422 = vrot.slane %v421, 4
      %v424 = vshll.u32 %v301, 16
      %v426 = vrot.slane %v424, 5
      %v427 = vsel %vm341, %v422, %v426
      %v428 = vshrl.u32 %v301, 16
      %v430 = vrot.slane %v428, 4
      %v431 = vor.u32 %v430, %v426
      %v432 = vrot.slane %v431, 4
      %v434 = vshll.u32 %v302, 16
      %v436 = vrot.slane %v434, 5
      %v437 = vsel %vm341, %v432, %v436
      %v439 = vshrl.u32 %v303, 16
      %v441 = vrot.slane %v439, 4
      %v442 = vshll.u32 %v303, 16
      %v444 = vrot.slane %v442, 5
      %v445 = vor.u32 %v441, %v444
      %v446 = vrot.slane %v445, 4
      %v448 = vshll.u32 %v304, 16
      %v450 = vrot.slane %v448, 5
      %v451 = vsel %vm341, %v446, %v450
      %v452 = vshrl.u32 %v304, 16
      %v454 = vrot.slane %v452, 4
      %v455 = vor.u32 %v454, %v450
      %v456 = vrot.slane %v455, 4
      %v458 = vshll.u32 %v305, 16
      %v460 = vrot.slane %v458, 5
      %v461 = vsel %vm341, %v456, %v460
      %v463 = vshrl.u32 %v306, 16
      %v465 = vrot.slane %v463, 4
      %v466 = vshll.u32 %v306, 16
      %v468 = vrot.slane %v466, 5
      %v469 = vor.u32 %v465, %v468
      %v470 = vrot.slane %v469, 4
      %v472 = vshll.u32 %v307, 16
      %v474 = vrot.slane %v472, 5
      %v475 = vsel %vm341, %v470, %v474
      %v476 = vshrl.u32 %v307, 16
      %v478 = vrot.slane %v476, 4
      %v479 = vor.u32 %v478, %v474
      %v480 = vrot.slane %v479, 4
      %v482 = vshll.u32 %v308, 16
      %v484 = vrot.slane %v482, 5
      %v485 = vsel %vm341, %v480, %v484
      %v487 = vshrl.u32 %v309, 16
      %v489 = vrot.slane %v487, 4
      %v490 = vshll.u32 %v309, 16
      %v492 = vrot.slane %v490, 5
      %v493 = vor.u32 %v489, %v492
      %v494 = vrot.slane %v493, 4
      %v496 = vshll.u32 %v310, 16
      %v498 = vrot.slane %v496, 5
      %v499 = vsel %vm341, %v494, %v498
      %v500 = vshrl.u32 %v310, 16
      %v502 = vrot.slane %v500, 4
      %v503 = vor.u32 %v502, %v498
      %v504 = vrot.slane %v503, 4
      %v506 = vshll.u32 %v311, 16
      %v508 = vrot.slane %v506, 5
      %v509 = vsel %vm341, %v504, %v508
      %v511 = vshrl.u32 %v312, 16
      %v513 = vrot.slane %v511, 4
      %v514 = vshll.u32 %v312, 16
      %v516 = vrot.slane %v514, 5
      %v517 = vor.u32 %v513, %v516
      %v518 = vrot.slane %v517, 4
      %v520 = vshll.u32 %v313, 16
      %v522 = vrot.slane %v520, 5
      %v523 = vsel %vm341, %v518, %v522
      %v524 = vshrl.u32 %v313, 16
      %v526 = vrot.slane %v524, 4
      %v527 = vor.u32 %v526, %v522
      %v528 = vrot.slane %v527, 4
      %v530 = vshll.u32 %v314, 16
      %v532 = vrot.slane %v530, 5
      %v533 = vsel %vm341, %v528, %v532
      %v535 = vshrl.u32 %v315, 16
      %v537 = vrot.slane %v535, 4
      %v538 = vshll.u32 %v315, 16
      %v540 = vrot.slane %v538, 5
      %v541 = vor.u32 %v537, %v540
      %v542 = vrot.slane %v541, 4
      %v544 = vshll.u32 %v316, 16
      %v546 = vrot.slane %v544, 5
      %v547 = vsel %vm341, %v542, %v546
      %v548 = vshrl.u32 %v316, 16
      %v550 = vrot.slane %v548, 4
      %v551 = vor.u32 %v550, %v546
      %v552 = vrot.slane %v551, 4
      %v554 = vshll.u32 %v317, 16
      %v556 = vrot.slane %v554, 5
      %v557 = vsel %vm341, %v552, %v556
      %v559 = vshrl.u32 %v318, 16
      %v561 = vrot.slane %v559, 4
      %v562 = vshll.u32 %v318, 16
      %v564 = vrot.slane %v562, 5
      %v565 = vor.u32 %v561, %v564
      %v566 = vrot.slane %v565, 4
      %v568 = vshll.u32 %v319, 16
      %v570 = vrot.slane %v568, 5
      %v571 = vsel %vm341, %v566, %v570
      %v572 = vshrl.u32 %v319, 16
      %v574 = vrot.slane %v572, 4
      %v575 = vor.u32 %v574, %v570
      %v576 = vrot.slane %v575, 4
      %v578 = vshll.u32 %v320, 16
      %v580 = vrot.slane %v578, 5
      %v581 = vsel %vm341, %v576, %v580
      %v583 = vshrl.u32 %v321, 16
      %v585 = vrot.slane %v583, 4
      %v586 = vshll.u32 %v321, 16
      %v588 = vrot.slane %v586, 5
      %v589 = vor.u32 %v585, %v588
      %v590 = vrot.slane %v589, 4
      %v592 = vshll.u32 %v322, 16
      %v594 = vrot.slane %v592, 5
      %v595 = vsel %vm341, %v590, %v594
      %v596 = vshrl.u32 %v322, 16
      %v598 = vrot.slane %v596, 4
      %v599 = vor.u32 %v598, %v594
      %v600 = vrot.slane %v599, 4
      %v602 = vshll.u32 %v323, 16
      %v604 = vrot.slane %v602, 5
      %v605 = vsel %vm341, %v600, %v604
      %v607 = vshrl.u32 %v324, 16
      %v609 = vrot.slane %v607, 4
      %v610 = vshll.u32 %v324, 16
      %v612 = vrot.slane %v610, 5
      %v613 = vor.u32 %v609, %v612
      %v614 = vrot.slane %v613, 4
      %v616 = vshll.u32 %v325, 16
      %v618 = vrot.slane %v616, 5
      %v619 = vsel %vm341, %v614, %v618
      %v620 = vshrl.u32 %v325, 16
      %v622 = vrot.slane %v620, 4
      %v623 = vor.u32 %v622, %v618
      %v624 = vrot.slane %v623, 4
      %v626 = vshll.u32 %v326, 16
      %v628 = vrot.slane %v626, 5
      %v629 = vsel %vm341, %v624, %v628
      %v631 = vshrl.u32 %v327, 16
      %v633 = vrot.slane %v631, 4
      %v634 = vshll.u32 %v327, 16
      %v636 = vrot.slane %v634, 5
      %v637 = vor.u32 %v633, %v636
      %v638 = vrot.slane %v637, 4
      %v640 = vshll.u32 %v328, 16
      %v642 = vrot.slane %v640, 5
      %v643 = vsel %vm341, %v638, %v642
      %v644 = vshrl.u32 %v328, 16
      %v646 = vrot.slane %v644, 4
      %v647 = vor.u32 %v646, %v642
      %v648 = vrot.slane %v647, 4
      %v650 = vshll.u32 %v329, 16
      %v652 = vrot.slane %v650, 5
      %v653 = vsel %vm341, %v648, %v652
      %v655 = vshrl.u32 %v330, 16
      %v657 = vrot.slane %v655, 4
      %v658 = vshll.u32 %v330, 16
      %v660 = vrot.slane %v658, 5
      %v661 = vor.u32 %v657, %v660
      %v662 = vrot.slane %v661, 4
      %v664 = vshll.u32 %v331, 16
      %v666 = vrot.slane %v664, 5
      %v667 = vsel %vm341, %v662, %v666
      %v668 = vshrl.u32 %v331, 16
      %v670 = vrot.slane %v668, 4
      %v671 = vor.u32 %v670, %v666
      %v672 = vrot.slane %v671, 4
      %v674 = vshll.u32 %v332, 16
      %v676 = vrot.slane %v674, 5
      %v677 = vsel %vm341, %v672, %v676
      %v679 = vshrl.u32 %v333, 16
      %v681 = vrot.slane %v679, 4
      %v682 = vshll.u32 %v333, 16
      %v684 = vrot.slane %v682, 5
      %v685 = vor.u32 %v681, %v684
      %v686 = vrot.slane %v685, 4
      %v688 = vshll.u32 %v334, 16
      %v690 = vrot.slane %v688, 5
      %v691 = vsel %vm341, %v686, %v690
      %v692 = vshrl.u32 %v334, 16
      %v694 = vrot.slane %v692, 4
      %v695 = vor.u32 %v694, %v690
      %v696 = vrot.slane %v695, 4
      %v698 = vshll.u32 %v335, 16
      %v700 = vrot.slane %v698, 5
      %v701 = vsel %vm341, %v696, %v700
      %v703 = vshrl.u32 %v336, 16
      %v705 = vrot.slane %v703, 4
      %v706 = vshll.u32 %v336, 16
      %v708 = vrot.slane %v706, 5
      %v709 = vor.u32 %v705, %v708
      %v710 = vrot.slane %v709, 4
      %v712 = vshll.u32 %v337, 16
      %v714 = vrot.slane %v712, 5
      %v715 = vsel %vm341, %v710, %v714
      %v716 = vshrl.u32 %v337, 16
      %v718 = vrot.slane %v716, 4
      %v719 = vor.u32 %v718, %v714
      %v720 = vrot.slane %v719, 4
      %v722 = vshll.u32 %v338, 16
      %v724 = vrot.slane %v722, 5
      %v725 = vsel %vm341, %v720, %v724
      %726 = vrot.lane.b32.xlu0 %v355, 8
      %v727 = vpop.permute.xlu0 %726
      %728 = vrot.lane.b32.xlu0 %v365, 8
      %v729 = vpop.permute.xlu0 %728
      %730 = vrot.lane.b32.xlu0 %v379, 8
      %v731 = vpop.permute.xlu0 %730
      %732 = vrot.lane.b32.xlu0 %v389, 8
      %v733 = vpop.permute.xlu0 %732
      %734 = vrot.lane.b32.xlu0 %v403, 8
      %v735 = vpop.permute.xlu0 %734
      %736 = vrot.lane.b32.xlu0 %v413, 8
      %v737 = vpop.permute.xlu0 %736
      %738 = vrot.lane.b32.xlu0 %v427, 8
      %v739 = vpop.permute.xlu0 %738
      %740 = vrot.lane.b32.xlu0 %v437, 8
      %v741 = vpop.permute.xlu0 %740
      %742 = vrot.lane.b32.xlu0 %v451, 8
      %v743 = vpop.permute.xlu0 %742
      %744 = vrot.lane.b32.xlu0 %v461, 8
      %v745 = vpop.permute.xlu0 %744
      %746 = vrot.lane.b32.xlu0 %v475, 8
      %v747 = vpop.permute.xlu0 %746
      %748 = vrot.lane.b32.xlu0 %v485, 8
      %v749 = vpop.permute.xlu0 %748
      %750 = vrot.lane.b32.xlu0 %v499, 8
      %v751 = vpop.permute.xlu0 %750
      %752 = vrot.lane.b32.xlu0 %v509, 8
      %v753 = vpop.permute.xlu0 %752
      %754 = vrot.lane.b32.xlu0 %v523, 8
      %v755 = vpop.permute.xlu0 %754
      %756 = vrot.lane.b32.xlu0 %v533, 8
      %v757 = vpop.permute.xlu0 %756
      %758 = vrot.lane.b32.xlu0 %v547, 8
      %v759 = vpop.permute.xlu0 %758
      %760 = vrot.lane.b32.xlu0 %v557, 8
      %v761 = vpop.permute.xlu0 %760
      %762 = vrot.lane.b32.xlu0 %v571, 8
      %v763 = vpop.permute.xlu0 %762
      %764 = vrot.lane.b32.xlu0 %v581, 8
      %v765 = vpop.permute.xlu0 %764
      %766 = vrot.lane.b32.xlu0 %v595, 8
      %v767 = vpop.permute.xlu0 %766
      %768 = vrot.lane.b32.xlu0 %v605, 8
      %v769 = vpop.permute.xlu0 %768
      %770 = vrot.lane.b32.xlu0 %v619, 8
      %v771 = vpop.permute.xlu0 %770
      %772 = vrot.lane.b32.xlu0 %v629, 8
      %v773 = vpop.permute.xlu0 %772
      %774 = vrot.lane.b32.xlu0 %v643, 8
      %v775 = vpop.permute.xlu0 %774
      %776 = vrot.lane.b32.xlu0 %v653, 8
      %v777 = vpop.permute.xlu0 %776
      %778 = vrot.lane.b32.xlu0 %v667, 8
      %v779 = vpop.permute.xlu0 %778
      %780 = vrot.lane.b32.xlu0 %v677, 8
      %v781 = vpop.permute.xlu0 %780
      %782 = vrot.lane.b32.xlu0 %v691, 8
      %v783 = vpop.permute.xlu0 %782
      %784 = vrot.lane.b32.xlu0 %v701, 8
      %v785 = vpop.permute.xlu0 %784
      %786 = vrot.lane.b32.xlu0 %v715, 8
      %v787 = vpop.permute.xlu0 %786
      %788 = vrot.lane.b32.xlu0 %v725, 8
      %v789 = vpop.permute.xlu0 %788
      %vm822 = vcmask 126016
      %823 = vst.msk [vmem:[#allocation2] sm:$0xf] %vm822, %v727
      %824 = vst.msk [vmem:[#allocation2 + $0x4] sm:$0xf] %vm822, %v729
      %825 = vst.msk [vmem:[#allocation2 + $0x8] sm:$0xf] %vm822, %v731
      %826 = vst.msk [vmem:[#allocation2 + $0xc] sm:$0xf] %vm822, %v733
      %827 = vst.msk [vmem:[#allocation2 + $0x10] sm:$0xf] %vm822, %v735
      %828 = vst.msk [vmem:[#allocation2 + $0x14] sm:$0xf] %vm822, %v737
      %829 = vst.msk [vmem:[#allocation2 + $0x18] sm:$0xf] %vm822, %v739
      %830 = vst.msk [vmem:[#allocation2 + $0x1c] sm:$0xf] %vm822, %v741
      %831 = vst.msk [vmem:[#allocation2 + $0x20] sm:$0xf] %vm822, %v743
      %832 = vst.msk [vmem:[#allocation2 + $0x24] sm:$0xf] %vm822, %v745
      %833 = vst.msk [vmem:[#allocation2 + $0x28] sm:$0xf] %vm822, %v747
      %834 = vst.msk [vmem:[#allocation2 + $0x2c] sm:$0xf] %vm822, %v749
      %835 = vst.msk [vmem:[#allocation2 + $0x30] sm:$0xf] %vm822, %v751
      %836 = vst.msk [vmem:[#allocation2 + $0x34] sm:$0xf] %vm822, %v753
      %837 = vst.msk [vmem:[#allocation2 + $0x38] sm:$0xf] %vm822, %v755
      %838 = vst.msk [vmem:[#allocation2 + $0x3c] sm:$0xf] %vm822, %v757
      %839 = vst.msk [vmem:[#allocation2 + $0x40] sm:$0xf] %vm822, %v759
      %840 = vst.msk [vmem:[#allocation2 + $0x44] sm:$0xf] %vm822, %v761
      %841 = vst.msk [vmem:[#allocation2 + $0x48] sm:$0xf] %vm822, %v763
      %842 = vst.msk [vmem:[#allocation2 + $0x4c] sm:$0xf] %vm822, %v765
      %843 = vst.msk [vmem:[#allocation2 + $0x50] sm:$0xf] %vm822, %v767
      %844 = vst.msk [vmem:[#allocation2 + $0x54] sm:$0xf] %vm822, %v769
      %845 = vst.msk [vmem:[#allocation2 + $0x58] sm:$0xf] %vm822, %v771
      %846 = vst.msk [vmem:[#allocation2 + $0x5c] sm:$0xf] %vm822, %v773
      %847 = vst.msk [vmem:[#allocation2 + $0x60] sm:$0xf] %vm822, %v775
      %848 = vst.msk [vmem:[#allocation2 + $0x64] sm:$0xf] %vm822, %v777
      %849 = vst.msk [vmem:[#allocation2 + $0x68] sm:$0xf] %vm822, %v779
      %850 = vst.msk [vmem:[#allocation2 + $0x6c] sm:$0xf] %vm822, %v781
      %851 = vst.msk [vmem:[#allocation2 + $0x70] sm:$0xf] %vm822, %v783
      %852 = vst.msk [vmem:[#allocation2 + $0x74] sm:$0xf] %vm822, %v785
      %853 = vst.msk [vmem:[#allocation2 + $0x78] sm:$0xf] %vm822, %v787
      %854 = vst.msk [vmem:[#allocation2 + $0x7c] sm:$0xf] %vm822, %v789
      %v855 = vld [vmem:[%s219] sm:$0xe]
      %v856 = vld [vmem:[%s219 + $0x4] sm:$0xf]
      %v857 = vld [vmem:[%s219 + $0x8] sm:$0x1]
      %v858 = vld [vmem:[%s219 + $0xc] sm:$0xe]
      %v859 = vld [vmem:[%s219 + $0x10] sm:$0xf]
      %v860 = vld [vmem:[%s219 + $0x14] sm:$0x1]
      %v861 = vld [vmem:[%s219 + $0x18] sm:$0xe]
      %v862 = vld [vmem:[%s219 + $0x1c] sm:$0xf]
      %v863 = vld [vmem:[%s219 + $0x20] sm:$0x1]
      %v864 = vld [vmem:[%s219 + $0x24] sm:$0xe]
      %v865 = vld [vmem:[%s219 + $0x28] sm:$0xf]
      %v866 = vld [vmem:[%s219 + $0x2c] sm:$0x1]
      %v867 = vld [vmem:[%s219 + $0x30] sm:$0xe]
      %v868 = vld [vmem:[%s219 + $0x34] sm:$0xf]
      %v869 = vld [vmem:[%s219 + $0x38] sm:$0x1]
      %v870 = vld [vmem:[%s219 + $0x3c] sm:$0xe]
      %v871 = vld [vmem:[%s219 + $0x40] sm:$0xf]
      %v872 = vld [vmem:[%s219 + $0x44] sm:$0x1]
      %v873 = vld [vmem:[%s219 + $0x48] sm:$0xe]
      %v874 = vld [vmem:[%s219 + $0x4c] sm:$0xf]
      %v875 = vld [vmem:[%s219 + $0x50] sm:$0x1]
      %v876 = vld [vmem:[%s219 + $0x54] sm:$0xe]
      %v877 = vld [vmem:[%s219 + $0x58] sm:$0xf]
      %v878 = vld [vmem:[%s219 + $0x5c] sm:$0x1]
      %v879 = vld [vmem:[%s219 + $0x60] sm:$0xe]
      %v880 = vld [vmem:[%s219 + $0x64] sm:$0xf]
      %v881 = vld [vmem:[%s219 + $0x68] sm:$0x1]
      %v882 = vld [vmem:[%s219 + $0x6c] sm:$0xe]
      %v883 = vld [vmem:[%s219 + $0x70] sm:$0xf]
      %v884 = vld [vmem:[%s219 + $0x74] sm:$0x1]
      %v885 = vld [vmem:[%s219 + $0x78] sm:$0xe]
      %v886 = vld [vmem:[%s219 + $0x7c] sm:$0xf]
      %v887 = vld [vmem:[%s219 + $0x80] sm:$0x1]
      %v888 = vld [vmem:[%s219 + $0x84] sm:$0xe]
      %v889 = vld [vmem:[%s219 + $0x88] sm:$0xf]
      %v890 = vld [vmem:[%s219 + $0x8c] sm:$0x1]
      %v891 = vld [vmem:[%s219 + $0x90] sm:$0xe]
      %v892 = vld [vmem:[%s219 + $0x94] sm:$0xf]
      %v893 = vld [vmem:[%s219 + $0x98] sm:$0x1]
      %v894 = vld [vmem:[%s219 + $0x9c] sm:$0xe]
      %v895 = vld [vmem:[%s219 + $0xa0] sm:$0xf]
      %v896 = vld [vmem:[%s219 + $0xa4] sm:$0x1]
      %v897 = vld [vmem:[%s219 + $0xa8] sm:$0xe]
      %v898 = vld [vmem:[%s219 + $0xac] sm:$0xf]
      %v899 = vld [vmem:[%s219 + $0xb0] sm:$0x1]
      %v900 = vld [vmem:[%s219 + $0xb4] sm:$0xe]
      %v901 = vld [vmem:[%s219 + $0xb8] sm:$0xf]
      %v902 = vld [vmem:[%s219 + $0xbc] sm:$0x1]
      %vm951 = vcmask 1042432
      %vm952 = vcmask 1046532
      %vm953 = vmor %vm951, %vm952
      %v954 = vrot.slane %v855, 5
      %v955 = vrot.slane %v954, 4
      %v956 = vrot.slane %v856, 5
      %v957 = vsel %vm953, %v955, %v956
      %v958 = vrot.slane %v956, 4
      %v959 = vrot.slane %v857, 5
      %v960 = vsel %vm953, %v958, %v959
      %v961 = vrot.slane %v858, 5
      %v962 = vrot.slane %v961, 4
      %v963 = vrot.slane %v859, 5
      %v964 = vsel %vm953, %v962, %v963
      %v965 = vrot.slane %v963, 4
      %v966 = vrot.slane %v860, 5
      %v967 = vsel %vm953, %v965, %v966
      %v968 = vrot.slane %v861, 5
      %v969 = vrot.slane %v968, 4
      %v970 = vrot.slane %v862, 5
      %v971 = vsel %vm953, %v969, %v970
      %v972 = vrot.slane %v970, 4
      %v973 = vrot.slane %v863, 5
      %v974 = vsel %vm953, %v972, %v973
      %v975 = vrot.slane %v864, 5
      %v976 = vrot.slane %v975, 4
      %v977 = vrot.slane %v865, 5
      %v978 = vsel %vm953, %v976, %v977
      %v979 = vrot.slane %v977, 4
      %v980 = vrot.slane %v866, 5
      %v981 = vsel %vm953, %v979, %v980
      %v982 = vrot.slane %v867, 5
      %v983 = vrot.slane %v982, 4
      %v984 = vrot.slane %v868, 5
      %v985 = vsel %vm953, %v983, %v984
      %v986 = vrot.slane %v984, 4
      %v987 = vrot.slane %v869, 5
      %v988 = vsel %vm953, %v986, %v987
      %v989 = vrot.slane %v870, 5
      %v990 = vrot.slane %v989, 4
      %v991 = vrot.slane %v871, 5
      %v992 = vsel %vm953, %v990, %v991
      %v993 = vrot.slane %v991, 4
      %v994 = vrot.slane %v872, 5
      %v995 = vsel %vm953, %v993, %v994
      %v996 = vrot.slane %v873, 5
      %v997 = vrot.slane %v996, 4
      %v998 = vrot.slane %v874, 5
      %v999 = vsel %vm953, %v997, %v998
      %v1000 = vrot.slane %v998, 4
      %v1001 = vrot.slane %v875, 5
      %v1002 = vsel %vm953, %v1000, %v1001
      %v1003 = vrot.slane %v876, 5
      %v1004 = vrot.slane %v1003, 4
      %v1005 = vrot.slane %v877, 5
      %v1006 = vsel %vm953, %v1004, %v1005
      %v1007 = vrot.slane %v1005, 4
      %v1008 = vrot.slane %v878, 5
      %v1009 = vsel %vm953, %v1007, %v1008
      %v1010 = vrot.slane %v879, 5
      %v1011 = vrot.slane %v1010, 4
      %v1012 = vrot.slane %v880, 5
      %v1013 = vsel %vm953, %v1011, %v1012
      %v1014 = vrot.slane %v1012, 4
      %v1015 = vrot.slane %v881, 5
      %v1016 = vsel %vm953, %v1014, %v1015
      %v1017 = vrot.slane %v882, 5
      %v1018 = vrot.slane %v1017, 4
      %v1019 = vrot.slane %v883, 5
      %v1020 = vsel %vm953, %v1018, %v1019
      %v1021 = vrot.slane %v1019, 4
      %v1022 = vrot.slane %v884, 5
      %v1023 = vsel %vm953, %v1021, %v1022
      %v1024 = vrot.slane %v885, 5
      %v1025 = vrot.slane %v1024, 4
      %v1026 = vrot.slane %v886, 5
      %v1027 = vsel %vm953, %v1025, %v1026
      %v1028 = vrot.slane %v1026, 4
      %v1029 = vrot.slane %v887, 5
      %v1030 = vsel %vm953, %v1028, %v1029
      %v1031 = vrot.slane %v888, 5
      %v1032 = vrot.slane %v1031, 4
      %v1033 = vrot.slane %v889, 5
      %v1034 = vsel %vm953, %v1032, %v1033
      %v1035 = vrot.slane %v1033, 4
      %v1036 = vrot.slane %v890, 5
      %v1037 = vsel %vm953, %v1035, %v1036
      %v1038 = vrot.slane %v891, 5
      %v1039 = vrot.slane %v1038, 4
      %v1040 = vrot.slane %v892, 5
      %v1041 = vsel %vm953, %v1039, %v1040
      %v1042 = vrot.slane %v1040, 4
      %v1043 = vrot.slane %v893, 5
      %v1044 = vsel %vm953, %v1042, %v1043
      %v1045 = vrot.slane %v894, 5
      %v1046 = vrot.slane %v1045, 4
      %v1047 = vrot.slane %v895, 5
      %v1048 = vsel %vm953, %v1046, %v1047
      %v1049 = vrot.slane %v1047, 4
      %v1050 = vrot.slane %v896, 5
      %v1051 = vsel %vm953, %v1049, %v1050
      %v1052 = vrot.slane %v897, 5
      %v1053 = vrot.slane %v1052, 4
      %v1054 = vrot.slane %v898, 5
      %v1055 = vsel %vm953, %v1053, %v1054
      %v1056 = vrot.slane %v1054, 4
      %v1057 = vrot.slane %v899, 5
      %v1058 = vsel %vm953, %v1056, %v1057
      %v1059 = vrot.slane %v900, 5
      %v1060 = vrot.slane %v1059, 4
      %v1061 = vrot.slane %v901, 5
      %v1062 = vsel %vm953, %v1060, %v1061
      %v1063 = vrot.slane %v1061, 4
      %v1064 = vrot.slane %v902, 5
      %v1065 = vsel %vm953, %v1063, %v1064
      %1066 = vrot.lane.b32.xlu0 %v957, 16
      %v1067 = vpop.permute.xlu0 %1066
      %1068 = vrot.lane.b32.xlu0 %v960, 16
      %v1069 = vpop.permute.xlu0 %1068
      %1070 = vrot.lane.b32.xlu0 %v964, 16
      %v1071 = vpop.permute.xlu0 %1070
      %1072 = vrot.lane.b32.xlu0 %v967, 16
      %v1073 = vpop.permute.xlu0 %1072
      %1074 = vrot.lane.b32.xlu0 %v971, 16
      %v1075 = vpop.permute.xlu0 %1074
      %1076 = vrot.lane.b32.xlu0 %v974, 16
      %v1077 = vpop.permute.xlu0 %1076
      %1078 = vrot.lane.b32.xlu0 %v978, 16
      %v1079 = vpop.permute.xlu0 %1078
      %1080 = vrot.lane.b32.xlu0 %v981, 16
      %v1081 = vpop.permute.xlu0 %1080
      %1082 = vrot.lane.b32.xlu0 %v985, 16
      %v1083 = vpop.permute.xlu0 %1082
      %1084 = vrot.lane.b32.xlu0 %v988, 16
      %v1085 = vpop.permute.xlu0 %1084
      %1086 = vrot.lane.b32.xlu0 %v992, 16
      %v1087 = vpop.permute.xlu0 %1086
      %1088 = vrot.lane.b32.xlu0 %v995, 16
      %v1089 = vpop.permute.xlu0 %1088
      %1090 = vrot.lane.b32.xlu0 %v999, 16
      %v1091 = vpop.permute.xlu0 %1090
      %1092 = vrot.lane.b32.xlu0 %v1002, 16
      %v1093 = vpop.permute.xlu0 %1092
      %1094 = vrot.lane.b32.xlu0 %v1006, 16
      %v1095 = vpop.permute.xlu0 %1094
      %1096 = vrot.lane.b32.xlu0 %v1009, 16
      %v1097 = vpop.permute.xlu0 %1096
      %1098 = vrot.lane.b32.xlu0 %v1013, 16
      %v1099 = vpop.permute.xlu0 %1098
      %1100 = vrot.lane.b32.xlu0 %v1016, 16
      %v1101 = vpop.permute.xlu0 %1100
      %1102 = vrot.lane.b32.xlu0 %v1020, 16
      %v1103 = vpop.permute.xlu0 %1102
      %1104 = vrot.lane.b32.xlu0 %v1023, 16
      %v1105 = vpop.permute.xlu0 %1104
      %1106 = vrot.lane.b32.xlu0 %v1027, 16
      %v1107 = vpop.permute.xlu0 %1106
      %1108 = vrot.lane.b32.xlu0 %v1030, 16
      %v1109 = vpop.permute.xlu0 %1108
      %1110 = vrot.lane.b32.xlu0 %v1034, 16
      %v1111 = vpop.permute.xlu0 %1110
      %1112 = vrot.lane.b32.xlu0 %v1037, 16
      %v1113 = vpop.permute.xlu0 %1112
      %1114 = vrot.lane.b32.xlu0 %v1041, 16
      %v1115 = vpop.permute.xlu0 %1114
      %1116 = vrot.lane.b32.xlu0 %v1044, 16
      %v1117 = vpop.permute.xlu0 %1116
      %1118 = vrot.lane.b32.xlu0 %v1048, 16
      %v1119 = vpop.permute.xlu0 %1118
      %1120 = vrot.lane.b32.xlu0 %v1051, 16
      %v1121 = vpop.permute.xlu0 %1120
      %1122 = vrot.lane.b32.xlu0 %v1055, 16
      %v1123 = vpop.permute.xlu0 %1122
      %1124 = vrot.lane.b32.xlu0 %v1058, 16
      %v1125 = vpop.permute.xlu0 %1124
      %1126 = vrot.lane.b32.xlu0 %v1062, 16
      %v1127 = vpop.permute.xlu0 %1126
      %1128 = vrot.lane.b32.xlu0 %v1065, 16
      %v1129 = vpop.permute.xlu0 %1128
      %vm1162 = vcmask 191616
      %1163 = vst.msk [vmem:[#allocation2] sm:$0xf] %vm1162, %v1067
      %1164 = vst.msk [vmem:[#allocation2 + $0x4] sm:$0xf] %vm1162, %v1069
      %1165 = vst.msk [vmem:[#allocation2 + $0x8] sm:$0xf] %vm1162, %v1071
      %1166 = vst.msk [vmem:[#allocation2 + $0xc] sm:$0xf] %vm1162, %v1073
      %1167 = vst.msk [vmem:[#allocation2 + $0x10] sm:$0xf] %vm1162, %v1075
      %1168 = vst.msk [vmem:[#allocation2 + $0x14] sm:$0xf] %vm1162, %v1077
      %1169 = vst.msk [vmem:[#allocation2 + $0x18] sm:$0xf] %vm1162, %v1079
      %1170 = vst.msk [vmem:[#allocation2 + $0x1c] sm:$0xf] %vm1162, %v1081
      %1171 = vst.msk [vmem:[#allocation2 + $0x20] sm:$0xf] %vm1162, %v1083
      %1172 = vst.msk [vmem:[#allocation2 + $0x24] sm:$0xf] %vm1162, %v1085
      %1173 = vst.msk [vmem:[#allocation2 + $0x28] sm:$0xf] %vm1162, %v1087
      %1174 = vst.msk [vmem:[#allocation2 + $0x2c] sm:$0xf] %vm1162, %v1089
      %1175 = vst.msk [vmem:[#allocation2 + $0x30] sm:$0xf] %vm1162, %v1091
      %1176 = vst.msk [vmem:[#allocation2 + $0x34] sm:$0xf] %vm1162, %v1093
      %1177 = vst.msk [vmem:[#allocation2 + $0x38] sm:$0xf] %vm1162, %v1095
      %1178 = vst.msk [vmem:[#allocation2 + $0x3c] sm:$0xf] %vm1162, %v1097
      %1179 = vst.msk [vmem:[#allocation2 + $0x40] sm:$0xf] %vm1162, %v1099
      %1180 = vst.msk [vmem:[#allocation2 + $0x44] sm:$0xf] %vm1162, %v1101
      %1181 = vst.msk [vmem:[#allocation2 + $0x48] sm:$0xf] %vm1162, %v1103
      %1182 = vst.msk [vmem:[#allocation2 + $0x4c] sm:$0xf] %vm1162, %v1105
      %1183 = vst.msk [vmem:[#allocation2 + $0x50] sm:$0xf] %vm1162, %v1107
      %1184 = vst.msk [vmem:[#allocation2 + $0x54] sm:$0xf] %vm1162, %v1109
      %1185 = vst.msk [vmem:[#allocation2 + $0x58] sm:$0xf] %vm1162, %v1111
      %1186 = vst.msk [vmem:[#allocation2 + $0x5c] sm:$0xf] %vm1162, %v1113
      %1187 = vst.msk [vmem:[#allocation2 + $0x60] sm:$0xf] %vm1162, %v1115
      %1188 = vst.msk [vmem:[#allocation2 + $0x64] sm:$0xf] %vm1162, %v1117
      %1189 = vst.msk [vmem:[#allocation2 + $0x68] sm:$0xf] %vm1162, %v1119
      %1190 = vst.msk [vmem:[#allocation2 + $0x6c] sm:$0xf] %vm1162, %v1121
      %1191 = vst.msk [vmem:[#allocation2 + $0x70] sm:$0xf] %vm1162, %v1123
      %1192 = vst.msk [vmem:[#allocation2 + $0x74] sm:$0xf] %vm1162, %v1125
      %1193 = vst.msk [vmem:[#allocation2 + $0x78] sm:$0xf] %vm1162, %v1127
      %1194 = vst.msk [vmem:[#allocation2 + $0x7c] sm:$0xf] %vm1162, %v1129
      %v1195 = vld [vmem:[%s219] sm:$0xe]
      %v1196 = vld [vmem:[%s219 + $0x4] sm:$0xf]
      %v1197 = vld [vmem:[%s219 + $0x8] sm:$0x3]
      %v1198 = vld [vmem:[%s219 + $0xc] sm:$0xe]
      %v1199 = vld [vmem:[%s219 + $0x10] sm:$0xf]
      %v1200 = vld [vmem:[%s219 + $0x14] sm:$0x3]
      %v1201 = vld [vmem:[%s219 + $0x18] sm:$0xe]
      %v1202 = vld [vmem:[%s219 + $0x1c] sm:$0xf]
      %v1203 = vld [vmem:[%s219 + $0x20] sm:$0x3]
      %v1204 = vld [vmem:[%s219 + $0x24] sm:$0xe]
      %v1205 = vld [vmem:[%s219 + $0x28] sm:$0xf]
      %v1206 = vld [vmem:[%s219 + $0x2c] sm:$0x3]
      %v1207 = vld [vmem:[%s219 + $0x30] sm:$0xe]
      %v1208 = vld [vmem:[%s219 + $0x34] sm:$0xf]
      %v1209 = vld [vmem:[%s219 + $0x38] sm:$0x3]
      %v1210 = vld [vmem:[%s219 + $0x3c] sm:$0xe]
      %v1211 = vld [vmem:[%s219 + $0x40] sm:$0xf]
      %v1212 = vld [vmem:[%s219 + $0x44] sm:$0x3]
      %v1213 = vld [vmem:[%s219 + $0x48] sm:$0xe]
      %v1214 = vld [vmem:[%s219 + $0x4c] sm:$0xf]
      %v1215 = vld [vmem:[%s219 + $0x50] sm:$0x3]
      %v1216 = vld [vmem:[%s219 + $0x54] sm:$0xe]
      %v1217 = vld [vmem:[%s219 + $0x58] sm:$0xf]
      %v1218 = vld [vmem:[%s219 + $0x5c] sm:$0x3]
      %v1219 = vld [vmem:[%s219 + $0x60] sm:$0xe]
      %v1220 = vld [vmem:[%s219 + $0x64] sm:$0xf]
      %v1221 = vld [vmem:[%s219 + $0x68] sm:$0x3]
      %v1222 = vld [vmem:[%s219 + $0x6c] sm:$0xe]
      %v1223 = vld [vmem:[%s219 + $0x70] sm:$0xf]
      %v1224 = vld [vmem:[%s219 + $0x74] sm:$0x3]
      %v1225 = vld [vmem:[%s219 + $0x78] sm:$0xe]
      %v1226 = vld [vmem:[%s219 + $0x7c] sm:$0xf]
      %v1227 = vld [vmem:[%s219 + $0x80] sm:$0x3]
      %v1228 = vld [vmem:[%s219 + $0x84] sm:$0xe]
      %v1229 = vld [vmem:[%s219 + $0x88] sm:$0xf]
      %v1230 = vld [vmem:[%s219 + $0x8c] sm:$0x3]
      %v1231 = vld [vmem:[%s219 + $0x90] sm:$0xe]
      %v1232 = vld [vmem:[%s219 + $0x94] sm:$0xf]
      %v1233 = vld [vmem:[%s219 + $0x98] sm:$0x3]
      %v1234 = vld [vmem:[%s219 + $0x9c] sm:$0xe]
      %v1235 = vld [vmem:[%s219 + $0xa0] sm:$0xf]
      %v1236 = vld [vmem:[%s219 + $0xa4] sm:$0x3]
      %v1237 = vld [vmem:[%s219 + $0xa8] sm:$0xe]
      %v1238 = vld [vmem:[%s219 + $0xac] sm:$0xf]
      %v1239 = vld [vmem:[%s219 + $0xb0] sm:$0x3]
      %v1240 = vld [vmem:[%s219 + $0xb4] sm:$0xe]
      %v1241 = vld [vmem:[%s219 + $0xb8] sm:$0xf]
      %v1242 = vld [vmem:[%s219 + $0xbc] sm:$0x3]
      %vm1243 = vsmask.f32 2304
      %vm1244 = vsmask.f32 6416
      %vm1245 = vmor %vm1243, %vm1244
      %v1247 = vshrl.u32 %v1195, 16
      %v1249 = vrot.slane %v1247, 5
      %v1250 = vshll.u32 %v1195, 16
      %v1252 = vrot.slane %v1250, 6
      %v1253 = vor.u32 %v1249, %v1252
      %v1254 = vrot.slane %v1253, 4
      %v1256 = vshrl.u32 %v1196, 16
      %v1258 = vrot.slane %v1256, 5
      %v1259 = vshll.u32 %v1196, 16
      %v1261 = vrot.slane %v1259, 6
      %v1262 = vor.u32 %v1258, %v1261
      %v1263 = vsel %vm1245, %v1254, %v1262
      %v1264 = vrot.slane %v1262, 4
      %v1266 = vshrl.u32 %v1197, 16
      %v1268 = vrot.slane %v1266, 5
      %v1269 = vshll.u32 %v1197, 16
      %v1271 = vrot.slane %v1269, 6
      %v1272 = vor.u32 %v1268, %v1271
      %v1273 = vsel %vm1245, %v1264, %v1272
      %v1275 = vshrl.u32 %v1198, 16
      %v1277 = vrot.slane %v1275, 5
      %v1278 = vshll.u32 %v1198, 16
      %v1280 = vrot.slane %v1278, 6
      %v1281 = vor.u32 %v1277, %v1280
      %v1282 = vrot.slane %v1281, 4
      %v1284 = vshrl.u32 %v1199, 16
      %v1286 = vrot.slane %v1284, 5
      %v1287 = vshll.u32 %v1199, 16
      %v1289 = vrot.slane %v1287, 6
      %v1290 = vor.u32 %v1286, %v1289
      %v1291 = vsel %vm1245, %v1282, %v1290
      %v1292 = vrot.slane %v1290, 4
      %v1294 = vshrl.u32 %v1200, 16
      %v1296 = vrot.slane %v1294, 5
      %v1297 = vshll.u32 %v1200, 16
      %v1299 = vrot.slane %v1297, 6
      %v1300 = vor.u32 %v1296, %v1299
      %v1301 = vsel %vm1245, %v1292, %v1300
      %v1303 = vshrl.u32 %v1201, 16
      %v1305 = vrot.slane %v1303, 5
      %v1306 = vshll.u32 %v1201, 16
      %v1308 = vrot.slane %v1306, 6
      %v1309 = vor.u32 %v1305, %v1308
      %v1310 = vrot.slane %v1309, 4
      %v1312 = vshrl.u32 %v1202, 16
      %v1314 = vrot.slane %v1312, 5
      %v1315 = vshll.u32 %v1202, 16
      %v1317 = vrot.slane %v1315, 6
      %v1318 = vor.u32 %v1314, %v1317
      %v1319 = vsel %vm1245, %v1310, %v1318
      %v1320 = vrot.slane %v1318, 4
      %v1322 = vshrl.u32 %v1203, 16
      %v1324 = vrot.slane %v1322, 5
      %v1325 = vshll.u32 %v1203, 16
      %v1327 = vrot.slane %v1325, 6
      %v1328 = vor.u32 %v1324, %v1327
      %v1329 = vsel %vm1245, %v1320, %v1328
      %v1331 = vshrl.u32 %v1204, 16
      %v1333 = vrot.slane %v1331, 5
      %v1334 = vshll.u32 %v1204, 16
      %v1336 = vrot.slane %v1334, 6
      %v1337 = vor.u32 %v1333, %v1336
      %v1338 = vrot.slane %v1337, 4
      %v1340 = vshrl.u32 %v1205, 16
      %v1342 = vrot.slane %v1340, 5
      %v1343 = vshll.u32 %v1205, 16
      %v1345 = vrot.slane %v1343, 6
      %v1346 = vor.u32 %v1342, %v1345
      %v1347 = vsel %vm1245, %v1338, %v1346
      %v1348 = vrot.slane %v1346, 4
      %v1350 = vshrl.u32 %v1206, 16
      %v1352 = vrot.slane %v1350, 5
      %v1353 = vshll.u32 %v1206, 16
      %v1355 = vrot.slane %v1353, 6
      %v1356 = vor.u32 %v1352, %v1355
      %v1357 = vsel %vm1245, %v1348, %v1356
      %v1359 = vshrl.u32 %v1207, 16
      %v1361 = vrot.slane %v1359, 5
      %v1362 = vshll.u32 %v1207, 16
      %v1364 = vrot.slane %v1362, 6
      %v1365 = vor.u32 %v1361, %v1364
      %v1366 = vrot.slane %v1365, 4
      %v1368 = vshrl.u32 %v1208, 16
      %v1370 = vrot.slane %v1368, 5
      %v1371 = vshll.u32 %v1208, 16
      %v1373 = vrot.slane %v1371, 6
      %v1374 = vor.u32 %v1370, %v1373
      %v1375 = vsel %vm1245, %v1366, %v1374
      %v1376 = vrot.slane %v1374, 4
      %v1378 = vshrl.u32 %v1209, 16
      %v1380 = vrot.slane %v1378, 5
      %v1381 = vshll.u32 %v1209, 16
      %v1383 = vrot.slane %v1381, 6
      %v1384 = vor.u32 %v1380, %v1383
      %v1385 = vsel %vm1245, %v1376, %v1384
      %v1387 = vshrl.u32 %v1210, 16
      %v1389 = vrot.slane %v1387, 5
      %v1390 = vshll.u32 %v1210, 16
      %v1392 = vrot.slane %v1390, 6
      %v1393 = vor.u32 %v1389, %v1392
      %v1394 = vrot.slane %v1393, 4
      %v1396 = vshrl.u32 %v1211, 16
      %v1398 = vrot.slane %v1396, 5
      %v1399 = vshll.u32 %v1211, 16
      %v1401 = vrot.slane %v1399, 6
      %v1402 = vor.u32 %v1398, %v1401
      %v1403 = vsel %vm1245, %v1394, %v1402
      %v1404 = vrot.slane %v1402, 4
      %v1406 = vshrl.u32 %v1212, 16
      %v1408 = vrot.slane %v1406, 5
      %v1409 = vshll.u32 %v1212, 16
      %v1411 = vrot.slane %v1409, 6
      %v1412 = vor.u32 %v1408, %v1411
      %v1413 = vsel %vm1245, %v1404, %v1412
      %v1415 = vshrl.u32 %v1213, 16
      %v1417 = vrot.slane %v1415, 5
      %v1418 = vshll.u32 %v1213, 16
      %v1420 = vrot.slane %v1418, 6
      %v1421 = vor.u32 %v1417, %v1420
      %v1422 = vrot.slane %v1421, 4
      %v1424 = vshrl.u32 %v1214, 16
      %v1426 = vrot.slane %v1424, 5
      %v1427 = vshll.u32 %v1214, 16
      %v1429 = vrot.slane %v1427, 6
      %v1430 = vor.u32 %v1426, %v1429
      %v1431 = vsel %vm1245, %v1422, %v1430
      %v1432 = vrot.slane %v1430, 4
      %v1434 = vshrl.u32 %v1215, 16
      %v1436 = vrot.slane %v1434, 5
      %v1437 = vshll.u32 %v1215, 16
      %v1439 = vrot.slane %v1437, 6
      %v1440 = vor.u32 %v1436, %v1439
      %v1441 = vsel %vm1245, %v1432, %v1440
      %v1443 = vshrl.u32 %v1216, 16
      %v1445 = vrot.slane %v1443, 5
      %v1446 = vshll.u32 %v1216, 16
      %v1448 = vrot.slane %v1446, 6
      %v1449 = vor.u32 %v1445, %v1448
      %v1450 = vrot.slane %v1449, 4
      %v1452 = vshrl.u32 %v1217, 16
      %v1454 = vrot.slane %v1452, 5
      %v1455 = vshll.u32 %v1217, 16
      %v1457 = vrot.slane %v1455, 6
      %v1458 = vor.u32 %v1454, %v1457
      %v1459 = vsel %vm1245, %v1450, %v1458
      %v1460 = vrot.slane %v1458, 4
      %v1462 = vshrl.u32 %v1218, 16
      %v1464 = vrot.slane %v1462, 5
      %v1465 = vshll.u32 %v1218, 16
      %v1467 = vrot.slane %v1465, 6
      %v1468 = vor.u32 %v1464, %v1467
      %v1469 = vsel %vm1245, %v1460, %v1468
      %v1471 = vshrl.u32 %v1219, 16
      %v1473 = vrot.slane %v1471, 5
      %v1474 = vshll.u32 %v1219, 16
      %v1476 = vrot.slane %v1474, 6
      %v1477 = vor.u32 %v1473, %v1476
      %v1478 = vrot.slane %v1477, 4
      %v1480 = vshrl.u32 %v1220, 16
      %v1482 = vrot.slane %v1480, 5
      %v1483 = vshll.u32 %v1220, 16
      %v1485 = vrot.slane %v1483, 6
      %v1486 = vor.u32 %v1482, %v1485
      %v1487 = vsel %vm1245, %v1478, %v1486
      %v1488 = vrot.slane %v1486, 4
      %v1490 = vshrl.u32 %v1221, 16
      %v1492 = vrot.slane %v1490, 5
      %v1493 = vshll.u32 %v1221, 16
      %v1495 = vrot.slane %v1493, 6
      %v1496 = vor.u32 %v1492, %v1495
      %v1497 = vsel %vm1245, %v1488, %v1496
      %v1499 = vshrl.u32 %v1222, 16
      %v1501 = vrot.slane %v1499, 5
      %v1502 = vshll.u32 %v1222, 16
      %v1504 = vrot.slane %v1502, 6
      %v1505 = vor.u32 %v1501, %v1504
      %v1506 = vrot.slane %v1505, 4
      %v1508 = vshrl.u32 %v1223, 16
      %v1510 = vrot.slane %v1508, 5
      %v1511 = vshll.u32 %v1223, 16
      %v1513 = vrot.slane %v1511, 6
      %v1514 = vor.u32 %v1510, %v1513
      %v1515 = vsel %vm1245, %v1506, %v1514
      %v1516 = vrot.slane %v1514, 4
      %v1518 = vshrl.u32 %v1224, 16
      %v1520 = vrot.slane %v1518, 5
      %v1521 = vshll.u32 %v1224, 16
      %v1523 = vrot.slane %v1521, 6
      %v1524 = vor.u32 %v1520, %v1523
      %v1525 = vsel %vm1245, %v1516, %v1524
      %v1527 = vshrl.u32 %v1225, 16
      %v1529 = vrot.slane %v1527, 5
      %v1530 = vshll.u32 %v1225, 16
      %v1532 = vrot.slane %v1530, 6
      %v1533 = vor.u32 %v1529, %v1532
      %v1534 = vrot.slane %v1533, 4
      %v1536 = vshrl.u32 %v1226, 16
      %v1538 = vrot.slane %v1536, 5
      %v1539 = vshll.u32 %v1226, 16
      %v1541 = vrot.slane %v1539, 6
      %v1542 = vor.u32 %v1538, %v1541
      %v1543 = vsel %vm1245, %v1534, %v1542
      %v1544 = vrot.slane %v1542, 4
      %v1546 = vshrl.u32 %v1227, 16
      %v1548 = vrot.slane %v1546, 5
      %v1549 = vshll.u32 %v1227, 16
      %v1551 = vrot.slane %v1549, 6
      %v1552 = vor.u32 %v1548, %v1551
      %v1553 = vsel %vm1245, %v1544, %v1552
      %v1555 = vshrl.u32 %v1228, 16
      %v1557 = vrot.slane %v1555, 5
      %v1558 = vshll.u32 %v1228, 16
      %v1560 = vrot.slane %v1558, 6
      %v1561 = vor.u32 %v1557, %v1560
      %v1562 = vrot.slane %v1561, 4
      %v1564 = vshrl.u32 %v1229, 16
      %v1566 = vrot.slane %v1564, 5
      %v1567 = vshll.u32 %v1229, 16
      %v1569 = vrot.slane %v1567, 6
      %v1570 = vor.u32 %v1566, %v1569
      %v1571 = vsel %vm1245, %v1562, %v1570
      %v1572 = vrot.slane %v1570, 4
      %v1574 = vshrl.u32 %v1230, 16
      %v1576 = vrot.slane %v1574, 5
      %v1577 = vshll.u32 %v1230, 16
      %v1579 = vrot.slane %v1577, 6
      %v1580 = vor.u32 %v1576, %v1579
      %v1581 = vsel %vm1245, %v1572, %v1580
      %v1583 = vshrl.u32 %v1231, 16
      %v1585 = vrot.slane %v1583, 5
      %v1586 = vshll.u32 %v1231, 16
      %v1588 = vrot.slane %v1586, 6
      %v1589 = vor.u32 %v1585, %v1588
      %v1590 = vrot.slane %v1589, 4
      %v1592 = vshrl.u32 %v1232, 16
      %v1594 = vrot.slane %v1592, 5
      %v1595 = vshll.u32 %v1232, 16
      %v1597 = vrot.slane %v1595, 6
      %v1598 = vor.u32 %v1594, %v1597
      %v1599 = vsel %vm1245, %v1590, %v1598
      %v1600 = vrot.slane %v1598, 4
      %v1602 = vshrl.u32 %v1233, 16
      %v1604 = vrot.slane %v1602, 5
      %v1605 = vshll.u32 %v1233, 16
      %v1607 = vrot.slane %v1605, 6
      %v1608 = vor.u32 %v1604, %v1607
      %v1609 = vsel %vm1245, %v1600, %v1608
      %v1611 = vshrl.u32 %v1234, 16
      %v1613 = vrot.slane %v1611, 5
      %v1614 = vshll.u32 %v1234, 16
      %v1616 = vrot.slane %v1614, 6
      %v1617 = vor.u32 %v1613, %v1616
      %v1618 = vrot.slane %v1617, 4
      %v1620 = vshrl.u32 %v1235, 16
      %v1622 = vrot.slane %v1620, 5
      %v1623 = vshll.u32 %v1235, 16
      %v1625 = vrot.slane %v1623, 6
      %v1626 = vor.u32 %v1622, %v1625
      %v1627 = vsel %vm1245, %v1618, %v1626
      %v1628 = vrot.slane %v1626, 4
      %v1630 = vshrl.u32 %v1236, 16
      %v1632 = vrot.slane %v1630, 5
      %v1633 = vshll.u32 %v1236, 16
      %v1635 = vrot.slane %v1633, 6
      %v1636 = vor.u32 %v1632, %v1635
      %v1637 = vsel %vm1245, %v1628, %v1636
      %v1639 = vshrl.u32 %v1237, 16
      %v1641 = vrot.slane %v1639, 5
      %v1642 = vshll.u32 %v1237, 16
      %v1644 = vrot.slane %v1642, 6
      %v1645 = vor.u32 %v1641, %v1644
      %v1646 = vrot.slane %v1645, 4
      %v1648 = vshrl.u32 %v1238, 16
      %v1650 = vrot.slane %v1648, 5
      %v1651 = vshll.u32 %v1238, 16
      %v1653 = vrot.slane %v1651, 6
      %v1654 = vor.u32 %v1650, %v1653
      %v1655 = vsel %vm1245, %v1646, %v1654
      %v1656 = vrot.slane %v1654, 4
      %v1658 = vshrl.u32 %v1239, 16
      %v1660 = vrot.slane %v1658, 5
      %v1661 = vshll.u32 %v1239, 16
      %v1663 = vrot.slane %v1661, 6
      %v1664 = vor.u32 %v1660, %v1663
      %v1665 = vsel %vm1245, %v1656, %v1664
      %v1667 = vshrl.u32 %v1240, 16
      %v1669 = vrot.slane %v1667, 5
      %v1670 = vshll.u32 %v1240, 16
      %v1672 = vrot.slane %v1670, 6
      %v1673 = vor.u32 %v1669, %v1672
      %v1674 = vrot.slane %v1673, 4
      %v1676 = vshrl.u32 %v1241, 16
      %v1678 = vrot.slane %v1676, 5
      %v1679 = vshll.u32 %v1241, 16
      %v1681 = vrot.slane %v1679, 6
      %v1682 = vor.u32 %v1678, %v1681
      %v1683 = vsel %vm1245, %v1674, %v1682
      %v1684 = vrot.slane %v1682, 4
      %v1686 = vshrl.u32 %v1242, 16
      %v1688 = vrot.slane %v1686, 5
      %v1689 = vshll.u32 %v1242, 16
      %v1691 = vrot.slane %v1689, 6
      %v1692 = vor.u32 %v1688, %v1691
      %v1693 = vsel %vm1245, %v1684, %v1692
      %1694 = vrot.lane.b32.xlu0 %v1263, 24
      %v1695 = vpop.permute.xlu0 %1694
      %1696 = vrot.lane.b32.xlu0 %v1273, 24
      %v1697 = vpop.permute.xlu0 %1696
      %1698 = vrot.lane.b32.xlu0 %v1291, 24
      %v1699 = vpop.permute.xlu0 %1698
      %1700 = vrot.lane.b32.xlu0 %v1301, 24
      %v1701 = vpop.permute.xlu0 %1700
      %1702 = vrot.lane.b32.xlu0 %v1319, 24
      %v1703 = vpop.permute.xlu0 %1702
      %1704 = vrot.lane.b32.xlu0 %v1329, 24
      %v1705 = vpop.permute.xlu0 %1704
      %1706 = vrot.lane.b32.xlu0 %v1347, 24
      %v1707 = vpop.permute.xlu0 %1706
      %1708 = vrot.lane.b32.xlu0 %v1357, 24
      %v1709 = vpop.permute.xlu0 %1708
      %1710 = vrot.lane.b32.xlu0 %v1375, 24
      %v1711 = vpop.permute.xlu0 %1710
      %1712 = vrot.lane.b32.xlu0 %v1385, 24
      %v1713 = vpop.permute.xlu0 %1712
      %1714 = vrot.lane.b32.xlu0 %v1403, 24
      %v1715 = vpop.permute.xlu0 %1714
      %1716 = vrot.lane.b32.xlu0 %v1413, 24
      %v1717 = vpop.permute.xlu0 %1716
      %1718 = vrot.lane.b32.xlu0 %v1431, 24
      %v1719 = vpop.permute.xlu0 %1718
      %1720 = vrot.lane.b32.xlu0 %v1441, 24
      %v1721 = vpop.permute.xlu0 %1720
      %1722 = vrot.lane.b32.xlu0 %v1459, 24
      %v1723 = vpop.permute.xlu0 %1722
      %1724 = vrot.lane.b32.xlu0 %v1469, 24
      %v1725 = vpop.permute.xlu0 %1724
      %1726 = vrot.lane.b32.xlu0 %v1487, 24
      %v1727 = vpop.permute.xlu0 %1726
      %1728 = vrot.lane.b32.xlu0 %v1497, 24
      %v1729 = vpop.permute.xlu0 %1728
      %1730 = vrot.lane.b32.xlu0 %v1515, 24
      %v1731 = vpop.permute.xlu0 %1730
      %1732 = vrot.lane.b32.xlu0 %v1525, 24
      %v1733 = vpop.permute.xlu0 %1732
      %1734 = vrot.lane.b32.xlu0 %v1543, 24
      %v1735 = vpop.permute.xlu0 %1734
      %1736 = vrot.lane.b32.xlu0 %v1553, 24
      %v1737 = vpop.permute.xlu0 %1736
      %1738 = vrot.lane.b32.xlu0 %v1571, 24
      %v1739 = vpop.permute.xlu0 %1738
      %1740 = vrot.lane.b32.xlu0 %v1581, 24
      %v1741 = vpop.permute.xlu0 %1740
      %1742 = vrot.lane.b32.xlu0 %v1599, 24
      %v1743 = vpop.permute.xlu0 %1742
      %1744 = vrot.lane.b32.xlu0 %v1609, 24
      %v1745 = vpop.permute.xlu0 %1744
      %1746 = vrot.lane.b32.xlu0 %v1627, 24
      %v1747 = vpop.permute.xlu0 %1746
      %1748 = vrot.lane.b32.xlu0 %v1637, 24
      %v1749 = vpop.permute.xlu0 %1748
      %1750 = vrot.lane.b32.xlu0 %v1655, 24
      %v1751 = vpop.permute.xlu0 %1750
      %1752 = vrot.lane.b32.xlu0 %v1665, 24
      %v1753 = vpop.permute.xlu0 %1752
      %1754 = vrot.lane.b32.xlu0 %v1683, 24
      %v1755 = vpop.permute.xlu0 %1754
      %1756 = vrot.lane.b32.xlu0 %v1693, 24
      %v1757 = vpop.permute.xlu0 %1756
      %vm1790 = vcmask 257216
      %1791 = vst.msk [vmem:[#allocation2] sm:$0xf] %vm1790, %v1695
      %1792 = vst.msk [vmem:[#allocation2 + $0x4] sm:$0xf] %vm1790, %v1697
      %1793 = vst.msk [vmem:[#allocation2 + $0x8] sm:$0xf] %vm1790, %v1699
      %1794 = vst.msk [vmem:[#allocation2 + $0xc] sm:$0xf] %vm1790, %v1701
      %1795 = vst.msk [vmem:[#allocation2 + $0x10] sm:$0xf] %vm1790, %v1703
      %1796 = vst.msk [vmem:[#allocation2 + $0x14] sm:$0xf] %vm1790, %v1705
      %1797 = vst.msk [vmem:[#allocation2 + $0x18] sm:$0xf] %vm1790, %v1707
      %1798 = vst.msk [vmem:[#allocation2 + $0x1c] sm:$0xf] %vm1790, %v1709
      %1799 = vst.msk [vmem:[#allocation2 + $0x20] sm:$0xf] %vm1790, %v1711
      %1800 = vst.msk [vmem:[#allocation2 + $0x24] sm:$0xf] %vm1790, %v1713
      %1801 = vst.msk [vmem:[#allocation2 + $0x28] sm:$0xf] %vm1790, %v1715
      %1802 = vst.msk [vmem:[#allocation2 + $0x2c] sm:$0xf] %vm1790, %v1717
      %1803 = vst.msk [vmem:[#allocation2 + $0x30] sm:$0xf] %vm1790, %v1719
      %1804 = vst.msk [vmem:[#allocation2 + $0x34] sm:$0xf] %vm1790, %v1721
      %1805 = vst.msk [vmem:[#allocation2 + $0x38] sm:$0xf] %vm1790, %v1723
      %1806 = vst.msk [vmem:[#allocation2 + $0x3c] sm:$0xf] %vm1790, %v1725
      %1807 = vst.msk [vmem:[#allocation2 + $0x40] sm:$0xf] %vm1790, %v1727
      %1808 = vst.msk [vmem:[#allocation2 + $0x44] sm:$0xf] %vm1790, %v1729
      %1809 = vst.msk [vmem:[#allocation2 + $0x48] sm:$0xf] %vm1790, %v1731
      %1810 = vst.msk [vmem:[#allocation2 + $0x4c] sm:$0xf] %vm1790, %v1733
      %1811 = vst.msk [vmem:[#allocation2 + $0x50] sm:$0xf] %vm1790, %v1735
      %1812 = vst.msk [vmem:[#allocation2 + $0x54] sm:$0xf] %vm1790, %v1737
      %1813 = vst.msk [vmem:[#allocation2 + $0x58] sm:$0xf] %vm1790, %v1739
      %1814 = vst.msk [vmem:[#allocation2 + $0x5c] sm:$0xf] %vm1790, %v1741
      %1815 = vst.msk [vmem:[#allocation2 + $0x60] sm:$0xf] %vm1790, %v1743
      %1816 = vst.msk [vmem:[#allocation2 + $0x64] sm:$0xf] %vm1790, %v1745
      %1817 = vst.msk [vmem:[#allocation2 + $0x68] sm:$0xf] %vm1790, %v1747
      %1818 = vst.msk [vmem:[#allocation2 + $0x6c] sm:$0xf] %vm1790, %v1749
      %1819 = vst.msk [vmem:[#allocation2 + $0x70] sm:$0xf] %vm1790, %v1751
      %1820 = vst.msk [vmem:[#allocation2 + $0x74] sm:$0xf] %vm1790, %v1753
      %1821 = vst.msk [vmem:[#allocation2 + $0x78] sm:$0xf] %vm1790, %v1755
      %1822 = vst.msk [vmem:[#allocation2 + $0x7c] sm:$0xf] %vm1790, %v1757
      %v1823 = vld [vmem:[%s219] sm:$0xc]
      %v1824 = vld [vmem:[%s219 + $0x4] sm:$0xf]
      %v1825 = vld [vmem:[%s219 + $0x8] sm:$0x3]
      %v1826 = vld [vmem:[%s219 + $0xc] sm:$0xc]
      %v1827 = vld [vmem:[%s219 + $0x10] sm:$0xf]
      %v1828 = vld [vmem:[%s219 + $0x14] sm:$0x3]
      %v1829 = vld [vmem:[%s219 + $0x18] sm:$0xc]
      %v1830 = vld [vmem:[%s219 + $0x1c] sm:$0xf]
      %v1831 = vld [vmem:[%s219 + $0x20] sm:$0x3]
      %v1832 = vld [vmem:[%s219 + $0x24] sm:$0xc]
      %v1833 = vld [vmem:[%s219 + $0x28] sm:$0xf]
      %v1834 = vld [vmem:[%s219 + $0x2c] sm:$0x3]
      %v1835 = vld [vmem:[%s219 + $0x30] sm:$0xc]
      %v1836 = vld [vmem:[%s219 + $0x34] sm:$0xf]
      %v1837 = vld [vmem:[%s219 + $0x38] sm:$0x3]
      %v1838 = vld [vmem:[%s219 + $0x3c] sm:$0xc]
      %v1839 = vld [vmem:[%s219 + $0x40] sm:$0xf]
      %v1840 = vld [vmem:[%s219 + $0x44] sm:$0x3]
      %v1841 = vld [vmem:[%s219 + $0x48] sm:$0xc]
      %v1842 = vld [vmem:[%s219 + $0x4c] sm:$0xf]
      %v1843 = vld [vmem:[%s219 + $0x50] sm:$0x3]
      %v1844 = vld [vmem:[%s219 + $0x54] sm:$0xc]
      %v1845 = vld [vmem:[%s219 + $0x58] sm:$0xf]
      %v1846 = vld [vmem:[%s219 + $0x5c] sm:$0x3]
      %v1847 = vld [vmem:[%s219 + $0x60] sm:$0xc]
      %v1848 = vld [vmem:[%s219 + $0x64] sm:$0xf]
      %v1849 = vld [vmem:[%s219 + $0x68] sm:$0x3]
      %v1850 = vld [vmem:[%s219 + $0x6c] sm:$0xc]
      %v1851 = vld [vmem:[%s219 + $0x70] sm:$0xf]
      %v1852 = vld [vmem:[%s219 + $0x74] sm:$0x3]
      %v1853 = vld [vmem:[%s219 + $0x78] sm:$0xc]
      %v1854 = vld [vmem:[%s219 + $0x7c] sm:$0xf]
      %v1855 = vld [vmem:[%s219 + $0x80] sm:$0x3]
      %v1856 = vld [vmem:[%s219 + $0x84] sm:$0xc]
      %v1857 = vld [vmem:[%s219 + $0x88] sm:$0xf]
      %v1858 = vld [vmem:[%s219 + $0x8c] sm:$0x3]
      %v1859 = vld [vmem:[%s219 + $0x90] sm:$0xc]
      %v1860 = vld [vmem:[%s219 + $0x94] sm:$0xf]
      %v1861 = vld [vmem:[%s219 + $0x98] sm:$0x3]
      %v1862 = vld [vmem:[%s219 + $0x9c] sm:$0xc]
      %v1863 = vld [vmem:[%s219 + $0xa0] sm:$0xf]
      %v1864 = vld [vmem:[%s219 + $0xa4] sm:$0x3]
      %v1865 = vld [vmem:[%s219 + $0xa8] sm:$0xc]
      %v1866 = vld [vmem:[%s219 + $0xac] sm:$0xf]
      %v1867 = vld [vmem:[%s219 + $0xb0] sm:$0x3]
      %v1868 = vld [vmem:[%s219 + $0xb4] sm:$0xc]
      %v1869 = vld [vmem:[%s219 + $0xb8] sm:$0xf]
      %v1870 = vld [vmem:[%s219 + $0xbc] sm:$0x3]
      %vm1919 = vcmask 1041408
      %vm1920 = vcmask 1045508
      %vm1921 = vmor %vm1919, %vm1920
      %v1922 = vrot.slane %v1823, 6
      %v1923 = vrot.slane %v1922, 4
      %v1924 = vrot.slane %v1824, 6
      %v1925 = vsel %vm1921, %v1923, %v1924
      %v1926 = vrot.slane %v1924, 4
      %v1927 = vrot.slane %v1825, 6
      %v1928 = vsel %vm1921, %v1926, %v1927
      %v1929 = vrot.slane %v1826, 6
      %v1930 = vrot.slane %v1929, 4
      %v1931 = vrot.slane %v1827, 6
      %v1932 = vsel %vm1921, %v1930, %v1931
      %v1933 = vrot.slane %v1931, 4
      %v1934 = vrot.slane %v1828, 6
      %v1935 = vsel %vm1921, %v1933, %v1934
      %v1936 = vrot.slane %v1829, 6
      %v1937 = vrot.slane %v1936, 4
      %v1938 = vrot.slane %v1830, 6
      %v1939 = vsel %vm1921, %v1937, %v1938
      %v1940 = vrot.slane %v1938, 4
      %v1941 = vrot.slane %v1831, 6
      %v1942 = vsel %vm1921, %v1940, %v1941
      %v1943 = vrot.slane %v1832, 6
      %v1944 = vrot.slane %v1943, 4
      %v1945 = vrot.slane %v1833, 6
      %v1946 = vsel %vm1921, %v1944, %v1945
      %v1947 = vrot.slane %v1945, 4
      %v1948 = vrot.slane %v1834, 6
      %v1949 = vsel %vm1921, %v1947, %v1948
      %v1950 = vrot.slane %v1835, 6
      %v1951 = vrot.slane %v1950, 4
      %v1952 = vrot.slane %v1836, 6
      %v1953 = vsel %vm1921, %v1951, %v1952
      %v1954 = vrot.slane %v1952, 4
      %v1955 = vrot.slane %v1837, 6
      %v1956 = vsel %vm1921, %v1954, %v1955
      %v1957 = vrot.slane %v1838, 6
      %v1958 = vrot.slane %v1957, 4
      %v1959 = vrot.slane %v1839, 6
      %v1960 = vsel %vm1921, %v1958, %v1959
      %v1961 = vrot.slane %v1959, 4
      %v1962 = vrot.slane %v1840, 6
      %v1963 = vsel %vm1921, %v1961, %v1962
      %v1964 = vrot.slane %v1841, 6
      %v1965 = vrot.slane %v1964, 4
      %v1966 = vrot.slane %v1842, 6
      %v1967 = vsel %vm1921, %v1965, %v1966
      %v1968 = vrot.slane %v1966, 4
      %v1969 = vrot.slane %v1843, 6
      %v1970 = vsel %vm1921, %v1968, %v1969
      %v1971 = vrot.slane %v1844, 6
      %v1972 = vrot.slane %v1971, 4
      %v1973 = vrot.slane %v1845, 6
      %v1974 = vsel %vm1921, %v1972, %v1973
      %v1975 = vrot.slane %v1973, 4
      %v1976 = vrot.slane %v1846, 6
      %v1977 = vsel %vm1921, %v1975, %v1976
      %v1978 = vrot.slane %v1847, 6
      %v1979 = vrot.slane %v1978, 4
      %v1980 = vrot.slane %v1848, 6
      %v1981 = vsel %vm1921, %v1979, %v1980
      %v1982 = vrot.slane %v1980, 4
      %v1983 = vrot.slane %v1849, 6
      %v1984 = vsel %vm1921, %v1982, %v1983
      %v1985 = vrot.slane %v1850, 6
      %v1986 = vrot.slane %v1985, 4
      %v1987 = vrot.slane %v1851, 6
      %v1988 = vsel %vm1921, %v1986, %v1987
      %v1989 = vrot.slane %v1987, 4
      %v1990 = vrot.slane %v1852, 6
      %v1991 = vsel %vm1921, %v1989, %v1990
      %v1992 = vrot.slane %v1853, 6
      %v1993 = vrot.slane %v1992, 4
      %v1994 = vrot.slane %v1854, 6
      %v1995 = vsel %vm1921, %v1993, %v1994
      %v1996 = vrot.slane %v1994, 4
      %v1997 = vrot.slane %v1855, 6
      %v1998 = vsel %vm1921, %v1996, %v1997
      %v1999 = vrot.slane %v1856, 6
      %v2000 = vrot.slane %v1999, 4
      %v2001 = vrot.slane %v1857, 6
      %v2002 = vsel %vm1921, %v2000, %v2001
      %v2003 = vrot.slane %v2001, 4
      %v2004 = vrot.slane %v1858, 6
      %v2005 = vsel %vm1921, %v2003, %v2004
      %v2006 = vrot.slane %v1859, 6
      %v2007 = vrot.slane %v2006, 4
      %v2008 = vrot.slane %v1860, 6
      %v2009 = vsel %vm1921, %v2007, %v2008
      %v2010 = vrot.slane %v2008, 4
      %v2011 = vrot.slane %v1861, 6
      %v2012 = vsel %vm1921, %v2010, %v2011
      %v2013 = vrot.slane %v1862, 6
      %v2014 = vrot.slane %v2013, 4
      %v2015 = vrot.slane %v1863, 6
      %v2016 = vsel %vm1921, %v2014, %v2015
      %v2017 = vrot.slane %v2015, 4
      %v2018 = vrot.slane %v1864, 6
      %v2019 = vsel %vm1921, %v2017, %v2018
      %v2020 = vrot.slane %v1865, 6
      %v2021 = vrot.slane %v2020, 4
      %v2022 = vrot.slane %v1866, 6
      %v2023 = vsel %vm1921, %v2021, %v2022
      %v2024 = vrot.slane %v2022, 4
      %v2025 = vrot.slane %v1867, 6
      %v2026 = vsel %vm1921, %v2024, %v2025
      %v2027 = vrot.slane %v1868, 6
      %v2028 = vrot.slane %v2027, 4
      %v2029 = vrot.slane %v1869, 6
      %v2030 = vsel %vm1921, %v2028, %v2029
      %v2031 = vrot.slane %v2029, 4
      %v2032 = vrot.slane %v1870, 6
      %v2033 = vsel %vm1921, %v2031, %v2032
      %2034 = vrot.lane.b32.xlu0 %v1925, 32
      %v2035 = vpop.permute.xlu0 %2034
      %2036 = vrot.lane.b32.xlu0 %v1928, 32
      %v2037 = vpop.permute.xlu0 %2036
      %2038 = vrot.lane.b32.xlu0 %v1932, 32
      %v2039 = vpop.permute.xlu0 %2038
      %2040 = vrot.lane.b32.xlu0 %v1935, 32
      %v2041 = vpop.permute.xlu0 %2040
      %2042 = vrot.lane.b32.xlu0 %v1939, 32
      %v2043 = vpop.permute.xlu0 %2042
      %2044 = vrot.lane.b32.xlu0 %v1942, 32
      %v2045 = vpop.permute.xlu0 %2044
      %2046 = vrot.lane.b32.xlu0 %v1946, 32
      %v2047 = vpop.permute.xlu0 %2046
      %2048 = vrot.lane.b32.xlu0 %v1949, 32
      %v2049 = vpop.permute.xlu0 %2048
      %2050 = vrot.lane.b32.xlu0 %v1953, 32
      %v2051 = vpop.permute.xlu0 %2050
      %2052 = vrot.lane.b32.xlu0 %v1956, 32
      %v2053 = vpop.permute.xlu0 %2052
      %2054 = vrot.lane.b32.xlu0 %v1960, 32
      %v2055 = vpop.permute.xlu0 %2054
      %2056 = vrot.lane.b32.xlu0 %v1963, 32
      %v2057 = vpop.permute.xlu0 %2056
      %2058 = vrot.lane.b32.xlu0 %v1967, 32
      %v2059 = vpop.permute.xlu0 %2058
      %2060 = vrot.lane.b32.xlu0 %v1970, 32
      %v2061 = vpop.permute.xlu0 %2060
      %2062 = vrot.lane.b32.xlu0 %v1974, 32
      %v2063 = vpop.permute.xlu0 %2062
      %2064 = vrot.lane.b32.xlu0 %v1977, 32
      %v2065 = vpop.permute.xlu0 %2064
      %2066 = vrot.lane.b32.xlu0 %v1981, 32
      %v2067 = vpop.permute.xlu0 %2066
      %2068 = vrot.lane.b32.xlu0 %v1984, 32
      %v2069 = vpop.permute.xlu0 %2068
      %2070 = vrot.lane.b32.xlu0 %v1988, 32
      %v2071 = vpop.permute.xlu0 %2070
      %2072 = vrot.lane.b32.xlu0 %v1991, 32
      %v2073 = vpop.permute.xlu0 %2072
      %2074 = vrot.lane.b32.xlu0 %v1995, 32
      %v2075 = vpop.permute.xlu0 %2074
      %2076 = vrot.lane.b32.xlu0 %v1998, 32
      %v2077 = vpop.permute.xlu0 %2076
      %2078 = vrot.lane.b32.xlu0 %v2002, 32
      %v2079 = vpop.permute.xlu0 %2078
      %2080 = vrot.lane.b32.xlu0 %v2005, 32
      %v2081 = vpop.permute.xlu0 %2080
      %2082 = vrot.lane.b32.xlu0 %v2009, 32
      %v2083 = vpop.permute.xlu0 %2082
      %2084 = vrot.lane.b32.xlu0 %v2012, 32
      %v2085 = vpop.permute.xlu0 %2084
      %2086 = vrot.lane.b32.xlu0 %v2016, 32
      %v2087 = vpop.permute.xlu0 %2086
      %2088 = vrot.lane.b32.xlu0 %v2019, 32
      %v2089 = vpop.permute.xlu0 %2088
      %2090 = vrot.lane.b32.xlu0 %v2023, 32
      %v2091 = vpop.permute.xlu0 %2090
      %2092 = vrot.lane.b32.xlu0 %v2026, 32
      %v2093 = vpop.permute.xlu0 %2092
      %2094 = vrot.lane.b32.xlu0 %v2030, 32
      %v2095 = vpop.permute.xlu0 %2094
      %2096 = vrot.lane.b32.xlu0 %v2033, 32
      %v2097 = vpop.permute.xlu0 %2096
      %vm2130 = vcmask 322816
      %2131 = vst.msk [vmem:[#allocation2] sm:$0xf] %vm2130, %v2035
      %2132 = vst.msk [vmem:[#allocation2 + $0x4] sm:$0xf] %vm2130, %v2037
      %2133 = vst.msk [vmem:[#allocation2 + $0x8] sm:$0xf] %vm2130, %v2039
      %2134 = vst.msk [vmem:[#allocation2 + $0xc] sm:$0xf] %vm2130, %v2041
      %2135 = vst.msk [vmem:[#allocation2 + $0x10] sm:$0xf] %vm2130, %v2043
      %2136 = vst.msk [vmem:[#allocation2 + $0x14] sm:$0xf] %vm2130, %v2045
      %2137 = vst.msk [vmem:[#allocation2 + $0x18] sm:$0xf] %vm2130, %v2047
      %2138 = vst.msk [vmem:[#allocation2 + $0x1c] sm:$0xf] %vm2130, %v2049
      %2139 = vst.msk [vmem:[#allocation2 + $0x20] sm:$0xf] %vm2130, %v2051
      %2140 = vst.msk [vmem:[#allocation2 + $0x24] sm:$0xf] %vm2130, %v2053
      %2141 = vst.msk [vmem:[#allocation2 + $0x28] sm:$0xf] %vm2130, %v2055
      %2142 = vst.msk [vmem:[#allocation2 + $0x2c] sm:$0xf] %vm2130, %v2057
      %2143 = vst.msk [vmem:[#allocation2 + $0x30] sm:$0xf] %vm2130, %v2059
      %2144 = vst.msk [vmem:[#allocation2 + $0x34] sm:$0xf] %vm2130, %v2061
      %2145 = vst.msk [vmem:[#allocation2 + $0x38] sm:$0xf] %vm2130, %v2063
      %2146 = vst.msk [vmem:[#allocation2 + $0x3c] sm:$0xf] %vm2130, %v2065
      %2147 = vst.msk [vmem:[#allocation2 + $0x40] sm:$0xf] %vm2130, %v2067
      %2148 = vst.msk [vmem:[#allocation2 + $0x44] sm:$0xf] %vm2130, %v2069
      %2149 = vst.msk [vmem:[#allocation2 + $0x48] sm:$0xf] %vm2130, %v2071
      %2150 = vst.msk [vmem:[#allocation2 + $0x4c] sm:$0xf] %vm2130, %v2073
      %2151 = vst.msk [vmem:[#allocation2 + $0x50] sm:$0xf] %vm2130, %v2075
      %2152 = vst.msk [vmem:[#allocation2 + $0x54] sm:$0xf] %vm2130, %v2077
      %2153 = vst.msk [vmem:[#allocation2 + $0x58] sm:$0xf] %vm2130, %v2079
      %2154 = vst.msk [vmem:[#allocation2 + $0x5c] sm:$0xf] %vm2130, %v2081
      %2155 = vst.msk [vmem:[#allocation2 + $0x60] sm:$0xf] %vm2130, %v2083
      %2156 = vst.msk [vmem:[#allocation2 + $0x64] sm:$0xf] %vm2130, %v2085
      %2157 = vst.msk [vmem:[#allocation2 + $0x68] sm:$0xf] %vm2130, %v2087
      %2158 = vst.msk [vmem:[#allocation2 + $0x6c] sm:$0xf] %vm2130, %v2089
      %2159 = vst.msk [vmem:[#allocation2 + $0x70] sm:$0xf] %vm2130, %v2091
      %2160 = vst.msk [vmem:[#allocation2 + $0x74] sm:$0xf] %vm2130, %v2093
      %2161 = vst.msk [vmem:[#allocation2 + $0x78] sm:$0xf] %vm2130, %v2095
      %2162 = vst.msk [vmem:[#allocation2 + $0x7c] sm:$0xf] %vm2130, %v2097
      %v2163 = vld [vmem:[%s219] sm:$0xc]
      %v2164 = vld [vmem:[%s219 + $0x4] sm:$0xf]
      %v2165 = vld [vmem:[%s219 + $0x8] sm:$0x7]
      %v2166 = vld [vmem:[%s219 + $0xc] sm:$0xc]
      %v2167 = vld [vmem:[%s219 + $0x10] sm:$0xf]
      %v2168 = vld [vmem:[%s219 + $0x14] sm:$0x7]
      %v2169 = vld [vmem:[%s219 + $0x18] sm:$0xc]
      %v2170 = vld [vmem:[%s219 + $0x1c] sm:$0xf]
      %v2171 = vld [vmem:[%s219 + $0x20] sm:$0x7]
      %v2172 = vld [vmem:[%s219 + $0x24] sm:$0xc]
      %v2173 = vld [vmem:[%s219 + $0x28] sm:$0xf]
      %v2174 = vld [vmem:[%s219 + $0x2c] sm:$0x7]
      %v2175 = vld [vmem:[%s219 + $0x30] sm:$0xc]
      %v2176 = vld [vmem:[%s219 + $0x34] sm:$0xf]
      %v2177 = vld [vmem:[%s219 + $0x38] sm:$0x7]
      %v2178 = vld [vmem:[%s219 + $0x3c] sm:$0xc]
      %v2179 = vld [vmem:[%s219 + $0x40] sm:$0xf]
      %v2180 = vld [vmem:[%s219 + $0x44] sm:$0x7]
      %v2181 = vld [vmem:[%s219 + $0x48] sm:$0xc]
      %v2182 = vld [vmem:[%s219 + $0x4c] sm:$0xf]
      %v2183 = vld [vmem:[%s219 + $0x50] sm:$0x7]
      %v2184 = vld [vmem:[%s219 + $0x54] sm:$0xc]
      %v2185 = vld [vmem:[%s219 + $0x58] sm:$0xf]
      %v2186 = vld [vmem:[%s219 + $0x5c] sm:$0x7]
      %v2187 = vld [vmem:[%s219 + $0x60] sm:$0xc]
      %v2188 = vld [vmem:[%s219 + $0x64] sm:$0xf]
      %v2189 = vld [vmem:[%s219 + $0x68] sm:$0x7]
      %v2190 = vld [vmem:[%s219 + $0x6c] sm:$0xc]
      %v2191 = vld [vmem:[%s219 + $0x70] sm:$0xf]
      %v2192 = vld [vmem:[%s219 + $0x74] sm:$0x7]
      %v2193 = vld [vmem:[%s219 + $0x78] sm:$0xc]
      %v2194 = vld [vmem:[%s219 + $0x7c] sm:$0xf]
      %v2195 = vld [vmem:[%s219 + $0x80] sm:$0x7]
      %v2196 = vld [vmem:[%s219 + $0x84] sm:$0xc]
      %v2197 = vld [vmem:[%s219 + $0x88] sm:$0xf]
      %v2198 = vld [vmem:[%s219 + $0x8c] sm:$0x7]
      %v2199 = vld [vmem:[%s219 + $0x90] sm:$0xc]
      %v2200 = vld [vmem:[%s219 + $0x94] sm:$0xf]
      %v2201 = vld [vmem:[%s219 + $0x98] sm:$0x7]
      %v2202 = vld [vmem:[%s219 + $0x9c] sm:$0xc]
      %v2203 = vld [vmem:[%s219 + $0xa0] sm:$0xf]
      %v2204 = vld [vmem:[%s219 + $0xa4] sm:$0x7]
      %v2205 = vld [vmem:[%s219 + $0xa8] sm:$0xc]
      %v2206 = vld [vmem:[%s219 + $0xac] sm:$0xf]
      %v2207 = vld [vmem:[%s219 + $0xb0] sm:$0x7]
      %v2208 = vld [vmem:[%s219 + $0xb4] sm:$0xc]
      %v2209 = vld [vmem:[%s219 + $0xb8] sm:$0xf]
      %v2210 = vld [vmem:[%s219 + $0xbc] sm:$0x7]
      %vm2211 = vsmask.f32 1280
      %vm2212 = vsmask.f32 5392
      %vm2213 = vmor %vm2211, %vm2212
      %v2215 = vshrl.u32 %v2163, 16
      %v2217 = vrot.slane %v2215, 6
      %v2218 = vshll.u32 %v2163, 16
      %v2220 = vrot.slane %v2218, 7
      %v2221 = vor.u32 %v2217, %v2220
      %v2222 = vrot.slane %v2221, 4
      %v2224 = vshrl.u32 %v2164, 16
      %v2226 = vrot.slane %v2224, 6
      %v2227 = vshll.u32 %v2164, 16
      %v2229 = vrot.slane %v2227, 7
      %v2230 = vor.u32 %v2226, %v2229
      %v2231 = vsel %vm2213, %v2222, %v2230
      %v2232 = vrot.slane %v2230, 4
      %v2234 = vshrl.u32 %v2165, 16
      %v2236 = vrot.slane %v2234, 6
      %v2237 = vshll.u32 %v2165, 16
      %v2239 = vrot.slane %v2237, 7
      %v2240 = vor.u32 %v2236, %v2239
      %v2241 = vsel %vm2213, %v2232, %v2240
      %v2243 = vshrl.u32 %v2166, 16
      %v2245 = vrot.slane %v2243, 6
      %v2246 = vshll.u32 %v2166, 16
      %v2248 = vrot.slane %v2246, 7
      %v2249 = vor.u32 %v2245, %v2248
      %v2250 = vrot.slane %v2249, 4
      %v2252 = vshrl.u32 %v2167, 16
      %v2254 = vrot.slane %v2252, 6
      %v2255 = vshll.u32 %v2167, 16
      %v2257 = vrot.slane %v2255, 7
      %v2258 = vor.u32 %v2254, %v2257
      %v2259 = vsel %vm2213, %v2250, %v2258
      %v2260 = vrot.slane %v2258, 4
      %v2262 = vshrl.u32 %v2168, 16
      %v2264 = vrot.slane %v2262, 6
      %v2265 = vshll.u32 %v2168, 16
      %v2267 = vrot.slane %v2265, 7
      %v2268 = vor.u32 %v2264, %v2267
      %v2269 = vsel %vm2213, %v2260, %v2268
      %v2271 = vshrl.u32 %v2169, 16
      %v2273 = vrot.slane %v2271, 6
      %v2274 = vshll.u32 %v2169, 16
      %v2276 = vrot.slane %v2274, 7
      %v2277 = vor.u32 %v2273, %v2276
      %v2278 = vrot.slane %v2277, 4
      %v2280 = vshrl.u32 %v2170, 16
      %v2282 = vrot.slane %v2280, 6
      %v2283 = vshll.u32 %v2170, 16
      %v2285 = vrot.slane %v2283, 7
      %v2286 = vor.u32 %v2282, %v2285
      %v2287 = vsel %vm2213, %v2278, %v2286
      %v2288 = vrot.slane %v2286, 4
      %v2290 = vshrl.u32 %v2171, 16
      %v2292 = vrot.slane %v2290, 6
      %v2293 = vshll.u32 %v2171, 16
      %v2295 = vrot.slane %v2293, 7
      %v2296 = vor.u32 %v2292, %v2295
      %v2297 = vsel %vm2213, %v2288, %v2296
      %v2299 = vshrl.u32 %v2172, 16
      %v2301 = vrot.slane %v2299, 6
      %v2302 = vshll.u32 %v2172, 16
      %v2304 = vrot.slane %v2302, 7
      %v2305 = vor.u32 %v2301, %v2304
      %v2306 = vrot.slane %v2305, 4
      %v2308 = vshrl.u32 %v2173, 16
      %v2310 = vrot.slane %v2308, 6
      %v2311 = vshll.u32 %v2173, 16
      %v2313 = vrot.slane %v2311, 7
      %v2314 = vor.u32 %v2310, %v2313
      %v2315 = vsel %vm2213, %v2306, %v2314
      %v2316 = vrot.slane %v2314, 4
      %v2318 = vshrl.u32 %v2174, 16
      %v2320 = vrot.slane %v2318, 6
      %v2321 = vshll.u32 %v2174, 16
      %v2323 = vrot.slane %v2321, 7
      %v2324 = vor.u32 %v2320, %v2323
      %v2325 = vsel %vm2213, %v2316, %v2324
      %v2327 = vshrl.u32 %v2175, 16
      %v2329 = vrot.slane %v2327, 6
      %v2330 = vshll.u32 %v2175, 16
      %v2332 = vrot.slane %v2330, 7
      %v2333 = vor.u32 %v2329, %v2332
      %v2334 = vrot.slane %v2333, 4
      %v2336 = vshrl.u32 %v2176, 16
      %v2338 = vrot.slane %v2336, 6
      %v2339 = vshll.u32 %v2176, 16
      %v2341 = vrot.slane %v2339, 7
      %v2342 = vor.u32 %v2338, %v2341
      %v2343 = vsel %vm2213, %v2334, %v2342
      %v2344 = vrot.slane %v2342, 4
      %v2346 = vshrl.u32 %v2177, 16
      %v2348 = vrot.slane %v2346, 6
      %v2349 = vshll.u32 %v2177, 16
      %v2351 = vrot.slane %v2349, 7
      %v2352 = vor.u32 %v2348, %v2351
      %v2353 = vsel %vm2213, %v2344, %v2352
      %v2355 = vshrl.u32 %v2178, 16
      %v2357 = vrot.slane %v2355, 6
      %v2358 = vshll.u32 %v2178, 16
      %v2360 = vrot.slane %v2358, 7
      %v2361 = vor.u32 %v2357, %v2360
      %v2362 = vrot.slane %v2361, 4
      %v2364 = vshrl.u32 %v2179, 16
      %v2366 = vrot.slane %v2364, 6
      %v2367 = vshll.u32 %v2179, 16
      %v2369 = vrot.slane %v2367, 7
      %v2370 = vor.u32 %v2366, %v2369
      %v2371 = vsel %vm2213, %v2362, %v2370
      %v2372 = vrot.slane %v2370, 4
      %v2374 = vshrl.u32 %v2180, 16
      %v2376 = vrot.slane %v2374, 6
      %v2377 = vshll.u32 %v2180, 16
      %v2379 = vrot.slane %v2377, 7
      %v2380 = vor.u32 %v2376, %v2379
      %v2381 = vsel %vm2213, %v2372, %v2380
      %v2383 = vshrl.u32 %v2181, 16
      %v2385 = vrot.slane %v2383, 6
      %v2386 = vshll.u32 %v2181, 16
      %v2388 = vrot.slane %v2386, 7
      %v2389 = vor.u32 %v2385, %v2388
      %v2390 = vrot.slane %v2389, 4
      %v2392 = vshrl.u32 %v2182, 16
      %v2394 = vrot.slane %v2392, 6
      %v2395 = vshll.u32 %v2182, 16
      %v2397 = vrot.slane %v2395, 7
      %v2398 = vor.u32 %v2394, %v2397
      %v2399 = vsel %vm2213, %v2390, %v2398
      %v2400 = vrot.slane %v2398, 4
      %v2402 = vshrl.u32 %v2183, 16
      %v2404 = vrot.slane %v2402, 6
      %v2405 = vshll.u32 %v2183, 16
      %v2407 = vrot.slane %v2405, 7
      %v2408 = vor.u32 %v2404, %v2407
      %v2409 = vsel %vm2213, %v2400, %v2408
      %v2411 = vshrl.u32 %v2184, 16
      %v2413 = vrot.slane %v2411, 6
      %v2414 = vshll.u32 %v2184, 16
      %v2416 = vrot.slane %v2414, 7
      %v2417 = vor.u32 %v2413, %v2416
      %v2418 = vrot.slane %v2417, 4
      %v2420 = vshrl.u32 %v2185, 16
      %v2422 = vrot.slane %v2420, 6
      %v2423 = vshll.u32 %v2185, 16
      %v2425 = vrot.slane %v2423, 7
      %v2426 = vor.u32 %v2422, %v2425
      %v2427 = vsel %vm2213, %v2418, %v2426
      %v2428 = vrot.slane %v2426, 4
      %v2430 = vshrl.u32 %v2186, 16
      %v2432 = vrot.slane %v2430, 6
      %v2433 = vshll.u32 %v2186, 16
      %v2435 = vrot.slane %v2433, 7
      %v2436 = vor.u32 %v2432, %v2435
      %v2437 = vsel %vm2213, %v2428, %v2436
      %v2439 = vshrl.u32 %v2187, 16
      %v2441 = vrot.slane %v2439, 6
      %v2442 = vshll.u32 %v2187, 16
      %v2444 = vrot.slane %v2442, 7
      %v2445 = vor.u32 %v2441, %v2444
      %v2446 = vrot.slane %v2445, 4
      %v2448 = vshrl.u32 %v2188, 16
      %v2450 = vrot.slane %v2448, 6
      %v2451 = vshll.u32 %v2188, 16
      %v2453 = vrot.slane %v2451, 7
      %v2454 = vor.u32 %v2450, %v2453
      %v2455 = vsel %vm2213, %v2446, %v2454
      %v2456 = vrot.slane %v2454, 4
      %v2458 = vshrl.u32 %v2189, 16
      %v2460 = vrot.slane %v2458, 6
      %v2461 = vshll.u32 %v2189, 16
      %v2463 = vrot.slane %v2461, 7
      %v2464 = vor.u32 %v2460, %v2463
      %v2465 = vsel %vm2213, %v2456, %v2464
      %v2467 = vshrl.u32 %v2190, 16
      %v2469 = vrot.slane %v2467, 6
      %v2470 = vshll.u32 %v2190, 16
      %v2472 = vrot.slane %v2470, 7
      %v2473 = vor.u32 %v2469, %v2472
      %v2474 = vrot.slane %v2473, 4
      %v2476 = vshrl.u32 %v2191, 16
      %v2478 = vrot.slane %v2476, 6
      %v2479 = vshll.u32 %v2191, 16
      %v2481 = vrot.slane %v2479, 7
      %v2482 = vor.u32 %v2478, %v2481
      %v2483 = vsel %vm2213, %v2474, %v2482
      %v2484 = vrot.slane %v2482, 4
      %v2486 = vshrl.u32 %v2192, 16
      %v2488 = vrot.slane %v2486, 6
      %v2489 = vshll.u32 %v2192, 16
      %v2491 = vrot.slane %v2489, 7
      %v2492 = vor.u32 %v2488, %v2491
      %v2493 = vsel %vm2213, %v2484, %v2492
      %v2495 = vshrl.u32 %v2193, 16
      %v2497 = vrot.slane %v2495, 6
      %v2498 = vshll.u32 %v2193, 16
      %v2500 = vrot.slane %v2498, 7
      %v2501 = vor.u32 %v2497, %v2500
      %v2502 = vrot.slane %v2501, 4
      %v2504 = vshrl.u32 %v2194, 16
      %v2506 = vrot.slane %v2504, 6
      %v2507 = vshll.u32 %v2194, 16
      %v2509 = vrot.slane %v2507, 7
      %v2510 = vor.u32 %v2506, %v2509
      %v2511 = vsel %vm2213, %v2502, %v2510
      %v2512 = vrot.slane %v2510, 4
      %v2514 = vshrl.u32 %v2195, 16
      %v2516 = vrot.slane %v2514, 6
      %v2517 = vshll.u32 %v2195, 16
      %v2519 = vrot.slane %v2517, 7
      %v2520 = vor.u32 %v2516, %v2519
      %v2521 = vsel %vm2213, %v2512, %v2520
      %v2523 = vshrl.u32 %v2196, 16
      %v2525 = vrot.slane %v2523, 6
      %v2526 = vshll.u32 %v2196, 16
      %v2528 = vrot.slane %v2526, 7
      %v2529 = vor.u32 %v2525, %v2528
      %v2530 = vrot.slane %v2529, 4
      %v2532 = vshrl.u32 %v2197, 16
      %v2534 = vrot.slane %v2532, 6
      %v2535 = vshll.u32 %v2197, 16
      %v2537 = vrot.slane %v2535, 7
      %v2538 = vor.u32 %v2534, %v2537
      %v2539 = vsel %vm2213, %v2530, %v2538
      %v2540 = vrot.slane %v2538, 4
      %v2542 = vshrl.u32 %v2198, 16
      %v2544 = vrot.slane %v2542, 6
      %v2545 = vshll.u32 %v2198, 16
      %v2547 = vrot.slane %v2545, 7
      %v2548 = vor.u32 %v2544, %v2547
      %v2549 = vsel %vm2213, %v2540, %v2548
      %v2551 = vshrl.u32 %v2199, 16
      %v2553 = vrot.slane %v2551, 6
      %v2554 = vshll.u32 %v2199, 16
      %v2556 = vrot.slane %v2554, 7
      %v2557 = vor.u32 %v2553, %v2556
      %v2558 = vrot.slane %v2557, 4
      %v2560 = vshrl.u32 %v2200, 16
      %v2562 = vrot.slane %v2560, 6
      %v2563 = vshll.u32 %v2200, 16
      %v2565 = vrot.slane %v2563, 7
      %v2566 = vor.u32 %v2562, %v2565
      %v2567 = vsel %vm2213, %v2558, %v2566
      %v2568 = vrot.slane %v2566, 4
      %v2570 = vshrl.u32 %v2201, 16
      %v2572 = vrot.slane %v2570, 6
      %v2573 = vshll.u32 %v2201, 16
      %v2575 = vrot.slane %v2573, 7
      %v2576 = vor.u32 %v2572, %v2575
      %v2577 = vsel %vm2213, %v2568, %v2576
      %v2579 = vshrl.u32 %v2202, 16
      %v2581 = vrot.slane %v2579, 6
      %v2582 = vshll.u32 %v2202, 16
      %v2584 = vrot.slane %v2582, 7
      %v2585 = vor.u32 %v2581, %v2584
      %v2586 = vrot.slane %v2585, 4
      %v2588 = vshrl.u32 %v2203, 16
      %v2590 = vrot.slane %v2588, 6
      %v2591 = vshll.u32 %v2203, 16
      %v2593 = vrot.slane %v2591, 7
      %v2594 = vor.u32 %v2590, %v2593
      %v2595 = vsel %vm2213, %v2586, %v2594
      %v2596 = vrot.slane %v2594, 4
      %v2598 = vshrl.u32 %v2204, 16
      %v2600 = vrot.slane %v2598, 6
      %v2601 = vshll.u32 %v2204, 16
      %v2603 = vrot.slane %v2601, 7
      %v2604 = vor.u32 %v2600, %v2603
      %v2605 = vsel %vm2213, %v2596, %v2604
      %v2607 = vshrl.u32 %v2205, 16
      %v2609 = vrot.slane %v2607, 6
      %v2610 = vshll.u32 %v2205, 16
      %v2612 = vrot.slane %v2610, 7
      %v2613 = vor.u32 %v2609, %v2612
      %v2614 = vrot.slane %v2613, 4
      %v2616 = vshrl.u32 %v2206, 16
      %v2618 = vrot.slane %v2616, 6
      %v2619 = vshll.u32 %v2206, 16
      %v2621 = vrot.slane %v2619, 7
      %v2622 = vor.u32 %v2618, %v2621
      %v2623 = vsel %vm2213, %v2614, %v2622
      %v2624 = vrot.slane %v2622, 4
      %v2626 = vshrl.u32 %v2207, 16
      %v2628 = vrot.slane %v2626, 6
      %v2629 = vshll.u32 %v2207, 16
      %v2631 = vrot.slane %v2629, 7
      %v2632 = vor.u32 %v2628, %v2631
      %v2633 = vsel %vm2213, %v2624, %v2632
      %v2635 = vshrl.u32 %v2208, 16
      %v2637 = vrot.slane %v2635, 6
      %v2638 = vshll.u32 %v2208, 16
      %v2640 = vrot.slane %v2638, 7
      %v2641 = vor.u32 %v2637, %v2640
      %v2642 = vrot.slane %v2641, 4
      %v2644 = vshrl.u32 %v2209, 16
      %v2646 = vrot.slane %v2644, 6
      %v2647 = vshll.u32 %v2209, 16
      %v2649 = vrot.slane %v2647, 7
      %v2650 = vor.u32 %v2646, %v2649
      %v2651 = vsel %vm2213, %v2642, %v2650
      %v2652 = vrot.slane %v2650, 4
      %v2654 = vshrl.u32 %v2210, 16
      %v2656 = vrot.slane %v2654, 6
      %v2657 = vshll.u32 %v2210, 16
      %v2659 = vrot.slane %v2657, 7
      %v2660 = vor.u32 %v2656, %v2659
      %v2661 = vsel %vm2213, %v2652, %v2660
      %2662 = vrot.lane.b32.xlu0 %v2231, 40
      %v2663 = vpop.permute.xlu0 %2662
      %2664 = vrot.lane.b32.xlu0 %v2241, 40
      %v2665 = vpop.permute.xlu0 %2664
      %2666 = vrot.lane.b32.xlu0 %v2259, 40
      %v2667 = vpop.permute.xlu0 %2666
      %2668 = vrot.lane.b32.xlu0 %v2269, 40
      %v2669 = vpop.permute.xlu0 %2668
      %2670 = vrot.lane.b32.xlu0 %v2287, 40
      %v2671 = vpop.permute.xlu0 %2670
      %2672 = vrot.lane.b32.xlu0 %v2297, 40
      %v2673 = vpop.permute.xlu0 %2672
      %2674 = vrot.lane.b32.xlu0 %v2315, 40
      %v2675 = vpop.permute.xlu0 %2674
      %2676 = vrot.lane.b32.xlu0 %v2325, 40
      %v2677 = vpop.permute.xlu0 %2676
      %2678 = vrot.lane.b32.xlu0 %v2343, 40
      %v2679 = vpop.permute.xlu0 %2678
      %2680 = vrot.lane.b32.xlu0 %v2353, 40
      %v2681 = vpop.permute.xlu0 %2680
      %2682 = vrot.lane.b32.xlu0 %v2371, 40
      %v2683 = vpop.permute.xlu0 %2682
      %2684 = vrot.lane.b32.xlu0 %v2381, 40
      %v2685 = vpop.permute.xlu0 %2684
      %2686 = vrot.lane.b32.xlu0 %v2399, 40
      %v2687 = vpop.permute.xlu0 %2686
      %2688 = vrot.lane.b32.xlu0 %v2409, 40
      %v2689 = vpop.permute.xlu0 %2688
      %2690 = vrot.lane.b32.xlu0 %v2427, 40
      %v2691 = vpop.permute.xlu0 %2690
      %2692 = vrot.lane.b32.xlu0 %v2437, 40
      %v2693 = vpop.permute.xlu0 %2692
      %2694 = vrot.lane.b32.xlu0 %v2455, 40
      %v2695 = vpop.permute.xlu0 %2694
      %2696 = vrot.lane.b32.xlu0 %v2465, 40
      %v2697 = vpop.permute.xlu0 %2696
      %2698 = vrot.lane.b32.xlu0 %v2483, 40
      %v2699 = vpop.permute.xlu0 %2698
      %2700 = vrot.lane.b32.xlu0 %v2493, 40
      %v2701 = vpop.permute.xlu0 %2700
      %2702 = vrot.lane.b32.xlu0 %v2511, 40
      %v2703 = vpop.permute.xlu0 %2702
      %2704 = vrot.lane.b32.xlu0 %v2521, 40
      %v2705 = vpop.permute.xlu0 %2704
      %2706 = vrot.lane.b32.xlu0 %v2539, 40
      %v2707 = vpop.permute.xlu0 %2706
      %2708 = vrot.lane.b32.xlu0 %v2549, 40
      %v2709 = vpop.permute.xlu0 %2708
      %2710 = vrot.lane.b32.xlu0 %v2567, 40
      %v2711 = vpop.permute.xlu0 %2710
      %2712 = vrot.lane.b32.xlu0 %v2577, 40
      %v2713 = vpop.permute.xlu0 %2712
      %2714 = vrot.lane.b32.xlu0 %v2595, 40
      %v2715 = vpop.permute.xlu0 %2714
      %2716 = vrot.lane.b32.xlu0 %v2605, 40
      %v2717 = vpop.permute.xlu0 %2716
      %2718 = vrot.lane.b32.xlu0 %v2623, 40
      %v2719 = vpop.permute.xlu0 %2718
      %2720 = vrot.lane.b32.xlu0 %v2633, 40
      %v2721 = vpop.permute.xlu0 %2720
      %2722 = vrot.lane.b32.xlu0 %v2651, 40
      %v2723 = vpop.permute.xlu0 %2722
      %2724 = vrot.lane.b32.xlu0 %v2661, 40
      %v2725 = vpop.permute.xlu0 %2724
      %vm2758 = vcmask 388416
      %2759 = vst.msk [vmem:[#allocation2] sm:$0xf] %vm2758, %v2663
      %2760 = vst.msk [vmem:[#allocation2 + $0x4] sm:$0xf] %vm2758, %v2665
      %2761 = vst.msk [vmem:[#allocation2 + $0x8] sm:$0xf] %vm2758, %v2667
      %2762 = vst.msk [vmem:[#allocation2 + $0xc] sm:$0xf] %vm2758, %v2669
      %2763 = vst.msk [vmem:[#allocation2 + $0x10] sm:$0xf] %vm2758, %v2671
      %2764 = vst.msk [vmem:[#allocation2 + $0x14] sm:$0xf] %vm2758, %v2673
      %2765 = vst.msk [vmem:[#allocation2 + $0x18] sm:$0xf] %vm2758, %v2675
      %2766 = vst.msk [vmem:[#allocation2 + $0x1c] sm:$0xf] %vm2758, %v2677
      %2767 = vst.msk [vmem:[#allocation2 + $0x20] sm:$0xf] %vm2758, %v2679
      %2768 = vst.msk [vmem:[#allocation2 + $0x24] sm:$0xf] %vm2758, %v2681
      %2769 = vst.msk [vmem:[#allocation2 + $0x28] sm:$0xf] %vm2758, %v2683
      %2770 = vst.msk [vmem:[#allocation2 + $0x2c] sm:$0xf] %vm2758, %v2685
      %2771 = vst.msk [vmem:[#allocation2 + $0x30] sm:$0xf] %vm2758, %v2687
      %2772 = vst.msk [vmem:[#allocation2 + $0x34] sm:$0xf] %vm2758, %v2689
      %2773 = vst.msk [vmem:[#allocation2 + $0x38] sm:$0xf] %vm2758, %v2691
      %2774 = vst.msk [vmem:[#allocation2 + $0x3c] sm:$0xf] %vm2758, %v2693
      %2775 = vst.msk [vmem:[#allocation2 + $0x40] sm:$0xf] %vm2758, %v2695
      %2776 = vst.msk [vmem:[#allocation2 + $0x44] sm:$0xf] %vm2758, %v2697
      %2777 = vst.msk [vmem:[#allocation2 + $0x48] sm:$0xf] %vm2758, %v2699
      %2778 = vst.msk [vmem:[#allocation2 + $0x4c] sm:$0xf] %vm2758, %v2701
      %2779 = vst.msk [vmem:[#allocation2 + $0x50] sm:$0xf] %vm2758, %v2703
      %2780 = vst.msk [vmem:[#allocation2 + $0x54] sm:$0xf] %vm2758, %v2705
      %2781 = vst.msk [vmem:[#allocation2 + $0x58] sm:$0xf] %vm2758, %v2707
      %2782 = vst.msk [vmem:[#allocation2 + $0x5c] sm:$0xf] %vm2758, %v2709
      %2783 = vst.msk [vmem:[#allocation2 + $0x60] sm:$0xf] %vm2758, %v2711
      %2784 = vst.msk [vmem:[#allocation2 + $0x64] sm:$0xf] %vm2758, %v2713
      %2785 = vst.msk [vmem:[#allocation2 + $0x68] sm:$0xf] %vm2758, %v2715
      %2786 = vst.msk [vmem:[#allocation2 + $0x6c] sm:$0xf] %vm2758, %v2717
      %2787 = vst.msk [vmem:[#allocation2 + $0x70] sm:$0xf] %vm2758, %v2719
      %2788 = vst.msk [vmem:[#allocation2 + $0x74] sm:$0xf] %vm2758, %v2721
      %2789 = vst.msk [vmem:[#allocation2 + $0x78] sm:$0xf] %vm2758, %v2723
      %2790 = vst.msk [vmem:[#allocation2 + $0x7c] sm:$0xf] %vm2758, %v2725
      %v2791 = vld [vmem:[%s219] sm:$0x8]
      %v2792 = vld [vmem:[%s219 + $0x4] sm:$0xf]
      %v2793 = vld [vmem:[%s219 + $0x8] sm:$0x7]
      %v2794 = vld [vmem:[%s219 + $0xc] sm:$0x8]
      %v2795 = vld [vmem:[%s219 + $0x10] sm:$0xf]
      %v2796 = vld [vmem:[%s219 + $0x14] sm:$0x7]
      %v2797 = vld [vmem:[%s219 + $0x18] sm:$0x8]
      %v2798 = vld [vmem:[%s219 + $0x1c] sm:$0xf]
      %v2799 = vld [vmem:[%s219 + $0x20] sm:$0x7]
      %v2800 = vld [vmem:[%s219 + $0x24] sm:$0x8]
      %v2801 = vld [vmem:[%s219 + $0x28] sm:$0xf]
      %v2802 = vld [vmem:[%s219 + $0x2c] sm:$0x7]
      %v2803 = vld [vmem:[%s219 + $0x30] sm:$0x8]
      %v2804 = vld [vmem:[%s219 + $0x34] sm:$0xf]
      %v2805 = vld [vmem:[%s219 + $0x38] sm:$0x7]
      %v2806 = vld [vmem:[%s219 + $0x3c] sm:$0x8]
      %v2807 = vld [vmem:[%s219 + $0x40] sm:$0xf]
      %v2808 = vld [vmem:[%s219 + $0x44] sm:$0x7]
      %v2809 = vld [vmem:[%s219 + $0x48] sm:$0x8]
      %v2810 = vld [vmem:[%s219 + $0x4c] sm:$0xf]
      %v2811 = vld [vmem:[%s219 + $0x50] sm:$0x7]
      %v2812 = vld [vmem:[%s219 + $0x54] sm:$0x8]
      %v2813 = vld [vmem:[%s219 + $0x58] sm:$0xf]
      %v2814 = vld [vmem:[%s219 + $0x5c] sm:$0x7]
      %v2815 = vld [vmem:[%s219 + $0x60] sm:$0x8]
      %v2816 = vld [vmem:[%s219 + $0x64] sm:$0xf]
      %v2817 = vld [vmem:[%s219 + $0x68] sm:$0x7]
      %v2818 = vld [vmem:[%s219 + $0x6c] sm:$0x8]
      %v2819 = vld [vmem:[%s219 + $0x70] sm:$0xf]
      %v2820 = vld [vmem:[%s219 + $0x74] sm:$0x7]
      %v2821 = vld [vmem:[%s219 + $0x78] sm:$0x8]
      %v2822 = vld [vmem:[%s219 + $0x7c] sm:$0xf]
      %v2823 = vld [vmem:[%s219 + $0x80] sm:$0x7]
      %v2824 = vld [vmem:[%s219 + $0x84] sm:$0x8]
      %v2825 = vld [vmem:[%s219 + $0x88] sm:$0xf]
      %v2826 = vld [vmem:[%s219 + $0x8c] sm:$0x7]
      %v2827 = vld [vmem:[%s219 + $0x90] sm:$0x8]
      %v2828 = vld [vmem:[%s219 + $0x94] sm:$0xf]
      %v2829 = vld [vmem:[%s219 + $0x98] sm:$0x7]
      %v2830 = vld [vmem:[%s219 + $0x9c] sm:$0x8]
      %v2831 = vld [vmem:[%s219 + $0xa0] sm:$0xf]
      %v2832 = vld [vmem:[%s219 + $0xa4] sm:$0x7]
      %v2833 = vld [vmem:[%s219 + $0xa8] sm:$0x8]
      %v2834 = vld [vmem:[%s219 + $0xac] sm:$0xf]
      %v2835 = vld [vmem:[%s219 + $0xb0] sm:$0x7]
      %v2836 = vld [vmem:[%s219 + $0xb4] sm:$0x8]
      %v2837 = vld [vmem:[%s219 + $0xb8] sm:$0xf]
      %v2838 = vld [vmem:[%s219 + $0xbc] sm:$0x7]
      %vm2887 = vcmask 1040384
      %vm2888 = vcmask 1044484
      %vm2889 = vmor %vm2887, %vm2888
      %v2890 = vrot.slane %v2791, 7
      %v2891 = vrot.slane %v2890, 4
      %v2892 = vrot.slane %v2792, 7
      %v2893 = vsel %vm2889, %v2891, %v2892
      %v2894 = vrot.slane %v2892, 4
      %v2895 = vrot.slane %v2793, 7
      %v2896 = vsel %vm2889, %v2894, %v2895
      %v2897 = vrot.slane %v2794, 7
      %v2898 = vrot.slane %v2897, 4
      %v2899 = vrot.slane %v2795, 7
      %v2900 = vsel %vm2889, %v2898, %v2899
      %v2901 = vrot.slane %v2899, 4
      %v2902 = vrot.slane %v2796, 7
      %v2903 = vsel %vm2889, %v2901, %v2902
      %v2904 = vrot.slane %v2797, 7
      %v2905 = vrot.slane %v2904, 4
      %v2906 = vrot.slane %v2798, 7
      %v2907 = vsel %vm2889, %v2905, %v2906
      %v2908 = vrot.slane %v2906, 4
      %v2909 = vrot.slane %v2799, 7
      %v2910 = vsel %vm2889, %v2908, %v2909
      %v2911 = vrot.slane %v2800, 7
      %v2912 = vrot.slane %v2911, 4
      %v2913 = vrot.slane %v2801, 7
      %v2914 = vsel %vm2889, %v2912, %v2913
      %v2915 = vrot.slane %v2913, 4
      %v2916 = vrot.slane %v2802, 7
      %v2917 = vsel %vm2889, %v2915, %v2916
      %v2918 = vrot.slane %v2803, 7
      %v2919 = vrot.slane %v2918, 4
      %v2920 = vrot.slane %v2804, 7
      %v2921 = vsel %vm2889, %v2919, %v2920
      %v2922 = vrot.slane %v2920, 4
      %v2923 = vrot.slane %v2805, 7
      %v2924 = vsel %vm2889, %v2922, %v2923
      %v2925 = vrot.slane %v2806, 7
      %v2926 = vrot.slane %v2925, 4
      %v2927 = vrot.slane %v2807, 7
      %v2928 = vsel %vm2889, %v2926, %v2927
      %v2929 = vrot.slane %v2927, 4
      %v2930 = vrot.slane %v2808, 7
      %v2931 = vsel %vm2889, %v2929, %v2930
      %v2932 = vrot.slane %v2809, 7
      %v2933 = vrot.slane %v2932, 4
      %v2934 = vrot.slane %v2810, 7
      %v2935 = vsel %vm2889, %v2933, %v2934
      %v2936 = vrot.slane %v2934, 4
      %v2937 = vrot.slane %v2811, 7
      %v2938 = vsel %vm2889, %v2936, %v2937
      %v2939 = vrot.slane %v2812, 7
      %v2940 = vrot.slane %v2939, 4
      %v2941 = vrot.slane %v2813, 7
      %v2942 = vsel %vm2889, %v2940, %v2941
      %v2943 = vrot.slane %v2941, 4
      %v2944 = vrot.slane %v2814, 7
      %v2945 = vsel %vm2889, %v2943, %v2944
      %v2946 = vrot.slane %v2815, 7
      %v2947 = vrot.slane %v2946, 4
      %v2948 = vrot.slane %v2816, 7
      %v2949 = vsel %vm2889, %v2947, %v2948
      %v2950 = vrot.slane %v2948, 4
      %v2951 = vrot.slane %v2817, 7
      %v2952 = vsel %vm2889, %v2950, %v2951
      %v2953 = vrot.slane %v2818, 7
      %v2954 = vrot.slane %v2953, 4
      %v2955 = vrot.slane %v2819, 7
      %v2956 = vsel %vm2889, %v2954, %v2955
      %v2957 = vrot.slane %v2955, 4
      %v2958 = vrot.slane %v2820, 7
      %v2959 = vsel %vm2889, %v2957, %v2958
      %v2960 = vrot.slane %v2821, 7
      %v2961 = vrot.slane %v2960, 4
      %v2962 = vrot.slane %v2822, 7
      %v2963 = vsel %vm2889, %v2961, %v2962
      %v2964 = vrot.slane %v2962, 4
      %v2965 = vrot.slane %v2823, 7
      %v2966 = vsel %vm2889, %v2964, %v2965
      %v2967 = vrot.slane %v2824, 7
      %v2968 = vrot.slane %v2967, 4
      %v2969 = vrot.slane %v2825, 7
      %v2970 = vsel %vm2889, %v2968, %v2969
      %v2971 = vrot.slane %v2969, 4
      %v2972 = vrot.slane %v2826, 7
      %v2973 = vsel %vm2889, %v2971, %v2972
      %v2974 = vrot.slane %v2827, 7
      %v2975 = vrot.slane %v2974, 4
      %v2976 = vrot.slane %v2828, 7
      %v2977 = vsel %vm2889, %v2975, %v2976
      %v2978 = vrot.slane %v2976, 4
      %v2979 = vrot.slane %v2829, 7
      %v2980 = vsel %vm2889, %v2978, %v2979
      %v2981 = vrot.slane %v2830, 7
      %v2982 = vrot.slane %v2981, 4
      %v2983 = vrot.slane %v2831, 7
      %v2984 = vsel %vm2889, %v2982, %v2983
      %v2985 = vrot.slane %v2983, 4
      %v2986 = vrot.slane %v2832, 7
      %v2987 = vsel %vm2889, %v2985, %v2986
      %v2988 = vrot.slane %v2833, 7
      %v2989 = vrot.slane %v2988, 4
      %v2990 = vrot.slane %v2834, 7
      %v2991 = vsel %vm2889, %v2989, %v2990
      %v2992 = vrot.slane %v2990, 4
      %v2993 = vrot.slane %v2835, 7
      %v2994 = vsel %vm2889, %v2992, %v2993
      %v2995 = vrot.slane %v2836, 7
      %v2996 = vrot.slane %v2995, 4
      %v2997 = vrot.slane %v2837, 7
      %v2998 = vsel %vm2889, %v2996, %v2997
      %v2999 = vrot.slane %v2997, 4
      %v3000 = vrot.slane %v2838, 7
      %v3001 = vsel %vm2889, %v2999, %v3000
      %3002 = vrot.lane.b32.xlu0 %v2893, 48
      %v3003 = vpop.permute.xlu0 %3002
      %3004 = vrot.lane.b32.xlu0 %v2896, 48
      %v3005 = vpop.permute.xlu0 %3004
      %3006 = vrot.lane.b32.xlu0 %v2900, 48
      %v3007 = vpop.permute.xlu0 %3006
      %3008 = vrot.lane.b32.xlu0 %v2903, 48
      %v3009 = vpop.permute.xlu0 %3008
      %3010 = vrot.lane.b32.xlu0 %v2907, 48
      %v3011 = vpop.permute.xlu0 %3010
      %3012 = vrot.lane.b32.xlu0 %v2910, 48
      %v3013 = vpop.permute.xlu0 %3012
      %3014 = vrot.lane.b32.xlu0 %v2914, 48
      %v3015 = vpop.permute.xlu0 %3014
      %3016 = vrot.lane.b32.xlu0 %v2917, 48
      %v3017 = vpop.permute.xlu0 %3016
      %3018 = vrot.lane.b32.xlu0 %v2921, 48
      %v3019 = vpop.permute.xlu0 %3018
      %3020 = vrot.lane.b32.xlu0 %v2924, 48
      %v3021 = vpop.permute.xlu0 %3020
      %3022 = vrot.lane.b32.xlu0 %v2928, 48
      %v3023 = vpop.permute.xlu0 %3022
      %3024 = vrot.lane.b32.xlu0 %v2931, 48
      %v3025 = vpop.permute.xlu0 %3024
      %3026 = vrot.lane.b32.xlu0 %v2935, 48
      %v3027 = vpop.permute.xlu0 %3026
      %3028 = vrot.lane.b32.xlu0 %v2938, 48
      %v3029 = vpop.permute.xlu0 %3028
      %3030 = vrot.lane.b32.xlu0 %v2942, 48
      %v3031 = vpop.permute.xlu0 %3030
      %3032 = vrot.lane.b32.xlu0 %v2945, 48
      %v3033 = vpop.permute.xlu0 %3032
      %3034 = vrot.lane.b32.xlu0 %v2949, 48
      %v3035 = vpop.permute.xlu0 %3034
      %3036 = vrot.lane.b32.xlu0 %v2952, 48
      %v3037 = vpop.permute.xlu0 %3036
      %3038 = vrot.lane.b32.xlu0 %v2956, 48
      %v3039 = vpop.permute.xlu0 %3038
      %3040 = vrot.lane.b32.xlu0 %v2959, 48
      %v3041 = vpop.permute.xlu0 %3040
      %3042 = vrot.lane.b32.xlu0 %v2963, 48
      %v3043 = vpop.permute.xlu0 %3042
      %3044 = vrot.lane.b32.xlu0 %v2966, 48
      %v3045 = vpop.permute.xlu0 %3044
      %3046 = vrot.lane.b32.xlu0 %v2970, 48
      %v3047 = vpop.permute.xlu0 %3046
      %3048 = vrot.lane.b32.xlu0 %v2973, 48
      %v3049 = vpop.permute.xlu0 %3048
      %3050 = vrot.lane.b32.xlu0 %v2977, 48
      %v3051 = vpop.permute.xlu0 %3050
      %3052 = vrot.lane.b32.xlu0 %v2980, 48
      %v3053 = vpop.permute.xlu0 %3052
      %3054 = vrot.lane.b32.xlu0 %v2984, 48
      %v3055 = vpop.permute.xlu0 %3054
      %3056 = vrot.lane.b32.xlu0 %v2987, 48
      %v3057 = vpop.permute.xlu0 %3056
      %3058 = vrot.lane.b32.xlu0 %v2991, 48
      %v3059 = vpop.permute.xlu0 %3058
      %3060 = vrot.lane.b32.xlu0 %v2994, 48
      %v3061 = vpop.permute.xlu0 %3060
      %3062 = vrot.lane.b32.xlu0 %v2998, 48
      %v3063 = vpop.permute.xlu0 %3062
      %3064 = vrot.lane.b32.xlu0 %v3001, 48
      %v3065 = vpop.permute.xlu0 %3064
      %vm3098 = vcmask 454016
      %3099 = vst.msk [vmem:[#allocation2] sm:$0xf] %vm3098, %v3003
      %3100 = vst.msk [vmem:[#allocation2 + $0x4] sm:$0xf] %vm3098, %v3005
      %3101 = vst.msk [vmem:[#allocation2 + $0x8] sm:$0xf] %vm3098, %v3007
      %3102 = vst.msk [vmem:[#allocation2 + $0xc] sm:$0xf] %vm3098, %v3009
      %3103 = vst.msk [vmem:[#allocation2 + $0x10] sm:$0xf] %vm3098, %v3011
      %3104 = vst.msk [vmem:[#allocation2 + $0x14] sm:$0xf] %vm3098, %v3013
      %3105 = vst.msk [vmem:[#allocation2 + $0x18] sm:$0xf] %vm3098, %v3015
      %3106 = vst.msk [vmem:[#allocation2 + $0x1c] sm:$0xf] %vm3098, %v3017
      %3107 = vst.msk [vmem:[#allocation2 + $0x20] sm:$0xf] %vm3098, %v3019
      %3108 = vst.msk [vmem:[#allocation2 + $0x24] sm:$0xf] %vm3098, %v3021
      %3109 = vst.msk [vmem:[#allocation2 + $0x28] sm:$0xf] %vm3098, %v3023
      %3110 = vst.msk [vmem:[#allocation2 + $0x2c] sm:$0xf] %vm3098, %v3025
      %3111 = vst.msk [vmem:[#allocation2 + $0x30] sm:$0xf] %vm3098, %v3027
      %3112 = vst.msk [vmem:[#allocation2 + $0x34] sm:$0xf] %vm3098, %v3029
      %3113 = vst.msk [vmem:[#allocation2 + $0x38] sm:$0xf] %vm3098, %v3031
      %3114 = vst.msk [vmem:[#allocation2 + $0x3c] sm:$0xf] %vm3098, %v3033
      %3115 = vst.msk [vmem:[#allocation2 + $0x40] sm:$0xf] %vm3098, %v3035
      %3116 = vst.msk [vmem:[#allocation2 + $0x44] sm:$0xf] %vm3098, %v3037
      %3117 = vst.msk [vmem:[#allocation2 + $0x48] sm:$0xf] %vm3098, %v3039
      %3118 = vst.msk [vmem:[#allocation2 + $0x4c] sm:$0xf] %vm3098, %v3041
      %3119 = vst.msk [vmem:[#allocation2 + $0x50] sm:$0xf] %vm3098, %v3043
      %3120 = vst.msk [vmem:[#allocation2 + $0x54] sm:$0xf] %vm3098, %v3045
      %3121 = vst.msk [vmem:[#allocation2 + $0x58] sm:$0xf] %vm3098, %v3047
      %3122 = vst.msk [vmem:[#allocation2 + $0x5c] sm:$0xf] %vm3098, %v3049
      %3123 = vst.msk [vmem:[#allocation2 + $0x60] sm:$0xf] %vm3098, %v3051
      %3124 = vst.msk [vmem:[#allocation2 + $0x64] sm:$0xf] %vm3098, %v3053
      %3125 = vst.msk [vmem:[#allocation2 + $0x68] sm:$0xf] %vm3098, %v3055
      %3126 = vst.msk [vmem:[#allocation2 + $0x6c] sm:$0xf] %vm3098, %v3057
      %3127 = vst.msk [vmem:[#allocation2 + $0x70] sm:$0xf] %vm3098, %v3059
      %3128 = vst.msk [vmem:[#allocation2 + $0x74] sm:$0xf] %vm3098, %v3061
      %3129 = vst.msk [vmem:[#allocation2 + $0x78] sm:$0xf] %vm3098, %v3063
      %3130 = vst.msk [vmem:[#allocation2 + $0x7c] sm:$0xf] %vm3098, %v3065
      %v3131 = vld [vmem:[#allocation2] sm:$0xf]
      %v3132 = vld [vmem:[#allocation2 + $0x4] sm:$0xf]
      %v3133 = vld [vmem:[#allocation2 + $0x8] sm:$0xf]
      %v3134 = vld [vmem:[#allocation2 + $0xc] sm:$0xf]
      %v3135 = vld [vmem:[#allocation2 + $0x10] sm:$0xf]
      %v3136 = vld [vmem:[#allocation2 + $0x14] sm:$0xf]
      %v3137 = vld [vmem:[#allocation2 + $0x18] sm:$0xf]
      %v3138 = vld [vmem:[#allocation2 + $0x1c] sm:$0xf]
      %v3139 = vld [vmem:[#allocation2 + $0x20] sm:$0xf]
      %v3140 = vld [vmem:[#allocation2 + $0x24] sm:$0xf]
      %v3141 = vld [vmem:[#allocation2 + $0x28] sm:$0xf]
      %v3142 = vld [vmem:[#allocation2 + $0x2c] sm:$0xf]
      %v3143 = vld [vmem:[#allocation2 + $0x30] sm:$0xf]
      %v3144 = vld [vmem:[#allocation2 + $0x34] sm:$0xf]
      %v3145 = vld [vmem:[#allocation2 + $0x38] sm:$0xf]
      %v3146 = vld [vmem:[#allocation2 + $0x3c] sm:$0xf]
      %v3147 = vld [vmem:[#allocation2 + $0x40] sm:$0xf]
      %v3148 = vld [vmem:[#allocation2 + $0x44] sm:$0xf]
      %v3149 = vld [vmem:[#allocation2 + $0x48] sm:$0xf]
      %v3150 = vld [vmem:[#allocation2 + $0x4c] sm:$0xf]
      %v3151 = vld [vmem:[#allocation2 + $0x50] sm:$0xf]
      %v3152 = vld [vmem:[#allocation2 + $0x54] sm:$0xf]
      %v3153 = vld [vmem:[#allocation2 + $0x58] sm:$0xf]
      %v3154 = vld [vmem:[#allocation2 + $0x5c] sm:$0xf]
      %v3155 = vld [vmem:[#allocation2 + $0x60] sm:$0xf]
      %v3156 = vld [vmem:[#allocation2 + $0x64] sm:$0xf]
      %v3157 = vld [vmem:[#allocation2 + $0x68] sm:$0xf]
      %v3158 = vld [vmem:[#allocation2 + $0x6c] sm:$0xf]
      %v3159 = vld [vmem:[#allocation2 + $0x70] sm:$0xf]
      %v3160 = vld [vmem:[#allocation2 + $0x74] sm:$0xf]
      %v3161 = vld [vmem:[#allocation2 + $0x78] sm:$0xf]
      %v3162 = vld [vmem:[#allocation2 + $0x7c] sm:$0xf]
      %v3163 = vld [vmem:[%s1] sm:$0xf]
      %v3164 = vld [vmem:[%s1 + $0x4] sm:$0xf]
      %v3165 = vld [vmem:[%s1 + $0x8] sm:$0xf]
      %v3166 = vld [vmem:[%s1 + $0xc] sm:$0xf]
      %v3167 = vld [vmem:[%s1 + $0x10] sm:$0xf]
      %v3168 = vld [vmem:[%s1 + $0x14] sm:$0xf]
      %v3169 = vld [vmem:[%s1 + $0x18] sm:$0xf]
      %v3170 = vld [vmem:[%s2] sm:$0x1]
      %v3172 = vperm.slane %v3170, 0
      %v3206 = vunpack.c.l.b16 %v3131
      %v3207 = vunpack.c.l.b16 %v3132
      %v3208 = vunpack.c.l.b16 %v3133
      %v3209 = vunpack.c.l.b16 %v3134
      %v3210 = vunpack.c.l.b16 %v3135
      %v3211 = vunpack.c.l.b16 %v3136
      %v3212 = vunpack.c.l.b16 %v3137
      %v3213 = vunpack.c.l.b16 %v3138
      %v3214 = vunpack.c.l.b16 %v3139
      %v3215 = vunpack.c.l.b16 %v3140
      %v3216 = vunpack.c.l.b16 %v3141
      %v3217 = vunpack.c.l.b16 %v3142
      %v3218 = vunpack.c.l.b16 %v3143
      %v3219 = vunpack.c.l.b16 %v3144
      %v3220 = vunpack.c.l.b16 %v3145
      %v3221 = vunpack.c.l.b16 %v3146
      %v3222 = vunpack.c.l.b16 %v3147
      %v3223 = vunpack.c.l.b16 %v3148
      %v3224 = vunpack.c.l.b16 %v3149
      %v3225 = vunpack.c.l.b16 %v3150
      %v3226 = vunpack.c.l.b16 %v3151
      %v3227 = vunpack.c.l.b16 %v3152
      %v3228 = vunpack.c.l.b16 %v3153
      %v3229 = vunpack.c.l.b16 %v3154
      %v3230 = vunpack.c.l.b16 %v3155
      %v3231 = vunpack.c.l.b16 %v3156
      %v3232 = vunpack.c.l.b16 %v3157
      %v3233 = vunpack.c.l.b16 %v3158
      %v3234 = vunpack.c.l.b16 %v3159
      %v3235 = vunpack.c.l.b16 %v3160
      %v3236 = vunpack.c.l.b16 %v3161
      %v3237 = vunpack.c.l.b16 %v3162
      %v3238 = vpack.c.b16 %v3207, %v3206
      %v3239 = vpack.c.b16 %v3209, %v3208
      %v3240 = vpack.c.b16 %v3211, %v3210
      %v3241 = vpack.c.b16 %v3213, %v3212
      %v3242 = vpack.c.b16 %v3215, %v3214
      %v3243 = vpack.c.b16 %v3217, %v3216
      %v3244 = vpack.c.b16 %v3219, %v3218
      %v3245 = vpack.c.b16 %v3221, %v3220
      %v3246 = vpack.c.b16 %v3223, %v3222
      %v3247 = vpack.c.b16 %v3225, %v3224
      %v3248 = vpack.c.b16 %v3227, %v3226
      %v3249 = vpack.c.b16 %v3229, %v3228
      %v3250 = vpack.c.b16 %v3231, %v3230
      %v3251 = vpack.c.b16 %v3233, %v3232
      %v3252 = vpack.c.b16 %v3235, %v3234
      %v3253 = vpack.c.b16 %v3237, %v3236
      %v3261 = vunpack.c.l.b16 %v3163
      %v3262 = vunpack.c.l.b16 %v3164
      %v3263 = vunpack.c.l.b16 %v3165
      %v3264 = vunpack.c.l.b16 %v3166
      %v3265 = vunpack.c.l.b16 %v3167
      %v3266 = vunpack.c.l.b16 %v3168
      %v3267 = vunpack.c.l.b16 %v3169
      %v3268 = vpack.c.b16 %v3262, %v3261
      %v3269 = vpack.c.b16 %v3264, %v3263
      %v3270 = vpack.c.b16 %v3266, %v3265
      %v3271 = vpack.c.b16 %v3267, %v3267
      %vm3275 = vcmask 457728
      %v3277 = vsel %vm3275, %v3238, 0
      %v3280 = vsel %vm3275, %v3239, 0
      %v3283 = vsel %vm3275, %v3240, 0
      %v3286 = vsel %vm3275, %v3241, 0
      %v3289 = vsel %vm3275, %v3242, 0
      %v3292 = vsel %vm3275, %v3243, 0
      %v3295 = vsel %vm3275, %v3244, 0
      %v3298 = vsel %vm3275, %v3245, 0
      %v3301 = vsel %vm3275, %v3246, 0
      %v3304 = vsel %vm3275, %v3247, 0
      %v3307 = vsel %vm3275, %v3248, 0
      %v3310 = vsel %vm3275, %v3249, 0
      %v3313 = vsel %vm3275, %v3250, 0
      %v3316 = vsel %vm3275, %v3251, 0
      %v3319 = vsel %vm3275, %v3252, 0
      %v3322 = vsel %vm3275, %v3253, 0
      %vm3324 = vcmask 1043456
      %v3326 = vsel %vm3324, %v3271, 0
      %3328 = vmatpush.bf16.msra.mxu0 0
      %3329 = vmatpush.bf16.msra.mxu0 0
      %3330 = vmatpush.bf16.msra.mxu0 0
      %3331 = vmatpush.bf16.msra.mxu0 0
      %3332 = vmatpush.bf16.msra.mxu0 %v3326
      %3333 = vmatpush.bf16.msra.mxu0 %v3270
      %3334 = vmatpush.bf16.msra.mxu0 %v3269
      %3335 = vmatpush.bf16.msra.mxu0 %v3268
      %3336 = vmatmul.bf16.gmra.mxu0 %v3277
      %v3337 = vpop.f32.mrf.mxu0
      %v3338 = vadd.f32 %v3172, %v3337
      %v3339 = vpop.f32.mrf.mxu0
      %v3340 = vadd.f32 %v3172, %v3339
      %3341 = vmatmul.bf16.gmra.mxu0 %v3280
      %v3342 = vpop.f32.mrf.mxu0
      %v3343 = vadd.f32 %v3172, %v3342
      %v3344 = vpop.f32.mrf.mxu0
      %v3345 = vadd.f32 %v3172, %v3344
      %3346 = vmatmul.bf16.gmra.mxu0 %v3283
      %v3347 = vpop.f32.mrf.mxu0
      %v3348 = vadd.f32 %v3172, %v3347
      %v3349 = vpop.f32.mrf.mxu0
      %v3350 = vadd.f32 %v3172, %v3349
      %3351 = vmatmul.bf16.gmra.mxu0 %v3286
      %v3352 = vpop.f32.mrf.mxu0
      %v3353 = vadd.f32 %v3172, %v3352
      %v3354 = vpop.f32.mrf.mxu0
      %v3355 = vadd.f32 %v3172, %v3354
      %3356 = vmatmul.bf16.gmra.mxu0 %v3289
      %v3357 = vpop.f32.mrf.mxu0
      %v3358 = vadd.f32 %v3172, %v3357
      %v3359 = vpop.f32.mrf.mxu0
      %v3360 = vadd.f32 %v3172, %v3359
      %3361 = vmatmul.bf16.gmra.mxu0 %v3292
      %v3362 = vpop.f32.mrf.mxu0
      %v3363 = vadd.f32 %v3172, %v3362
      %v3364 = vpop.f32.mrf.mxu0
      %v3365 = vadd.f32 %v3172, %v3364
      %3366 = vmatmul.bf16.gmra.mxu0 %v3295
      %v3367 = vpop.f32.mrf.mxu0
      %v3368 = vadd.f32 %v3172, %v3367
      %v3369 = vpop.f32.mrf.mxu0
      %v3370 = vadd.f32 %v3172, %v3369
      %3371 = vmatmul.bf16.gmra.mxu0 %v3298
      %v3372 = vpop.f32.mrf.mxu0
      %v3373 = vadd.f32 %v3172, %v3372
      %v3374 = vpop.f32.mrf.mxu0
      %v3375 = vadd.f32 %v3172, %v3374
      %3376 = vmatmul.bf16.gmra.mxu0 %v3301
      %v3377 = vpop.f32.mrf.mxu0
      %v3378 = vadd.f32 %v3172, %v3377
      %v3379 = vpop.f32.mrf.mxu0
      %v3380 = vadd.f32 %v3172, %v3379
      %3381 = vmatmul.bf16.gmra.mxu0 %v3304
      %v3382 = vpop.f32.mrf.mxu0
      %v3383 = vadd.f32 %v3172, %v3382
      %v3384 = vpop.f32.mrf.mxu0
      %v3385 = vadd.f32 %v3172, %v3384
      %3386 = vmatmul.bf16.gmra.mxu0 %v3307
      %v3387 = vpop.f32.mrf.mxu0
      %v3388 = vadd.f32 %v3172, %v3387
      %v3389 = vpop.f32.mrf.mxu0
      %v3390 = vadd.f32 %v3172, %v3389
      %3391 = vmatmul.bf16.gmra.mxu0 %v3310
      %v3392 = vpop.f32.mrf.mxu0
      %v3393 = vadd.f32 %v3172, %v3392
      %v3394 = vpop.f32.mrf.mxu0
      %v3395 = vadd.f32 %v3172, %v3394
      %3396 = vmatmul.bf16.gmra.mxu0 %v3313
      %v3397 = vpop.f32.mrf.mxu0
      %v3398 = vadd.f32 %v3172, %v3397
      %v3399 = vpop.f32.mrf.mxu0
      %v3400 = vadd.f32 %v3172, %v3399
      %3401 = vmatmul.bf16.gmra.mxu0 %v3316
      %v3402 = vpop.f32.mrf.mxu0
      %v3403 = vadd.f32 %v3172, %v3402
      %v3404 = vpop.f32.mrf.mxu0
      %v3405 = vadd.f32 %v3172, %v3404
      %3406 = vmatmul.bf16.gmra.mxu0 %v3319
      %v3407 = vpop.f32.mrf.mxu0
      %v3408 = vadd.f32 %v3172, %v3407
      %v3409 = vpop.f32.mrf.mxu0
      %v3410 = vadd.f32 %v3172, %v3409
      %3411 = vmatmul.bf16.gmra.mxu0 %v3322
      %v3412 = vpop.f32.mrf.mxu0
      %v3413 = vadd.f32 %v3172, %v3412
      %v3414 = vpop.f32.mrf.mxu0
      %v3415 = vadd.f32 %v3172, %v3414
      %3416 = vdwg.mxu0
      %v3417 = vpack.c.bf16 %v3338, %v3338
      %v3418 = vpack.c.bf16 %v3340, %v3340
      %v3419 = vpack.c.bf16 %v3343, %v3343
      %v3420 = vpack.c.bf16 %v3345, %v3345
      %v3421 = vpack.c.bf16 %v3348, %v3348
      %v3422 = vpack.c.bf16 %v3350, %v3350
      %v3423 = vpack.c.bf16 %v3353, %v3353
      %v3424 = vpack.c.bf16 %v3355, %v3355
      %v3425 = vpack.c.bf16 %v3358, %v3358
      %v3426 = vpack.c.bf16 %v3360, %v3360
      %v3427 = vpack.c.bf16 %v3363, %v3363
      %v3428 = vpack.c.bf16 %v3365, %v3365
      %v3429 = vpack.c.bf16 %v3368, %v3368
      %v3430 = vpack.c.bf16 %v3370, %v3370
      %v3431 = vpack.c.bf16 %v3373, %v3373
      %v3432 = vpack.c.bf16 %v3375, %v3375
      %v3433 = vpack.c.bf16 %v3378, %v3378
      %v3434 = vpack.c.bf16 %v3380, %v3380
      %v3435 = vpack.c.bf16 %v3383, %v3383
      %v3436 = vpack.c.bf16 %v3385, %v3385
      %v3437 = vpack.c.bf16 %v3388, %v3388
      %v3438 = vpack.c.bf16 %v3390, %v3390
      %v3439 = vpack.c.bf16 %v3393, %v3393
      %v3440 = vpack.c.bf16 %v3395, %v3395
      %v3441 = vpack.c.bf16 %v3398, %v3398
      %v3442 = vpack.c.bf16 %v3400, %v3400
      %v3443 = vpack.c.bf16 %v3403, %v3403
      %v3444 = vpack.c.bf16 %v3405, %v3405
      %v3445 = vpack.c.bf16 %v3408, %v3408
      %v3446 = vpack.c.bf16 %v3410, %v3410
      %v3447 = vpack.c.bf16 %v3413, %v3413
      %v3448 = vpack.c.bf16 %v3415, %v3415
      %3449 = vst.msk [vmem:[#allocation3] sm:$0xf] %vm258, 0
      %3450 = vst.msk [vmem:[#allocation3 + $0x4] sm:$0xf] %vm258, 0
      %3451 = vst.msk [vmem:[#allocation3 + $0x8] sm:$0xf] %vm258, 0
      %3452 = vst.msk [vmem:[#allocation3 + $0xc] sm:$0xf] %vm258, 0
      %3453 = vst.msk [vmem:[#allocation3 + $0x10] sm:$0xf] %vm258, 0
      %3454 = vst.msk [vmem:[#allocation3 + $0x14] sm:$0xf] %vm258, 0
      %3455 = vst.msk [vmem:[#allocation3 + $0x98] sm:$0xf] %vm258, 0
      %3456 = vst.msk [vmem:[#allocation3 + $0x9c] sm:$0xf] %vm258, 0
      %3457 = vst.msk [vmem:[#allocation3 + $0xa0] sm:$0xf] %vm258, 0
      %3458 = vst.msk [vmem:[#allocation3 + $0xa4] sm:$0xf] %vm258, 0
      %3459 = vst.msk [vmem:[#allocation3 + $0xa8] sm:$0xf] %vm258, 0
      %3460 = vst.msk [vmem:[#allocation3 + $0xac] sm:$0xf] %vm258, 0
      %3461 = vst.msk [vmem:[#allocation3 + $0x18] sm:$0xf] %vm258, %v3417
      %3462 = vst.msk [vmem:[#allocation3 + $0x1c] sm:$0xf] %vm258, %v3418
      %3463 = vst.msk [vmem:[#allocation3 + $0x20] sm:$0xf] %vm258, %v3419
      %3464 = vst.msk [vmem:[#allocation3 + $0x24] sm:$0xf] %vm258, %v3420
      %3465 = vst.msk [vmem:[#allocation3 + $0x28] sm:$0xf] %vm258, %v3421
      %3466 = vst.msk [vmem:[#allocation3 + $0x2c] sm:$0xf] %vm258, %v3422
      %3467 = vst.msk [vmem:[#allocation3 + $0x30] sm:$0xf] %vm258, %v3423
      %3468 = vst.msk [vmem:[#allocation3 + $0x34] sm:$0xf] %vm258, %v3424
      %3469 = vst.msk [vmem:[#allocation3 + $0x38] sm:$0xf] %vm258, %v3425
      %3470 = vst.msk [vmem:[#allocation3 + $0x3c] sm:$0xf] %vm258, %v3426
      %3471 = vst.msk [vmem:[#allocation3 + $0x40] sm:$0xf] %vm258, %v3427
      %3472 = vst.msk [vmem:[#allocation3 + $0x44] sm:$0xf] %vm258, %v3428
      %3473 = vst.msk [vmem:[#allocation3 + $0x48] sm:$0xf] %vm258, %v3429
      %3474 = vst.msk [vmem:[#allocation3 + $0x4c] sm:$0xf] %vm258, %v3430
      %3475 = vst.msk [vmem:[#allocation3 + $0x50] sm:$0xf] %vm258, %v3431
      %3476 = vst.msk [vmem:[#allocation3 + $0x54] sm:$0xf] %vm258, %v3432
      %3477 = vst.msk [vmem:[#allocation3 + $0x58] sm:$0xf] %vm258, %v3433
      %3478 = vst.msk [vmem:[#allocation3 + $0x5c] sm:$0xf] %vm258, %v3434
      %3479 = vst.msk [vmem:[#allocation3 + $0x60] sm:$0xf] %vm258, %v3435
      %3480 = vst.msk [vmem:[#allocation3 + $0x64] sm:$0xf] %vm258, %v3436
      %3481 = vst.msk [vmem:[#allocation3 + $0x68] sm:$0xf] %vm258, %v3437
      %3482 = vst.msk [vmem:[#allocation3 + $0x6c] sm:$0xf] %vm258, %v3438
      %3483 = vst.msk [vmem:[#allocation3 + $0x70] sm:$0xf] %vm258, %v3439
      %3484 = vst.msk [vmem:[#allocation3 + $0x74] sm:$0xf] %vm258, %v3440
      %3485 = vst.msk [vmem:[#allocation3 + $0x78] sm:$0xf] %vm258, %v3441
      %3486 = vst.msk [vmem:[#allocation3 + $0x7c] sm:$0xf] %vm258, %v3442
      %3487 = vst.msk [vmem:[#allocation3 + $0x80] sm:$0xf] %vm258, %v3443
      %3488 = vst.msk [vmem:[#allocation3 + $0x84] sm:$0xf] %vm258, %v3444
      %3489 = vst.msk [vmem:[#allocation3 + $0x88] sm:$0xf] %vm258, %v3445
      %3490 = vst.msk [vmem:[#allocation3 + $0x8c] sm:$0xf] %vm258, %v3446
      %3491 = vst.msk [vmem:[#allocation3 + $0x90] sm:$0xf] %vm258, %v3447
      %3492 = vst.msk [vmem:[#allocation3 + $0x94] sm:$0xf] %vm258, %v3448
      %v3493 = vld [vmem:[#allocation3] sm:$0xf]
      %v3494 = vld [vmem:[#allocation3 + $0x4] sm:$0xf]
      %v3495 = vld [vmem:[#allocation3 + $0x8] sm:$0xf]
      %v3496 = vld [vmem:[#allocation3 + $0xc] sm:$0xf]
      %v3497 = vld [vmem:[#allocation3 + $0x10] sm:$0xf]
      %v3498 = vld [vmem:[#allocation3 + $0x14] sm:$0xf]
      %v3499 = vld [vmem:[#allocation3 + $0x18] sm:$0xf]
      %v3500 = vld [vmem:[#allocation3 + $0x1c] sm:$0xf]
      %v3501 = vld [vmem:[#allocation3 + $0x20] sm:$0xf]
      %v3502 = vld [vmem:[#allocation3 + $0x24] sm:$0xf]
      %v3503 = vld [vmem:[#allocation3 + $0x28] sm:$0xf]
      %v3504 = vld [vmem:[#allocation3 + $0x2c] sm:$0xf]
      %v3505 = vld [vmem:[#allocation3 + $0x30] sm:$0xf]
      %v3506 = vld [vmem:[#allocation3 + $0x34] sm:$0xf]
      %v3507 = vld [vmem:[#allocation3 + $0x38] sm:$0xf]
      %v3508 = vld [vmem:[#allocation3 + $0x3c] sm:$0xf]
      %v3509 = vld [vmem:[#allocation3 + $0x40] sm:$0xf]
      %v3510 = vld [vmem:[#allocation3 + $0x44] sm:$0xf]
      %v3511 = vld [vmem:[#allocation3 + $0x48] sm:$0xf]
      %v3512 = vld [vmem:[#allocation3 + $0x4c] sm:$0xf]
      %v3513 = vld [vmem:[#allocation3 + $0x50] sm:$0xf]
      %v3514 = vld [vmem:[#allocation3 + $0x54] sm:$0xf]
      %v3515 = vld [vmem:[#allocation3 + $0x58] sm:$0xf]
      %v3516 = vld [vmem:[#allocation3 + $0x5c] sm:$0xf]
      %v3517 = vld [vmem:[#allocation3 + $0x60] sm:$0xf]
      %v3518 = vld [vmem:[#allocation3 + $0x64] sm:$0xf]
      %v3519 = vld [vmem:[#allocation3 + $0x68] sm:$0xf]
      %v3520 = vld [vmem:[#allocation3 + $0x6c] sm:$0xf]
      %v3521 = vld [vmem:[#allocation3 + $0x70] sm:$0xf]
      %v3522 = vld [vmem:[#allocation3 + $0x74] sm:$0xf]
      %v3523 = vld [vmem:[#allocation3 + $0x78] sm:$0xf]
      %v3524 = vld [vmem:[#allocation3 + $0x7c] sm:$0xf]
      %3525 = vst.msk [vmem:[#allocation4] sm:$0xf] %vm258, %v3493
      %3526 = vst.msk [vmem:[#allocation4 + $0x4] sm:$0xf] %vm258, %v3494
      %3527 = vst.msk [vmem:[#allocation4 + $0x8] sm:$0xf] %vm258, %v3495
      %3528 = vst.msk [vmem:[#allocation4 + $0xc] sm:$0xf] %vm258, %v3496
      %3529 = vst.msk [vmem:[#allocation4 + $0x10] sm:$0xf] %vm258, %v3497
      %3530 = vst.msk [vmem:[#allocation4 + $0x14] sm:$0xf] %vm258, %v3498
      %3531 = vst.msk [vmem:[#allocation4 + $0x18] sm:$0xf] %vm258, %v3499
      %3532 = vst.msk [vmem:[#allocation4 + $0x1c] sm:$0xf] %vm258, %v3500
      %3533 = vst.msk [vmem:[#allocation4 + $0x20] sm:$0xf] %vm258, %v3501
      %3534 = vst.msk [vmem:[#allocation4 + $0x24] sm:$0xf] %vm258, %v3502
      %3535 = vst.msk [vmem:[#allocation4 + $0x28] sm:$0xf] %vm258, %v3503
      %3536 = vst.msk [vmem:[#allocation4 + $0x2c] sm:$0xf] %vm258, %v3504
      %3537 = vst.msk [vmem:[#allocation4 + $0x30] sm:$0xf] %vm258, %v3505
      %3538 = vst.msk [vmem:[#allocation4 + $0x34] sm:$0xf] %vm258, %v3506
      %3539 = vst.msk [vmem:[#allocation4 + $0x38] sm:$0xf] %vm258, %v3507
      %3540 = vst.msk [vmem:[#allocation4 + $0x3c] sm:$0xf] %vm258, %v3508
      %3541 = vst.msk [vmem:[#allocation4 + $0x40] sm:$0xf] %vm258, %v3509
      %3542 = vst.msk [vmem:[#allocation4 + $0x44] sm:$0xf] %vm258, %v3510
      %3543 = vst.msk [vmem:[#allocation4 + $0x48] sm:$0xf] %vm258, %v3511
      %3544 = vst.msk [vmem:[#allocation4 + $0x4c] sm:$0xf] %vm258, %v3512
      %3545 = vst.msk [vmem:[#allocation4 + $0x50] sm:$0xf] %vm258, %v3513
      %3546 = vst.msk [vmem:[#allocation4 + $0x54] sm:$0xf] %vm258, %v3514
      %3547 = vst.msk [vmem:[#allocation4 + $0x58] sm:$0xf] %vm258, %v3515
      %3548 = vst.msk [vmem:[#allocation4 + $0x5c] sm:$0xf] %vm258, %v3516
      %3549 = vst.msk [vmem:[#allocation4 + $0x60] sm:$0xf] %vm258, %v3517
      %3550 = vst.msk [vmem:[#allocation4 + $0x64] sm:$0xf] %vm258, %v3518
      %3551 = vst.msk [vmem:[#allocation4 + $0x68] sm:$0xf] %vm258, %v3519
      %3552 = vst.msk [vmem:[#allocation4 + $0x6c] sm:$0xf] %vm258, %v3520
      %3553 = vst.msk [vmem:[#allocation4 + $0x70] sm:$0xf] %vm258, %v3521
      %3554 = vst.msk [vmem:[#allocation4 + $0x74] sm:$0xf] %vm258, %v3522
      %3555 = vst.msk [vmem:[#allocation4 + $0x78] sm:$0xf] %vm258, %v3523
      %3556 = vst.msk [vmem:[#allocation4 + $0x7c] sm:$0xf] %vm258, %v3524
      %v3557 = vld [vmem:[#allocation3 + $0x8] sm:$0xf]
      %v3558 = vld [vmem:[#allocation3 + $0xc] sm:$0xf]
      %v3559 = vld [vmem:[#allocation3 + $0x10] sm:$0xf]
      %v3560 = vld [vmem:[#allocation3 + $0x14] sm:$0xf]
      %v3561 = vld [vmem:[#allocation3 + $0x18] sm:$0xf]
      %v3562 = vld [vmem:[#allocation3 + $0x1c] sm:$0xf]
      %v3563 = vld [vmem:[#allocation3 + $0x20] sm:$0xf]
      %v3564 = vld [vmem:[#allocation3 + $0x24] sm:$0xf]
      %v3565 = vld [vmem:[#allocation3 + $0x28] sm:$0xf]
      %v3566 = vld [vmem:[#allocation3 + $0x2c] sm:$0xf]
      %v3567 = vld [vmem:[#allocation3 + $0x30] sm:$0xf]
      %v3568 = vld [vmem:[#allocation3 + $0x34] sm:$0xf]
      %v3569 = vld [vmem:[#allocation3 + $0x38] sm:$0xf]
      %v3570 = vld [vmem:[#allocation3 + $0x3c] sm:$0xf]
      %v3571 = vld [vmem:[#allocation3 + $0x40] sm:$0xf]
      %v3572 = vld [vmem:[#allocation3 + $0x44] sm:$0xf]
      %v3573 = vld [vmem:[#allocation3 + $0x48] sm:$0xf]
      %v3574 = vld [vmem:[#allocation3 + $0x4c] sm:$0xf]
      %v3575 = vld [vmem:[#allocation3 + $0x50] sm:$0xf]
      %v3576 = vld [vmem:[#allocation3 + $0x54] sm:$0xf]
      %v3577 = vld [vmem:[#allocation3 + $0x58] sm:$0xf]
      %v3578 = vld [vmem:[#allocation3 + $0x5c] sm:$0xf]
      %v3579 = vld [vmem:[#allocation3 + $0x60] sm:$0xf]
      %v3580 = vld [vmem:[#allocation3 + $0x64] sm:$0xf]
      %v3581 = vld [vmem:[#allocation3 + $0x68] sm:$0xf]
      %v3582 = vld [vmem:[#allocation3 + $0x6c] sm:$0xf]
      %v3583 = vld [vmem:[#allocation3 + $0x70] sm:$0xf]
      %v3584 = vld [vmem:[#allocation3 + $0x74] sm:$0xf]
      %v3585 = vld [vmem:[#allocation3 + $0x78] sm:$0xf]
      %v3586 = vld [vmem:[#allocation3 + $0x7c] sm:$0xf]
      %v3587 = vld [vmem:[#allocation3 + $0x80] sm:$0xf]
      %v3588 = vld [vmem:[#allocation3 + $0x84] sm:$0xf]
      %3621 = vrot.lane.b32.xlu0 %v3557, 8
      %v3622 = vpop.permute.xlu0 %3621
      %3623 = vrot.lane.b32.xlu0 %v3558, 8
      %v3624 = vpop.permute.xlu0 %3623
      %3625 = vrot.lane.b32.xlu0 %v3559, 8
      %v3626 = vpop.permute.xlu0 %3625
      %3627 = vrot.lane.b32.xlu0 %v3560, 8
      %v3628 = vpop.permute.xlu0 %3627
      %3629 = vrot.lane.b32.xlu0 %v3561, 8
      %v3630 = vpop.permute.xlu0 %3629
      %3631 = vrot.lane.b32.xlu0 %v3562, 8
      %v3632 = vpop.permute.xlu0 %3631
      %3633 = vrot.lane.b32.xlu0 %v3563, 8
      %v3634 = vpop.permute.xlu0 %3633
      %3635 = vrot.lane.b32.xlu0 %v3564, 8
      %v3636 = vpop.permute.xlu0 %3635
      %3637 = vrot.lane.b32.xlu0 %v3565, 8
      %v3638 = vpop.permute.xlu0 %3637
      %3639 = vrot.lane.b32.xlu0 %v3566, 8
      %v3640 = vpop.permute.xlu0 %3639
      %3641 = vrot.lane.b32.xlu0 %v3567, 8
      %v3642 = vpop.permute.xlu0 %3641
      %3643 = vrot.lane.b32.xlu0 %v3568, 8
      %v3644 = vpop.permute.xlu0 %3643
      %3645 = vrot.lane.b32.xlu0 %v3569, 8
      %v3646 = vpop.permute.xlu0 %3645
      %3647 = vrot.lane.b32.xlu0 %v3570, 8
      %v3648 = vpop.permute.xlu0 %3647
      %3649 = vrot.lane.b32.xlu0 %v3571, 8
      %v3650 = vpop.permute.xlu0 %3649
      %3651 = vrot.lane.b32.xlu0 %v3572, 8
      %v3652 = vpop.permute.xlu0 %3651
      %3653 = vrot.lane.b32.xlu0 %v3573, 8
      %v3654 = vpop.permute.xlu0 %3653
      %3655 = vrot.lane.b32.xlu0 %v3574, 8
      %v3656 = vpop.permute.xlu0 %3655
      %3657 = vrot.lane.b32.xlu0 %v3575, 8
      %v3658 = vpop.permute.xlu0 %3657
      %3659 = vrot.lane.b32.xlu0 %v3576, 8
      %v3660 = vpop.permute.xlu0 %3659
      %3661 = vrot.lane.b32.xlu0 %v3577, 8
      %v3662 = vpop.permute.xlu0 %3661
      %3663 = vrot.lane.b32.xlu0 %v3578, 8
      %v3664 = vpop.permute.xlu0 %3663
      %3665 = vrot.lane.b32.xlu0 %v3579, 8
      %v3666 = vpop.permute.xlu0 %3665
      %3667 = vrot.lane.b32.xlu0 %v3580, 8
      %v3668 = vpop.permute.xlu0 %3667
      %3669 = vrot.lane.b32.xlu0 %v3581, 8
      %v3670 = vpop.permute.xlu0 %3669
      %3671 = vrot.lane.b32.xlu0 %v3582, 8
      %v3672 = vpop.permute.xlu0 %3671
      %3673 = vrot.lane.b32.xlu0 %v3583, 8
      %v3674 = vpop.permute.xlu0 %3673
      %3675 = vrot.lane.b32.xlu0 %v3584, 8
      %v3676 = vpop.permute.xlu0 %3675
      %3677 = vrot.lane.b32.xlu0 %v3585, 8
      %v3678 = vpop.permute.xlu0 %3677
      %3679 = vrot.lane.b32.xlu0 %v3586, 8
      %v3680 = vpop.permute.xlu0 %3679
      %3681 = vrot.lane.b32.xlu0 %v3587, 8
      %v3682 = vpop.permute.xlu0 %3681
      %3683 = vrot.lane.b32.xlu0 %v3588, 8
      %v3684 = vpop.permute.xlu0 %3683
      %3717 = vst.msk [vmem:[#allocation4] sm:$0xf] %vm822, %v3622
      %3718 = vst.msk [vmem:[#allocation4 + $0x4] sm:$0xf] %vm822, %v3624
      %3719 = vst.msk [vmem:[#allocation4 + $0x8] sm:$0xf] %vm822, %v3626
      %3720 = vst.msk [vmem:[#allocation4 + $0xc] sm:$0xf] %vm822, %v3628
      %3721 = vst.msk [vmem:[#allocation4 + $0x10] sm:$0xf] %vm822, %v3630
      %3722 = vst.msk [vmem:[#allocation4 + $0x14] sm:$0xf] %vm822, %v3632
      %3723 = vst.msk [vmem:[#allocation4 + $0x18] sm:$0xf] %vm822, %v3634
      %3724 = vst.msk [vmem:[#allocation4 + $0x1c] sm:$0xf] %vm822, %v3636
      %3725 = vst.msk [vmem:[#allocation4 + $0x20] sm:$0xf] %vm822, %v3638
      %3726 = vst.msk [vmem:[#allocation4 + $0x24] sm:$0xf] %vm822, %v3640
      %3727 = vst.msk [vmem:[#allocation4 + $0x28] sm:$0xf] %vm822, %v3642
      %3728 = vst.msk [vmem:[#allocation4 + $0x2c] sm:$0xf] %vm822, %v3644
      %3729 = vst.msk [vmem:[#allocation4 + $0x30] sm:$0xf] %vm822, %v3646
      %3730 = vst.msk [vmem:[#allocation4 + $0x34] sm:$0xf] %vm822, %v3648
      %3731 = vst.msk [vmem:[#allocation4 + $0x38] sm:$0xf] %vm822, %v3650
      %3732 = vst.msk [vmem:[#allocation4 + $0x3c] sm:$0xf] %vm822, %v3652
      %3733 = vst.msk [vmem:[#allocation4 + $0x40] sm:$0xf] %vm822, %v3654
      %3734 = vst.msk [vmem:[#allocation4 + $0x44] sm:$0xf] %vm822, %v3656
      %3735 = vst.msk [vmem:[#allocation4 + $0x48] sm:$0xf] %vm822, %v3658
      %3736 = vst.msk [vmem:[#allocation4 + $0x4c] sm:$0xf] %vm822, %v3660
      %3737 = vst.msk [vmem:[#allocation4 + $0x50] sm:$0xf] %vm822, %v3662
      %3738 = vst.msk [vmem:[#allocation4 + $0x54] sm:$0xf] %vm822, %v3664
      %3739 = vst.msk [vmem:[#allocation4 + $0x58] sm:$0xf] %vm822, %v3666
      %3740 = vst.msk [vmem:[#allocation4 + $0x5c] sm:$0xf] %vm822, %v3668
      %3741 = vst.msk [vmem:[#allocation4 + $0x60] sm:$0xf] %vm822, %v3670
      %3742 = vst.msk [vmem:[#allocation4 + $0x64] sm:$0xf] %vm822, %v3672
      %3743 = vst.msk [vmem:[#allocation4 + $0x68] sm:$0xf] %vm822, %v3674
      %3744 = vst.msk [vmem:[#allocation4 + $0x6c] sm:$0xf] %vm822, %v3676
      %3745 = vst.msk [vmem:[#allocation4 + $0x70] sm:$0xf] %vm822, %v3678
      %3746 = vst.msk [vmem:[#allocation4 + $0x74] sm:$0xf] %vm822, %v3680
      %3747 = vst.msk [vmem:[#allocation4 + $0x78] sm:$0xf] %vm822, %v3682
      %3748 = vst.msk [vmem:[#allocation4 + $0x7c] sm:$0xf] %vm822, %v3684
      %v3749 = vld [vmem:[#allocation3 + $0x10] sm:$0xf]
      %v3750 = vld [vmem:[#allocation3 + $0x14] sm:$0xf]
      %v3751 = vld [vmem:[#allocation3 + $0x18] sm:$0xf]
      %v3752 = vld [vmem:[#allocation3 + $0x1c] sm:$0xf]
      %v3753 = vld [vmem:[#allocation3 + $0x20] sm:$0xf]
      %v3754 = vld [vmem:[#allocation3 + $0x24] sm:$0xf]
      %v3755 = vld [vmem:[#allocation3 + $0x28] sm:$0xf]
      %v3756 = vld [vmem:[#allocation3 + $0x2c] sm:$0xf]
      %v3757 = vld [vmem:[#allocation3 + $0x30] sm:$0xf]
      %v3758 = vld [vmem:[#allocation3 + $0x34] sm:$0xf]
      %v3759 = vld [vmem:[#allocation3 + $0x38] sm:$0xf]
      %v3760 = vld [vmem:[#allocation3 + $0x3c] sm:$0xf]
      %v3761 = vld [vmem:[#allocation3 + $0x40] sm:$0xf]
      %v3762 = vld [vmem:[#allocation3 + $0x44] sm:$0xf]
      %v3763 = vld [vmem:[#allocation3 + $0x48] sm:$0xf]
      %v3764 = vld [vmem:[#allocation3 + $0x4c] sm:$0xf]
      %v3765 = vld [vmem:[#allocation3 + $0x50] sm:$0xf]
      %v3766 = vld [vmem:[#allocation3 + $0x54] sm:$0xf]
      %v3767 = vld [vmem:[#allocation3 + $0x58] sm:$0xf]
      %v3768 = vld [vmem:[#allocation3 + $0x5c] sm:$0xf]
      %v3769 = vld [vmem:[#allocation3 + $0x60] sm:$0xf]
      %v3770 = vld [vmem:[#allocation3 + $0x64] sm:$0xf]
      %v3771 = vld [vmem:[#allocation3 + $0x68] sm:$0xf]
      %v3772 = vld [vmem:[#allocation3 + $0x6c] sm:$0xf]
      %v3773 = vld [vmem:[#allocation3 + $0x70] sm:$0xf]
      %v3774 = vld [vmem:[#allocation3 + $0x74] sm:$0xf]
      %v3775 = vld [vmem:[#allocation3 + $0x78] sm:$0xf]
      %v3776 = vld [vmem:[#allocation3 + $0x7c] sm:$0xf]
      %v3777 = vld [vmem:[#allocation3 + $0x80] sm:$0xf]
      %v3778 = vld [vmem:[#allocation3 + $0x84] sm:$0xf]
      %v3779 = vld [vmem:[#allocation3 + $0x88] sm:$0xf]
      %v3780 = vld [vmem:[#allocation3 + $0x8c] sm:$0xf]
      %3813 = vrot.lane.b32.xlu0 %v3749, 16
      %v3814 = vpop.permute.xlu0 %3813
      %3815 = vrot.lane.b32.xlu0 %v3750, 16
      %v3816 = vpop.permute.xlu0 %3815
      %3817 = vrot.lane.b32.xlu0 %v3751, 16
      %v3818 = vpop.permute.xlu0 %3817
      %3819 = vrot.lane.b32.xlu0 %v3752, 16
      %v3820 = vpop.permute.xlu0 %3819
      %3821 = vrot.lane.b32.xlu0 %v3753, 16
      %v3822 = vpop.permute.xlu0 %3821
      %3823 = vrot.lane.b32.xlu0 %v3754, 16
      %v3824 = vpop.permute.xlu0 %3823
      %3825 = vrot.lane.b32.xlu0 %v3755, 16
      %v3826 = vpop.permute.xlu0 %3825
      %3827 = vrot.lane.b32.xlu0 %v3756, 16
      %v3828 = vpop.permute.xlu0 %3827
      %3829 = vrot.lane.b32.xlu0 %v3757, 16
      %v3830 = vpop.permute.xlu0 %3829
      %3831 = vrot.lane.b32.xlu0 %v3758, 16
      %v3832 = vpop.permute.xlu0 %3831
      %3833 = vrot.lane.b32.xlu0 %v3759, 16
      %v3834 = vpop.permute.xlu0 %3833
      %3835 = vrot.lane.b32.xlu0 %v3760, 16
      %v3836 = vpop.permute.xlu0 %3835
      %3837 = vrot.lane.b32.xlu0 %v3761, 16
      %v3838 = vpop.permute.xlu0 %3837
      %3839 = vrot.lane.b32.xlu0 %v3762, 16
      %v3840 = vpop.permute.xlu0 %3839
      %3841 = vrot.lane.b32.xlu0 %v3763, 16
      %v3842 = vpop.permute.xlu0 %3841
      %3843 = vrot.lane.b32.xlu0 %v3764, 16
      %v3844 = vpop.permute.xlu0 %3843
      %3845 = vrot.lane.b32.xlu0 %v3765, 16
      %v3846 = vpop.permute.xlu0 %3845
      %3847 = vrot.lane.b32.xlu0 %v3766, 16
      %v3848 = vpop.permute.xlu0 %3847
      %3849 = vrot.lane.b32.xlu0 %v3767, 16
      %v3850 = vpop.permute.xlu0 %3849
      %3851 = vrot.lane.b32.xlu0 %v3768, 16
      %v3852 = vpop.permute.xlu0 %3851
      %3853 = vrot.lane.b32.xlu0 %v3769, 16
      %v3854 = vpop.permute.xlu0 %3853
      %3855 = vrot.lane.b32.xlu0 %v3770, 16
      %v3856 = vpop.permute.xlu0 %3855
      %3857 = vrot.lane.b32.xlu0 %v3771, 16
      %v3858 = vpop.permute.xlu0 %3857
      %3859 = vrot.lane.b32.xlu0 %v3772, 16
      %v3860 = vpop.permute.xlu0 %3859
      %3861 = vrot.lane.b32.xlu0 %v3773, 16
      %v3862 = vpop.permute.xlu0 %3861
      %3863 = vrot.lane.b32.xlu0 %v3774, 16
      %v3864 = vpop.permute.xlu0 %3863
      %3865 = vrot.lane.b32.xlu0 %v3775, 16
      %v3866 = vpop.permute.xlu0 %3865
      %3867 = vrot.lane.b32.xlu0 %v3776, 16
      %v3868 = vpop.permute.xlu0 %3867
      %3869 = vrot.lane.b32.xlu0 %v3777, 16
      %v3870 = vpop.permute.xlu0 %3869
      %3871 = vrot.lane.b32.xlu0 %v3778, 16
      %v3872 = vpop.permute.xlu0 %3871
      %3873 = vrot.lane.b32.xlu0 %v3779, 16
      %v3874 = vpop.permute.xlu0 %3873
      %3875 = vrot.lane.b32.xlu0 %v3780, 16
      %v3876 = vpop.permute.xlu0 %3875
      %3909 = vst.msk [vmem:[#allocation4] sm:$0xf] %vm1162, %v3814
      %3910 = vst.msk [vmem:[#allocation4 + $0x4] sm:$0xf] %vm1162, %v3816
      %3911 = vst.msk [vmem:[#allocation4 + $0x8] sm:$0xf] %vm1162, %v3818
      %3912 = vst.msk [vmem:[#allocation4 + $0xc] sm:$0xf] %vm1162, %v3820
      %3913 = vst.msk [vmem:[#allocation4 + $0x10] sm:$0xf] %vm1162, %v3822
      %3914 = vst.msk [vmem:[#allocation4 + $0x14] sm:$0xf] %vm1162, %v3824
      %3915 = vst.msk [vmem:[#allocation4 + $0x18] sm:$0xf] %vm1162, %v3826
      %3916 = vst.msk [vmem:[#allocation4 + $0x1c] sm:$0xf] %vm1162, %v3828
      %3917 = vst.msk [vmem:[#allocation4 + $0x20] sm:$0xf] %vm1162, %v3830
      %3918 = vst.msk [vmem:[#allocation4 + $0x24] sm:$0xf] %vm1162, %v3832
      %3919 = vst.msk [vmem:[#allocation4 + $0x28] sm:$0xf] %vm1162, %v3834
      %3920 = vst.msk [vmem:[#allocation4 + $0x2c] sm:$0xf] %vm1162, %v3836
      %3921 = vst.msk [vmem:[#allocation4 + $0x30] sm:$0xf] %vm1162, %v3838
      %3922 = vst.msk [vmem:[#allocation4 + $0x34] sm:$0xf] %vm1162, %v3840
      %3923 = vst.msk [vmem:[#allocation4 + $0x38] sm:$0xf] %vm1162, %v3842
      %3924 = vst.msk [vmem:[#allocation4 + $0x3c] sm:$0xf] %vm1162, %v3844
      %3925 = vst.msk [vmem:[#allocation4 + $0x40] sm:$0xf] %vm1162, %v3846
      %3926 = vst.msk [vmem:[#allocation4 + $0x44] sm:$0xf] %vm1162, %v3848
      %3927 = vst.msk [vmem:[#allocation4 + $0x48] sm:$0xf] %vm1162, %v3850
      %3928 = vst.msk [vmem:[#allocation4 + $0x4c] sm:$0xf] %vm1162, %v3852
      %3929 = vst.msk [vmem:[#allocation4 + $0x50] sm:$0xf] %vm1162, %v3854
      %3930 = vst.msk [vmem:[#allocation4 + $0x54] sm:$0xf] %vm1162, %v3856
      %3931 = vst.msk [vmem:[#allocation4 + $0x58] sm:$0xf] %vm1162, %v3858
      %3932 = vst.msk [vmem:[#allocation4 + $0x5c] sm:$0xf] %vm1162, %v3860
      %3933 = vst.msk [vmem:[#allocation4 + $0x60] sm:$0xf] %vm1162, %v3862
      %3934 = vst.msk [vmem:[#allocation4 + $0x64] sm:$0xf] %vm1162, %v3864
      %3935 = vst.msk [vmem:[#allocation4 + $0x68] sm:$0xf] %vm1162, %v3866
      %3936 = vst.msk [vmem:[#allocation4 + $0x6c] sm:$0xf] %vm1162, %v3868
      %3937 = vst.msk [vmem:[#allocation4 + $0x70] sm:$0xf] %vm1162, %v3870
      %3938 = vst.msk [vmem:[#allocation4 + $0x74] sm:$0xf] %vm1162, %v3872
      %3939 = vst.msk [vmem:[#allocation4 + $0x78] sm:$0xf] %vm1162, %v3874
      %3940 = vst.msk [vmem:[#allocation4 + $0x7c] sm:$0xf] %vm1162, %v3876
      %v3941 = vld [vmem:[#allocation3 + $0x18] sm:$0xf]
      %v3942 = vld [vmem:[#allocation3 + $0x1c] sm:$0xf]
      %v3943 = vld [vmem:[#allocation3 + $0x20] sm:$0xf]
      %v3944 = vld [vmem:[#allocation3 + $0x24] sm:$0xf]
      %v3945 = vld [vmem:[#allocation3 + $0x28] sm:$0xf]
      %v3946 = vld [vmem:[#allocation3 + $0x2c] sm:$0xf]
      %v3947 = vld [vmem:[#allocation3 + $0x30] sm:$0xf]
      %v3948 = vld [vmem:[#allocation3 + $0x34] sm:$0xf]
      %v3949 = vld [vmem:[#allocation3 + $0x38] sm:$0xf]
      %v3950 = vld [vmem:[#allocation3 + $0x3c] sm:$0xf]
      %v3951 = vld [vmem:[#allocation3 + $0x40] sm:$0xf]
      %v3952 = vld [vmem:[#allocation3 + $0x44] sm:$0xf]
      %v3953 = vld [vmem:[#allocation3 + $0x48] sm:$0xf]
      %v3954 = vld [vmem:[#allocation3 + $0x4c] sm:$0xf]
      %v3955 = vld [vmem:[#allocation3 + $0x50] sm:$0xf]
      %v3956 = vld [vmem:[#allocation3 + $0x54] sm:$0xf]
      %v3957 = vld [vmem:[#allocation3 + $0x58] sm:$0xf]
      %v3958 = vld [vmem:[#allocation3 + $0x5c] sm:$0xf]
      %v3959 = vld [vmem:[#allocation3 + $0x60] sm:$0xf]
      %v3960 = vld [vmem:[#allocation3 + $0x64] sm:$0xf]
      %v3961 = vld [vmem:[#allocation3 + $0x68] sm:$0xf]
      %v3962 = vld [vmem:[#allocation3 + $0x6c] sm:$0xf]
      %v3963 = vld [vmem:[#allocation3 + $0x70] sm:$0xf]
      %v3964 = vld [vmem:[#allocation3 + $0x74] sm:$0xf]
      %v3965 = vld [vmem:[#allocation3 + $0x78] sm:$0xf]
      %v3966 = vld [vmem:[#allocation3 + $0x7c] sm:$0xf]
      %v3967 = vld [vmem:[#allocation3 + $0x80] sm:$0xf]
      %v3968 = vld [vmem:[#allocation3 + $0x84] sm:$0xf]
      %v3969 = vld [vmem:[#allocation3 + $0x88] sm:$0xf]
      %v3970 = vld [vmem:[#allocation3 + $0x8c] sm:$0xf]
      %v3971 = vld [vmem:[#allocation3 + $0x90] sm:$0xf]
      %v3972 = vld [vmem:[#allocation3 + $0x94] sm:$0xf]
      %4005 = vrot.lane.b32.xlu0 %v3941, 24
      %v4006 = vpop.permute.xlu0 %4005
      %4007 = vrot.lane.b32.xlu0 %v3942, 24
      %v4008 = vpop.permute.xlu0 %4007
      %4009 = vrot.lane.b32.xlu0 %v3943, 24
      %v4010 = vpop.permute.xlu0 %4009
      %4011 = vrot.lane.b32.xlu0 %v3944, 24
      %v4012 = vpop.permute.xlu0 %4011
      %4013 = vrot.lane.b32.xlu0 %v3945, 24
      %v4014 = vpop.permute.xlu0 %4013
      %4015 = vrot.lane.b32.xlu0 %v3946, 24
      %v4016 = vpop.permute.xlu0 %4015
      %4017 = vrot.lane.b32.xlu0 %v3947, 24
      %v4018 = vpop.permute.xlu0 %4017
      %4019 = vrot.lane.b32.xlu0 %v3948, 24
      %v4020 = vpop.permute.xlu0 %4019
      %4021 = vrot.lane.b32.xlu0 %v3949, 24
      %v4022 = vpop.permute.xlu0 %4021
      %4023 = vrot.lane.b32.xlu0 %v3950, 24
      %v4024 = vpop.permute.xlu0 %4023
      %4025 = vrot.lane.b32.xlu0 %v3951, 24
      %v4026 = vpop.permute.xlu0 %4025
      %4027 = vrot.lane.b32.xlu0 %v3952, 24
      %v4028 = vpop.permute.xlu0 %4027
      %4029 = vrot.lane.b32.xlu0 %v3953, 24
      %v4030 = vpop.permute.xlu0 %4029
      %4031 = vrot.lane.b32.xlu0 %v3954, 24
      %v4032 = vpop.permute.xlu0 %4031
      %4033 = vrot.lane.b32.xlu0 %v3955, 24
      %v4034 = vpop.permute.xlu0 %4033
      %4035 = vrot.lane.b32.xlu0 %v3956, 24
      %v4036 = vpop.permute.xlu0 %4035
      %4037 = vrot.lane.b32.xlu0 %v3957, 24
      %v4038 = vpop.permute.xlu0 %4037
      %4039 = vrot.lane.b32.xlu0 %v3958, 24
      %v4040 = vpop.permute.xlu0 %4039
      %4041 = vrot.lane.b32.xlu0 %v3959, 24
      %v4042 = vpop.permute.xlu0 %4041
      %4043 = vrot.lane.b32.xlu0 %v3960, 24
      %v4044 = vpop.permute.xlu0 %4043
      %4045 = vrot.lane.b32.xlu0 %v3961, 24
      %v4046 = vpop.permute.xlu0 %4045
      %4047 = vrot.lane.b32.xlu0 %v3962, 24
      %v4048 = vpop.permute.xlu0 %4047
      %4049 = vrot.lane.b32.xlu0 %v3963, 24
      %v4050 = vpop.permute.xlu0 %4049
      %4051 = vrot.lane.b32.xlu0 %v3964, 24
      %v4052 = vpop.permute.xlu0 %4051
      %4053 = vrot.lane.b32.xlu0 %v3965, 24
      %v4054 = vpop.permute.xlu0 %4053
      %4055 = vrot.lane.b32.xlu0 %v3966, 24
      %v4056 = vpop.permute.xlu0 %4055
      %4057 = vrot.lane.b32.xlu0 %v3967, 24
      %v4058 = vpop.permute.xlu0 %4057
      %4059 = vrot.lane.b32.xlu0 %v3968, 24
      %v4060 = vpop.permute.xlu0 %4059
      %4061 = vrot.lane.b32.xlu0 %v3969, 24
      %v4062 = vpop.permute.xlu0 %4061
      %4063 = vrot.lane.b32.xlu0 %v3970, 24
      %v4064 = vpop.permute.xlu0 %4063
      %4065 = vrot.lane.b32.xlu0 %v3971, 24
      %v4066 = vpop.permute.xlu0 %4065
      %4067 = vrot.lane.b32.xlu0 %v3972, 24
      %v4068 = vpop.permute.xlu0 %4067
      %4101 = vst.msk [vmem:[#allocation4] sm:$0xf] %vm1790, %v4006
      %4102 = vst.msk [vmem:[#allocation4 + $0x4] sm:$0xf] %vm1790, %v4008
      %4103 = vst.msk [vmem:[#allocation4 + $0x8] sm:$0xf] %vm1790, %v4010
      %4104 = vst.msk [vmem:[#allocation4 + $0xc] sm:$0xf] %vm1790, %v4012
      %4105 = vst.msk [vmem:[#allocation4 + $0x10] sm:$0xf] %vm1790, %v4014
      %4106 = vst.msk [vmem:[#allocation4 + $0x14] sm:$0xf] %vm1790, %v4016
      %4107 = vst.msk [vmem:[#allocation4 + $0x18] sm:$0xf] %vm1790, %v4018
      %4108 = vst.msk [vmem:[#allocation4 + $0x1c] sm:$0xf] %vm1790, %v4020
      %4109 = vst.msk [vmem:[#allocation4 + $0x20] sm:$0xf] %vm1790, %v4022
      %4110 = vst.msk [vmem:[#allocation4 + $0x24] sm:$0xf] %vm1790, %v4024
      %4111 = vst.msk [vmem:[#allocation4 + $0x28] sm:$0xf] %vm1790, %v4026
      %4112 = vst.msk [vmem:[#allocation4 + $0x2c] sm:$0xf] %vm1790, %v4028
      %4113 = vst.msk [vmem:[#allocation4 + $0x30] sm:$0xf] %vm1790, %v4030
      %4114 = vst.msk [vmem:[#allocation4 + $0x34] sm:$0xf] %vm1790, %v4032
      %4115 = vst.msk [vmem:[#allocation4 + $0x38] sm:$0xf] %vm1790, %v4034
      %4116 = vst.msk [vmem:[#allocation4 + $0x3c] sm:$0xf] %vm1790, %v4036
      %4117 = vst.msk [vmem:[#allocation4 + $0x40] sm:$0xf] %vm1790, %v4038
      %4118 = vst.msk [vmem:[#allocation4 + $0x44] sm:$0xf] %vm1790, %v4040
      %4119 = vst.msk [vmem:[#allocation4 + $0x48] sm:$0xf] %vm1790, %v4042
      %4120 = vst.msk [vmem:[#allocation4 + $0x4c] sm:$0xf] %vm1790, %v4044
      %4121 = vst.msk [vmem:[#allocation4 + $0x50] sm:$0xf] %vm1790, %v4046
      %4122 = vst.msk [vmem:[#allocation4 + $0x54] sm:$0xf] %vm1790, %v4048
      %4123 = vst.msk [vmem:[#allocation4 + $0x58] sm:$0xf] %vm1790, %v4050
      %4124 = vst.msk [vmem:[#allocation4 + $0x5c] sm:$0xf] %vm1790, %v4052
      %4125 = vst.msk [vmem:[#allocation4 + $0x60] sm:$0xf] %vm1790, %v4054
      %4126 = vst.msk [vmem:[#allocation4 + $0x64] sm:$0xf] %vm1790, %v4056
      %4127 = vst.msk [vmem:[#allocation4 + $0x68] sm:$0xf] %vm1790, %v4058
      %4128 = vst.msk [vmem:[#allocation4 + $0x6c] sm:$0xf] %vm1790, %v4060
      %4129 = vst.msk [vmem:[#allocation4 + $0x70] sm:$0xf] %vm1790, %v4062
      %4130 = vst.msk [vmem:[#allocation4 + $0x74] sm:$0xf] %vm1790, %v4064
      %4131 = vst.msk [vmem:[#allocation4 + $0x78] sm:$0xf] %vm1790, %v4066
      %4132 = vst.msk [vmem:[#allocation4 + $0x7c] sm:$0xf] %vm1790, %v4068
      %v4133 = vld [vmem:[#allocation3 + $0x20] sm:$0xf]
      %v4134 = vld [vmem:[#allocation3 + $0x24] sm:$0xf]
      %v4135 = vld [vmem:[#allocation3 + $0x28] sm:$0xf]
      %v4136 = vld [vmem:[#allocation3 + $0x2c] sm:$0xf]
      %v4137 = vld [vmem:[#allocation3 + $0x30] sm:$0xf]
      %v4138 = vld [vmem:[#allocation3 + $0x34] sm:$0xf]
      %v4139 = vld [vmem:[#allocation3 + $0x38] sm:$0xf]
      %v4140 = vld [vmem:[#allocation3 + $0x3c] sm:$0xf]
      %v4141 = vld [vmem:[#allocation3 + $0x40] sm:$0xf]
      %v4142 = vld [vmem:[#allocation3 + $0x44] sm:$0xf]
      %v4143 = vld [vmem:[#allocation3 + $0x48] sm:$0xf]
      %v4144 = vld [vmem:[#allocation3 + $0x4c] sm:$0xf]
      %v4145 = vld [vmem:[#allocation3 + $0x50] sm:$0xf]
      %v4146 = vld [vmem:[#allocation3 + $0x54] sm:$0xf]
      %v4147 = vld [vmem:[#allocation3 + $0x58] sm:$0xf]
      %v4148 = vld [vmem:[#allocation3 + $0x5c] sm:$0xf]
      %v4149 = vld [vmem:[#allocation3 + $0x60] sm:$0xf]
      %v4150 = vld [vmem:[#allocation3 + $0x64] sm:$0xf]
      %v4151 = vld [vmem:[#allocation3 + $0x68] sm:$0xf]
      %v4152 = vld [vmem:[#allocation3 + $0x6c] sm:$0xf]
      %v4153 = vld [vmem:[#allocation3 + $0x70] sm:$0xf]
      %v4154 = vld [vmem:[#allocation3 + $0x74] sm:$0xf]
      %v4155 = vld [vmem:[#allocation3 + $0x78] sm:$0xf]
      %v4156 = vld [vmem:[#allocation3 + $0x7c] sm:$0xf]
      %v4157 = vld [vmem:[#allocation3 + $0x80] sm:$0xf]
      %v4158 = vld [vmem:[#allocation3 + $0x84] sm:$0xf]
      %v4159 = vld [vmem:[#allocation3 + $0x88] sm:$0xf]
      %v4160 = vld [vmem:[#allocation3 + $0x8c] sm:$0xf]
      %v4161 = vld [vmem:[#allocation3 + $0x90] sm:$0xf]
      %v4162 = vld [vmem:[#allocation3 + $0x94] sm:$0xf]
      %v4163 = vld [vmem:[#allocation3 + $0x98] sm:$0xf]
      %v4164 = vld [vmem:[#allocation3 + $0x9c] sm:$0xf]
      %4197 = vrot.lane.b32.xlu0 %v4133, 32
      %v4198 = vpop.permute.xlu0 %4197
      %4199 = vrot.lane.b32.xlu0 %v4134, 32
      %v4200 = vpop.permute.xlu0 %4199
      %4201 = vrot.lane.b32.xlu0 %v4135, 32
      %v4202 = vpop.permute.xlu0 %4201
      %4203 = vrot.lane.b32.xlu0 %v4136, 32
      %v4204 = vpop.permute.xlu0 %4203
      %4205 = vrot.lane.b32.xlu0 %v4137, 32
      %v4206 = vpop.permute.xlu0 %4205
      %4207 = vrot.lane.b32.xlu0 %v4138, 32
      %v4208 = vpop.permute.xlu0 %4207
      %4209 = vrot.lane.b32.xlu0 %v4139, 32
      %v4210 = vpop.permute.xlu0 %4209
      %4211 = vrot.lane.b32.xlu0 %v4140, 32
      %v4212 = vpop.permute.xlu0 %4211
      %4213 = vrot.lane.b32.xlu0 %v4141, 32
      %v4214 = vpop.permute.xlu0 %4213
      %4215 = vrot.lane.b32.xlu0 %v4142, 32
      %v4216 = vpop.permute.xlu0 %4215
      %4217 = vrot.lane.b32.xlu0 %v4143, 32
      %v4218 = vpop.permute.xlu0 %4217
      %4219 = vrot.lane.b32.xlu0 %v4144, 32
      %v4220 = vpop.permute.xlu0 %4219
      %4221 = vrot.lane.b32.xlu0 %v4145, 32
      %v4222 = vpop.permute.xlu0 %4221
      %4223 = vrot.lane.b32.xlu0 %v4146, 32
      %v4224 = vpop.permute.xlu0 %4223
      %4225 = vrot.lane.b32.xlu0 %v4147, 32
      %v4226 = vpop.permute.xlu0 %4225
      %4227 = vrot.lane.b32.xlu0 %v4148, 32
      %v4228 = vpop.permute.xlu0 %4227
      %4229 = vrot.lane.b32.xlu0 %v4149, 32
      %v4230 = vpop.permute.xlu0 %4229
      %4231 = vrot.lane.b32.xlu0 %v4150, 32
      %v4232 = vpop.permute.xlu0 %4231
      %4233 = vrot.lane.b32.xlu0 %v4151, 32
      %v4234 = vpop.permute.xlu0 %4233
      %4235 = vrot.lane.b32.xlu0 %v4152, 32
      %v4236 = vpop.permute.xlu0 %4235
      %4237 = vrot.lane.b32.xlu0 %v4153, 32
      %v4238 = vpop.permute.xlu0 %4237
      %4239 = vrot.lane.b32.xlu0 %v4154, 32
      %v4240 = vpop.permute.xlu0 %4239
      %4241 = vrot.lane.b32.xlu0 %v4155, 32
      %v4242 = vpop.permute.xlu0 %4241
      %4243 = vrot.lane.b32.xlu0 %v4156, 32
      %v4244 = vpop.permute.xlu0 %4243
      %4245 = vrot.lane.b32.xlu0 %v4157, 32
      %v4246 = vpop.permute.xlu0 %4245
      %4247 = vrot.lane.b32.xlu0 %v4158, 32
      %v4248 = vpop.permute.xlu0 %4247
      %4249 = vrot.lane.b32.xlu0 %v4159, 32
      %v4250 = vpop.permute.xlu0 %4249
      %4251 = vrot.lane.b32.xlu0 %v4160, 32
      %v4252 = vpop.permute.xlu0 %4251
      %4253 = vrot.lane.b32.xlu0 %v4161, 32
      %v4254 = vpop.permute.xlu0 %4253
      %4255 = vrot.lane.b32.xlu0 %v4162, 32
      %v4256 = vpop.permute.xlu0 %4255
      %4257 = vrot.lane.b32.xlu0 %v4163, 32
      %v4258 = vpop.permute.xlu0 %4257
      %4259 = vrot.lane.b32.xlu0 %v4164, 32
      %v4260 = vpop.permute.xlu0 %4259
      %4293 = vst.msk [vmem:[#allocation4] sm:$0xf] %vm2130, %v4198
      %4294 = vst.msk [vmem:[#allocation4 + $0x4] sm:$0xf] %vm2130, %v4200
      %4295 = vst.msk [vmem:[#allocation4 + $0x8] sm:$0xf] %vm2130, %v4202
      %4296 = vst.msk [vmem:[#allocation4 + $0xc] sm:$0xf] %vm2130, %v4204
      %4297 = vst.msk [vmem:[#allocation4 + $0x10] sm:$0xf] %vm2130, %v4206
      %4298 = vst.msk [vmem:[#allocation4 + $0x14] sm:$0xf] %vm2130, %v4208
      %4299 = vst.msk [vmem:[#allocation4 + $0x18] sm:$0xf] %vm2130, %v4210
      %4300 = vst.msk [vmem:[#allocation4 + $0x1c] sm:$0xf] %vm2130, %v4212
      %4301 = vst.msk [vmem:[#allocation4 + $0x20] sm:$0xf] %vm2130, %v4214
      %4302 = vst.msk [vmem:[#allocation4 + $0x24] sm:$0xf] %vm2130, %v4216
      %4303 = vst.msk [vmem:[#allocation4 + $0x28] sm:$0xf] %vm2130, %v4218
      %4304 = vst.msk [vmem:[#allocation4 + $0x2c] sm:$0xf] %vm2130, %v4220
      %4305 = vst.msk [vmem:[#allocation4 + $0x30] sm:$0xf] %vm2130, %v4222
      %4306 = vst.msk [vmem:[#allocation4 + $0x34] sm:$0xf] %vm2130, %v4224
      %4307 = vst.msk [vmem:[#allocation4 + $0x38] sm:$0xf] %vm2130, %v4226
      %4308 = vst.msk [vmem:[#allocation4 + $0x3c] sm:$0xf] %vm2130, %v4228
      %4309 = vst.msk [vmem:[#allocation4 + $0x40] sm:$0xf] %vm2130, %v4230
      %4310 = vst.msk [vmem:[#allocation4 + $0x44] sm:$0xf] %vm2130, %v4232
      %4311 = vst.msk [vmem:[#allocation4 + $0x48] sm:$0xf] %vm2130, %v4234
      %4312 = vst.msk [vmem:[#allocation4 + $0x4c] sm:$0xf] %vm2130, %v4236
      %4313 = vst.msk [vmem:[#allocation4 + $0x50] sm:$0xf] %vm2130, %v4238
      %4314 = vst.msk [vmem:[#allocation4 + $0x54] sm:$0xf] %vm2130, %v4240
      %4315 = vst.msk [vmem:[#allocation4 + $0x58] sm:$0xf] %vm2130, %v4242
      %4316 = vst.msk [vmem:[#allocation4 + $0x5c] sm:$0xf] %vm2130, %v4244
      %4317 = vst.msk [vmem:[#allocation4 + $0x60] sm:$0xf] %vm2130, %v4246
      %4318 = vst.msk [vmem:[#allocation4 + $0x64] sm:$0xf] %vm2130, %v4248
      %4319 = vst.msk [vmem:[#allocation4 + $0x68] sm:$0xf] %vm2130, %v4250
      %4320 = vst.msk [vmem:[#allocation4 + $0x6c] sm:$0xf] %vm2130, %v4252
      %4321 = vst.msk [vmem:[#allocation4 + $0x70] sm:$0xf] %vm2130, %v4254
      %4322 = vst.msk [vmem:[#allocation4 + $0x74] sm:$0xf] %vm2130, %v4256
      %4323 = vst.msk [vmem:[#allocation4 + $0x78] sm:$0xf] %vm2130, %v4258
      %4324 = vst.msk [vmem:[#allocation4 + $0x7c] sm:$0xf] %vm2130, %v4260
      %v4325 = vld [vmem:[#allocation3 + $0x28] sm:$0xf]
      %v4326 = vld [vmem:[#allocation3 + $0x2c] sm:$0xf]
      %v4327 = vld [vmem:[#allocation3 + $0x30] sm:$0xf]
      %v4328 = vld [vmem:[#allocation3 + $0x34] sm:$0xf]
      %v4329 = vld [vmem:[#allocation3 + $0x38] sm:$0xf]
      %v4330 = vld [vmem:[#allocation3 + $0x3c] sm:$0xf]
      %v4331 = vld [vmem:[#allocation3 + $0x40] sm:$0xf]
      %v4332 = vld [vmem:[#allocation3 + $0x44] sm:$0xf]
      %v4333 = vld [vmem:[#allocation3 + $0x48] sm:$0xf]
      %v4334 = vld [vmem:[#allocation3 + $0x4c] sm:$0xf]
      %v4335 = vld [vmem:[#allocation3 + $0x50] sm:$0xf]
      %v4336 = vld [vmem:[#allocation3 + $0x54] sm:$0xf]
      %v4337 = vld [vmem:[#allocation3 + $0x58] sm:$0xf]
      %v4338 = vld [vmem:[#allocation3 + $0x5c] sm:$0xf]
      %v4339 = vld [vmem:[#allocation3 + $0x60] sm:$0xf]
      %v4340 = vld [vmem:[#allocation3 + $0x64] sm:$0xf]
      %v4341 = vld [vmem:[#allocation3 + $0x68] sm:$0xf]
      %v4342 = vld [vmem:[#allocation3 + $0x6c] sm:$0xf]
      %v4343 = vld [vmem:[#allocation3 + $0x70] sm:$0xf]
      %v4344 = vld [vmem:[#allocation3 + $0x74] sm:$0xf]
      %v4345 = vld [vmem:[#allocation3 + $0x78] sm:$0xf]
      %v4346 = vld [vmem:[#allocation3 + $0x7c] sm:$0xf]
      %v4347 = vld [vmem:[#allocation3 + $0x80] sm:$0xf]
      %v4348 = vld [vmem:[#allocation3 + $0x84] sm:$0xf]
      %v4349 = vld [vmem:[#allocation3 + $0x88] sm:$0xf]
      %v4350 = vld [vmem:[#allocation3 + $0x8c] sm:$0xf]
      %v4351 = vld [vmem:[#allocation3 + $0x90] sm:$0xf]
      %v4352 = vld [vmem:[#allocation3 + $0x94] sm:$0xf]
      %v4353 = vld [vmem:[#allocation3 + $0x98] sm:$0xf]
      %v4354 = vld [vmem:[#allocation3 + $0x9c] sm:$0xf]
      %v4355 = vld [vmem:[#allocation3 + $0xa0] sm:$0xf]
      %v4356 = vld [vmem:[#allocation3 + $0xa4] sm:$0xf]
      %4389 = vrot.lane.b32.xlu0 %v4325, 40
      %v4390 = vpop.permute.xlu0 %4389
      %4391 = vrot.lane.b32.xlu0 %v4326, 40
      %v4392 = vpop.permute.xlu0 %4391
      %4393 = vrot.lane.b32.xlu0 %v4327, 40
      %v4394 = vpop.permute.xlu0 %4393
      %4395 = vrot.lane.b32.xlu0 %v4328, 40
      %v4396 = vpop.permute.xlu0 %4395
      %4397 = vrot.lane.b32.xlu0 %v4329, 40
      %v4398 = vpop.permute.xlu0 %4397
      %4399 = vrot.lane.b32.xlu0 %v4330, 40
      %v4400 = vpop.permute.xlu0 %4399
      %4401 = vrot.lane.b32.xlu0 %v4331, 40
      %v4402 = vpop.permute.xlu0 %4401
      %4403 = vrot.lane.b32.xlu0 %v4332, 40
      %v4404 = vpop.permute.xlu0 %4403
      %4405 = vrot.lane.b32.xlu0 %v4333, 40
      %v4406 = vpop.permute.xlu0 %4405
      %4407 = vrot.lane.b32.xlu0 %v4334, 40
      %v4408 = vpop.permute.xlu0 %4407
      %4409 = vrot.lane.b32.xlu0 %v4335, 40
      %v4410 = vpop.permute.xlu0 %4409
      %4411 = vrot.lane.b32.xlu0 %v4336, 40
      %v4412 = vpop.permute.xlu0 %4411
      %4413 = vrot.lane.b32.xlu0 %v4337, 40
      %v4414 = vpop.permute.xlu0 %4413
      %4415 = vrot.lane.b32.xlu0 %v4338, 40
      %v4416 = vpop.permute.xlu0 %4415
      %4417 = vrot.lane.b32.xlu0 %v4339, 40
      %v4418 = vpop.permute.xlu0 %4417
      %4419 = vrot.lane.b32.xlu0 %v4340, 40
      %v4420 = vpop.permute.xlu0 %4419
      %4421 = vrot.lane.b32.xlu0 %v4341, 40
      %v4422 = vpop.permute.xlu0 %4421
      %4423 = vrot.lane.b32.xlu0 %v4342, 40
      %v4424 = vpop.permute.xlu0 %4423
      %4425 = vrot.lane.b32.xlu0 %v4343, 40
      %v4426 = vpop.permute.xlu0 %4425
      %4427 = vrot.lane.b32.xlu0 %v4344, 40
      %v4428 = vpop.permute.xlu0 %4427
      %4429 = vrot.lane.b32.xlu0 %v4345, 40
      %v4430 = vpop.permute.xlu0 %4429
      %4431 = vrot.lane.b32.xlu0 %v4346, 40
      %v4432 = vpop.permute.xlu0 %4431
      %4433 = vrot.lane.b32.xlu0 %v4347, 40
      %v4434 = vpop.permute.xlu0 %4433
      %4435 = vrot.lane.b32.xlu0 %v4348, 40
      %v4436 = vpop.permute.xlu0 %4435
      %4437 = vrot.lane.b32.xlu0 %v4349, 40
      %v4438 = vpop.permute.xlu0 %4437
      %4439 = vrot.lane.b32.xlu0 %v4350, 40
      %v4440 = vpop.permute.xlu0 %4439
      %4441 = vrot.lane.b32.xlu0 %v4351, 40
      %v4442 = vpop.permute.xlu0 %4441
      %4443 = vrot.lane.b32.xlu0 %v4352, 40
      %v4444 = vpop.permute.xlu0 %4443
      %4445 = vrot.lane.b32.xlu0 %v4353, 40
      %v4446 = vpop.permute.xlu0 %4445
      %4447 = vrot.lane.b32.xlu0 %v4354, 40
      %v4448 = vpop.permute.xlu0 %4447
      %4449 = vrot.lane.b32.xlu0 %v4355, 40
      %v4450 = vpop.permute.xlu0 %4449
      %4451 = vrot.lane.b32.xlu0 %v4356, 40
      %v4452 = vpop.permute.xlu0 %4451
      %4485 = vst.msk [vmem:[#allocation4] sm:$0xf] %vm2758, %v4390
      %4486 = vst.msk [vmem:[#allocation4 + $0x4] sm:$0xf] %vm2758, %v4392
      %4487 = vst.msk [vmem:[#allocation4 + $0x8] sm:$0xf] %vm2758, %v4394
      %4488 = vst.msk [vmem:[#allocation4 + $0xc] sm:$0xf] %vm2758, %v4396
      %4489 = vst.msk [vmem:[#allocation4 + $0x10] sm:$0xf] %vm2758, %v4398
      %4490 = vst.msk [vmem:[#allocation4 + $0x14] sm:$0xf] %vm2758, %v4400
      %4491 = vst.msk [vmem:[#allocation4 + $0x18] sm:$0xf] %vm2758, %v4402
      %4492 = vst.msk [vmem:[#allocation4 + $0x1c] sm:$0xf] %vm2758, %v4404
      %4493 = vst.msk [vmem:[#allocation4 + $0x20] sm:$0xf] %vm2758, %v4406
      %4494 = vst.msk [vmem:[#allocation4 + $0x24] sm:$0xf] %vm2758, %v4408
      %4495 = vst.msk [vmem:[#allocation4 + $0x28] sm:$0xf] %vm2758, %v4410
      %4496 = vst.msk [vmem:[#allocation4 + $0x2c] sm:$0xf] %vm2758, %v4412
      %4497 = vst.msk [vmem:[#allocation4 + $0x30] sm:$0xf] %vm2758, %v4414
      %4498 = vst.msk [vmem:[#allocation4 + $0x34] sm:$0xf] %vm2758, %v4416
      %4499 = vst.msk [vmem:[#allocation4 + $0x38] sm:$0xf] %vm2758, %v4418
      %4500 = vst.msk [vmem:[#allocation4 + $0x3c] sm:$0xf] %vm2758, %v4420
      %4501 = vst.msk [vmem:[#allocation4 + $0x40] sm:$0xf] %vm2758, %v4422
      %4502 = vst.msk [vmem:[#allocation4 + $0x44] sm:$0xf] %vm2758, %v4424
      %4503 = vst.msk [vmem:[#allocation4 + $0x48] sm:$0xf] %vm2758, %v4426
      %4504 = vst.msk [vmem:[#allocation4 + $0x4c] sm:$0xf] %vm2758, %v4428
      %4505 = vst.msk [vmem:[#allocation4 + $0x50] sm:$0xf] %vm2758, %v4430
      %4506 = vst.msk [vmem:[#allocation4 + $0x54] sm:$0xf] %vm2758, %v4432
      %4507 = vst.msk [vmem:[#allocation4 + $0x58] sm:$0xf] %vm2758, %v4434
      %4508 = vst.msk [vmem:[#allocation4 + $0x5c] sm:$0xf] %vm2758, %v4436
      %4509 = vst.msk [vmem:[#allocation4 + $0x60] sm:$0xf] %vm2758, %v4438
      %4510 = vst.msk [vmem:[#allocation4 + $0x64] sm:$0xf] %vm2758, %v4440
      %4511 = vst.msk [vmem:[#allocation4 + $0x68] sm:$0xf] %vm2758, %v4442
      %4512 = vst.msk [vmem:[#allocation4 + $0x6c] sm:$0xf] %vm2758, %v4444
      %4513 = vst.msk [vmem:[#allocation4 + $0x70] sm:$0xf] %vm2758, %v4446
      %4514 = vst.msk [vmem:[#allocation4 + $0x74] sm:$0xf] %vm2758, %v4448
      %4515 = vst.msk [vmem:[#allocation4 + $0x78] sm:$0xf] %vm2758, %v4450
      %4516 = vst.msk [vmem:[#allocation4 + $0x7c] sm:$0xf] %vm2758, %v4452
      %v4517 = vld [vmem:[#allocation3 + $0x30] sm:$0xf]
      %v4518 = vld [vmem:[#allocation3 + $0x34] sm:$0xf]
      %v4519 = vld [vmem:[#allocation3 + $0x38] sm:$0xf]
      %v4520 = vld [vmem:[#allocation3 + $0x3c] sm:$0xf]
      %v4521 = vld [vmem:[#allocation3 + $0x40] sm:$0xf]
      %v4522 = vld [vmem:[#allocation3 + $0x44] sm:$0xf]
      %v4523 = vld [vmem:[#allocation3 + $0x48] sm:$0xf]
      %v4524 = vld [vmem:[#allocation3 + $0x4c] sm:$0xf]
      %v4525 = vld [vmem:[#allocation3 + $0x50] sm:$0xf]
      %v4526 = vld [vmem:[#allocation3 + $0x54] sm:$0xf]
      %v4527 = vld [vmem:[#allocation3 + $0x58] sm:$0xf]
      %v4528 = vld [vmem:[#allocation3 + $0x5c] sm:$0xf]
      %v4529 = vld [vmem:[#allocation3 + $0x60] sm:$0xf]
      %v4530 = vld [vmem:[#allocation3 + $0x64] sm:$0xf]
      %v4531 = vld [vmem:[#allocation3 + $0x68] sm:$0xf]
      %v4532 = vld [vmem:[#allocation3 + $0x6c] sm:$0xf]
      %v4533 = vld [vmem:[#allocation3 + $0x70] sm:$0xf]
      %v4534 = vld [vmem:[#allocation3 + $0x74] sm:$0xf]
      %v4535 = vld [vmem:[#allocation3 + $0x78] sm:$0xf]
      %v4536 = vld [vmem:[#allocation3 + $0x7c] sm:$0xf]
      %v4537 = vld [vmem:[#allocation3 + $0x80] sm:$0xf]
      %v4538 = vld [vmem:[#allocation3 + $0x84] sm:$0xf]
      %v4539 = vld [vmem:[#allocation3 + $0x88] sm:$0xf]
      %v4540 = vld [vmem:[#allocation3 + $0x8c] sm:$0xf]
      %v4541 = vld [vmem:[#allocation3 + $0x90] sm:$0xf]
      %v4542 = vld [vmem:[#allocation3 + $0x94] sm:$0xf]
      %v4543 = vld [vmem:[#allocation3 + $0x98] sm:$0xf]
      %v4544 = vld [vmem:[#allocation3 + $0x9c] sm:$0xf]
      %v4545 = vld [vmem:[#allocation3 + $0xa0] sm:$0xf]
      %v4546 = vld [vmem:[#allocation3 + $0xa4] sm:$0xf]
      %v4547 = vld [vmem:[#allocation3 + $0xa8] sm:$0xf]
      %v4548 = vld [vmem:[#allocation3 + $0xac] sm:$0xf]
      %4581 = vrot.lane.b32.xlu0 %v4517, 48
      %v4582 = vpop.permute.xlu0 %4581
      %4583 = vrot.lane.b32.xlu0 %v4518, 48
      %v4584 = vpop.permute.xlu0 %4583
      %4585 = vrot.lane.b32.xlu0 %v4519, 48
      %v4586 = vpop.permute.xlu0 %4585
      %4587 = vrot.lane.b32.xlu0 %v4520, 48
      %v4588 = vpop.permute.xlu0 %4587
      %4589 = vrot.lane.b32.xlu0 %v4521, 48
      %v4590 = vpop.permute.xlu0 %4589
      %4591 = vrot.lane.b32.xlu0 %v4522, 48
      %v4592 = vpop.permute.xlu0 %4591
      %4593 = vrot.lane.b32.xlu0 %v4523, 48
      %v4594 = vpop.permute.xlu0 %4593
      %4595 = vrot.lane.b32.xlu0 %v4524, 48
      %v4596 = vpop.permute.xlu0 %4595
      %4597 = vrot.lane.b32.xlu0 %v4525, 48
      %v4598 = vpop.permute.xlu0 %4597
      %4599 = vrot.lane.b32.xlu0 %v4526, 48
      %v4600 = vpop.permute.xlu0 %4599
      %4601 = vrot.lane.b32.xlu0 %v4527, 48
      %v4602 = vpop.permute.xlu0 %4601
      %4603 = vrot.lane.b32.xlu0 %v4528, 48
      %v4604 = vpop.permute.xlu0 %4603
      %4605 = vrot.lane.b32.xlu0 %v4529, 48
      %v4606 = vpop.permute.xlu0 %4605
      %4607 = vrot.lane.b32.xlu0 %v4530, 48
      %v4608 = vpop.permute.xlu0 %4607
      %4609 = vrot.lane.b32.xlu0 %v4531, 48
      %v4610 = vpop.permute.xlu0 %4609
      %4611 = vrot.lane.b32.xlu0 %v4532, 48
      %v4612 = vpop.permute.xlu0 %4611
      %4613 = vrot.lane.b32.xlu0 %v4533, 48
      %v4614 = vpop.permute.xlu0 %4613
      %4615 = vrot.lane.b32.xlu0 %v4534, 48
      %v4616 = vpop.permute.xlu0 %4615
      %4617 = vrot.lane.b32.xlu0 %v4535, 48
      %v4618 = vpop.permute.xlu0 %4617
      %4619 = vrot.lane.b32.xlu0 %v4536, 48
      %v4620 = vpop.permute.xlu0 %4619
      %4621 = vrot.lane.b32.xlu0 %v4537, 48
      %v4622 = vpop.permute.xlu0 %4621
      %4623 = vrot.lane.b32.xlu0 %v4538, 48
      %v4624 = vpop.permute.xlu0 %4623
      %4625 = vrot.lane.b32.xlu0 %v4539, 48
      %v4626 = vpop.permute.xlu0 %4625
      %4627 = vrot.lane.b32.xlu0 %v4540, 48
      %v4628 = vpop.permute.xlu0 %4627
      %4629 = vrot.lane.b32.xlu0 %v4541, 48
      %v4630 = vpop.permute.xlu0 %4629
      %4631 = vrot.lane.b32.xlu0 %v4542, 48
      %v4632 = vpop.permute.xlu0 %4631
      %4633 = vrot.lane.b32.xlu0 %v4543, 48
      %v4634 = vpop.permute.xlu0 %4633
      %4635 = vrot.lane.b32.xlu0 %v4544, 48
      %v4636 = vpop.permute.xlu0 %4635
      %4637 = vrot.lane.b32.xlu0 %v4545, 48
      %v4638 = vpop.permute.xlu0 %4637
      %4639 = vrot.lane.b32.xlu0 %v4546, 48
      %v4640 = vpop.permute.xlu0 %4639
      %4641 = vrot.lane.b32.xlu0 %v4547, 48
      %v4642 = vpop.permute.xlu0 %4641
      %4643 = vrot.lane.b32.xlu0 %v4548, 48
      %v4644 = vpop.permute.xlu0 %4643
      %4677 = vst.msk [vmem:[#allocation4] sm:$0xf] %vm3098, %v4582
      %4678 = vst.msk [vmem:[#allocation4 + $0x4] sm:$0xf] %vm3098, %v4584
      %4679 = vst.msk [vmem:[#allocation4 + $0x8] sm:$0xf] %vm3098, %v4586
      %4680 = vst.msk [vmem:[#allocation4 + $0xc] sm:$0xf] %vm3098, %v4588
      %4681 = vst.msk [vmem:[#allocation4 + $0x10] sm:$0xf] %vm3098, %v4590
      %4682 = vst.msk [vmem:[#allocation4 + $0x14] sm:$0xf] %vm3098, %v4592
      %4683 = vst.msk [vmem:[#allocation4 + $0x18] sm:$0xf] %vm3098, %v4594
      %4684 = vst.msk [vmem:[#allocation4 + $0x1c] sm:$0xf] %vm3098, %v4596
      %4685 = vst.msk [vmem:[#allocation4 + $0x20] sm:$0xf] %vm3098, %v4598
      %4686 = vst.msk [vmem:[#allocation4 + $0x24] sm:$0xf] %vm3098, %v4600
      %4687 = vst.msk [vmem:[#allocation4 + $0x28] sm:$0xf] %vm3098, %v4602
      %4688 = vst.msk [vmem:[#allocation4 + $0x2c] sm:$0xf] %vm3098, %v4604
      %4689 = vst.msk [vmem:[#allocation4 + $0x30] sm:$0xf] %vm3098, %v4606
      %4690 = vst.msk [vmem:[#allocation4 + $0x34] sm:$0xf] %vm3098, %v4608
      %4691 = vst.msk [vmem:[#allocation4 + $0x38] sm:$0xf] %vm3098, %v4610
      %4692 = vst.msk [vmem:[#allocation4 + $0x3c] sm:$0xf] %vm3098, %v4612
      %4693 = vst.msk [vmem:[#allocation4 + $0x40] sm:$0xf] %vm3098, %v4614
      %4694 = vst.msk [vmem:[#allocation4 + $0x44] sm:$0xf] %vm3098, %v4616
      %4695 = vst.msk [vmem:[#allocation4 + $0x48] sm:$0xf] %vm3098, %v4618
      %4696 = vst.msk [vmem:[#allocation4 + $0x4c] sm:$0xf] %vm3098, %v4620
      %4697 = vst.msk [vmem:[#allocation4 + $0x50] sm:$0xf] %vm3098, %v4622
      %4698 = vst.msk [vmem:[#allocation4 + $0x54] sm:$0xf] %vm3098, %v4624
      %4699 = vst.msk [vmem:[#allocation4 + $0x58] sm:$0xf] %vm3098, %v4626
      %4700 = vst.msk [vmem:[#allocation4 + $0x5c] sm:$0xf] %vm3098, %v4628
      %4701 = vst.msk [vmem:[#allocation4 + $0x60] sm:$0xf] %vm3098, %v4630
      %4702 = vst.msk [vmem:[#allocation4 + $0x64] sm:$0xf] %vm3098, %v4632
      %4703 = vst.msk [vmem:[#allocation4 + $0x68] sm:$0xf] %vm3098, %v4634
      %4704 = vst.msk [vmem:[#allocation4 + $0x6c] sm:$0xf] %vm3098, %v4636
      %4705 = vst.msk [vmem:[#allocation4 + $0x70] sm:$0xf] %vm3098, %v4638
      %4706 = vst.msk [vmem:[#allocation4 + $0x74] sm:$0xf] %vm3098, %v4640
      %4707 = vst.msk [vmem:[#allocation4 + $0x78] sm:$0xf] %vm3098, %v4642
      %4708 = vst.msk [vmem:[#allocation4 + $0x7c] sm:$0xf] %vm3098, %v4644
      %v4709 = vld [vmem:[#allocation4] sm:$0xf]
      %v4710 = vld [vmem:[#allocation4 + $0x4] sm:$0xf]
      %v4711 = vld [vmem:[#allocation4 + $0x8] sm:$0xf]
      %v4712 = vld [vmem:[#allocation4 + $0xc] sm:$0xf]
      %v4713 = vld [vmem:[#allocation4 + $0x10] sm:$0xf]
      %v4714 = vld [vmem:[#allocation4 + $0x14] sm:$0xf]
      %v4715 = vld [vmem:[#allocation4 + $0x18] sm:$0xf]
      %v4716 = vld [vmem:[#allocation4 + $0x1c] sm:$0xf]
      %v4717 = vld [vmem:[#allocation4 + $0x20] sm:$0xf]
      %v4718 = vld [vmem:[#allocation4 + $0x24] sm:$0xf]
      %v4719 = vld [vmem:[#allocation4 + $0x28] sm:$0xf]
      %v4720 = vld [vmem:[#allocation4 + $0x2c] sm:$0xf]
      %v4721 = vld [vmem:[#allocation4 + $0x30] sm:$0xf]
      %v4722 = vld [vmem:[#allocation4 + $0x34] sm:$0xf]
      %v4723 = vld [vmem:[#allocation4 + $0x38] sm:$0xf]
      %v4724 = vld [vmem:[#allocation4 + $0x3c] sm:$0xf]
      %v4725 = vld [vmem:[#allocation4 + $0x40] sm:$0xf]
      %v4726 = vld [vmem:[#allocation4 + $0x44] sm:$0xf]
      %v4727 = vld [vmem:[#allocation4 + $0x48] sm:$0xf]
      %v4728 = vld [vmem:[#allocation4 + $0x4c] sm:$0xf]
      %v4729 = vld [vmem:[#allocation4 + $0x50] sm:$0xf]
      %v4730 = vld [vmem:[#allocation4 + $0x54] sm:$0xf]
      %v4731 = vld [vmem:[#allocation4 + $0x58] sm:$0xf]
      %v4732 = vld [vmem:[#allocation4 + $0x5c] sm:$0xf]
      %v4733 = vld [vmem:[#allocation4 + $0x60] sm:$0xf]
      %v4734 = vld [vmem:[#allocation4 + $0x64] sm:$0xf]
      %v4735 = vld [vmem:[#allocation4 + $0x68] sm:$0xf]
      %v4736 = vld [vmem:[#allocation4 + $0x6c] sm:$0xf]
      %v4737 = vld [vmem:[#allocation4 + $0x70] sm:$0xf]
      %v4738 = vld [vmem:[#allocation4 + $0x74] sm:$0xf]
      %v4739 = vld [vmem:[#allocation4 + $0x78] sm:$0xf]
      %v4740 = vld [vmem:[#allocation4 + $0x7c] sm:$0xf]
      %v4741 = vld [vmem:[%s3] sm:$0xf]
      %v4742 = vld [vmem:[%s3 + $0x4] sm:$0xf]
      %v4743 = vld [vmem:[%s3 + $0x8] sm:$0xf]
      %v4744 = vld [vmem:[%s3 + $0xc] sm:$0xf]
      %v4745 = vld [vmem:[%s3 + $0x10] sm:$0xf]
      %v4746 = vld [vmem:[%s3 + $0x14] sm:$0xf]
      %v4747 = vld [vmem:[%s3 + $0x18] sm:$0xf]
      %v4748 = vld [vmem:[%s4] sm:$0x1]
      %v4750 = vperm.slane %v4748, 0
      %v4784 = vunpack.c.l.b16 %v4709
      %v4785 = vunpack.c.l.b16 %v4710
      %v4786 = vunpack.c.l.b16 %v4711
      %v4787 = vunpack.c.l.b16 %v4712
      %v4788 = vunpack.c.l.b16 %v4713
      %v4789 = vunpack.c.l.b16 %v4714
      %v4790 = vunpack.c.l.b16 %v4715
      %v4791 = vunpack.c.l.b16 %v4716
      %v4792 = vunpack.c.l.b16 %v4717
      %v4793 = vunpack.c.l.b16 %v4718
      %v4794 = vunpack.c.l.b16 %v4719
      %v4795 = vunpack.c.l.b16 %v4720
      %v4796 = vunpack.c.l.b16 %v4721
      %v4797 = vunpack.c.l.b16 %v4722
      %v4798 = vunpack.c.l.b16 %v4723
      %v4799 = vunpack.c.l.b16 %v4724
      %v4800 = vunpack.c.l.b16 %v4725
      %v4801 = vunpack.c.l.b16 %v4726
      %v4802 = vunpack.c.l.b16 %v4727
      %v4803 = vunpack.c.l.b16 %v4728
      %v4804 = vunpack.c.l.b16 %v4729
      %v4805 = vunpack.c.l.b16 %v4730
      %v4806 = vunpack.c.l.b16 %v4731
      %v4807 = vunpack.c.l.b16 %v4732
      %v4808 = vunpack.c.l.b16 %v4733
      %v4809 = vunpack.c.l.b16 %v4734
      %v4810 = vunpack.c.l.b16 %v4735
      %v4811 = vunpack.c.l.b16 %v4736
      %v4812 = vunpack.c.l.b16 %v4737
      %v4813 = vunpack.c.l.b16 %v4738
      %v4814 = vunpack.c.l.b16 %v4739
      %v4815 = vunpack.c.l.b16 %v4740
      %v4816 = vpack.c.b16 %v4785, %v4784
      %v4817 = vpack.c.b16 %v4787, %v4786
      %v4818 = vpack.c.b16 %v4789, %v4788
      %v4819 = vpack.c.b16 %v4791, %v4790
      %v4820 = vpack.c.b16 %v4793, %v4792
      %v4821 = vpack.c.b16 %v4795, %v4794
      %v4822 = vpack.c.b16 %v4797, %v4796
      %v4823 = vpack.c.b16 %v4799, %v4798
      %v4824 = vpack.c.b16 %v4801, %v4800
      %v4825 = vpack.c.b16 %v4803, %v4802
      %v4826 = vpack.c.b16 %v4805, %v4804
      %v4827 = vpack.c.b16 %v4807, %v4806
      %v4828 = vpack.c.b16 %v4809, %v4808
      %v4829 = vpack.c.b16 %v4811, %v4810
      %v4830 = vpack.c.b16 %v4813, %v4812
      %v4831 = vpack.c.b16 %v4815, %v4814
      %v4839 = vunpack.c.l.b16 %v4741
      %v4840 = vunpack.c.l.b16 %v4742
      %v4841 = vunpack.c.l.b16 %v4743
      %v4842 = vunpack.c.l.b16 %v4744
      %v4843 = vunpack.c.l.b16 %v4745
      %v4844 = vunpack.c.l.b16 %v4746
      %v4845 = vunpack.c.l.b16 %v4747
      %v4846 = vpack.c.b16 %v4840, %v4839
      %v4847 = vpack.c.b16 %v4842, %v4841
      %v4848 = vpack.c.b16 %v4844, %v4843
      %v4849 = vpack.c.b16 %v4845, %v4845
      %v4854 = vsel %vm3275, %v4816, 0
      %v4857 = vsel %vm3275, %v4817, 0
      %v4860 = vsel %vm3275, %v4818, 0
      %v4863 = vsel %vm3275, %v4819, 0
      %v4866 = vsel %vm3275, %v4820, 0
      %v4869 = vsel %vm3275, %v4821, 0
      %v4872 = vsel %vm3275, %v4822, 0
      %v4875 = vsel %vm3275, %v4823, 0
      %v4878 = vsel %vm3275, %v4824, 0
      %v4881 = vsel %vm3275, %v4825, 0
      %v4884 = vsel %vm3275, %v4826, 0
      %v4887 = vsel %vm3275, %v4827, 0
      %v4890 = vsel %vm3275, %v4828, 0
      %v4893 = vsel %vm3275, %v4829, 0
      %v4896 = vsel %vm3275, %v4830, 0
      %v4899 = vsel %vm3275, %v4831, 0
      %v4902 = vsel %vm3324, %v4849, 0
      %4904 = vmatpush.bf16.msra.mxu0 0
      %4905 = vmatpush.bf16.msra.mxu0 0
      %4906 = vmatpush.bf16.msra.mxu0 0
      %4907 = vmatpush.bf16.msra.mxu0 0
      %4908 = vmatpush.bf16.msra.mxu0 %v4902
      %4909 = vmatpush.bf16.msra.mxu0 %v4848
      %4910 = vmatpush.bf16.msra.mxu0 %v4847
      %4911 = vmatpush.bf16.msra.mxu0 %v4846
      %4912 = vmatmul.bf16.gmra.mxu0 %v4854
      %v4913 = vpop.f32.mrf.mxu0
      %v4914 = vadd.f32 %v4750, %v4913
      %v4915 = vpop.f32.mrf.mxu0
      %v4916 = vadd.f32 %v4750, %v4915
      %4917 = vmatmul.bf16.gmra.mxu0 %v4857
      %v4918 = vpop.f32.mrf.mxu0
      %v4919 = vadd.f32 %v4750, %v4918
      %v4920 = vpop.f32.mrf.mxu0
      %v4921 = vadd.f32 %v4750, %v4920
      %4922 = vmatmul.bf16.gmra.mxu0 %v4860
      %v4923 = vpop.f32.mrf.mxu0
      %v4924 = vadd.f32 %v4750, %v4923
      %v4925 = vpop.f32.mrf.mxu0
      %v4926 = vadd.f32 %v4750, %v4925
      %4927 = vmatmul.bf16.gmra.mxu0 %v4863
      %v4928 = vpop.f32.mrf.mxu0
      %v4929 = vadd.f32 %v4750, %v4928
      %v4930 = vpop.f32.mrf.mxu0
      %v4931 = vadd.f32 %v4750, %v4930
      %4932 = vmatmul.bf16.gmra.mxu0 %v4866
      %v4933 = vpop.f32.mrf.mxu0
      %v4934 = vadd.f32 %v4750, %v4933
      %v4935 = vpop.f32.mrf.mxu0
      %v4936 = vadd.f32 %v4750, %v4935
      %4937 = vmatmul.bf16.gmra.mxu0 %v4869
      %v4938 = vpop.f32.mrf.mxu0
      %v4939 = vadd.f32 %v4750, %v4938
      %v4940 = vpop.f32.mrf.mxu0
      %v4941 = vadd.f32 %v4750, %v4940
      %4942 = vmatmul.bf16.gmra.mxu0 %v4872
      %v4943 = vpop.f32.mrf.mxu0
      %v4944 = vadd.f32 %v4750, %v4943
      %v4945 = vpop.f32.mrf.mxu0
      %v4946 = vadd.f32 %v4750, %v4945
      %4947 = vmatmul.bf16.gmra.mxu0 %v4875
      %v4948 = vpop.f32.mrf.mxu0
      %v4949 = vadd.f32 %v4750, %v4948
      %v4950 = vpop.f32.mrf.mxu0
      %v4951 = vadd.f32 %v4750, %v4950
      %4952 = vmatmul.bf16.gmra.mxu0 %v4878
      %v4953 = vpop.f32.mrf.mxu0
      %v4954 = vadd.f32 %v4750, %v4953
      %v4955 = vpop.f32.mrf.mxu0
      %v4956 = vadd.f32 %v4750, %v4955
      %4957 = vmatmul.bf16.gmra.mxu0 %v4881
      %v4958 = vpop.f32.mrf.mxu0
      %v4959 = vadd.f32 %v4750, %v4958
      %v4960 = vpop.f32.mrf.mxu0
      %v4961 = vadd.f32 %v4750, %v4960
      %4962 = vmatmul.bf16.gmra.mxu0 %v4884
      %v4963 = vpop.f32.mrf.mxu0
      %v4964 = vadd.f32 %v4750, %v4963
      %v4965 = vpop.f32.mrf.mxu0
      %v4966 = vadd.f32 %v4750, %v4965
      %4967 = vmatmul.bf16.gmra.mxu0 %v4887
      %v4968 = vpop.f32.mrf.mxu0
      %v4969 = vadd.f32 %v4750, %v4968
      %v4970 = vpop.f32.mrf.mxu0
      %v4971 = vadd.f32 %v4750, %v4970
      %4972 = vmatmul.bf16.gmra.mxu0 %v4890
      %v4973 = vpop.f32.mrf.mxu0
      %v4974 = vadd.f32 %v4750, %v4973
      %v4975 = vpop.f32.mrf.mxu0
      %v4976 = vadd.f32 %v4750, %v4975
      %4977 = vmatmul.bf16.gmra.mxu0 %v4893
      %v4978 = vpop.f32.mrf.mxu0
      %v4979 = vadd.f32 %v4750, %v4978
      %v4980 = vpop.f32.mrf.mxu0
      %v4981 = vadd.f32 %v4750, %v4980
      %4982 = vmatmul.bf16.gmra.mxu0 %v4896
      %v4983 = vpop.f32.mrf.mxu0
      %v4984 = vadd.f32 %v4750, %v4983
      %v4985 = vpop.f32.mrf.mxu0
      %v4986 = vadd.f32 %v4750, %v4985
      %4987 = vmatmul.bf16.gmra.mxu0 %v4899
      %v4988 = vpop.f32.mrf.mxu0
      %v4989 = vadd.f32 %v4750, %v4988
      %v4990 = vpop.f32.mrf.mxu0
      %v4991 = vadd.f32 %v4750, %v4990
      %4992 = vdwg.mxu0
      %v4993 = vpack.c.bf16 %v4914, %v4914
      %v4994 = vpack.c.bf16 %v4916, %v4916
      %v4995 = vpack.c.bf16 %v4919, %v4919
      %v4996 = vpack.c.bf16 %v4921, %v4921
      %v4997 = vpack.c.bf16 %v4924, %v4924
      %v4998 = vpack.c.bf16 %v4926, %v4926
      %v4999 = vpack.c.bf16 %v4929, %v4929
      %v5000 = vpack.c.bf16 %v4931, %v4931
      %v5001 = vpack.c.bf16 %v4934, %v4934
      %v5002 = vpack.c.bf16 %v4936, %v4936
      %v5003 = vpack.c.bf16 %v4939, %v4939
      %v5004 = vpack.c.bf16 %v4941, %v4941
      %v5005 = vpack.c.bf16 %v4944, %v4944
      %v5006 = vpack.c.bf16 %v4946, %v4946
      %v5007 = vpack.c.bf16 %v4949, %v4949
      %v5008 = vpack.c.bf16 %v4951, %v4951
      %v5009 = vpack.c.bf16 %v4954, %v4954
      %v5010 = vpack.c.bf16 %v4956, %v4956
      %v5011 = vpack.c.bf16 %v4959, %v4959
      %v5012 = vpack.c.bf16 %v4961, %v4961
      %v5013 = vpack.c.bf16 %v4964, %v4964
      %v5014 = vpack.c.bf16 %v4966, %v4966
      %v5015 = vpack.c.bf16 %v4969, %v4969
      %v5016 = vpack.c.bf16 %v4971, %v4971
      %v5017 = vpack.c.bf16 %v4974, %v4974
      %v5018 = vpack.c.bf16 %v4976, %v4976
      %v5019 = vpack.c.bf16 %v4979, %v4979
      %v5020 = vpack.c.bf16 %v4981, %v4981
      %v5021 = vpack.c.bf16 %v4984, %v4984
      %v5022 = vpack.c.bf16 %v4986, %v4986
      %v5023 = vpack.c.bf16 %v4989, %v4989
      %v5024 = vpack.c.bf16 %v4991, %v4991
      %5025 = vst.msk [vmem:[%s224] sm:$0xf] %vm258, %v4993
      %5026 = vst.msk [vmem:[%s224 + $0x4] sm:$0xf] %vm258, %v4994
      %5027 = vst.msk [vmem:[%s224 + $0x8] sm:$0xf] %vm258, %v4995
      %5028 = vst.msk [vmem:[%s224 + $0xc] sm:$0xf] %vm258, %v4996
      %5029 = vst.msk [vmem:[%s224 + $0x10] sm:$0xf] %vm258, %v4997
      %5030 = vst.msk [vmem:[%s224 + $0x14] sm:$0xf] %vm258, %v4998
      %5031 = vst.msk [vmem:[%s224 + $0x18] sm:$0xf] %vm258, %v4999
      %5032 = vst.msk [vmem:[%s224 + $0x1c] sm:$0xf] %vm258, %v5000
      %5033 = vst.msk [vmem:[%s224 + $0x20] sm:$0xf] %vm258, %v5001
      %5034 = vst.msk [vmem:[%s224 + $0x24] sm:$0xf] %vm258, %v5002
      %5035 = vst.msk [vmem:[%s224 + $0x28] sm:$0xf] %vm258, %v5003
      %5036 = vst.msk [vmem:[%s224 + $0x2c] sm:$0xf] %vm258, %v5004
      %5037 = vst.msk [vmem:[%s224 + $0x30] sm:$0xf] %vm258, %v5005
      %5038 = vst.msk [vmem:[%s224 + $0x34] sm:$0xf] %vm258, %v5006
      %5039 = vst.msk [vmem:[%s224 + $0x38] sm:$0xf] %vm258, %v5007
      %5040 = vst.msk [vmem:[%s224 + $0x3c] sm:$0xf] %vm258, %v5008
      %5041 = vst.msk [vmem:[%s224 + $0x40] sm:$0xf] %vm258, %v5009
      %5042 = vst.msk [vmem:[%s224 + $0x44] sm:$0xf] %vm258, %v5010
      %5043 = vst.msk [vmem:[%s224 + $0x48] sm:$0xf] %vm258, %v5011
      %5044 = vst.msk [vmem:[%s224 + $0x4c] sm:$0xf] %vm258, %v5012
      %5045 = vst.msk [vmem:[%s224 + $0x50] sm:$0xf] %vm258, %v5013
      %5046 = vst.msk [vmem:[%s224 + $0x54] sm:$0xf] %vm258, %v5014
      %5047 = vst.msk [vmem:[%s224 + $0x58] sm:$0xf] %vm258, %v5015
      %5048 = vst.msk [vmem:[%s224 + $0x5c] sm:$0xf] %vm258, %v5016
      %5049 = vst.msk [vmem:[%s224 + $0x60] sm:$0xf] %vm258, %v5017
      %5050 = vst.msk [vmem:[%s224 + $0x64] sm:$0xf] %vm258, %v5018
      %5051 = vst.msk [vmem:[%s224 + $0x68] sm:$0xf] %vm258, %v5019
      %5052 = vst.msk [vmem:[%s224 + $0x6c] sm:$0xf] %vm258, %v5020
      %5053 = vst.msk [vmem:[%s224 + $0x70] sm:$0xf] %vm258, %v5021
      %5054 = vst.msk [vmem:[%s224 + $0x74] sm:$0xf] %vm258, %v5022
      %5055 = vst.msk [vmem:[%s224 + $0x78] sm:$0xf] %vm258, %v5023
      %5056 = vst.msk [vmem:[%s224 + $0x7c] sm:$0xf] %vm258, %v5024
      %p5057 = scmp.lt.s32.totalorder %s16, 1
      %s5058 = scalar_select %p5057, %s16, 1
      %s5059 = smul.addr %s5058, 32
      %s5060 = smul.addr %s5059, 4
      %s5061 = scalar_lea.vmem %s5, %s5060
      // Predicated region
      $region41: #{reduction_b_v4.8} parent=39 // pred_check
        %p5062 = pneg %p144
      $region42: #{reduction_b_v4.8} parent=39 // pred_check_branch
        %5064 = sbr.rel (%p5062) target = $region44
      $region43: #{reduction_b_v4.8} parent=39 // pred_region
        _
      $region44: #{reduction_b_v4.8} parent=39 // pred_fallthru
        _
    $region40: #{reduction_b_v4.8} parent=5 // pred_fallthru
      _
    %p5065 = scmp.le.s32.totalorder 2, %s11
    // Predicated region
    $region45: #{reduction_b_v4.8} parent=5 // pred_check
      %p5066 = pneg %p5065
    $region46: #{reduction_b_v4.8} parent=5 // pred_check_branch
      %5068 = sbr.rel (%p5066) target = $region48
    $region47: #{reduction_b_v4.8} parent=5 // pred_region
      %s5069 = ssub.s32 %s11, 2
      // Predicated region
      $region49: #{reduction_b_v4.8} parent=47 // pred_check
        %p5070 = pneg %p150
      $region50: #{reduction_b_v4.8} parent=47 // pred_check_branch
        %5072 = sbr.rel (%p5070) target = $region52
      $region51: #{reduction_b_v4.8} parent=47 // pred_region
        %p5073 = scmp.lt.s32.totalorder %s17, 1
        %s5074 = scalar_select %p5073, %s17, 1
        %s5075 = smul.addr %s5074, 32
        %s5076 = smul.addr %s5075, 4
        %s5077 = scalar_lea.vmem %s5, %s5076
      $region52: #{reduction_b_v4.8} parent=47 // pred_fallthru
        _
    $region48: #{reduction_b_v4.8} parent=5 // pred_fallthru
      _
  $region6: #{reduction_b_v4.8} parent=0 // loop_footer
    %s15 = sadd.s32 1, %s11
  $region7: #{reduction_b_v4.8} parent=0 // loop_footer_branch
    %10 = sbr.rel target = $region3
  $region8: #{reduction_b_v4.8} parent=0 // loop_exit
    _

</llo_original>
